<compile_context>
chip_gen: v7x
topology: tpu7x:2x2x1
jax: 0.10.0
libtpu: 0.0.40
codegen_flags: <defaults>
</compile_context>

<pallas_src>
import functools

import jax
import jax.numpy as jnp
from jax.experimental import pallas as pl
from jax.experimental.pallas import tpu as pltpu


def _round_up(x, m):
    return (x + m - 1) // m * m


# ---------------------------------------------------------------------------
# Kernel 1: tiled matmul + folded BN + activation  (all 1x1 convolutions)
# ---------------------------------------------------------------------------

def _mm_bn_act_kernel(x_ref, w_ref, scale_ref, shift_ref, o_ref, acc_ref, *, act):
    k = pl.program_id(1)

    @pl.when(k == 0)
    def _():
        acc_ref[...] = jnp.zeros_like(acc_ref)

    acc_ref[...] += jnp.dot(x_ref[...], w_ref[...],
                            preferred_element_type=jnp.float32)

    @pl.when(k == pl.num_programs(1) - 1)
    def _():
        y = acc_ref[...] * scale_ref[...] + shift_ref[...]
        if act == "relu":
            y = jnp.maximum(y, 0.0)
        elif act == "sigmoid":
            y = pl.reciprocal(1.0 + jnp.exp(-y), approx=True)
        o_ref[...] = y.astype(o_ref.dtype)


def matmul_bn_act(x, w, scale, shift, act="relu", tm_max=256, tk_max=1152):
    """x: [M, K], w: [K, N] (K, N multiples of 128) -> [M, N] float32."""
    m, k = x.shape
    n = w.shape[1]
    x = x.astype(jnp.bfloat16)
    w = w.astype(jnp.bfloat16)

    tm = min(tm_max, _round_up(m, 8))
    m_pad = _round_up(m, tm)
    if m_pad != m:
        x = jnp.pad(x, ((0, m_pad - m), (0, 0)))

    tk = k
    if k > tk_max:
        for cand in range(tk_max - tk_max % 128, 0, -128):
            if k % cand == 0:
                tk = cand
                break

    grid = (m_pad // tm, k // tk)
    kern = functools.partial(_mm_bn_act_kernel, act=act)
    out = pl.pallas_call(
        kern,
        out_shape=jax.ShapeDtypeStruct((m_pad, n), jnp.float32),
        grid=grid,
        in_specs=[
            pl.BlockSpec((tm, tk), lambda i, j: (i, j)),
            pl.BlockSpec((tk, n), lambda i, j: (j, 0)),
            pl.BlockSpec((1, n), lambda i, j: (0, 0)),
            pl.BlockSpec((1, n), lambda i, j: (0, 0)),
        ],
        out_specs=pl.BlockSpec((tm, n), lambda i, j: (i, 0)),
        scratch_shapes=[pltpu.VMEM((tm, n), jnp.float32)],
        compiler_params=pltpu.CompilerParams(
            dimension_semantics=("parallel", "arbitrary"),
            vmem_limit_bytes=32 * 1024 * 1024,
        ),
    )(x, w, scale.reshape(1, n), shift.reshape(1, n))
    return out[:m] if m_pad != m else out


# ---------------------------------------------------------------------------
# Kernel 2: direct 3x3 conv + folded BN + ReLU (no HBM im2col blow-up)
# ---------------------------------------------------------------------------

def _conv3x3_bn_relu_kernel(x_ref, w_ref, scale_ref, shift_ref, o_ref, *, h, wp):
    """x_ref:  [1, (h+2)*wp + 2, C]  zero-padded image, rows flattened (f32)
       w_ref:  [3, 3, C, OC]         taps ordered (dy, dx, cin, cout) (bf16)
       o_ref:  [1, h*wp, OC]         'extended' output; columns >= W of each
                                     spatial row are garbage and get sliced off."""
    x = x_ref[0]
    n_rows = h * wp
    acc = None
    for dy in range(3):
        for dx in range(3):
            off = dy * wp + dx
            xs = x[off:off + n_rows, :].astype(jnp.bfloat16)
            part = jnp.dot(xs, w_ref[dy, dx], preferred_element_type=jnp.float32)
            acc = part if acc is None else acc + part
    y = acc * scale_ref[...] + shift_ref[...]
    o_ref[0] = jnp.maximum(y, 0.0)


def conv3x3_bn_relu(x_nhwc, w_oihw, scale, shift):
    """3x3 stride-1 pad-1 ConvBNReLU, NHWC.  Activation is read from HBM once per
    image (vs. a 9x im2col round trip); taps are accumulated on the MXU in VMEM."""
    b, h, w, c = x_nhwc.shape
    oc = w_oihw.shape[0]
    wp = w + 2
    xp = jnp.pad(x_nhwc, ((0, 0), (1, 1), (1, 1), (0, 0)))
    xpf = xp.reshape(b, (h + 2) * wp, c)
    # 2 extra zero rows: only read by the discarded "garbage" columns of the last row.
    xpf = jnp.pad(xpf, ((0, 0), (0, 2), (0, 0)))
    wt = jnp.transpose(w_oihw, (2, 3, 1, 0)).astype(jnp.bfloat16)   # [3,3,C,OC]

    # TODO(synk): for production resolutions, add a row-tile grid axis with a
    #             2-row halo so each image is pipelined in TH-row chunks.
    kern = functools.partial(_conv3x3_bn_relu_kernel, h=h, wp=wp)
    out_ext = pl.pallas_call(
        kern,
        out_shape=jax.ShapeDtypeStruct((b, h * wp, oc), jnp.float32),
        grid=(b,),
        in_specs=[
            pl.BlockSpec((1, (h + 2) * wp + 2, c), lambda i: (i, 0, 0)),
            pl.BlockSpec((3, 3, c, oc), lambda i: (0, 0, 0, 0)),
            pl.BlockSpec((1, oc), lambda i: (0, 0)),
            pl.BlockSpec((1, oc), lambda i: (0, 0)),
        ],
        out_specs=pl.BlockSpec((1, h * wp, oc), lambda i: (i, 0, 0)),
        compiler_params=pltpu.CompilerParams(
            dimension_semantics=("parallel",),
            vmem_limit_bytes=32 * 1024 * 1024,
        ),
    )(xpf, wt, scale.reshape(1, oc), shift.reshape(1, oc))
    return out_ext.reshape(b, h, wp, oc)[:, :, :w, :]


# ---------------------------------------------------------------------------
# Kernel 3: StripAttentionModule core (bmm -> softmax -> bmm -> residual)
# ---------------------------------------------------------------------------

def _strip_attn_kernel(qp_ref, k_ref, vp_ref, x_ref, o_ref):
    qp = qp_ref[0]                      # [W, Cm]   (H-avg-pooled, permuted) bf16
    kk = k_ref[0]                       # [Cm, HW]  bf16
    vp = vp_ref[0]                      # [Cout, W] (H-avg-pooled) bf16
    att = jnp.dot(qp, kk, preferred_element_type=jnp.float32)      # [W, HW]
    # torch softmax(dim=1) on [B, W, HW]  ==  softmax over axis 0 here
    att = att - jnp.max(att, axis=0, keepdims=True)
    e = jnp.exp(att)
    att = e * pl.reciprocal(jnp.sum(e, axis=0, keepdims=True), approx=True)
    aug = jnp.dot(vp, att.astype(jnp.bfloat16),
                  preferred_element_type=jnp.float32)              # [Cout, HW]
    o_ref[0] = (x_ref[0] + aug).astype(o_ref.dtype)


def strip_attention(qp, k, vp, x_flat):
    """qp: [B, W, Cm], k: [B, Cm, HW], vp: [B, Cout, W], x_flat: [B, Cout, HW]."""
    b, w, cm = qp.shape
    hw = k.shape[2]
    cout = vp.shape[1]
    # TODO(synk): at production H16*W16, add an HW-tiling grid axis (softmax is
    #             over W, so HW columns are independent).
    return pl.pallas_call(
        _strip_attn_kernel,
        out_shape=jax.ShapeDtypeStruct((b, cout, hw), jnp.float32),
        grid=(b,),
        in_specs=[
            pl.BlockSpec((1, w, cm), lambda i: (i, 0, 0)),
            pl.BlockSpec((1, cm, hw), lambda i: (i, 0, 0)),
            pl.BlockSpec((1, cout, w), lambda i: (i, 0, 0)),
            pl.BlockSpec((1, cout, hw), lambda i: (i, 0, 0)),
        ],
        out_specs=pl.BlockSpec((1, cout, hw), lambda i: (i, 0, 0)),
        compiler_params=pltpu.CompilerParams(dimension_semantics=("parallel",)),
    )(qp.astype(jnp.bfloat16), k.astype(jnp.bfloat16),
      vp.astype(jnp.bfloat16), x_flat)


# ---------------------------------------------------------------------------
# Kernel 4: attention-weighted feature fusion (elementwise)
# ---------------------------------------------------------------------------

def _fuse_atten_kernel(f16_ref, f32up_ref, atten_ref, f32out_ref, sum_ref):
    """feat32_up = upsampled(feat32)*atten ; feat16_sum = feat16*(1-atten) + feat32_up.
       (atten is spatially constant, so scaling commutes with nearest upsampling.)"""
    atten = atten_ref[0]                          # [1, C]
    f32s = f32up_ref[0] * atten                   # [HW, C]
    f32out_ref[0] = f32s
    sum_ref[0] = f16_ref[0] * (1.0 - atten) + f32s


def fuse_atten(f16_flat, f32up_flat, atten):
    """f16_flat/f32up_flat: [B, HW, C], atten: [B, 1, C] -> (feat32_up, feat16_sum)."""
    b, hw, c = f16_flat.shape
    return pl.pallas_call(
        _fuse_atten_kernel,
        out_shape=(
            jax.ShapeDtypeStruct((b, hw, c), jnp.float32),
            jax.ShapeDtypeStruct((b, hw, c), jnp.float32),
        ),
        grid=(b,),
        in_specs=[
            pl.BlockSpec((1, hw, c), lambda i: (i, 0, 0)),
            pl.BlockSpec((1, hw, c), lambda i: (i, 0, 0)),
            pl.BlockSpec((1, 1, c), lambda i: (i, 0, 0)),
        ],
        out_specs=(
            pl.BlockSpec((1, hw, c), lambda i: (i, 0, 0)),
            pl.BlockSpec((1, hw, c), lambda i: (i, 0, 0)),
        ),
        compiler_params=pltpu.CompilerParams(dimension_semantics=("parallel",)),
    )(f16_flat, f32up_flat, atten)


# ---------------------------------------------------------------------------
# Glue: nearest upsample, parameters
# ---------------------------------------------------------------------------

def upsample_nearest(x_nhwc, out_h, out_w):
    """Matches F.interpolate(mode='nearest'): src = floor(dst * in / out)."""
    b, h, w, c = x_nhwc.shape
    if out_h % h == 0 and out_w % w == 0:
        rh, rw = out_h // h, out_w // w
        x = jnp.broadcast_to(x_nhwc[:, :, None, :, None, :], (b, h, rh, w, rw, c))
        return x.reshape(b, out_h, out_w, c)
    hi = (jnp.arange(out_h) * h) // out_h
    wi = (jnp.arange(out_w) * w) // out_w
    return x_nhwc[:, hi][:, :, wi]


def _bn_fold(c, tag):
    idx = jnp.arange(c, dtype=jnp.float32)
    gamma = 1.0 + 0.05 * jnp.sin(idx + tag)
    beta = 0.02 * jnp.cos(idx + tag)
    mean = 0.01 * jnp.sin(0.5 * idx + tag)
    var = 1.0 + 0.1 * jnp.cos(0.3 * idx + tag) ** 2
    eps = 1e-5
    scale = gamma / jnp.sqrt(var + eps)
    shift = beta - mean * scale
    return scale, shift


def make_params():
    key = jax.random.PRNGKey(0)
    keys = jax.random.split(key, 9)

    def conv_w(k, oc, ic, ks):
        # kaiming_normal_(a=1): std = sqrt(2 / ((1 + a^2) * fan_in)) = 1/sqrt(fan_in)
        fan_in = ic * ks * ks
        return jax.random.normal(k, (oc, ic, ks, ks), jnp.float32) / jnp.sqrt(
            jnp.float32(fan_in))

    p = {}
    p["head16_w"] = conv_w(keys[0], 128, 256, 3); p["head16_bn"] = _bn_fold(128, 0.0)
    p["head32_w"] = conv_w(keys[1], 128, 512, 3); p["head32_bn"] = _bn_fold(128, 1.0)
    p["afm_conv_w"] = conv_w(keys[2], 128, 640, 1); p["afm_conv_bn"] = _bn_fold(128, 2.0)
    p["afm_atten_w"] = conv_w(keys[3], 128, 128, 1); p["afm_atten_bn"] = _bn_fold(128, 3.0)
    p["head1_w"] = conv_w(keys[4], 128, 128, 3); p["head1_bn"] = _bn_fold(128, 4.0)
    p["sam_c1_w"] = conv_w(keys[5], 64, 128, 1); p["sam_c1_bn"] = _bn_fold(64, 5.0)
    p["sam_c2_w"] = conv_w(keys[6], 64, 128, 1); p["sam_c2_bn"] = _bn_fold(64, 6.0)
    p["sam_c3_w"] = conv_w(keys[7], 128, 128, 1); p["sam_c3_bn"] = _bn_fold(128, 7.0)
    p["head2_w"] = conv_w(keys[8], 128, 128, 3); p["head2_bn"] = _bn_fold(128, 8.0)
    return p


# ---------------------------------------------------------------------------
# AttaNetHead forward (post-backbone)
# ---------------------------------------------------------------------------

def attanet_head_forward(params, feat8, feat16, feat32):
    """feat8: [B,128,H8,W8], feat16: [B,256,H16,W16], feat32: [B,512,H32,W32] (NCHW)."""
    f16 = jnp.transpose(feat16, (0, 2, 3, 1))      # [B,H16,W16,256]
    f32 = jnp.transpose(feat32, (0, 2, 3, 1))      # [B,H32,W32,512]
    b, h16, w16, _ = f16.shape
    h8, w8 = feat8.shape[2], feat8.shape[3]

    # feat16 = conv_head16(feat16)
    f16c = conv3x3_bn_relu(f16, params["head16_w"], *params["head16_bn"])

    # ---- AttentionFusionModule(feat16, feat32) ----
    f32_up_raw = upsample_nearest(f32, h16, w16)                   # [B,H16,W16,512]
    fcat = jnp.concatenate([f16c, f32_up_raw], axis=-1)            # [B,H16,W16,640]
    feat = matmul_bn_act(fcat.reshape(b * h16 * w16, 640),
                         params["afm_conv_w"].reshape(128, 640).T,
                         *params["afm_conv_bn"], act="relu")       # [B*HW,128]
    pooled = jnp.mean(feat.reshape(b, h16 * w16, 128), axis=1)     # [B,128]
    # Tiny squeeze matmul ([B,128] @ [128,128]) in plain XLA: a Pallas launch
    # here is pure overhead (per perf review).
    aw = params["afm_atten_w"].reshape(128, 128).T
    a_scale, a_shift = params["afm_atten_bn"]
    atten = jax.nn.sigmoid(pooled @ aw * a_scale + a_shift)        # [B,128]

    # feat32 = conv_head32(feat32)
    f32c = conv3x3_bn_relu(f32, params["head32_w"], *params["head32_bn"])
    f32c_up = upsample_nearest(f32c, h16, w16)                     # [B,H16,W16,128]

    # feat32*atten, upsample, feat16*(1-atten), sum  (fused Pallas elementwise kernel)
    c = 128
    feat32_up_flat, feat16_sum_flat = fuse_atten(
        f16c.reshape(b, h16 * w16, c),
        f32c_up.reshape(b, h16 * w16, c),
        atten.reshape(b, 1, c),
    )
    feat32_up = feat32_up_flat.reshape(b, h16, w16, c)
    feat16_sum = feat16_sum_flat.reshape(b, h16, w16, c)

    # feat16_sum = conv_head1(feat16_sum)
    feat16_sum = conv3x3_bn_relu(feat16_sum, params["head1_w"], *params["head1_bn"])

    # ---- StripAttentionModule (q/k/v 1x1 convs fused into one N=256 matmul) ----
    x = feat16_sum                                                  # [B,H16,W16,128]
    qkv_w = jnp.concatenate(
        [params["sam_c1_w"].reshape(64, 128),
         params["sam_c2_w"].reshape(64, 128),
         params["sam_c3_w"].reshape(128, 128)], axis=0).T           # [128, 256]
    qkv_scale = jnp.concatenate([params["sam_c1_bn"][0],
                                 params["sam_c2_bn"][0],
                                 params["sam_c3_bn"][0]])
    qkv_shift = jnp.concatenate([params["sam_c1_bn"][1],
                                 params["sam_c2_bn"][1],
                                 params["sam_c3_bn"][1]])
    qkv = matmul_bn_act(x.reshape(b * h16 * w16, 128), qkv_w,
                        qkv_scale, qkv_shift, act="relu")           # [B*HW, 256]
    qkv = qkv.reshape(b, h16, w16, 256)
    q = qkv[..., :64]
    k = qkv[..., 64:128]
    v = qkv[..., 128:]

    qp = jnp.mean(q, axis=1)                                        # avg_pool [h,1] -> [B,W,64]
    kf = jnp.transpose(k, (0, 3, 1, 2)).reshape(b, 64, h16 * w16)   # [B, 64, HW]
    vp = jnp.transpose(jnp.mean(v, axis=1), (0, 2, 1))              # [B, 128, W]
    xf = jnp.transpose(x, (0, 3, 1, 2)).reshape(b, 128, h16 * w16)  # [B, 128, HW]
    sam_flat = strip_attention(qp, kf, vp, xf)                      # [B, 128, HW]
    sam_out = jnp.transpose(sam_flat.reshape(b, 128, h16, w16), (0, 2, 3, 1))

    # feat16_up = conv_head2(interpolate(feat16_sum, (h8, w8)))
    feat16_up = upsample_nearest(sam_out, h8, w8)
    feat16_up = conv3x3_bn_relu(feat16_up, params["head2_w"], *params["head2_bn"])

    out16 = jnp.transpose(feat16_up, (0, 3, 1, 2))                  # [B,128,H8,W8]
    out32 = jnp.transpose(feat32_up, (0, 3, 1, 2))                  # [B,128,H16,W16]
    return out16, out32, feat8


# ---------------------------------------------------------------------------
if __name__ == "__main__":
    B = 2
    key = jax.random.PRNGKey(0)
    k1, k2, k3 = jax.random.split(key, 3)
    # ResNet18 backbone feature maps (channels 128/256/512, strides 8/16/32)
    feat8 = jax.random.normal(k1, (B, 128, 8, 8), jnp.float32)
    feat16 = jax.random.normal(k2, (B, 256, 4, 4), jnp.float32)
    feat32 = jax.random.normal(k3, (B, 512, 2, 2), jnp.float32)

    params = make_params()
    fwd = jax.jit(functools.partial(attanet_head_forward, params))
    out16, out32, out8 = fwd(feat8, feat16, feat32)
    jax.block_until_ready((out16, out32, out8))

    assert out16.shape == (B, 128, 8, 8)
    assert out32.shape == (B, 128, 4, 4)
    assert out8.shape == (B, 128, 8, 8)
    assert jnp.all(jnp.isfinite(out16)) and jnp.all(jnp.isfinite(out32))
    print("KERNEL_OK")
</pallas_src>

<mosaic_0001>
module attributes {stable_mosaic.version = 11 : i64} {
  func.func @_conv3x3_bn_relu_kernel(%arg0: i32, %arg1: memref<1x38x256xf32, #tpu.memory_space<vmem>>, %arg2: memref<3x3x256x128xbf16, #tpu.memory_space<vmem>>, %arg3: memref<1x128xf32, #tpu.memory_space<vmem>>, %arg4: memref<1x128xf32, #tpu.memory_space<vmem>>, %arg5: memref<1x24x128xf32, #tpu.memory_space<vmem>>) attributes {dimension_semantics = [#tpu.dimension_semantics<parallel>], iteration_bounds = array<i64: 2>, scalar_prefetch = 0 : i64, scratch_operands = 0 : i64, tpu.core_type = #tpu.core_type<tc>, window_params = [{transform_indices = @transform_0, window_bounds = array<i64: 1, 38, 256>}, {pipeline_mode = #tpu.pipeline_mode<synchronous>, transform_indices = @transform_1, window_bounds = array<i64: 3, 3, 256, 128>}, {pipeline_mode = #tpu.pipeline_mode<synchronous>, transform_indices = @transform_2, window_bounds = array<i64: 1, 128>}, {pipeline_mode = #tpu.pipeline_mode<synchronous>, transform_indices = @transform_3, window_bounds = array<i64: 1, 128>}, {transform_indices = @transform_4, window_bounds = array<i64: 1, 24, 128>}]} {
    %c0 = arith.constant 0 : index
    %c0_0 = arith.constant 0 : index
    %c0_1 = arith.constant 0 : index
    %0 = vector.load %arg1[%c0, %c0_0, %c0_1] : memref<1x38x256xf32, #tpu.memory_space<vmem>>, vector<1x38x256xf32>
    %1 = vector.shape_cast %0 : vector<1x38x256xf32> to vector<38x256xf32>
    %2 = vector.extract_strided_slice %1 {offsets = [0, 0], sizes = [24, 256], strides = [1, 1]} : vector<38x256xf32> to vector<24x256xf32>
    %3 = arith.truncf %2 : vector<24x256xf32> to vector<24x256xbf16>
    %c0_2 = arith.constant 0 : index
    %c0_3 = arith.constant 0 : index
    %c0_4 = arith.constant 0 : index
    %c0_5 = arith.constant 0 : index
    %4 = vector.load %arg2[%c0_2, %c0_3, %c0_4, %c0_5] : memref<3x3x256x128xbf16, #tpu.memory_space<vmem>>, vector<1x1x256x128xbf16>
    %5 = vector.shape_cast %4 : vector<1x1x256x128xbf16> to vector<256x128xbf16>
    %cst = arith.constant dense<0.000000e+00> : vector<24x128xf32>
    %6 = tpu.matmul %3, %5, %cst {dimension_numbers = #tpu.dot_dimension_numbers<[1], [0], [0], [1], [0, 0, 1, 1], [], []>} : vector<24x256xbf16>, vector<256x128xbf16>, vector<24x128xf32> -> vector<24x128xf32>
    %7 = vector.extract_strided_slice %1 {offsets = [1, 0], sizes = [24, 256], strides = [1, 1]} : vector<38x256xf32> to vector<24x256xf32>
    %8 = arith.truncf %7 : vector<24x256xf32> to vector<24x256xbf16>
    %c0_6 = arith.constant 0 : index
    %c1 = arith.constant 1 : index
    %c0_7 = arith.constant 0 : index
    %c0_8 = arith.constant 0 : index
    %9 = vector.load %arg2[%c0_6, %c1, %c0_7, %c0_8] : memref<3x3x256x128xbf16, #tpu.memory_space<vmem>>, vector<1x1x256x128xbf16>
    %10 = vector.shape_cast %9 : vector<1x1x256x128xbf16> to vector<256x128xbf16>
    %cst_9 = arith.constant dense<0.000000e+00> : vector<24x128xf32>
    %11 = tpu.matmul %8, %10, %cst_9 {dimension_numbers = #tpu.dot_dimension_numbers<[1], [0], [0], [1], [0, 0, 1, 1], [], []>} : vector<24x256xbf16>, vector<256x128xbf16>, vector<24x128xf32> -> vector<24x128xf32>
    %12 = arith.addf %6, %11 : vector<24x128xf32>
    %13 = vector.extract_strided_slice %1 {offsets = [2, 0], sizes = [24, 256], strides = [1, 1]} : vector<38x256xf32> to vector<24x256xf32>
    %14 = arith.truncf %13 : vector<24x256xf32> to vector<24x256xbf16>
    %c0_10 = arith.constant 0 : index
    %c2 = arith.constant 2 : index
    %c0_11 = arith.constant 0 : index
    %c0_12 = arith.constant 0 : index
    %15 = vector.load %arg2[%c0_10, %c2, %c0_11, %c0_12] : memref<3x3x256x128xbf16, #tpu.memory_space<vmem>>, vector<1x1x256x128xbf16>
    %16 = vector.shape_cast %15 : vector<1x1x256x128xbf16> to vector<256x128xbf16>
    %cst_13 = arith.constant dense<0.000000e+00> : vector<24x128xf32>
    %17 = tpu.matmul %14, %16, %cst_13 {dimension_numbers = #tpu.dot_dimension_numbers<[1], [0], [0], [1], [0, 0, 1, 1], [], []>} : vector<24x256xbf16>, vector<256x128xbf16>, vector<24x128xf32> -> vector<24x128xf32>
    %18 = arith.addf %12, %17 : vector<24x128xf32>
    %19 = vector.extract_strided_slice %1 {offsets = [6, 0], sizes = [24, 256], strides = [1, 1]} : vector<38x256xf32> to vector<24x256xf32>
    %20 = arith.truncf %19 : vector<24x256xf32> to vector<24x256xbf16>
    %c1_14 = arith.constant 1 : index
    %c0_15 = arith.constant 0 : index
    %c0_16 = arith.constant 0 : index
    %c0_17 = arith.constant 0 : index
    %21 = vector.load %arg2[%c1_14, %c0_15, %c0_16, %c0_17] : memref<3x3x256x128xbf16, #tpu.memory_space<vmem>>, vector<1x1x256x128xbf16>
    %22 = vector.shape_cast %21 : vector<1x1x256x128xbf16> to vector<256x128xbf16>
    %cst_18 = arith.constant dense<0.000000e+00> : vector<24x128xf32>
    %23 = tpu.matmul %20, %22, %cst_18 {dimension_numbers = #tpu.dot_dimension_numbers<[1], [0], [0], [1], [0, 0, 1, 1], [], []>} : vector<24x256xbf16>, vector<256x128xbf16>, vector<24x128xf32> -> vector<24x128xf32>
    %24 = arith.addf %18, %23 : vector<24x128xf32>
    %25 = vector.extract_strided_slice %1 {offsets = [7, 0], sizes = [24, 256], strides = [1, 1]} : vector<38x256xf32> to vector<24x256xf32>
    %26 = arith.truncf %25 : vector<24x256xf32> to vector<24x256xbf16>
    %c1_19 = arith.constant 1 : index
    %c1_20 = arith.constant 1 : index
    %c0_21 = arith.constant 0 : index
    %c0_22 = arith.constant 0 : index
    %27 = vector.load %arg2[%c1_19, %c1_20, %c0_21, %c0_22] : memref<3x3x256x128xbf16, #tpu.memory_space<vmem>>, vector<1x1x256x128xbf16>
    %28 = vector.shape_cast %27 : vector<1x1x256x128xbf16> to vector<256x128xbf16>
    %cst_23 = arith.constant dense<0.000000e+00> : vector<24x128xf32>
    %29 = tpu.matmul %26, %28, %cst_23 {dimension_numbers = #tpu.dot_dimension_numbers<[1], [0], [0], [1], [0, 0, 1, 1], [], []>} : vector<24x256xbf16>, vector<256x128xbf16>, vector<24x128xf32> -> vector<24x128xf32>
    %30 = arith.addf %24, %29 : vector<24x128xf32>
    %31 = vector.extract_strided_slice %1 {offsets = [8, 0], sizes = [24, 256], strides = [1, 1]} : vector<38x256xf32> to vector<24x256xf32>
    %32 = arith.truncf %31 : vector<24x256xf32> to vector<24x256xbf16>
    %c1_24 = arith.constant 1 : index
    %c2_25 = arith.constant 2 : index
    %c0_26 = arith.constant 0 : index
    %c0_27 = arith.constant 0 : index
    %33 = vector.load %arg2[%c1_24, %c2_25, %c0_26, %c0_27] : memref<3x3x256x128xbf16, #tpu.memory_space<vmem>>, vector<1x1x256x128xbf16>
    %34 = vector.shape_cast %33 : vector<1x1x256x128xbf16> to vector<256x128xbf16>
    %cst_28 = arith.constant dense<0.000000e+00> : vector<24x128xf32>
    %35 = tpu.matmul %32, %34, %cst_28 {dimension_numbers = #tpu.dot_dimension_numbers<[1], [0], [0], [1], [0, 0, 1, 1], [], []>} : vector<24x256xbf16>, vector<256x128xbf16>, vector<24x128xf32> -> vector<24x128xf32>
    %36 = arith.addf %30, %35 : vector<24x128xf32>
    %37 = vector.extract_strided_slice %1 {offsets = [12, 0], sizes = [24, 256], strides = [1, 1]} : vector<38x256xf32> to vector<24x256xf32>
    %38 = arith.truncf %37 : vector<24x256xf32> to vector<24x256xbf16>
    %c2_29 = arith.constant 2 : index
    %c0_30 = arith.constant 0 : index
    %c0_31 = arith.constant 0 : index
    %c0_32 = arith.constant 0 : index
    %39 = vector.load %arg2[%c2_29, %c0_30, %c0_31, %c0_32] : memref<3x3x256x128xbf16, #tpu.memory_space<vmem>>, vector<1x1x256x128xbf16>
    %40 = vector.shape_cast %39 : vector<1x1x256x128xbf16> to vector<256x128xbf16>
    %cst_33 = arith.constant dense<0.000000e+00> : vector<24x128xf32>
    %41 = tpu.matmul %38, %40, %cst_33 {dimension_numbers = #tpu.dot_dimension_numbers<[1], [0], [0], [1], [0, 0, 1, 1], [], []>} : vector<24x256xbf16>, vector<256x128xbf16>, vector<24x128xf32> -> vector<24x128xf32>
    %42 = arith.addf %36, %41 : vector<24x128xf32>
    %43 = vector.extract_strided_slice %1 {offsets = [13, 0], sizes = [24, 256], strides = [1, 1]} : vector<38x256xf32> to vector<24x256xf32>
    %44 = arith.truncf %43 : vector<24x256xf32> to vector<24x256xbf16>
    %c2_34 = arith.constant 2 : index
    %c1_35 = arith.constant 1 : index
    %c0_36 = arith.constant 0 : index
    %c0_37 = arith.constant 0 : index
    %45 = vector.load %arg2[%c2_34, %c1_35, %c0_36, %c0_37] : memref<3x3x256x128xbf16, #tpu.memory_space<vmem>>, vector<1x1x256x128xbf16>
    %46 = vector.shape_cast %45 : vector<1x1x256x128xbf16> to vector<256x128xbf16>
    %cst_38 = arith.constant dense<0.000000e+00> : vector<24x128xf32>
    %47 = tpu.matmul %44, %46, %cst_38 {dimension_numbers = #tpu.dot_dimension_numbers<[1], [0], [0], [1], [0, 0, 1, 1], [], []>} : vector<24x256xbf16>, vector<256x128xbf16>, vector<24x128xf32> -> vector<24x128xf32>
    %48 = arith.addf %42, %47 : vector<24x128xf32>
    %49 = vector.extract_strided_slice %1 {offsets = [14, 0], sizes = [24, 256], strides = [1, 1]} : vector<38x256xf32> to vector<24x256xf32>
    %50 = arith.truncf %49 : vector<24x256xf32> to vector<24x256xbf16>
    %c2_39 = arith.constant 2 : index
    %c2_40 = arith.constant 2 : index
    %c0_41 = arith.constant 0 : index
    %c0_42 = arith.constant 0 : index
    %51 = vector.load %arg2[%c2_39, %c2_40, %c0_41, %c0_42] : memref<3x3x256x128xbf16, #tpu.memory_space<vmem>>, vector<1x1x256x128xbf16>
    %52 = vector.shape_cast %51 : vector<1x1x256x128xbf16> to vector<256x128xbf16>
    %cst_43 = arith.constant dense<0.000000e+00> : vector<24x128xf32>
    %53 = tpu.matmul %50, %52, %cst_43 {dimension_numbers = #tpu.dot_dimension_numbers<[1], [0], [0], [1], [0, 0, 1, 1], [], []>} : vector<24x256xbf16>, vector<256x128xbf16>, vector<24x128xf32> -> vector<24x128xf32>
    %54 = arith.addf %48, %53 : vector<24x128xf32>
    %c0_44 = arith.constant 0 : index
    %c0_45 = arith.constant 0 : index
    %55 = vector.load %arg3[%c0_44, %c0_45] : memref<1x128xf32, #tpu.memory_space<vmem>>, vector<1x128xf32>
    %56 = vector.broadcast %55 : vector<1x128xf32> to vector<24x128xf32>
    %57 = arith.mulf %54, %56 : vector<24x128xf32>
    %c0_46 = arith.constant 0 : index
    %c0_47 = arith.constant 0 : index
    %58 = vector.load %arg4[%c0_46, %c0_47] : memref<1x128xf32, #tpu.memory_space<vmem>>, vector<1x128xf32>
    %59 = vector.broadcast %58 : vector<1x128xf32> to vector<24x128xf32>
    %60 = arith.addf %57, %59 : vector<24x128xf32>
    %cst_48 = arith.constant 0.000000e+00 : f32
    %61 = vector.broadcast %cst_48 : f32 to vector<24x128xf32>
    %62 = arith.maximumf %60, %61 : vector<24x128xf32>
    %c0_49 = arith.constant 0 : index
    %c0_50 = arith.constant 0 : index
    %c0_51 = arith.constant 0 : index
    %63 = vector.load %arg5[%c0_49, %c0_50, %c0_51] : memref<1x24x128xf32, #tpu.memory_space<vmem>>, vector<1x24x128xf32>
    %64 = vector.shape_cast %63 : vector<1x24x128xf32> to vector<24x128xf32>
    %65 = vector.shape_cast %62 : vector<24x128xf32> to vector<1x24x128xf32>
    tpu.vector_store %arg5[%c0_49, %c0_50, %c0_51], %65 {strides = array<i32>} : memref<1x24x128xf32, #tpu.memory_space<vmem>>, vector<1x24x128xf32>,
    return
  }
  func.func @transform_0(%arg0: i32) -> (i32, i32, i32) {
    %c0_i32 = arith.constant 0 : i32
    %c0_i32_0 = arith.constant 0 : i32
    %c0_i32_1 = arith.constant 0 : i32
    return %arg0, %c0_i32, %c0_i32_0 : i32, i32, i32
  }
  func.func @transform_1(%arg0: i32) -> (i32, i32, i32, i32) {
    %c0_i32 = arith.constant 0 : i32
    %c0_i32_0 = arith.constant 0 : i32
    %c0_i32_1 = arith.constant 0 : i32
    %c0_i32_2 = arith.constant 0 : i32
    %c0_i32_3 = arith.constant 0 : i32
    return %c0_i32, %c0_i32_0, %c0_i32_1, %c0_i32_2 : i32, i32, i32, i32
  }
  func.func @transform_2(%arg0: i32) -> (i32, i32) {
    %c0_i32 = arith.constant 0 : i32
    %c0_i32_0 = arith.constant 0 : i32
    %c0_i32_1 = arith.constant 0 : i32
    return %c0_i32, %c0_i32_0 : i32, i32
  }
  func.func @transform_3(%arg0: i32) -> (i32, i32) {
    %c0_i32 = arith.constant 0 : i32
    %c0_i32_0 = arith.constant 0 : i32
    %c0_i32_1 = arith.constant 0 : i32
    return %c0_i32, %c0_i32_0 : i32, i32
  }
  func.func @transform_4(%arg0: i32) -> (i32, i32, i32) {
    %c0_i32 = arith.constant 0 : i32
    %c0_i32_0 = arith.constant 0 : i32
    %c0_i32_1 = arith.constant 0 : i32
    return %arg0, %c0_i32, %c0_i32_0 : i32, i32, i32
  }
}

module attributes {stable_mosaic.version = 11 : i64} {
  func.func @_mm_bn_act_kernel(%arg0: i32, %arg1: i32, %arg2: memref<32x640xbf16, #tpu.memory_space<vmem>>, %arg3: memref<640x128xbf16, #tpu.memory_space<vmem>>, %arg4: memref<1x128xf32, #tpu.memory_space<vmem>>, %arg5: memref<1x128xf32, #tpu.memory_space<vmem>>, %arg6: memref<32x128xf32, #tpu.memory_space<vmem>>, %arg7: memref<32x128xf32, #tpu.memory_space<vmem>>) attributes {dimension_semantics = [#tpu.dimension_semantics<parallel>, #tpu.dimension_semantics<arbitrary>], iteration_bounds = array<i64: 1, 1>, scalar_prefetch = 0 : i64, scratch_operands = 1 : i64, tpu.core_type = #tpu.core_type<tc>, window_params = [{transform_indices = @transform_0, window_bounds = array<i64: 32, 640>}, {transform_indices = @transform_1, window_bounds = array<i64: 640, 128>}, {pipeline_mode = #tpu.pipeline_mode<synchronous>, transform_indices = @transform_2, window_bounds = array<i64: 1, 128>}, {pipeline_mode = #tpu.pipeline_mode<synchronous>, transform_indices = @transform_3, window_bounds = array<i64: 1, 128>}, {transform_indices = @transform_4, window_bounds = array<i64: 32, 128>}]} {
    %c0_i32 = arith.constant 0 : i32
    %0 = arith.cmpi eq, %arg1, %c0_i32 : i32
    %1 = arith.extui %0 : i1 to i32
    %c0_i32_0 = arith.constant 0 : i32
    %2 = arith.cmpi ne, %1, %c0_i32_0 : i32
    scf.if %2 {
      %cst_10 = arith.constant 0.000000e+00 : f32
      %12 = vector.broadcast %cst_10 : f32 to vector<32x128xf32>
      %c0_11 = arith.constant 0 : index
      %c0_12 = arith.constant 0 : index
      %13 = vector.load %arg7[%c0_11, %c0_12] : memref<32x128xf32, #tpu.memory_space<vmem>>, vector<32x128xf32>
      tpu.vector_store %arg7[%c0_11, %c0_12], %12 {strides = array<i32>} : memref<32x128xf32, #tpu.memory_space<vmem>>, vector<32x128xf32>,
    } else {
    }
    %c0 = arith.constant 0 : index
    %c0_1 = arith.constant 0 : index
    %3 = vector.load %arg7[%c0, %c0_1] : memref<32x128xf32, #tpu.memory_space<vmem>>, vector<32x128xf32>
    %c0_2 = arith.constant 0 : index
    %c0_3 = arith.constant 0 : index
    %4 = vector.load %arg2[%c0_2, %c0_3] : memref<32x640xbf16, #tpu.memory_space<vmem>>, vector<32x640xbf16>
    %c0_4 = arith.constant 0 : index
    %c0_5 = arith.constant 0 : index
    %5 = vector.load %arg3[%c0_4, %c0_5] : memref<640x128xbf16, #tpu.memory_space<vmem>>, vector<640x128xbf16>
    %cst = arith.constant dense<0.000000e+00> : vector<32x128xf32>
    %6 = tpu.matmul %4, %5, %cst {dimension_numbers = #tpu.dot_dimension_numbers<[1], [0], [0], [1], [0, 0, 1, 1], [], []>} : vector<32x640xbf16>, vector<640x128xbf16>, vector<32x128xf32> -> vector<32x128xf32>
    %7 = arith.addf %3, %6 : vector<32x128xf32>
    %c0_6 = arith.constant 0 : index
    %c0_7 = arith.constant 0 : index
    %8 = vector.load %arg7[%c0_6, %c0_7] : memref<32x128xf32, #tpu.memory_space<vmem>>, vector<32x128xf32>
    tpu.vector_store %arg7[%c0_6, %c0_7], %7 {strides = array<i32>} : memref<32x128xf32, #tpu.memory_space<vmem>>, vector<32x128xf32>,
    %c0_i32_8 = arith.constant 0 : i32
    %9 = arith.cmpi eq, %arg1, %c0_i32_8 : i32
    %10 = arith.extui %9 : i1 to i32
    %c0_i32_9 = arith.constant 0 : i32
    %11 = arith.cmpi ne, %10, %c0_i32_9 : i32
    scf.if %11 {
      %c0_10 = arith.constant 0 : index
      %c0_11 = arith.constant 0 : index
      %12 = vector.load %arg7[%c0_10, %c0_11] : memref<32x128xf32, #tpu.memory_space<vmem>>, vector<32x128xf32>
      %c0_12 = arith.constant 0 : index
      %c0_13 = arith.constant 0 : index
      %13 = vector.load %arg4[%c0_12, %c0_13] : memref<1x128xf32, #tpu.memory_space<vmem>>, vector<1x128xf32>
      %14 = vector.broadcast %13 : vector<1x128xf32> to vector<32x128xf32>
      %15 = arith.mulf %12, %14 : vector<32x128xf32>
      %c0_14 = arith.constant 0 : index
      %c0_15 = arith.constant 0 : index
      %16 = vector.load %arg5[%c0_14, %c0_15] : memref<1x128xf32, #tpu.memory_space<vmem>>, vector<1x128xf32>
      %17 = vector.broadcast %16 : vector<1x128xf32> to vector<32x128xf32>
      %18 = arith.addf %15, %17 : vector<32x128xf32>
      %cst_16 = arith.constant 0.000000e+00 : f32
      %19 = vector.broadcast %cst_16 : f32 to vector<32x128xf32>
      %20 = arith.maximumf %18, %19 : vector<32x128xf32>
      %c0_17 = arith.constant 0 : index
      %c0_18 = arith.constant 0 : index
      %21 = vector.load %arg6[%c0_17, %c0_18] : memref<32x128xf32, #tpu.memory_space<vmem>>, vector<32x128xf32>
      tpu.vector_store %arg6[%c0_17, %c0_18], %20 {strides = array<i32>} : memref<32x128xf32, #tpu.memory_space<vmem>>, vector<32x128xf32>,
    } else {
    }
    return
  }
  func.func @transform_0(%arg0: i32, %arg1: i32) -> (i32, i32) {
    %c0_i32 = arith.constant 0 : i32
    return %arg0, %arg1 : i32, i32
  }
  func.func @transform_1(%arg0: i32, %arg1: i32) -> (i32, i32) {
    %c0_i32 = arith.constant 0 : i32
    %c0_i32_0 = arith.constant 0 : i32
    return %arg1, %c0_i32 : i32, i32
  }
  func.func @transform_2(%arg0: i32, %arg1: i32) -> (i32, i32) {
    %c0_i32 = arith.constant 0 : i32
    %c0_i32_0 = arith.constant 0 : i32
    %c0_i32_1 = arith.constant 0 : i32
    return %c0_i32, %c0_i32_0 : i32, i32
  }
  func.func @transform_3(%arg0: i32, %arg1: i32) -> (i32, i32) {
    %c0_i32 = arith.constant 0 : i32
    %c0_i32_0 = arith.constant 0 : i32
    %c0_i32_1 = arith.constant 0 : i32
    return %c0_i32, %c0_i32_0 : i32, i32
  }
  func.func @transform_4(%arg0: i32, %arg1: i32) -> (i32, i32) {
    %c0_i32 = arith.constant 0 : i32
    %c0_i32_0 = arith.constant 0 : i32
    return %arg0, %c0_i32 : i32, i32
  }
}

module attributes {stable_mosaic.version = 11 : i64} {
  func.func @_conv3x3_bn_relu_kernel(%arg0: i32, %arg1: memref<1x18x512xf32, #tpu.memory_space<vmem>>, %arg2: memref<3x3x512x128xbf16, #tpu.memory_space<vmem>>, %arg3: memref<1x128xf32, #tpu.memory_space<vmem>>, %arg4: memref<1x128xf32, #tpu.memory_space<vmem>>, %arg5: memref<1x8x128xf32, #tpu.memory_space<vmem>>) attributes {dimension_semantics = [#tpu.dimension_semantics<parallel>], iteration_bounds = array<i64: 2>, scalar_prefetch = 0 : i64, scratch_operands = 0 : i64, tpu.core_type = #tpu.core_type<tc>, window_params = [{transform_indices = @transform_0, window_bounds = array<i64: 1, 18, 512>}, {pipeline_mode = #tpu.pipeline_mode<synchronous>, transform_indices = @transform_1, window_bounds = array<i64: 3, 3, 512, 128>}, {pipeline_mode = #tpu.pipeline_mode<synchronous>, transform_indices = @transform_2, window_bounds = array<i64: 1, 128>}, {pipeline_mode = #tpu.pipeline_mode<synchronous>, transform_indices = @transform_3, window_bounds = array<i64: 1, 128>}, {transform_indices = @transform_4, window_bounds = array<i64: 1, 8, 128>}]} {
    %c0 = arith.constant 0 : index
    %c0_0 = arith.constant 0 : index
    %c0_1 = arith.constant 0 : index
    %0 = vector.load %arg1[%c0, %c0_0, %c0_1] : memref<1x18x512xf32, #tpu.memory_space<vmem>>, vector<1x18x512xf32>
    %1 = vector.shape_cast %0 : vector<1x18x512xf32> to vector<18x512xf32>
    %2 = vector.extract_strided_slice %1 {offsets = [0, 0], sizes = [8, 512], strides = [1, 1]} : vector<18x512xf32> to vector<8x512xf32>
    %3 = arith.truncf %2 : vector<8x512xf32> to vector<8x512xbf16>
    %c0_2 = arith.constant 0 : index
    %c0_3 = arith.constant 0 : index
    %c0_4 = arith.constant 0 : index
    %c0_5 = arith.constant 0 : index
    %4 = vector.load %arg2[%c0_2, %c0_3, %c0_4, %c0_5] : memref<3x3x512x128xbf16, #tpu.memory_space<vmem>>, vector<1x1x512x128xbf16>
    %5 = vector.shape_cast %4 : vector<1x1x512x128xbf16> to vector<512x128xbf16>
    %cst = arith.constant dense<0.000000e+00> : vector<8x128xf32>
    %6 = tpu.matmul %3, %5, %cst {dimension_numbers = #tpu.dot_dimension_numbers<[1], [0], [0], [1], [0, 0, 1, 1], [], []>} : vector<8x512xbf16>, vector<512x128xbf16>, vector<8x128xf32> -> vector<8x128xf32>
    %7 = vector.extract_strided_slice %1 {offsets = [1, 0], sizes = [8, 512], strides = [1, 1]} : vector<18x512xf32> to vector<8x512xf32>
    %8 = arith.truncf %7 : vector<8x512xf32> to vector<8x512xbf16>
    %c0_6 = arith.constant 0 : index
    %c1 = arith.constant 1 : index
    %c0_7 = arith.constant 0 : index
    %c0_8 = arith.constant 0 : index
    %9 = vector.load %arg2[%c0_6, %c1, %c0_7, %c0_8] : memref<3x3x512x128xbf16, #tpu.memory_space<vmem>>, vector<1x1x512x128xbf16>
    %10 = vector.shape_cast %9 : vector<1x1x512x128xbf16> to vector<512x128xbf16>
    %cst_9 = arith.constant dense<0.000000e+00> : vector<8x128xf32>
    %11 = tpu.matmul %8, %10, %cst_9 {dimension_numbers = #tpu.dot_dimension_numbers<[1], [0], [0], [1], [0, 0, 1, 1], [], []>} : vector<8x512xbf16>, vector<512x128xbf16>, vector<8x128xf32> -> vector<8x128xf32>
    %12 = arith.addf %6, %11 : vector<8x128xf32>
    %13 = vector.extract_strided_slice %1 {offsets = [2, 0], sizes = [8, 512], strides = [1, 1]} : vector<18x512xf32> to vector<8x512xf32>
    %14 = arith.truncf %13 : vector<8x512xf32> to vector<8x512xbf16>
    %c0_10 = arith.constant 0 : index
    %c2 = arith.constant 2 : index
    %c0_11 = arith.constant 0 : index
    %c0_12 = arith.constant 0 : index
    %15 = vector.load %arg2[%c0_10, %c2, %c0_11, %c0_12] : memref<3x3x512x128xbf16, #tpu.memory_space<vmem>>, vector<1x1x512x128xbf16>
    %16 = vector.shape_cast %15 : vector<1x1x512x128xbf16> to vector<512x128xbf16>
    %cst_13 = arith.constant dense<0.000000e+00> : vector<8x128xf32>
    %17 = tpu.matmul %14, %16, %cst_13 {dimension_numbers = #tpu.dot_dimension_numbers<[1], [0], [0], [1], [0, 0, 1, 1], [], []>} : vector<8x512xbf16>, vector<512x128xbf16>, vector<8x128xf32> -> vector<8x128xf32>
    %18 = arith.addf %12, %17 : vector<8x128xf32>
    %19 = vector.extract_strided_slice %1 {offsets = [4, 0], sizes = [8, 512], strides = [1, 1]} : vector<18x512xf32> to vector<8x512xf32>
    %20 = arith.truncf %19 : vector<8x512xf32> to vector<8x512xbf16>
    %c1_14 = arith.constant 1 : index
    %c0_15 = arith.constant 0 : index
    %c0_16 = arith.constant 0 : index
    %c0_17 = arith.constant 0 : index
    %21 = vector.load %arg2[%c1_14, %c0_15, %c0_16, %c0_17] : memref<3x3x512x128xbf16, #tpu.memory_space<vmem>>, vector<1x1x512x128xbf16>
    %22 = vector.shape_cast %21 : vector<1x1x512x128xbf16> to vector<512x128xbf16>
    %cst_18 = arith.constant dense<0.000000e+00> : vector<8x128xf32>
    %23 = tpu.matmul %20, %22, %cst_18 {dimension_numbers = #tpu.dot_dimension_numbers<[1], [0], [0], [1], [0, 0, 1, 1], [], []>} : vector<8x512xbf16>, vector<512x128xbf16>, vector<8x128xf32> -> vector<8x128xf32>
    %24 = arith.addf %18, %23 : vector<8x128xf32>
    %25 = vector.extract_strided_slice %1 {offsets = [5, 0], sizes = [8, 512], strides = [1, 1]} : vector<18x512xf32> to vector<8x512xf32>
    %26 = arith.truncf %25 : vector<8x512xf32> to vector<8x512xbf16>
    %c1_19 = arith.constant 1 : index
    %c1_20 = arith.constant 1 : index
    %c0_21 = arith.constant 0 : index
    %c0_22 = arith.constant 0 : index
    %27 = vector.load %arg2[%c1_19, %c1_20, %c0_21, %c0_22] : memref<3x3x512x128xbf16, #tpu.memory_space<vmem>>, vector<1x1x512x128xbf16>
    %28 = vector.shape_cast %27 : vector<1x1x512x128xbf16> to vector<512x128xbf16>
    %cst_23 = arith.constant dense<0.000000e+00> : vector<8x128xf32>
    %29 = tpu.matmul %26, %28, %cst_23 {dimension_numbers = #tpu.dot_dimension_numbers<[1], [0], [0], [1], [0, 0, 1, 1], [], []>} : vector<8x512xbf16>, vector<512x128xbf16>, vector<8x128xf32> -> vector<8x128xf32>
    %30 = arith.addf %24, %29 : vector<8x128xf32>
    %31 = vector.extract_strided_slice %1 {offsets = [6, 0], sizes = [8, 512], strides = [1, 1]} : vector<18x512xf32> to vector<8x512xf32>
    %32 = arith.truncf %31 : vector<8x512xf32> to vector<8x512xbf16>
    %c1_24 = arith.constant 1 : index
    %c2_25 = arith.constant 2 : index
    %c0_26 = arith.constant 0 : index
    %c0_27 = arith.constant 0 : index
    %33 = vector.load %arg2[%c1_24, %c2_25, %c0_26, %c0_27] : memref<3x3x512x128xbf16, #tpu.memory_space<vmem>>, vector<1x1x512x128xbf16>
    %34 = vector.shape_cast %33 : vector<1x1x512x128xbf16> to vector<512x128xbf16>
    %cst_28 = arith.constant dense<0.000000e+00> : vector<8x128xf32>
    %35 = tpu.matmul %32, %34, %cst_28 {dimension_numbers = #tpu.dot_dimension_numbers<[1], [0], [0], [1], [0, 0, 1, 1], [], []>} : vector<8x512xbf16>, vector<512x128xbf16>, vector<8x128xf32> -> vector<8x128xf32>
    %36 = arith.addf %30, %35 : vector<8x128xf32>
    %37 = vector.extract_strided_slice %1 {offsets = [8, 0], sizes = [8, 512], strides = [1, 1]} : vector<18x512xf32> to vector<8x512xf32>
    %38 = arith.truncf %37 : vector<8x512xf32> to vector<8x512xbf16>
    %c2_29 = arith.constant 2 : index
    %c0_30 = arith.constant 0 : index
    %c0_31 = arith.constant 0 : index
    %c0_32 = arith.constant 0 : index
    %39 = vector.load %arg2[%c2_29, %c0_30, %c0_31, %c0_32] : memref<3x3x512x128xbf16, #tpu.memory_space<vmem>>, vector<1x1x512x128xbf16>
    %40 = vector.shape_cast %39 : vector<1x1x512x128xbf16> to vector<512x128xbf16>
    %cst_33 = arith.constant dense<0.000000e+00> : vector<8x128xf32>
    %41 = tpu.matmul %38, %40, %cst_33 {dimension_numbers = #tpu.dot_dimension_numbers<[1], [0], [0], [1], [0, 0, 1, 1], [], []>} : vector<8x512xbf16>, vector<512x128xbf16>, vector<8x128xf32> -> vector<8x128xf32>
    %42 = arith.addf %36, %41 : vector<8x128xf32>
    %43 = vector.extract_strided_slice %1 {offsets = [9, 0], sizes = [8, 512], strides = [1, 1]} : vector<18x512xf32> to vector<8x512xf32>
    %44 = arith.truncf %43 : vector<8x512xf32> to vector<8x512xbf16>
    %c2_34 = arith.constant 2 : index
    %c1_35 = arith.constant 1 : index
    %c0_36 = arith.constant 0 : index
    %c0_37 = arith.constant 0 : index
    %45 = vector.load %arg2[%c2_34, %c1_35, %c0_36, %c0_37] : memref<3x3x512x128xbf16, #tpu.memory_space<vmem>>, vector<1x1x512x128xbf16>
    %46 = vector.shape_cast %45 : vector<1x1x512x128xbf16> to vector<512x128xbf16>
    %cst_38 = arith.constant dense<0.000000e+00> : vector<8x128xf32>
    %47 = tpu.matmul %44, %46, %cst_38 {dimension_numbers = #tpu.dot_dimension_numbers<[1], [0], [0], [1], [0, 0, 1, 1], [], []>} : vector<8x512xbf16>, vector<512x128xbf16>, vector<8x128xf32> -> vector<8x128xf32>
    %48 = arith.addf %42, %47 : vector<8x128xf32>
    %49 = vector.extract_strided_slice %1 {offsets = [10, 0], sizes = [8, 512], strides = [1, 1]} : vector<18x512xf32> to vector<8x512xf32>
    %50 = arith.truncf %49 : vector<8x512xf32> to vector<8x512xbf16>
    %c2_39 = arith.constant 2 : index
    %c2_40 = arith.constant 2 : index
    %c0_41 = arith.constant 0 : index
    %c0_42 = arith.constant 0 : index
    %51 = vector.load %arg2[%c2_39, %c2_40, %c0_41, %c0_42] : memref<3x3x512x128xbf16, #tpu.memory_space<vmem>>, vector<1x1x512x128xbf16>
    %52 = vector.shape_cast %51 : vector<1x1x512x128xbf16> to vector<512x128xbf16>
    %cst_43 = arith.constant dense<0.000000e+00> : vector<8x128xf32>
    %53 = tpu.matmul %50, %52, %cst_43 {dimension_numbers = #tpu.dot_dimension_numbers<[1], [0], [0], [1], [0, 0, 1, 1], [], []>} : vector<8x512xbf16>, vector<512x128xbf16>, vector<8x128xf32> -> vector<8x128xf32>
    %54 = arith.addf %48, %53 : vector<8x128xf32>
    %c0_44 = arith.constant 0 : index
    %c0_45 = arith.constant 0 : index
    %55 = vector.load %arg3[%c0_44, %c0_45] : memref<1x128xf32, #tpu.memory_space<vmem>>, vector<1x128xf32>
    %56 = vector.broadcast %55 : vector<1x128xf32> to vector<8x128xf32>
    %57 = arith.mulf %54, %56 : vector<8x128xf32>
    %c0_46 = arith.constant 0 : index
    %c0_47 = arith.constant 0 : index
    %58 = vector.load %arg4[%c0_46, %c0_47] : memref<1x128xf32, #tpu.memory_space<vmem>>, vector<1x128xf32>
    %59 = vector.broadcast %58 : vector<1x128xf32> to vector<8x128xf32>
    %60 = arith.addf %57, %59 : vector<8x128xf32>
    %cst_48 = arith.constant 0.000000e+00 : f32
    %61 = vector.broadcast %cst_48 : f32 to vector<8x128xf32>
    %62 = arith.maximumf %60, %61 : vector<8x128xf32>
    %c0_49 = arith.constant 0 : index
    %c0_50 = arith.constant 0 : index
    %c0_51 = arith.constant 0 : index
    %63 = vector.load %arg5[%c0_49, %c0_50, %c0_51] : memref<1x8x128xf32, #tpu.memory_space<vmem>>, vector<1x8x128xf32>
    %64 = vector.shape_cast %63 : vector<1x8x128xf32> to vector<8x128xf32>
    %65 = vector.shape_cast %62 : vector<8x128xf32> to vector<1x8x128xf32>
    tpu.vector_store %arg5[%c0_49, %c0_50, %c0_51], %65 {strides = array<i32>} : memref<1x8x128xf32, #tpu.memory_space<vmem>>, vector<1x8x128xf32>,
    return
  }
  func.func @transform_0(%arg0: i32) -> (i32, i32, i32) {
    %c0_i32 = arith.constant 0 : i32
    %c0_i32_0 = arith.constant 0 : i32
    %c0_i32_1 = arith.constant 0 : i32
    return %arg0, %c0_i32, %c0_i32_0 : i32, i32, i32
  }
  func.func @transform_1(%arg0: i32) -> (i32, i32, i32, i32) {
    %c0_i32 = arith.constant 0 : i32
    %c0_i32_0 = arith.constant 0 : i32
    %c0_i32_1 = arith.constant 0 : i32
    %c0_i32_2 = arith.constant 0 : i32
    %c0_i32_3 = arith.constant 0 : i32
    return %c0_i32, %c0_i32_0, %c0_i32_1, %c0_i32_2 : i32, i32, i32, i32
  }
  func.func @transform_2(%arg0: i32) -> (i32, i32) {
    %c0_i32 = arith.constant 0 : i32
    %c0_i32_0 = arith.constant 0 : i32
    %c0_i32_1 = arith.constant 0 : i32
    return %c0_i32, %c0_i32_0 : i32, i32
  }
  func.func @transform_3(%arg0: i32) -> (i32, i32) {
    %c0_i32 = arith.constant 0 : i32
    %c0_i32_0 = arith.constant 0 : i32
    %c0_i32_1 = arith.constant 0 : i32
    return %c0_i32, %c0_i32_0 : i32, i32
  }
  func.func @transform_4(%arg0: i32) -> (i32, i32, i32) {
    %c0_i32 = arith.constant 0 : i32
    %c0_i32_0 = arith.constant 0 : i32
    %c0_i32_1 = arith.constant 0 : i32
    return %arg0, %c0_i32, %c0_i32_0 : i32, i32, i32
  }
}

module attributes {stable_mosaic.version = 11 : i64} {
  func.func @_fuse_atten_kernel(%arg0: i32, %arg1: memref<1x16x128xf32, #tpu.memory_space<vmem>>, %arg2: memref<1x16x128xf32, #tpu.memory_space<vmem>>, %arg3: memref<1x1x128xf32, #tpu.memory_space<vmem>>, %arg4: memref<1x16x128xf32, #tpu.memory_space<vmem>>, %arg5: memref<1x16x128xf32, #tpu.memory_space<vmem>>) attributes {dimension_semantics = [#tpu.dimension_semantics<parallel>], iteration_bounds = array<i64: 2>, scalar_prefetch = 0 : i64, scratch_operands = 0 : i64, tpu.core_type = #tpu.core_type<tc>, window_params = [{transform_indices = @transform_0, window_bounds = array<i64: 1, 16, 128>}, {transform_indices = @transform_1, window_bounds = array<i64: 1, 16, 128>}, {transform_indices = @transform_2, window_bounds = array<i64: 1, 1, 128>}, {transform_indices = @transform_3, window_bounds = array<i64: 1, 16, 128>}, {transform_indices = @transform_4, window_bounds = array<i64: 1, 16, 128>}]} {
    %c0 = arith.constant 0 : index
    %c0_0 = arith.constant 0 : index
    %c0_1 = arith.constant 0 : index
    %0 = vector.load %arg3[%c0, %c0_0, %c0_1] : memref<1x1x128xf32, #tpu.memory_space<vmem>>, vector<1x1x128xf32>
    %1 = vector.shape_cast %0 : vector<1x1x128xf32> to vector<1x128xf32>
    %c0_2 = arith.constant 0 : index
    %c0_3 = arith.constant 0 : index
    %c0_4 = arith.constant 0 : index
    %2 = vector.load %arg2[%c0_2, %c0_3, %c0_4] : memref<1x16x128xf32, #tpu.memory_space<vmem>>, vector<1x16x128xf32>
    %3 = vector.shape_cast %2 : vector<1x16x128xf32> to vector<16x128xf32>
    %4 = vector.broadcast %1 : vector<1x128xf32> to vector<16x128xf32>
    %5 = arith.mulf %3, %4 : vector<16x128xf32>
    %c0_5 = arith.constant 0 : index
    %c0_6 = arith.constant 0 : index
    %c0_7 = arith.constant 0 : index
    %6 = vector.load %arg4[%c0_5, %c0_6, %c0_7] : memref<1x16x128xf32, #tpu.memory_space<vmem>>, vector<1x16x128xf32>
    %7 = vector.shape_cast %6 : vector<1x16x128xf32> to vector<16x128xf32>
    %8 = vector.shape_cast %5 : vector<16x128xf32> to vector<1x16x128xf32>
    tpu.vector_store %arg4[%c0_5, %c0_6, %c0_7], %8 {strides = array<i32>} : memref<1x16x128xf32, #tpu.memory_space<vmem>>, vector<1x16x128xf32>,
    %c0_8 = arith.constant 0 : index
    %c0_9 = arith.constant 0 : index
    %c0_10 = arith.constant 0 : index
    %9 = vector.load %arg1[%c0_8, %c0_9, %c0_10] : memref<1x16x128xf32, #tpu.memory_space<vmem>>, vector<1x16x128xf32>
    %10 = vector.shape_cast %9 : vector<1x16x128xf32> to vector<16x128xf32>
    %cst = arith.constant 1.000000e+00 : f32
    %11 = vector.broadcast %cst : f32 to vector<1x128xf32>
    %12 = arith.subf %11, %1 : vector<1x128xf32>
    %13 = vector.broadcast %12 : vector<1x128xf32> to vector<16x128xf32>
    %14 = arith.mulf %10, %13 : vector<16x128xf32>
    %15 = arith.addf %14, %5 : vector<16x128xf32>
    %c0_11 = arith.constant 0 : index
    %c0_12 = arith.constant 0 : index
    %c0_13 = arith.constant 0 : index
    %16 = vector.load %arg5[%c0_11, %c0_12, %c0_13] : memref<1x16x128xf32, #tpu.memory_space<vmem>>, vector<1x16x128xf32>
    %17 = vector.shape_cast %16 : vector<1x16x128xf32> to vector<16x128xf32>
    %18 = vector.shape_cast %15 : vector<16x128xf32> to vector<1x16x128xf32>
    tpu.vector_store %arg5[%c0_11, %c0_12, %c0_13], %18 {strides = array<i32>} : memref<1x16x128xf32, #tpu.memory_space<vmem>>, vector<1x16x128xf32>,
    return
  }
  func.func @transform_0(%arg0: i32) -> (i32, i32, i32) {
    %c0_i32 = arith.constant 0 : i32
    %c0_i32_0 = arith.constant 0 : i32
    %c0_i32_1 = arith.constant 0 : i32
    return %arg0, %c0_i32, %c0_i32_0 : i32, i32, i32
  }
  func.func @transform_1(%arg0: i32) -> (i32, i32, i32) {
    %c0_i32 = arith.constant 0 : i32
    %c0_i32_0 = arith.constant 0 : i32
    %c0_i32_1 = arith.constant 0 : i32
    return %arg0, %c0_i32, %c0_i32_0 : i32, i32, i32
  }
  func.func @transform_2(%arg0: i32) -> (i32, i32, i32) {
    %c0_i32 = arith.constant 0 : i32
    %c0_i32_0 = arith.constant 0 : i32
    %c0_i32_1 = arith.constant 0 : i32
    return %arg0, %c0_i32, %c0_i32_0 : i32, i32, i32
  }
  func.func @transform_3(%arg0: i32) -> (i32, i32, i32) {
    %c0_i32 = arith.constant 0 : i32
    %c0_i32_0 = arith.constant 0 : i32
    %c0_i32_1 = arith.constant 0 : i32
    return %arg0, %c0_i32, %c0_i32_0 : i32, i32, i32
  }
  func.func @transform_4(%arg0: i32) -> (i32, i32, i32) {
    %c0_i32 = arith.constant 0 : i32
    %c0_i32_0 = arith.constant 0 : i32
    %c0_i32_1 = arith.constant 0 : i32
    return %arg0, %c0_i32, %c0_i32_0 : i32, i32, i32
  }
}

module attributes {stable_mosaic.version = 11 : i64} {
  func.func @_conv3x3_bn_relu_kernel(%arg0: i32, %arg1: memref<1x38x128xf32, #tpu.memory_space<vmem>>, %arg2: memref<3x3x128x128xbf16, #tpu.memory_space<vmem>>, %arg3: memref<1x128xf32, #tpu.memory_space<vmem>>, %arg4: memref<1x128xf32, #tpu.memory_space<vmem>>, %arg5: memref<1x24x128xf32, #tpu.memory_space<vmem>>) attributes {dimension_semantics = [#tpu.dimension_semantics<parallel>], iteration_bounds = array<i64: 2>, scalar_prefetch = 0 : i64, scratch_operands = 0 : i64, tpu.core_type = #tpu.core_type<tc>, window_params = [{transform_indices = @transform_0, window_bounds = array<i64: 1, 38, 128>}, {pipeline_mode = #tpu.pipeline_mode<synchronous>, transform_indices = @transform_1, window_bounds = array<i64: 3, 3, 128, 128>}, {pipeline_mode = #tpu.pipeline_mode<synchronous>, transform_indices = @transform_2, window_bounds = array<i64: 1, 128>}, {pipeline_mode = #tpu.pipeline_mode<synchronous>, transform_indices = @transform_3, window_bounds = array<i64: 1, 128>}, {transform_indices = @transform_4, window_bounds = array<i64: 1, 24, 128>}]} {
    %c0 = arith.constant 0 : index
    %c0_0 = arith.constant 0 : index
    %c0_1 = arith.constant 0 : index
    %0 = vector.load %arg1[%c0, %c0_0, %c0_1] : memref<1x38x128xf32, #tpu.memory_space<vmem>>, vector<1x38x128xf32>
    %1 = vector.shape_cast %0 : vector<1x38x128xf32> to vector<38x128xf32>
    %2 = vector.extract_strided_slice %1 {offsets = [0, 0], sizes = [24, 128], strides = [1, 1]} : vector<38x128xf32> to vector<24x128xf32>
    %3 = arith.truncf %2 : vector<24x128xf32> to vector<24x128xbf16>
    %c0_2 = arith.constant 0 : index
    %c0_3 = arith.constant 0 : index
    %c0_4 = arith.constant 0 : index
    %c0_5 = arith.constant 0 : index
    %4 = vector.load %arg2[%c0_2, %c0_3, %c0_4, %c0_5] : memref<3x3x128x128xbf16, #tpu.memory_space<vmem>>, vector<1x1x128x128xbf16>
    %5 = vector.shape_cast %4 : vector<1x1x128x128xbf16> to vector<128x128xbf16>
    %cst = arith.constant dense<0.000000e+00> : vector<24x128xf32>
    %6 = tpu.matmul %3, %5, %cst {dimension_numbers = #tpu.dot_dimension_numbers<[1], [0], [0], [1], [0, 0, 1, 1], [], []>} : vector<24x128xbf16>, vector<128x128xbf16>, vector<24x128xf32> -> vector<24x128xf32>
    %7 = vector.extract_strided_slice %1 {offsets = [1, 0], sizes = [24, 128], strides = [1, 1]} : vector<38x128xf32> to vector<24x128xf32>
    %8 = arith.truncf %7 : vector<24x128xf32> to vector<24x128xbf16>
    %c0_6 = arith.constant 0 : index
    %c1 = arith.constant 1 : index
    %c0_7 = arith.constant 0 : index
    %c0_8 = arith.constant 0 : index
    %9 = vector.load %arg2[%c0_6, %c1, %c0_7, %c0_8] : memref<3x3x128x128xbf16, #tpu.memory_space<vmem>>, vector<1x1x128x128xbf16>
    %10 = vector.shape_cast %9 : vector<1x1x128x128xbf16> to vector<128x128xbf16>
    %cst_9 = arith.constant dense<0.000000e+00> : vector<24x128xf32>
    %11 = tpu.matmul %8, %10, %cst_9 {dimension_numbers = #tpu.dot_dimension_numbers<[1], [0], [0], [1], [0, 0, 1, 1], [], []>} : vector<24x128xbf16>, vector<128x128xbf16>, vector<24x128xf32> -> vector<24x128xf32>
    %12 = arith.addf %6, %11 : vector<24x128xf32>
    %13 = vector.extract_strided_slice %1 {offsets = [2, 0], sizes = [24, 128], strides = [1, 1]} : vector<38x128xf32> to vector<24x128xf32>
    %14 = arith.truncf %13 : vector<24x128xf32> to vector<24x128xbf16>
    %c0_10 = arith.constant 0 : index
    %c2 = arith.constant 2 : index
    %c0_11 = arith.constant 0 : index
    %c0_12 = arith.constant 0 : index
    %15 = vector.load %arg2[%c0_10, %c2, %c0_11, %c0_12] : memref<3x3x128x128xbf16, #tpu.memory_space<vmem>>, vector<1x1x128x128xbf16>
    %16 = vector.shape_cast %15 : vector<1x1x128x128xbf16> to vector<128x128xbf16>
    %cst_13 = arith.constant dense<0.000000e+00> : vector<24x128xf32>
    %17 = tpu.matmul %14, %16, %cst_13 {dimension_numbers = #tpu.dot_dimension_numbers<[1], [0], [0], [1], [0, 0, 1, 1], [], []>} : vector<24x128xbf16>, vector<128x128xbf16>, vector<24x128xf32> -> vector<24x128xf32>
    %18 = arith.addf %12, %17 : vector<24x128xf32>
    %19 = vector.extract_strided_slice %1 {offsets = [6, 0], sizes = [24, 128], strides = [1, 1]} : vector<38x128xf32> to vector<24x128xf32>
    %20 = arith.truncf %19 : vector<24x128xf32> to vector<24x128xbf16>
    %c1_14 = arith.constant 1 : index
    %c0_15 = arith.constant 0 : index
    %c0_16 = arith.constant 0 : index
    %c0_17 = arith.constant 0 : index
    %21 = vector.load %arg2[%c1_14, %c0_15, %c0_16, %c0_17] : memref<3x3x128x128xbf16, #tpu.memory_space<vmem>>, vector<1x1x128x128xbf16>
    %22 = vector.shape_cast %21 : vector<1x1x128x128xbf16> to vector<128x128xbf16>
    %cst_18 = arith.constant dense<0.000000e+00> : vector<24x128xf32>
    %23 = tpu.matmul %20, %22, %cst_18 {dimension_numbers = #tpu.dot_dimension_numbers<[1], [0], [0], [1], [0, 0, 1, 1], [], []>} : vector<24x128xbf16>, vector<128x128xbf16>, vector<24x128xf32> -> vector<24x128xf32>
    %24 = arith.addf %18, %23 : vector<24x128xf32>
    %25 = vector.extract_strided_slice %1 {offsets = [7, 0], sizes = [24, 128], strides = [1, 1]} : vector<38x128xf32> to vector<24x128xf32>
    %26 = arith.truncf %25 : vector<24x128xf32> to vector<24x128xbf16>
    %c1_19 = arith.constant 1 : index
    %c1_20 = arith.constant 1 : index
    %c0_21 = arith.constant 0 : index
    %c0_22 = arith.constant 0 : index
    %27 = vector.load %arg2[%c1_19, %c1_20, %c0_21, %c0_22] : memref<3x3x128x128xbf16, #tpu.memory_space<vmem>>, vector<1x1x128x128xbf16>
    %28 = vector.shape_cast %27 : vector<1x1x128x128xbf16> to vector<128x128xbf16>
    %cst_23 = arith.constant dense<0.000000e+00> : vector<24x128xf32>
    %29 = tpu.matmul %26, %28, %cst_23 {dimension_numbers = #tpu.dot_dimension_numbers<[1], [0], [0], [1], [0, 0, 1, 1], [], []>} : vector<24x128xbf16>, vector<128x128xbf16>, vector<24x128xf32> -> vector<24x128xf32>
    %30 = arith.addf %24, %29 : vector<24x128xf32>
    %31 = vector.extract_strided_slice %1 {offsets = [8, 0], sizes = [24, 128], strides = [1, 1]} : vector<38x128xf32> to vector<24x128xf32>
    %32 = arith.truncf %31 : vector<24x128xf32> to vector<24x128xbf16>
    %c1_24 = arith.constant 1 : index
    %c2_25 = arith.constant 2 : index
    %c0_26 = arith.constant 0 : index
    %c0_27 = arith.constant 0 : index
    %33 = vector.load %arg2[%c1_24, %c2_25, %c0_26, %c0_27] : memref<3x3x128x128xbf16, #tpu.memory_space<vmem>>, vector<1x1x128x128xbf16>
    %34 = vector.shape_cast %33 : vector<1x1x128x128xbf16> to vector<128x128xbf16>
    %cst_28 = arith.constant dense<0.000000e+00> : vector<24x128xf32>
    %35 = tpu.matmul %32, %34, %cst_28 {dimension_numbers = #tpu.dot_dimension_numbers<[1], [0], [0], [1], [0, 0, 1, 1], [], []>} : vector<24x128xbf16>, vector<128x128xbf16>, vector<24x128xf32> -> vector<24x128xf32>
    %36 = arith.addf %30, %35 : vector<24x128xf32>
    %37 = vector.extract_strided_slice %1 {offsets = [12, 0], sizes = [24, 128], strides = [1, 1]} : vector<38x128xf32> to vector<24x128xf32>
    %38 = arith.truncf %37 : vector<24x128xf32> to vector<24x128xbf16>
    %c2_29 = arith.constant 2 : index
    %c0_30 = arith.constant 0 : index
    %c0_31 = arith.constant 0 : index
    %c0_32 = arith.constant 0 : index
    %39 = vector.load %arg2[%c2_29, %c0_30, %c0_31, %c0_32] : memref<3x3x128x128xbf16, #tpu.memory_space<vmem>>, vector<1x1x128x128xbf16>
    %40 = vector.shape_cast %39 : vector<1x1x128x128xbf16> to vector<128x128xbf16>
    %cst_33 = arith.constant dense<0.000000e+00> : vector<24x128xf32>
    %41 = tpu.matmul %38, %40, %cst_33 {dimension_numbers = #tpu.dot_dimension_numbers<[1], [0], [0], [1], [0, 0, 1, 1], [], []>} : vector<24x128xbf16>, vector<128x128xbf16>, vector<24x128xf32> -> vector<24x128xf32>
    %42 = arith.addf %36, %41 : vector<24x128xf32>
    %43 = vector.extract_strided_slice %1 {offsets = [13, 0], sizes = [24, 128], strides = [1, 1]} : vector<38x128xf32> to vector<24x128xf32>
    %44 = arith.truncf %43 : vector<24x128xf32> to vector<24x128xbf16>
    %c2_34 = arith.constant 2 : index
    %c1_35 = arith.constant 1 : index
    %c0_36 = arith.constant 0 : index
    %c0_37 = arith.constant 0 : index
    %45 = vector.load %arg2[%c2_34, %c1_35, %c0_36, %c0_37] : memref<3x3x128x128xbf16, #tpu.memory_space<vmem>>, vector<1x1x128x128xbf16>
    %46 = vector.shape_cast %45 : vector<1x1x128x128xbf16> to vector<128x128xbf16>
    %cst_38 = arith.constant dense<0.000000e+00> : vector<24x128xf32>
    %47 = tpu.matmul %44, %46, %cst_38 {dimension_numbers = #tpu.dot_dimension_numbers<[1], [0], [0], [1], [0, 0, 1, 1], [], []>} : vector<24x128xbf16>, vector<128x128xbf16>, vector<24x128xf32> -> vector<24x128xf32>
    %48 = arith.addf %42, %47 : vector<24x128xf32>
    %49 = vector.extract_strided_slice %1 {offsets = [14, 0], sizes = [24, 128], strides = [1, 1]} : vector<38x128xf32> to vector<24x128xf32>
    %50 = arith.truncf %49 : vector<24x128xf32> to vector<24x128xbf16>
    %c2_39 = arith.constant 2 : index
    %c2_40 = arith.constant 2 : index
    %c0_41 = arith.constant 0 : index
    %c0_42 = arith.constant 0 : index
    %51 = vector.load %arg2[%c2_39, %c2_40, %c0_41, %c0_42] : memref<3x3x128x128xbf16, #tpu.memory_space<vmem>>, vector<1x1x128x128xbf16>
    %52 = vector.shape_cast %51 : vector<1x1x128x128xbf16> to vector<128x128xbf16>
    %cst_43 = arith.constant dense<0.000000e+00> : vector<24x128xf32>
    %53 = tpu.matmul %50, %52, %cst_43 {dimension_numbers = #tpu.dot_dimension_numbers<[1], [0], [0], [1], [0, 0, 1, 1], [], []>} : vector<24x128xbf16>, vector<128x128xbf16>, vector<24x128xf32> -> vector<24x128xf32>
    %54 = arith.addf %48, %53 : vector<24x128xf32>
    %c0_44 = arith.constant 0 : index
    %c0_45 = arith.constant 0 : index
    %55 = vector.load %arg3[%c0_44, %c0_45] : memref<1x128xf32, #tpu.memory_space<vmem>>, vector<1x128xf32>
    %56 = vector.broadcast %55 : vector<1x128xf32> to vector<24x128xf32>
    %57 = arith.mulf %54, %56 : vector<24x128xf32>
    %c0_46 = arith.constant 0 : index
    %c0_47 = arith.constant 0 : index
    %58 = vector.load %arg4[%c0_46, %c0_47] : memref<1x128xf32, #tpu.memory_space<vmem>>, vector<1x128xf32>
    %59 = vector.broadcast %58 : vector<1x128xf32> to vector<24x128xf32>
    %60 = arith.addf %57, %59 : vector<24x128xf32>
    %cst_48 = arith.constant 0.000000e+00 : f32
    %61 = vector.broadcast %cst_48 : f32 to vector<24x128xf32>
    %62 = arith.maximumf %60, %61 : vector<24x128xf32>
    %c0_49 = arith.constant 0 : index
    %c0_50 = arith.constant 0 : index
    %c0_51 = arith.constant 0 : index
    %63 = vector.load %arg5[%c0_49, %c0_50, %c0_51] : memref<1x24x128xf32, #tpu.memory_space<vmem>>, vector<1x24x128xf32>
    %64 = vector.shape_cast %63 : vector<1x24x128xf32> to vector<24x128xf32>
    %65 = vector.shape_cast %62 : vector<24x128xf32> to vector<1x24x128xf32>
    tpu.vector_store %arg5[%c0_49, %c0_50, %c0_51], %65 {strides = array<i32>} : memref<1x24x128xf32, #tpu.memory_space<vmem>>, vector<1x24x128xf32>,
    return
  }
  func.func @transform_0(%arg0: i32) -> (i32, i32, i32) {
    %c0_i32 = arith.constant 0 : i32
    %c0_i32_0 = arith.constant 0 : i32
    %c0_i32_1 = arith.constant 0 : i32
    return %arg0, %c0_i32, %c0_i32_0 : i32, i32, i32
  }
  func.func @transform_1(%arg0: i32) -> (i32, i32, i32, i32) {
    %c0_i32 = arith.constant 0 : i32
    %c0_i32_0 = arith.constant 0 : i32
    %c0_i32_1 = arith.constant 0 : i32
    %c0_i32_2 = arith.constant 0 : i32
    %c0_i32_3 = arith.constant 0 : i32
    return %c0_i32, %c0_i32_0, %c0_i32_1, %c0_i32_2 : i32, i32, i32, i32
  }
  func.func @transform_2(%arg0: i32) -> (i32, i32) {
    %c0_i32 = arith.constant 0 : i32
    %c0_i32_0 = arith.constant 0 : i32
    %c0_i32_1 = arith.constant 0 : i32
    return %c0_i32, %c0_i32_0 : i32, i32
  }
  func.func @transform_3(%arg0: i32) -> (i32, i32) {
    %c0_i32 = arith.constant 0 : i32
    %c0_i32_0 = arith.constant 0 : i32
    %c0_i32_1 = arith.constant 0 : i32
    return %c0_i32, %c0_i32_0 : i32, i32
  }
  func.func @transform_4(%arg0: i32) -> (i32, i32, i32) {
    %c0_i32 = arith.constant 0 : i32
    %c0_i32_0 = arith.constant 0 : i32
    %c0_i32_1 = arith.constant 0 : i32
    return %arg0, %c0_i32, %c0_i32_0 : i32, i32, i32
  }
}

module attributes {stable_mosaic.version = 11 : i64} {
  func.func @_mm_bn_act_kernel(%arg0: i32, %arg1: i32, %arg2: memref<32x128xbf16, #tpu.memory_space<vmem>>, %arg3: memref<128x256xbf16, #tpu.memory_space<vmem>>, %arg4: memref<1x256xf32, #tpu.memory_space<vmem>>, %arg5: memref<1x256xf32, #tpu.memory_space<vmem>>, %arg6: memref<32x256xf32, #tpu.memory_space<vmem>>, %arg7: memref<32x256xf32, #tpu.memory_space<vmem>>) attributes {dimension_semantics = [#tpu.dimension_semantics<parallel>, #tpu.dimension_semantics<arbitrary>], iteration_bounds = array<i64: 1, 1>, scalar_prefetch = 0 : i64, scratch_operands = 1 : i64, tpu.core_type = #tpu.core_type<tc>, window_params = [{transform_indices = @transform_0, window_bounds = array<i64: 32, 128>}, {transform_indices = @transform_1, window_bounds = array<i64: 128, 256>}, {pipeline_mode = #tpu.pipeline_mode<synchronous>, transform_indices = @transform_2, window_bounds = array<i64: 1, 256>}, {pipeline_mode = #tpu.pipeline_mode<synchronous>, transform_indices = @transform_3, window_bounds = array<i64: 1, 256>}, {transform_indices = @transform_4, window_bounds = array<i64: 32, 256>}]} {
    %c0_i32 = arith.constant 0 : i32
    %0 = arith.cmpi eq, %arg1, %c0_i32 : i32
    %1 = arith.extui %0 : i1 to i32
    %c0_i32_0 = arith.constant 0 : i32
    %2 = arith.cmpi ne, %1, %c0_i32_0 : i32
    scf.if %2 {
      %cst_10 = arith.constant 0.000000e+00 : f32
      %12 = vector.broadcast %cst_10 : f32 to vector<32x256xf32>
      %c0_11 = arith.constant 0 : index
      %c0_12 = arith.constant 0 : index
      %13 = vector.load %arg7[%c0_11, %c0_12] : memref<32x256xf32, #tpu.memory_space<vmem>>, vector<32x256xf32>
      tpu.vector_store %arg7[%c0_11, %c0_12], %12 {strides = array<i32>} : memref<32x256xf32, #tpu.memory_space<vmem>>, vector<32x256xf32>,
    } else {
    }
    %c0 = arith.constant 0 : index
    %c0_1 = arith.constant 0 : index
    %3 = vector.load %arg7[%c0, %c0_1] : memref<32x256xf32, #tpu.memory_space<vmem>>, vector<32x256xf32>
    %c0_2 = arith.constant 0 : index
    %c0_3 = arith.constant 0 : index
    %4 = vector.load %arg2[%c0_2, %c0_3] : memref<32x128xbf16, #tpu.memory_space<vmem>>, vector<32x128xbf16>
    %c0_4 = arith.constant 0 : index
    %c0_5 = arith.constant 0 : index
    %5 = vector.load %arg3[%c0_4, %c0_5] : memref<128x256xbf16, #tpu.memory_space<vmem>>, vector<128x256xbf16>
    %cst = arith.constant dense<0.000000e+00> : vector<32x256xf32>
    %6 = tpu.matmul %4, %5, %cst {dimension_numbers = #tpu.dot_dimension_numbers<[1], [0], [0], [1], [0, 0, 1, 1], [], []>} : vector<32x128xbf16>, vector<128x256xbf16>, vector<32x256xf32> -> vector<32x256xf32>
    %7 = arith.addf %3, %6 : vector<32x256xf32>
    %c0_6 = arith.constant 0 : index
    %c0_7 = arith.constant 0 : index
    %8 = vector.load %arg7[%c0_6, %c0_7] : memref<32x256xf32, #tpu.memory_space<vmem>>, vector<32x256xf32>
    tpu.vector_store %arg7[%c0_6, %c0_7], %7 {strides = array<i32>} : memref<32x256xf32, #tpu.memory_space<vmem>>, vector<32x256xf32>,
    %c0_i32_8 = arith.constant 0 : i32
    %9 = arith.cmpi eq, %arg1, %c0_i32_8 : i32
    %10 = arith.extui %9 : i1 to i32
    %c0_i32_9 = arith.constant 0 : i32
    %11 = arith.cmpi ne, %10, %c0_i32_9 : i32
    scf.if %11 {
      %c0_10 = arith.constant 0 : index
      %c0_11 = arith.constant 0 : index
      %12 = vector.load %arg7[%c0_10, %c0_11] : memref<32x256xf32, #tpu.memory_space<vmem>>, vector<32x256xf32>
      %c0_12 = arith.constant 0 : index
      %c0_13 = arith.constant 0 : index
      %13 = vector.load %arg4[%c0_12, %c0_13] : memref<1x256xf32, #tpu.memory_space<vmem>>, vector<1x256xf32>
      %14 = vector.broadcast %13 : vector<1x256xf32> to vector<32x256xf32>
      %15 = arith.mulf %12, %14 : vector<32x256xf32>
      %c0_14 = arith.constant 0 : index
      %c0_15 = arith.constant 0 : index
      %16 = vector.load %arg5[%c0_14, %c0_15] : memref<1x256xf32, #tpu.memory_space<vmem>>, vector<1x256xf32>
      %17 = vector.broadcast %16 : vector<1x256xf32> to vector<32x256xf32>
      %18 = arith.addf %15, %17 : vector<32x256xf32>
      %cst_16 = arith.constant 0.000000e+00 : f32
      %19 = vector.broadcast %cst_16 : f32 to vector<32x256xf32>
      %20 = arith.maximumf %18, %19 : vector<32x256xf32>
      %c0_17 = arith.constant 0 : index
      %c0_18 = arith.constant 0 : index
      %21 = vector.load %arg6[%c0_17, %c0_18] : memref<32x256xf32, #tpu.memory_space<vmem>>, vector<32x256xf32>
      tpu.vector_store %arg6[%c0_17, %c0_18], %20 {strides = array<i32>} : memref<32x256xf32, #tpu.memory_space<vmem>>, vector<32x256xf32>,
    } else {
    }
    return
  }
  func.func @transform_0(%arg0: i32, %arg1: i32) -> (i32, i32) {
    %c0_i32 = arith.constant 0 : i32
    return %arg0, %arg1 : i32, i32
  }
  func.func @transform_1(%arg0: i32, %arg1: i32) -> (i32, i32) {
    %c0_i32 = arith.constant 0 : i32
    %c0_i32_0 = arith.constant 0 : i32
    return %arg1, %c0_i32 : i32, i32
  }
  func.func @transform_2(%arg0: i32, %arg1: i32) -> (i32, i32) {
    %c0_i32 = arith.constant 0 : i32
    %c0_i32_0 = arith.constant 0 : i32
    %c0_i32_1 = arith.constant 0 : i32
    return %c0_i32, %c0_i32_0 : i32, i32
  }
  func.func @transform_3(%arg0: i32, %arg1: i32) -> (i32, i32) {
    %c0_i32 = arith.constant 0 : i32
    %c0_i32_0 = arith.constant 0 : i32
    %c0_i32_1 = arith.constant 0 : i32
    return %c0_i32, %c0_i32_0 : i32, i32
  }
  func.func @transform_4(%arg0: i32, %arg1: i32) -> (i32, i32) {
    %c0_i32 = arith.constant 0 : i32
    %c0_i32_0 = arith.constant 0 : i32
    return %arg0, %c0_i32 : i32, i32
  }
}

module attributes {stable_mosaic.version = 11 : i64} {
  func.func @_strip_attn_kernel(%arg0: i32, %arg1: memref<1x4x64xbf16, #tpu.memory_space<vmem>>, %arg2: memref<1x64x16xbf16, #tpu.memory_space<vmem>>, %arg3: memref<1x128x4xbf16, #tpu.memory_space<vmem>>, %arg4: memref<1x128x16xf32, #tpu.memory_space<vmem>>, %arg5: memref<1x128x16xf32, #tpu.memory_space<vmem>>) attributes {dimension_semantics = [#tpu.dimension_semantics<parallel>], iteration_bounds = array<i64: 2>, scalar_prefetch = 0 : i64, scratch_operands = 0 : i64, tpu.core_type = #tpu.core_type<tc>, window_params = [{transform_indices = @transform_0, window_bounds = array<i64: 1, 4, 64>}, {transform_indices = @transform_1, window_bounds = array<i64: 1, 64, 16>}, {transform_indices = @transform_2, window_bounds = array<i64: 1, 128, 4>}, {transform_indices = @transform_3, window_bounds = array<i64: 1, 128, 16>}, {transform_indices = @transform_4, window_bounds = array<i64: 1, 128, 16>}]} {
    %c0 = arith.constant 0 : index
    %c0_0 = arith.constant 0 : index
    %c0_1 = arith.constant 0 : index
    %0 = vector.load %arg1[%c0, %c0_0, %c0_1] : memref<1x4x64xbf16, #tpu.memory_space<vmem>>, vector<1x4x64xbf16>
    %1 = vector.shape_cast %0 : vector<1x4x64xbf16> to vector<4x64xbf16>
    %c0_2 = arith.constant 0 : index
    %c0_3 = arith.constant 0 : index
    %c0_4 = arith.constant 0 : index
    %2 = vector.load %arg2[%c0_2, %c0_3, %c0_4] : memref<1x64x16xbf16, #tpu.memory_space<vmem>>, vector<1x64x16xbf16>
    %3 = vector.shape_cast %2 : vector<1x64x16xbf16> to vector<64x16xbf16>
    %c0_5 = arith.constant 0 : index
    %c0_6 = arith.constant 0 : index
    %c0_7 = arith.constant 0 : index
    %4 = vector.load %arg3[%c0_5, %c0_6, %c0_7] : memref<1x128x4xbf16, #tpu.memory_space<vmem>>, vector<1x128x4xbf16>
    %5 = vector.shape_cast %4 : vector<1x128x4xbf16> to vector<128x4xbf16>
    %cst = arith.constant dense<0.000000e+00> : vector<4x16xf32>
    %6 = tpu.matmul %1, %3, %cst {dimension_numbers = #tpu.dot_dimension_numbers<[1], [0], [0], [1], [0, 0, 1, 1], [], []>} : vector<4x64xbf16>, vector<64x16xbf16>, vector<4x16xf32> -> vector<4x16xf32>
    %cst_8 = arith.constant dense<0xFF800000> : vector<16xf32>
    %7 = vector.multi_reduction <maximumf>, %6, %cst_8 [0] : vector<4x16xf32> to vector<16xf32>
    %8 = vector.shape_cast %7 : vector<16xf32> to vector<1x16xf32>
    %9 = vector.broadcast %8 : vector<1x16xf32> to vector<4x16xf32>
    %10 = arith.subf %6, %9 : vector<4x16xf32>
    %11 = math.exp %10 : vector<4x16xf32>
    %cst_9 = arith.constant dense<0.000000e+00> : vector<16xf32>
    %12 = vector.multi_reduction <add>, %11, %cst_9 [0] : vector<4x16xf32> to vector<16xf32>
    %13 = vector.shape_cast %12 : vector<16xf32> to vector<1x16xf32>
    %14 = tpu.reciprocal %13 {approx = true} : vector<1x16xf32> -> vector<1x16xf32>
    %15 = vector.broadcast %14 : vector<1x16xf32> to vector<4x16xf32>
    %16 = arith.mulf %11, %15 : vector<4x16xf32>
    %17 = arith.truncf %16 : vector<4x16xf32> to vector<4x16xbf16>
    %cst_10 = arith.constant dense<0.000000e+00> : vector<128x16xf32>
    %18 = tpu.matmul %5, %17, %cst_10 {dimension_numbers = #tpu.dot_dimension_numbers<[1], [0], [0], [1], [0, 0, 1, 1], [], []>} : vector<128x4xbf16>, vector<4x16xbf16>, vector<128x16xf32> -> vector<128x16xf32>
    %c0_11 = arith.constant 0 : index
    %c0_12 = arith.constant 0 : index
    %c0_13 = arith.constant 0 : index
    %19 = vector.load %arg4[%c0_11, %c0_12, %c0_13] : memref<1x128x16xf32, #tpu.memory_space<vmem>>, vector<1x128x16xf32>
    %20 = vector.shape_cast %19 : vector<1x128x16xf32> to vector<128x16xf32>
    %21 = arith.addf %20, %18 : vector<128x16xf32>
    %c0_14 = arith.constant 0 : index
    %c0_15 = arith.constant 0 : index
    %c0_16 = arith.constant 0 : index
    %22 = vector.load %arg5[%c0_14, %c0_15, %c0_16] : memref<1x128x16xf32, #tpu.memory_space<vmem>>, vector<1x128x16xf32>
    %23 = vector.shape_cast %22 : vector<1x128x16xf32> to vector<128x16xf32>
    %24 = vector.shape_cast %21 : vector<128x16xf32> to vector<1x128x16xf32>
    tpu.vector_store %arg5[%c0_14, %c0_15, %c0_16], %24 {strides = array<i32>} : memref<1x128x16xf32, #tpu.memory_space<vmem>>, vector<1x128x16xf32>,
    return
  }
  func.func @transform_0(%arg0: i32) -> (i32, i32, i32) {
    %c0_i32 = arith.constant 0 : i32
    %c0_i32_0 = arith.constant 0 : i32
    %c0_i32_1 = arith.constant 0 : i32
    return %arg0, %c0_i32, %c0_i32_0 : i32, i32, i32
  }
  func.func @transform_1(%arg0: i32) -> (i32, i32, i32) {
    %c0_i32 = arith.constant 0 : i32
    %c0_i32_0 = arith.constant 0 : i32
    %c0_i32_1 = arith.constant 0 : i32
    return %arg0, %c0_i32, %c0_i32_0 : i32, i32, i32
  }
  func.func @transform_2(%arg0: i32) -> (i32, i32, i32) {
    %c0_i32 = arith.constant 0 : i32
    %c0_i32_0 = arith.constant 0 : i32
    %c0_i32_1 = arith.constant 0 : i32
    return %arg0, %c0_i32, %c0_i32_0 : i32, i32, i32
  }
  func.func @transform_3(%arg0: i32) -> (i32, i32, i32) {
    %c0_i32 = arith.constant 0 : i32
    %c0_i32_0 = arith.constant 0 : i32
    %c0_i32_1 = arith.constant 0 : i32
    return %arg0, %c0_i32, %c0_i32_0 : i32, i32, i32
  }
  func.func @transform_4(%arg0: i32) -> (i32, i32, i32) {
    %c0_i32 = arith.constant 0 : i32
    %c0_i32_0 = arith.constant 0 : i32
    %c0_i32_1 = arith.constant 0 : i32
    return %arg0, %c0_i32, %c0_i32_0 : i32, i32, i32
  }
}

module attributes {stable_mosaic.version = 11 : i64} {
  func.func @_conv3x3_bn_relu_kernel(%arg0: i32, %arg1: memref<1x102x128xf32, #tpu.memory_space<vmem>>, %arg2: memref<3x3x128x128xbf16, #tpu.memory_space<vmem>>, %arg3: memref<1x128xf32, #tpu.memory_space<vmem>>, %arg4: memref<1x128xf32, #tpu.memory_space<vmem>>, %arg5: memref<1x80x128xf32, #tpu.memory_space<vmem>>) attributes {dimension_semantics = [#tpu.dimension_semantics<parallel>], iteration_bounds = array<i64: 2>, scalar_prefetch = 0 : i64, scratch_operands = 0 : i64, tpu.core_type = #tpu.core_type<tc>, window_params = [{transform_indices = @transform_0, window_bounds = array<i64: 1, 102, 128>}, {pipeline_mode = #tpu.pipeline_mode<synchronous>, transform_indices = @transform_1, window_bounds = array<i64: 3, 3, 128, 128>}, {pipeline_mode = #tpu.pipeline_mode<synchronous>, transform_indices = @transform_2, window_bounds = array<i64: 1, 128>}, {pipeline_mode = #tpu.pipeline_mode<synchronous>, transform_indices = @transform_3, window_bounds = array<i64: 1, 128>}, {transform_indices = @transform_4, window_bounds = array<i64: 1, 80, 128>}]} {
    %c0 = arith.constant 0 : index
    %c0_0 = arith.constant 0 : index
    %c0_1 = arith.constant 0 : index
    %0 = vector.load %arg1[%c0, %c0_0, %c0_1] : memref<1x102x128xf32, #tpu.memory_space<vmem>>, vector<1x102x128xf32>
    %1 = vector.shape_cast %0 : vector<1x102x128xf32> to vector<102x128xf32>
    %2 = vector.extract_strided_slice %1 {offsets = [0, 0], sizes = [80, 128], strides = [1, 1]} : vector<102x128xf32> to vector<80x128xf32>
    %3 = arith.truncf %2 : vector<80x128xf32> to vector<80x128xbf16>
    %c0_2 = arith.constant 0 : index
    %c0_3 = arith.constant 0 : index
    %c0_4 = arith.constant 0 : index
    %c0_5 = arith.constant 0 : index
    %4 = vector.load %arg2[%c0_2, %c0_3, %c0_4, %c0_5] : memref<3x3x128x128xbf16, #tpu.memory_space<vmem>>, vector<1x1x128x128xbf16>
    %5 = vector.shape_cast %4 : vector<1x1x128x128xbf16> to vector<128x128xbf16>
    %cst = arith.constant dense<0.000000e+00> : vector<80x128xf32>
    %6 = tpu.matmul %3, %5, %cst {dimension_numbers = #tpu.dot_dimension_numbers<[1], [0], [0], [1], [0, 0, 1, 1], [], []>} : vector<80x128xbf16>, vector<128x128xbf16>, vector<80x128xf32> -> vector<80x128xf32>
    %7 = vector.extract_strided_slice %1 {offsets = [1, 0], sizes = [80, 128], strides = [1, 1]} : vector<102x128xf32> to vector<80x128xf32>
    %8 = arith.truncf %7 : vector<80x128xf32> to vector<80x128xbf16>
    %c0_6 = arith.constant 0 : index
    %c1 = arith.constant 1 : index
    %c0_7 = arith.constant 0 : index
    %c0_8 = arith.constant 0 : index
    %9 = vector.load %arg2[%c0_6, %c1, %c0_7, %c0_8] : memref<3x3x128x128xbf16, #tpu.memory_space<vmem>>, vector<1x1x128x128xbf16>
    %10 = vector.shape_cast %9 : vector<1x1x128x128xbf16> to vector<128x128xbf16>
    %cst_9 = arith.constant dense<0.000000e+00> : vector<80x128xf32>
    %11 = tpu.matmul %8, %10, %cst_9 {dimension_numbers = #tpu.dot_dimension_numbers<[1], [0], [0], [1], [0, 0, 1, 1], [], []>} : vector<80x128xbf16>, vector<128x128xbf16>, vector<80x128xf32> -> vector<80x128xf32>
    %12 = arith.addf %6, %11 : vector<80x128xf32>
    %13 = vector.extract_strided_slice %1 {offsets = [2, 0], sizes = [80, 128], strides = [1, 1]} : vector<102x128xf32> to vector<80x128xf32>
    %14 = arith.truncf %13 : vector<80x128xf32> to vector<80x128xbf16>
    %c0_10 = arith.constant 0 : index
    %c2 = arith.constant 2 : index
    %c0_11 = arith.constant 0 : index
    %c0_12 = arith.constant 0 : index
    %15 = vector.load %arg2[%c0_10, %c2, %c0_11, %c0_12] : memref<3x3x128x128xbf16, #tpu.memory_space<vmem>>, vector<1x1x128x128xbf16>
    %16 = vector.shape_cast %15 : vector<1x1x128x128xbf16> to vector<128x128xbf16>
    %cst_13 = arith.constant dense<0.000000e+00> : vector<80x128xf32>
    %17 = tpu.matmul %14, %16, %cst_13 {dimension_numbers = #tpu.dot_dimension_numbers<[1], [0], [0], [1], [0, 0, 1, 1], [], []>} : vector<80x128xbf16>, vector<128x128xbf16>, vector<80x128xf32> -> vector<80x128xf32>
    %18 = arith.addf %12, %17 : vector<80x128xf32>
    %19 = vector.extract_strided_slice %1 {offsets = [10, 0], sizes = [80, 128], strides = [1, 1]} : vector<102x128xf32> to vector<80x128xf32>
    %20 = arith.truncf %19 : vector<80x128xf32> to vector<80x128xbf16>
    %c1_14 = arith.constant 1 : index
    %c0_15 = arith.constant 0 : index
    %c0_16 = arith.constant 0 : index
    %c0_17 = arith.constant 0 : index
    %21 = vector.load %arg2[%c1_14, %c0_15, %c0_16, %c0_17] : memref<3x3x128x128xbf16, #tpu.memory_space<vmem>>, vector<1x1x128x128xbf16>
    %22 = vector.shape_cast %21 : vector<1x1x128x128xbf16> to vector<128x128xbf16>
    %cst_18 = arith.constant dense<0.000000e+00> : vector<80x128xf32>
    %23 = tpu.matmul %20, %22, %cst_18 {dimension_numbers = #tpu.dot_dimension_numbers<[1], [0], [0], [1], [0, 0, 1, 1], [], []>} : vector<80x128xbf16>, vector<128x128xbf16>, vector<80x128xf32> -> vector<80x128xf32>
    %24 = arith.addf %18, %23 : vector<80x128xf32>
    %25 = vector.extract_strided_slice %1 {offsets = [11, 0], sizes = [80, 128], strides = [1, 1]} : vector<102x128xf32> to vector<80x128xf32>
    %26 = arith.truncf %25 : vector<80x128xf32> to vector<80x128xbf16>
    %c1_19 = arith.constant 1 : index
    %c1_20 = arith.constant 1 : index
    %c0_21 = arith.constant 0 : index
    %c0_22 = arith.constant 0 : index
    %27 = vector.load %arg2[%c1_19, %c1_20, %c0_21, %c0_22] : memref<3x3x128x128xbf16, #tpu.memory_space<vmem>>, vector<1x1x128x128xbf16>
    %28 = vector.shape_cast %27 : vector<1x1x128x128xbf16> to vector<128x128xbf16>
    %cst_23 = arith.constant dense<0.000000e+00> : vector<80x128xf32>
    %29 = tpu.matmul %26, %28, %cst_23 {dimension_numbers = #tpu.dot_dimension_numbers<[1], [0], [0], [1], [0, 0, 1, 1], [], []>} : vector<80x128xbf16>, vector<128x128xbf16>, vector<80x128xf32> -> vector<80x128xf32>
    %30 = arith.addf %24, %29 : vector<80x128xf32>
    %31 = vector.extract_strided_slice %1 {offsets = [12, 0], sizes = [80, 128], strides = [1, 1]} : vector<102x128xf32> to vector<80x128xf32>
    %32 = arith.truncf %31 : vector<80x128xf32> to vector<80x128xbf16>
    %c1_24 = arith.constant 1 : index
    %c2_25 = arith.constant 2 : index
    %c0_26 = arith.constant 0 : index
    %c0_27 = arith.constant 0 : index
    %33 = vector.load %arg2[%c1_24, %c2_25, %c0_26, %c0_27] : memref<3x3x128x128xbf16, #tpu.memory_space<vmem>>, vector<1x1x128x128xbf16>
    %34 = vector.shape_cast %33 : vector<1x1x128x128xbf16> to vector<128x128xbf16>
    %cst_28 = arith.constant dense<0.000000e+00> : vector<80x128xf32>
    %35 = tpu.matmul %32, %34, %cst_28 {dimension_numbers = #tpu.dot_dimension_numbers<[1], [0], [0], [1], [0, 0, 1, 1], [], []>} : vector<80x128xbf16>, vector<128x128xbf16>, vector<80x128xf32> -> vector<80x128xf32>
    %36 = arith.addf %30, %35 : vector<80x128xf32>
    %37 = vector.extract_strided_slice %1 {offsets = [20, 0], sizes = [80, 128], strides = [1, 1]} : vector<102x128xf32> to vector<80x128xf32>
    %38 = arith.truncf %37 : vector<80x128xf32> to vector<80x128xbf16>
    %c2_29 = arith.constant 2 : index
    %c0_30 = arith.constant 0 : index
    %c0_31 = arith.constant 0 : index
    %c0_32 = arith.constant 0 : index
    %39 = vector.load %arg2[%c2_29, %c0_30, %c0_31, %c0_32] : memref<3x3x128x128xbf16, #tpu.memory_space<vmem>>, vector<1x1x128x128xbf16>
    %40 = vector.shape_cast %39 : vector<1x1x128x128xbf16> to vector<128x128xbf16>
    %cst_33 = arith.constant dense<0.000000e+00> : vector<80x128xf32>
    %41 = tpu.matmul %38, %40, %cst_33 {dimension_numbers = #tpu.dot_dimension_numbers<[1], [0], [0], [1], [0, 0, 1, 1], [], []>} : vector<80x128xbf16>, vector<128x128xbf16>, vector<80x128xf32> -> vector<80x128xf32>
    %42 = arith.addf %36, %41 : vector<80x128xf32>
    %43 = vector.extract_strided_slice %1 {offsets = [21, 0], sizes = [80, 128], strides = [1, 1]} : vector<102x128xf32> to vector<80x128xf32>
    %44 = arith.truncf %43 : vector<80x128xf32> to vector<80x128xbf16>
    %c2_34 = arith.constant 2 : index
    %c1_35 = arith.constant 1 : index
    %c0_36 = arith.constant 0 : index
    %c0_37 = arith.constant 0 : index
    %45 = vector.load %arg2[%c2_34, %c1_35, %c0_36, %c0_37] : memref<3x3x128x128xbf16, #tpu.memory_space<vmem>>, vector<1x1x128x128xbf16>
    %46 = vector.shape_cast %45 : vector<1x1x128x128xbf16> to vector<128x128xbf16>
    %cst_38 = arith.constant dense<0.000000e+00> : vector<80x128xf32>
    %47 = tpu.matmul %44, %46, %cst_38 {dimension_numbers = #tpu.dot_dimension_numbers<[1], [0], [0], [1], [0, 0, 1, 1], [], []>} : vector<80x128xbf16>, vector<128x128xbf16>, vector<80x128xf32> -> vector<80x128xf32>
    %48 = arith.addf %42, %47 : vector<80x128xf32>
    %49 = vector.extract_strided_slice %1 {offsets = [22, 0], sizes = [80, 128], strides = [1, 1]} : vector<102x128xf32> to vector<80x128xf32>
    %50 = arith.truncf %49 : vector<80x128xf32> to vector<80x128xbf16>
    %c2_39 = arith.constant 2 : index
    %c2_40 = arith.constant 2 : index
    %c0_41 = arith.constant 0 : index
    %c0_42 = arith.constant 0 : index
    %51 = vector.load %arg2[%c2_39, %c2_40, %c0_41, %c0_42] : memref<3x3x128x128xbf16, #tpu.memory_space<vmem>>, vector<1x1x128x128xbf16>
    %52 = vector.shape_cast %51 : vector<1x1x128x128xbf16> to vector<128x128xbf16>
    %cst_43 = arith.constant dense<0.000000e+00> : vector<80x128xf32>
    %53 = tpu.matmul %50, %52, %cst_43 {dimension_numbers = #tpu.dot_dimension_numbers<[1], [0], [0], [1], [0, 0, 1, 1], [], []>} : vector<80x128xbf16>, vector<128x128xbf16>, vector<80x128xf32> -> vector<80x128xf32>
    %54 = arith.addf %48, %53 : vector<80x128xf32>
    %c0_44 = arith.constant 0 : index
    %c0_45 = arith.constant 0 : index
    %55 = vector.load %arg3[%c0_44, %c0_45] : memref<1x128xf32, #tpu.memory_space<vmem>>, vector<1x128xf32>
    %56 = vector.broadcast %55 : vector<1x128xf32> to vector<80x128xf32>
    %57 = arith.mulf %54, %56 : vector<80x128xf32>
    %c0_46 = arith.constant 0 : index
    %c0_47 = arith.constant 0 : index
    %58 = vector.load %arg4[%c0_46, %c0_47] : memref<1x128xf32, #tpu.memory_space<vmem>>, vector<1x128xf32>
    %59 = vector.broadcast %58 : vector<1x128xf32> to vector<80x128xf32>
    %60 = arith.addf %57, %59 : vector<80x128xf32>
    %cst_48 = arith.constant 0.000000e+00 : f32
    %61 = vector.broadcast %cst_48 : f32 to vector<80x128xf32>
    %62 = arith.maximumf %60, %61 : vector<80x128xf32>
    %c0_49 = arith.constant 0 : index
    %c0_50 = arith.constant 0 : index
    %c0_51 = arith.constant 0 : index
    %63 = vector.load %arg5[%c0_49, %c0_50, %c0_51] : memref<1x80x128xf32, #tpu.memory_space<vmem>>, vector<1x80x128xf32>
    %64 = vector.shape_cast %63 : vector<1x80x128xf32> to vector<80x128xf32>
    %65 = vector.shape_cast %62 : vector<80x128xf32> to vector<1x80x128xf32>
    tpu.vector_store %arg5[%c0_49, %c0_50, %c0_51], %65 {strides = array<i32>} : memref<1x80x128xf32, #tpu.memory_space<vmem>>, vector<1x80x128xf32>,
    return
  }
  func.func @transform_0(%arg0: i32) -> (i32, i32, i32) {
    %c0_i32 = arith.constant 0 : i32
    %c0_i32_0 = arith.constant 0 : i32
    %c0_i32_1 = arith.constant 0 : i32
    return %arg0, %c0_i32, %c0_i32_0 : i32, i32, i32
  }
  func.func @transform_1(%arg0: i32) -> (i32, i32, i32, i32) {
    %c0_i32 = arith.constant 0 : i32
    %c0_i32_0 = arith.constant 0 : i32
    %c0_i32_1 = arith.constant 0 : i32
    %c0_i32_2 = arith.constant 0 : i32
    %c0_i32_3 = arith.constant 0 : i32
    return %c0_i32, %c0_i32_0, %c0_i32_1, %c0_i32_2 : i32, i32, i32, i32
  }
  func.func @transform_2(%arg0: i32) -> (i32, i32) {
    %c0_i32 = arith.constant 0 : i32
    %c0_i32_0 = arith.constant 0 : i32
    %c0_i32_1 = arith.constant 0 : i32
    return %c0_i32, %c0_i32_0 : i32, i32
  }
  func.func @transform_3(%arg0: i32) -> (i32, i32) {
    %c0_i32 = arith.constant 0 : i32
    %c0_i32_0 = arith.constant 0 : i32
    %c0_i32_1 = arith.constant 0 : i32
    return %c0_i32, %c0_i32_0 : i32, i32
  }
  func.func @transform_4(%arg0: i32) -> (i32, i32, i32) {
    %c0_i32 = arith.constant 0 : i32
    %c0_i32_0 = arith.constant 0 : i32
    %c0_i32_1 = arith.constant 0 : i32
    return %arg0, %c0_i32, %c0_i32_0 : i32, i32, i32
  }
}

</mosaic_0001>

<llo_original>
// kernel: attanet_head_forward.11
$region0: #{attanet_head_forward.11}
  #allocation0 [shape = 'u32[]', space=smem, size = 0x4, offset = 0x4, fixed_abs, tag = 'smem constant byte address 0x4 - core index']
  #allocation1 [shape = 'u32[144,128]{1,0:T(1,128)}', space=vmem, size = 0x12000, scoped, tag = 'internal scratch']
  %s0 = inlined_call_operand.vmem [shape: f32[2,16,128], index: 0, kind: input, shape index: {}]
  %s1 = inlined_call_operand.vmem [shape: f32[2,16,128], index: 1, kind: input, shape index: {}]
  %s2 = inlined_call_operand.vmem [shape: f32[2,1,128], index: 2, kind: input, shape index: {}]
  %s3 = inlined_call_operand.hbm [shape: f32[2,16,128], index: 3, kind: output, shape index: {0}]
  %s4 = inlined_call_operand.vmem [shape: f32[2,16,128], index: 4, kind: output, shape index: {1}]
  %5 = xla_tuple %s3, %s4
  %s6 = sld [smem:[#allocation0]]
  $region53: #{attanet_head_forward.11} parent=0
    _
  %s8 = ssub.s32 1, %s6
  %s9 = scalar_select 0, %s8, %s6
  $region1: #{attanet_head_forward.11} parent=0
    #allocation2 [shape = 'u8[16384]{0}', space=vmem, size = 0x4000, scoped, tag = 'output window, operand 0']
    #allocation3 [shape = 's32[2]{0}', space=sflag, size = 0x8, scoped, tag = 'scoped memory for attanet_head_forward.11']
    %10 = vsyncpa [#allocation3], 0
    %s11 = scalar_lea.sflag [#allocation3], 1
    %12 = vsyncpa %s11, 0
    loop: start=0, step=1, limit=4
    $region2: #{attanet_head_forward.11} parent=1 // loop_pre_header
      _
    $region3: #{attanet_head_forward.11} parent=1 // loop_header
      %s14 = sphi 0, %s18
      %p15 = scmp.ge.s32.totalorder %s14, 4
      %s24 = sphi 0, %s26
      %s27 = sphi 0, %s24
      %s28 = sphi 0, %s27
      %s44 = sphi 0, %s28
      %s50 = sphi 0, %s52
      %s53 = sphi 0, %s50
      %s54 = sphi 0, %s53
      %s70 = sphi 0, %s54
      %s76 = sphi 0, %s78
      %s79 = sphi 0, %s76
      %s80 = sphi 0, %s79
      %s96 = sphi 0, %s80
      %s102 = sphi 0, %s104
      %s105 = sphi 0, %s102
      %s106 = sphi 0, %s105
      %s122 = sphi 0, %s106
      %s128 = sphi 0, %s130
      %s131 = sphi 0, %s128
      %s132 = sphi 0, %s131
      %s148 = sphi 0, %s132
    $region4: #{attanet_head_forward.11} parent=1 // loop_header_branch
      %17 = sbr.rel (%p15) target = $region8
    $region5: #{attanet_head_forward.11} parent=1 // loop_body
      %s19 = ssub.s32 %s14, 1
      %s20 = ssub.s32 %s14, 2
      %s21 = sadd.s32 %s14, 1
      %s22 = ssub.s32 %s14, %s21
      %p23 = scmp.eq.s32.totalorder %s22, 0
      %s25 = sadd.s32 %s24, 1
      %s26 = scalar_select %p23, %s24, %s25
      %p29 = pneg %p23
      %p30 = scmp.eq.s32.totalorder %s14, 1
      %p31 = por %p29, %p30
      %p32 = scmp.ne.s32.totalorder %s24, %s27
      %p33 = scmp.eq.s32.totalorder %s14, 0
      %p34 = por %p32, %p33
      %p35 = scmp.ne.s32.totalorder %s24, %s27
      %p36 = scmp.eq.s32.totalorder %s19, 1
      %p37 = por %p35, %p36
      %p38 = scmp.ne.s32.totalorder %s27, %s28
      %p39 = scmp.eq.s32.totalorder %s19, 0
      %p40 = por %p38, %p39
      %p41 = scmp.ne.s32.totalorder %s27, %s28
      %p42 = scmp.eq.s32.totalorder %s20, 1
      %p43 = por %p41, %p42
      %p45 = scmp.ne.s32.totalorder %s28, %s44
      %p46 = scmp.eq.s32.totalorder %s20, 0
      %p47 = por %p45, %p46
      %s48 = ssub.s32 %s14, %s21
      %p49 = scmp.eq.s32.totalorder %s48, 0
      %s51 = sadd.s32 %s50, 1
      %s52 = scalar_select %p49, %s50, %s51
      %p55 = pneg %p49
      %p56 = scmp.eq.s32.totalorder %s14, 1
      %p57 = por %p55, %p56
      %p58 = scmp.ne.s32.totalorder %s50, %s53
      %p59 = scmp.eq.s32.totalorder %s14, 0
      %p60 = por %p58, %p59
      %p61 = scmp.ne.s32.totalorder %s50, %s53
      %p62 = scmp.eq.s32.totalorder %s19, 1
      %p63 = por %p61, %p62
      %p64 = scmp.ne.s32.totalorder %s53, %s54
      %p65 = scmp.eq.s32.totalorder %s19, 0
      %p66 = por %p64, %p65
      %p67 = scmp.ne.s32.totalorder %s53, %s54
      %p68 = scmp.eq.s32.totalorder %s20, 1
      %p69 = por %p67, %p68
      %p71 = scmp.ne.s32.totalorder %s54, %s70
      %p72 = scmp.eq.s32.totalorder %s20, 0
      %p73 = por %p71, %p72
      %s74 = ssub.s32 %s14, %s21
      %p75 = scmp.eq.s32.totalorder %s74, 0
      %s77 = sadd.s32 %s76, 1
      %s78 = scalar_select %p75, %s76, %s77
      %p81 = pneg %p75
      %p82 = scmp.eq.s32.totalorder %s14, 1
      %p83 = por %p81, %p82
      %p84 = scmp.ne.s32.totalorder %s76, %s79
      %p85 = scmp.eq.s32.totalorder %s14, 0
      %p86 = por %p84, %p85
      %p87 = scmp.ne.s32.totalorder %s76, %s79
      %p88 = scmp.eq.s32.totalorder %s19, 1
      %p89 = por %p87, %p88
      %p90 = scmp.ne.s32.totalorder %s79, %s80
      %p91 = scmp.eq.s32.totalorder %s19, 0
      %p92 = por %p90, %p91
      %p93 = scmp.ne.s32.totalorder %s79, %s80
      %p94 = scmp.eq.s32.totalorder %s20, 1
      %p95 = por %p93, %p94
      %p97 = scmp.ne.s32.totalorder %s80, %s96
      %p98 = scmp.eq.s32.totalorder %s20, 0
      %p99 = por %p97, %p98
      %s100 = ssub.s32 %s14, %s21
      %p101 = scmp.eq.s32.totalorder %s100, 0
      %s103 = sadd.s32 %s102, 1
      %s104 = scalar_select %p101, %s102, %s103
      %p107 = pneg %p101
      %p108 = scmp.eq.s32.totalorder %s14, 1
      %p109 = por %p107, %p108
      %p110 = scmp.ne.s32.totalorder %s102, %s105
      %p111 = scmp.eq.s32.totalorder %s14, 0
      %p112 = por %p110, %p111
      %p113 = scmp.ne.s32.totalorder %s102, %s105
      %p114 = scmp.eq.s32.totalorder %s19, 1
      %p115 = por %p113, %p114
      %p116 = scmp.ne.s32.totalorder %s105, %s106
      %p117 = scmp.eq.s32.totalorder %s19, 0
      %p118 = por %p116, %p117
      %p119 = scmp.ne.s32.totalorder %s105, %s106
      %p120 = scmp.eq.s32.totalorder %s20, 1
      %p121 = por %p119, %p120
      %p123 = scmp.ne.s32.totalorder %s106, %s122
      %p124 = scmp.eq.s32.totalorder %s20, 0
      %p125 = por %p123, %p124
      %s126 = ssub.s32 %s14, %s21
      %p127 = scmp.eq.s32.totalorder %s126, 0
      %s129 = sadd.s32 %s128, 1
      %s130 = scalar_select %p127, %s128, %s129
      %p133 = pneg %p127
      %p134 = scmp.eq.s32.totalorder %s14, 1
      %p135 = por %p133, %p134
      %p136 = scmp.ne.s32.totalorder %s128, %s131
      %p137 = scmp.eq.s32.totalorder %s14, 0
      %p138 = por %p136, %p137
      %p139 = scmp.ne.s32.totalorder %s128, %s131
      %p140 = scmp.eq.s32.totalorder %s19, 1
      %p141 = por %p139, %p140
      %p142 = scmp.ne.s32.totalorder %s131, %s132
      %p143 = scmp.eq.s32.totalorder %s19, 0
      %p144 = por %p142, %p143
      %p145 = scmp.ne.s32.totalorder %s131, %s132
      %p146 = scmp.eq.s32.totalorder %s20, 1
      %p147 = por %p145, %p146
      %p149 = scmp.ne.s32.totalorder %s132, %s148
      %p150 = scmp.eq.s32.totalorder %s20, 0
      %p151 = por %p149, %p150
      %p152 = scmp.le.s32.totalorder 1, %s14
      %p153 = scmp.lt.s32.totalorder %s14, 3
      %p154 = pnand %p152, %p153
      %p155 = pneg %p154
      // Predicated region
      $region9: #{attanet_head_forward.11} parent=5 // pred_check
        _
      $region10: #{attanet_head_forward.11} parent=5 // pred_check_branch
        %157 = sbr.rel (%p154) target = $region12
      $region11: #{attanet_head_forward.11} parent=5 // pred_region
        %s158 = ssub.s32 %s14, 1
      $region12: #{attanet_head_forward.11} parent=5 // pred_fallthru
        _
      %p159 = scmp.lt.s32.totalorder %s14, 2
      // Predicated region
      $region13: #{attanet_head_forward.11} parent=5 // pred_check
        %p160 = pneg %p159
      $region14: #{attanet_head_forward.11} parent=5 // pred_check_branch
        %162 = sbr.rel (%p160) target = $region16
      $region15: #{attanet_head_forward.11} parent=5 // pred_region
        // Predicated region
        $region17: #{attanet_head_forward.11} parent=15 // pred_check
          %p163 = pneg %p34
        $region18: #{attanet_head_forward.11} parent=15 // pred_check_branch
          %165 = sbr.rel (%p163) target = $region20
        $region19: #{attanet_head_forward.11} parent=15 // pred_region
          %p166 = scmp.lt.s32.totalorder %s14, 1
          %s167 = scalar_select %p166, %s14, 1
          %s168 = smul.addr %s167, 2
          %s169 = smul.addr %s168, 8
          %s170 = scalar_lea.vmem %s0, %s169
        $region20: #{attanet_head_forward.11} parent=15 // pred_fallthru
          _
        // Predicated region
        $region21: #{attanet_head_forward.11} parent=15 // pred_check
          %p171 = pneg %p60
        $region22: #{attanet_head_forward.11} parent=15 // pred_check_branch
          %173 = sbr.rel (%p171) target = $region24
        $region23: #{attanet_head_forward.11} parent=15 // pred_region
          %p174 = scmp.lt.s32.totalorder %s14, 1
          %s175 = scalar_select %p174, %s14, 1
          %s176 = smul.addr %s175, 2
          %s177 = smul.addr %s176, 8
          %s178 = scalar_lea.vmem %s1, %s177
        $region24: #{attanet_head_forward.11} parent=15 // pred_fallthru
          _
        // Predicated region
        $region25: #{attanet_head_forward.11} parent=15 // pred_check
          %p179 = pneg %p86
        $region26: #{attanet_head_forward.11} parent=15 // pred_check_branch
          %181 = sbr.rel (%p179) target = $region28
        $region27: #{attanet_head_forward.11} parent=15 // pred_region
          %p182 = scmp.lt.s32.totalorder %s14, 1
          %s183 = scalar_select %p182, %s14, 1
          %s184 = scalar_lea.vmem %s2, %s183
        $region28: #{attanet_head_forward.11} parent=15 // pred_fallthru
          _
      $region16: #{attanet_head_forward.11} parent=5 // pred_fallthru
        _
      %p185 = scmp.le.s32.totalorder 1, %s14
      %p186 = scmp.lt.s32.totalorder %s14, 3
      %p187 = pnand %p185, %p186
      %p188 = pneg %p187
      // Predicated region
      $region29: #{attanet_head_forward.11} parent=5 // pred_check
        _
      $region30: #{attanet_head_forward.11} parent=5 // pred_check_branch
        %190 = sbr.rel (%p187) target = $region32
      $region31: #{attanet_head_forward.11} parent=5 // pred_region
        %s191 = ssub.s32 %s14, 1
        %p192 = scmp.lt.s32.totalorder %s19, 1
        %s193 = scalar_select %p192, %s19, 1
        %s194 = smul.addr %s193, 2
        %s195 = smul.addr %s194, 8
        %s196 = scalar_lea.vmem %s0, %s195
        %p197 = pneg %p40
        %p198 = pneg %p37
        %p199 = scmp.lt.s32.totalorder %s19, 1
        %s200 = scalar_select %p199, %s19, 1
        %s201 = smul.addr %s200, 2
        %s202 = smul.addr %s201, 8
        %s203 = scalar_lea.vmem %s1, %s202
        %p204 = pneg %p66
        %p205 = pneg %p63
        %p206 = scmp.lt.s32.totalorder %s19, 1
        %s207 = scalar_select %p206, %s19, 1
        %s208 = scalar_lea.vmem %s2, %s207
        %p209 = pneg %p92
        %p210 = pneg %p89
        %p211 = pneg %p118
        %p212 = pneg %p115
        %s213 = sand.u32 %s105, 1
        %s214 = scalar_lea.sflag [#allocation3], %s213
        %s215 = sand.u32 %s105, 1
        %s216 = smul.addr %s215, 16
        %s217 = scalar_lea.vmem [#allocation2], %s216
        %p218 = pneg %p144
        %p219 = pneg %p141
        %p220 = scmp.lt.s32.totalorder %s19, 1
        %s221 = scalar_select %p220, %s19, 1
        %s222 = smul.addr %s221, 2
        %s223 = smul.addr %s222, 8
        %s224 = scalar_lea.vmem %s4, %s223
        %p225 = scmp.lt.s32.totalorder %s19, 1
        %s226 = scalar_select %p225, %s19, 1
        %s227 = smul.addr %s226, 2
        %s228 = smul.addr %s227, 8
        %s229 = scalar_lea.vmem %s0, %s228
        %p230 = scmp.lt.s32.totalorder %s19, 1
        %s231 = scalar_select %p230, %s19, 1
        %s232 = smul.addr %s231, 2
        %s233 = smul.addr %s232, 8
        %s234 = scalar_lea.vmem %s1, %s233
        %p235 = scmp.lt.s32.totalorder %s19, 1
        %s236 = scalar_select %p235, %s19, 1
        %s237 = scalar_lea.vmem %s2, %s236
        %p238 = scmp.lt.s32.totalorder %s19, 1
        %s239 = scalar_select %p238, %s19, 1
        %s240 = smul.addr %s239, 2
        %s241 = smul.addr %s240, 8
        %s242 = scalar_lea.vmem %s4, %s241
        %v243 = vld [vmem:[%s237] sm:$0x1]
        %v244 = vld [vmem:[%s234] sm:$0xff]
        %v245 = vld [vmem:[%s234 + $0x8] sm:$0xff]
        %v247 = vlaneseq
        %v248 = vshrl.u32 %v247, 7
        %v249 = vsub.s32 0, %v248
        %v250 = vrot.slane %v243, %v249
        %v252 = vmul.f32 %v244, %v250
        %v253 = vmul.f32 %v245, %v250
        %254 = vst [vmem:[%s217] sm:$0xff] %v252
        %255 = vst [vmem:[%s217 + $0x8] sm:$0xff] %v253
        %v256 = vld [vmem:[%s229] sm:$0xff]
        %v257 = vld [vmem:[%s229 + $0x8] sm:$0xff]
        %v258 = vsub.f32 1.0, %v243
        %v260 = vlaneseq
        %v261 = vshrl.u32 %v260, 7
        %v262 = vsub.s32 0, %v261
        %v263 = vrot.slane %v258, %v262
        %v265 = vmul.f32 %v256, %v263
        %v266 = vmul.f32 %v257, %v263
        %v267 = vadd.f32 %v265, %v252
        %v268 = vadd.f32 %v266, %v253
        %269 = vst [vmem:[%s242] sm:$0xff] %v267
        %270 = vst [vmem:[%s242 + $0x8] sm:$0xff] %v268
        %s271 = sand.u32 %s105, 1
        %s272 = scalar_lea.sflag [#allocation3], %s271
        %s273 = sand.u32 %s105, 1
        %s274 = smul.addr %s273, 16
        %s275 = scalar_lea.vmem [#allocation2], %s274
        %p276 = scmp.lt.s32.totalorder %s19, 1
        %s277 = scalar_select %p276, %s19, 1
        %s278 = smul.addr %s277, 2
        %s279 = smul.addr %s278, 8
        %s280 = scalar_lea.vmem %s4, %s279
        // Predicated region
        $region33: #{attanet_head_forward.11} parent=31 // pred_check
          %p281 = pneg %p115
        $region34: #{attanet_head_forward.11} parent=31 // pred_check_branch
          %283 = sbr.rel (%p281) target = $region36
        $region35: #{attanet_head_forward.11} parent=31 // pred_region
          %s285 = ssub.s32 256, 256
          %286 = vsyncadd %s272, %s285
          %s287 = smul.addr %s19, 2
          %s288 = smul.addr %s287, 128
          %s289 = scalar_lea.hbm %s3, %s288
          %s290 = sshll.u32 %s275, 4
          %s291 = int_to_ptr.vmem [resolvable:$true] %s290
          %296 = dma.vmem_to_hbm [thread:$0]  %s291, 256, %s289, %s272, 128, 128, 8
        $region36: #{attanet_head_forward.11} parent=31 // pred_fallthru
          _
        // Predicated region
        $region37: #{attanet_head_forward.11} parent=31 // pred_check
          %p297 = pneg %p141
        $region38: #{attanet_head_forward.11} parent=31 // pred_check_branch
          %299 = sbr.rel (%p297) target = $region40
        $region39: #{attanet_head_forward.11} parent=31 // pred_region
          _
        $region40: #{attanet_head_forward.11} parent=31 // pred_fallthru
          _
      $region32: #{attanet_head_forward.11} parent=5 // pred_fallthru
        _
      %p300 = scmp.le.s32.totalorder 2, %s14
      // Predicated region
      $region41: #{attanet_head_forward.11} parent=5 // pred_check
        %p301 = pneg %p300
      $region42: #{attanet_head_forward.11} parent=5 // pred_check_branch
        %303 = sbr.rel (%p301) target = $region44
      $region43: #{attanet_head_forward.11} parent=5 // pred_region
        %s304 = ssub.s32 %s14, 2
        // Predicated region
        $region45: #{attanet_head_forward.11} parent=43 // pred_check
          %p305 = pneg %p121
        $region46: #{attanet_head_forward.11} parent=43 // pred_check_branch
          %307 = sbr.rel (%p305) target = $region48
        $region47: #{attanet_head_forward.11} parent=43 // pred_region
          %s308 = sand.u32 %s106, 1
          %s309 = scalar_lea.sflag [#allocation3], %s308
          %s310 = sand.u32 %s106, 1
          %s311 = smul.addr %s310, 16
          %s312 = scalar_lea.vmem [#allocation2], %s311
          %313 = dma.done %s309, 256
        $region48: #{attanet_head_forward.11} parent=43 // pred_fallthru
          _
        // Predicated region
        $region49: #{attanet_head_forward.11} parent=43 // pred_check
          %p314 = pneg %p147
        $region50: #{attanet_head_forward.11} parent=43 // pred_check_branch
          %316 = sbr.rel (%p314) target = $region52
        $region51: #{attanet_head_forward.11} parent=43 // pred_region
          %p317 = scmp.lt.s32.totalorder %s20, 1
          %s318 = scalar_select %p317, %s20, 1
          %s319 = smul.addr %s318, 2
          %s320 = smul.addr %s319, 8
          %s321 = scalar_lea.vmem %s4, %s320
        $region52: #{attanet_head_forward.11} parent=43 // pred_fallthru
          _
      $region44: #{attanet_head_forward.11} parent=5 // pred_fallthru
        _
    $region6: #{attanet_head_forward.11} parent=1 // loop_footer
      %s18 = sadd.s32 1, %s14
    $region7: #{attanet_head_forward.11} parent=1 // loop_footer_branch
      %13 = sbr.rel target = $region3
    $region8: #{attanet_head_forward.11} parent=1 // loop_exit
      _
    %322 = vsyncpa [#allocation3], 1
    %s323 = scalar_lea.sflag [#allocation3], 1
    %324 = vsyncpa %s323, 1

// kernel: attanet_head_forward.9
$region0: #{attanet_head_forward.9}
  #allocation0 [shape = 'u32[]', space=smem, size = 0x4, offset = 0x4, fixed_abs, tag = 'smem constant byte address 0x4 - core index']
  #allocation1 [shape = 'u32[144,128]{1,0:T(1,128)}', space=vmem, size = 0x12000, scoped, tag = 'internal scratch']
  #allocation2 [shape = 'f32[32,128]{1,0:T(8,128)}', space=vmem, size = 0x4000, scoped, tag = 'scratch operand']
  %s0 = inlined_call_operand.vmem [shape: bf16[32,640], index: 0, kind: input, shape index: {}]
  %s1 = inlined_call_operand.vmem [shape: bf16[640,128], index: 1, kind: input, shape index: {}]
  %s2 = inlined_call_operand.vmem [shape: f32[1,128], index: 2, kind: input, shape index: {}]
  %s3 = inlined_call_operand.vmem [shape: f32[1,128], index: 3, kind: input, shape index: {}]
  %s4 = inlined_call_operand.vmem [shape: f32[32,128], index: 4, kind: output, shape index: {}]
  %s5 = sld [smem:[#allocation0]]
  $region34: #{attanet_head_forward.9} parent=0
    _
  %s7 = ssub.s32 1, %s5
  %s8 = scalar_select 0, %s7, %s5
  // Predicated region
  $region2: #{attanet_head_forward.9} parent=0 // pred_check
    _
  $region3: #{attanet_head_forward.9} parent=0 // pred_check_branch
    %10 = sbr.rel (0) target = $region5
  $region4: #{attanet_head_forward.9} parent=0 // pred_region
    _
  $region5: #{attanet_head_forward.9} parent=0 // pred_fallthru
    _
  // Predicated region
  $region6: #{attanet_head_forward.9} parent=0 // pred_check
    _
  $region7: #{attanet_head_forward.9} parent=0 // pred_check_branch
    %12 = sbr.rel (0) target = $region9
  $region8: #{attanet_head_forward.9} parent=0 // pred_region
    _
  $region9: #{attanet_head_forward.9} parent=0 // pred_fallthru
    _
  // Predicated region
  $region10: #{attanet_head_forward.9} parent=0 // pred_check
    _
  $region11: #{attanet_head_forward.9} parent=0 // pred_check_branch
    %14 = sbr.rel (0) target = $region13
  $region12: #{attanet_head_forward.9} parent=0 // pred_region
    _
  $region13: #{attanet_head_forward.9} parent=0 // pred_fallthru
    _
  // Predicated region
  $region14: #{attanet_head_forward.9} parent=0 // pred_check
    _
  $region15: #{attanet_head_forward.9} parent=0 // pred_check_branch
    %16 = sbr.rel (0) target = $region17
  $region16: #{attanet_head_forward.9} parent=0 // pred_region
    _
  $region17: #{attanet_head_forward.9} parent=0 // pred_fallthru
    _
  %p18 = scmp.eq.s32.totalorder 0, 0
  // Predicated region
  $region18: #{attanet_head_forward.9} parent=0 // pred_check
    %p19 = pneg %p18
  $region19: #{attanet_head_forward.9} parent=0 // pred_check_branch
    %21 = sbr.rel (%p19) target = $region21
  $region20: #{attanet_head_forward.9} parent=0 // pred_region
    %22 = vst [vmem:[#allocation2] sm:$0xff] 0.0
    %23 = vst [vmem:[#allocation2 + $0x8] sm:$0xff] 0.0
    %24 = vst [vmem:[#allocation2 + $0x10] sm:$0xff] 0.0
    %25 = vst [vmem:[#allocation2 + $0x18] sm:$0xff] 0.0
  $region21: #{attanet_head_forward.9} parent=0 // pred_fallthru
    _
  %v26 = vld [vmem:[#allocation2] sm:$0xff]
  %v27 = vld [vmem:[#allocation2 + $0x8] sm:$0xff]
  %v28 = vld [vmem:[#allocation2 + $0x10] sm:$0xff]
  %v29 = vld [vmem:[#allocation2 + $0x18] sm:$0xff]
  %v30 = vld [vmem:[%s0] sm:$0xff]
  %v31 = vld [vmem:[%s0 + $0x8] sm:$0xff]
  %v32 = vld [vmem:[%s0 + $0x10] sm:$0xf]
  %v33 = vld [vmem:[%s0 + $0x14] sm:$0xff]
  %v34 = vld [vmem:[%s0 + $0x1c] sm:$0xff]
  %v35 = vld [vmem:[%s0 + $0x24] sm:$0xf]
  %v36 = vld [vmem:[%s0 + $0x28] sm:$0xff]
  %v37 = vld [vmem:[%s0 + $0x30] sm:$0xff]
  %v38 = vld [vmem:[%s0 + $0x38] sm:$0xf]
  %v39 = vld [vmem:[%s0 + $0x3c] sm:$0xff]
  %v40 = vld [vmem:[%s0 + $0x44] sm:$0xff]
  %v41 = vld [vmem:[%s0 + $0x4c] sm:$0xf]
  %v42 = vld [vmem:[%s1] sm:$0xf]
  %v43 = vld [vmem:[%s1 + $0x4] sm:$0xf]
  %v44 = vld [vmem:[%s1 + $0x8] sm:$0xf]
  %v45 = vld [vmem:[%s1 + $0xc] sm:$0xf]
  %v46 = vld [vmem:[%s1 + $0x10] sm:$0xf]
  %v47 = vld [vmem:[%s1 + $0x14] sm:$0xf]
  %v48 = vld [vmem:[%s1 + $0x18] sm:$0xf]
  %v49 = vld [vmem:[%s1 + $0x1c] sm:$0xf]
  %v50 = vld [vmem:[%s1 + $0x20] sm:$0xf]
  %v51 = vld [vmem:[%s1 + $0x24] sm:$0xf]
  %v52 = vld [vmem:[%s1 + $0x28] sm:$0xf]
  %v53 = vld [vmem:[%s1 + $0x2c] sm:$0xf]
  %v54 = vld [vmem:[%s1 + $0x30] sm:$0xf]
  %v55 = vld [vmem:[%s1 + $0x34] sm:$0xf]
  %v56 = vld [vmem:[%s1 + $0x38] sm:$0xf]
  %v57 = vld [vmem:[%s1 + $0x3c] sm:$0xf]
  %v58 = vld [vmem:[%s1 + $0x40] sm:$0xf]
  %v59 = vld [vmem:[%s1 + $0x44] sm:$0xf]
  %v60 = vld [vmem:[%s1 + $0x48] sm:$0xf]
  %v61 = vld [vmem:[%s1 + $0x4c] sm:$0xf]
  %v62 = vld [vmem:[%s1 + $0x50] sm:$0xf]
  %v63 = vld [vmem:[%s1 + $0x54] sm:$0xf]
  %v64 = vld [vmem:[%s1 + $0x58] sm:$0xf]
  %v65 = vld [vmem:[%s1 + $0x5c] sm:$0xf]
  %v66 = vld [vmem:[%s1 + $0x60] sm:$0xf]
  %v67 = vld [vmem:[%s1 + $0x64] sm:$0xf]
  %v68 = vld [vmem:[%s1 + $0x68] sm:$0xf]
  %v69 = vld [vmem:[%s1 + $0x6c] sm:$0xf]
  %v70 = vld [vmem:[%s1 + $0x70] sm:$0xf]
  %v71 = vld [vmem:[%s1 + $0x74] sm:$0xf]
  %v72 = vld [vmem:[%s1 + $0x78] sm:$0xf]
  %v73 = vld [vmem:[%s1 + $0x7c] sm:$0xf]
  %v74 = vld [vmem:[%s1 + $0x80] sm:$0xf]
  %v75 = vld [vmem:[%s1 + $0x84] sm:$0xf]
  %v76 = vld [vmem:[%s1 + $0x88] sm:$0xf]
  %v77 = vld [vmem:[%s1 + $0x8c] sm:$0xf]
  %v78 = vld [vmem:[%s1 + $0x90] sm:$0xf]
  %v79 = vld [vmem:[%s1 + $0x94] sm:$0xf]
  %v80 = vld [vmem:[%s1 + $0x98] sm:$0xf]
  %v81 = vld [vmem:[%s1 + $0x9c] sm:$0xf]
  %v82 = vld [vmem:[%s1 + $0xa0] sm:$0xf]
  %v83 = vld [vmem:[%s1 + $0xa4] sm:$0xf]
  %v84 = vld [vmem:[%s1 + $0xa8] sm:$0xf]
  %v85 = vld [vmem:[%s1 + $0xac] sm:$0xf]
  %v86 = vld [vmem:[%s1 + $0xb0] sm:$0xf]
  %v87 = vld [vmem:[%s1 + $0xb4] sm:$0xf]
  %v88 = vld [vmem:[%s1 + $0xb8] sm:$0xf]
  %v89 = vld [vmem:[%s1 + $0xbc] sm:$0xf]
  %v90 = vld [vmem:[%s1 + $0xc0] sm:$0xf]
  %v91 = vld [vmem:[%s1 + $0xc4] sm:$0xf]
  %v92 = vld [vmem:[%s1 + $0xc8] sm:$0xf]
  %v93 = vld [vmem:[%s1 + $0xcc] sm:$0xf]
  %v94 = vld [vmem:[%s1 + $0xd0] sm:$0xf]
  %v95 = vld [vmem:[%s1 + $0xd4] sm:$0xf]
  %v96 = vld [vmem:[%s1 + $0xd8] sm:$0xf]
  %v97 = vld [vmem:[%s1 + $0xdc] sm:$0xf]
  %v98 = vld [vmem:[%s1 + $0xe0] sm:$0xf]
  %v99 = vld [vmem:[%s1 + $0xe4] sm:$0xf]
  %v100 = vld [vmem:[%s1 + $0xe8] sm:$0xf]
  %v101 = vld [vmem:[%s1 + $0xec] sm:$0xf]
  %v102 = vld [vmem:[%s1 + $0xf0] sm:$0xf]
  %v103 = vld [vmem:[%s1 + $0xf4] sm:$0xf]
  %v104 = vld [vmem:[%s1 + $0xf8] sm:$0xf]
  %v105 = vld [vmem:[%s1 + $0xfc] sm:$0xf]
  %v106 = vld [vmem:[%s1 + $0x100] sm:$0xf]
  %v107 = vld [vmem:[%s1 + $0x104] sm:$0xf]
  %v108 = vld [vmem:[%s1 + $0x108] sm:$0xf]
  %v109 = vld [vmem:[%s1 + $0x10c] sm:$0xf]
  %v110 = vld [vmem:[%s1 + $0x110] sm:$0xf]
  %v111 = vld [vmem:[%s1 + $0x114] sm:$0xf]
  %v112 = vld [vmem:[%s1 + $0x118] sm:$0xf]
  %v113 = vld [vmem:[%s1 + $0x11c] sm:$0xf]
  %v114 = vld [vmem:[%s1 + $0x120] sm:$0xf]
  %v115 = vld [vmem:[%s1 + $0x124] sm:$0xf]
  %v116 = vld [vmem:[%s1 + $0x128] sm:$0xf]
  %v117 = vld [vmem:[%s1 + $0x12c] sm:$0xf]
  %v118 = vld [vmem:[%s1 + $0x130] sm:$0xf]
  %v119 = vld [vmem:[%s1 + $0x134] sm:$0xf]
  %v120 = vld [vmem:[%s1 + $0x138] sm:$0xf]
  %v121 = vld [vmem:[%s1 + $0x13c] sm:$0xf]
  %v134 = vunpack.c.l.b16 %v30
  %v135 = vunpack.c.h.b16 %v30
  %v136 = vunpack.c.l.b16 %v31
  %v137 = vunpack.c.h.b16 %v31
  %v138 = vunpack.c.l.b16 %v32
  %v139 = vunpack.c.l.b16 %v33
  %v140 = vunpack.c.h.b16 %v33
  %v141 = vunpack.c.l.b16 %v34
  %v142 = vunpack.c.h.b16 %v34
  %v143 = vunpack.c.l.b16 %v35
  %v144 = vunpack.c.l.b16 %v36
  %v145 = vunpack.c.h.b16 %v36
  %v146 = vunpack.c.l.b16 %v37
  %v147 = vunpack.c.h.b16 %v37
  %v148 = vunpack.c.l.b16 %v38
  %v149 = vunpack.c.l.b16 %v39
  %v150 = vunpack.c.h.b16 %v39
  %v151 = vunpack.c.l.b16 %v40
  %v152 = vunpack.c.h.b16 %v40
  %v153 = vunpack.c.l.b16 %v41
  %v154 = vpack.c.b16 %v139, %v134
  %v155 = vpack.c.b16 %v140, %v135
  %v156 = vpack.c.b16 %v141, %v136
  %v157 = vpack.c.b16 %v142, %v137
  %v158 = vpack.c.b16 %v143, %v138
  %v159 = vpack.c.b16 %v149, %v144
  %v160 = vpack.c.b16 %v150, %v145
  %v161 = vpack.c.b16 %v151, %v146
  %v162 = vpack.c.b16 %v152, %v147
  %v163 = vpack.c.b16 %v153, %v148
  %v254 = vunpack.c.l.b16 %v42
  %v255 = vunpack.c.l.b16 %v43
  %v256 = vunpack.c.l.b16 %v44
  %v257 = vunpack.c.l.b16 %v45
  %v258 = vunpack.c.l.b16 %v46
  %v259 = vunpack.c.l.b16 %v47
  %v260 = vunpack.c.l.b16 %v48
  %v261 = vunpack.c.l.b16 %v49
  %v262 = vunpack.c.l.b16 %v50
  %v263 = vunpack.c.l.b16 %v51
  %v264 = vunpack.c.l.b16 %v52
  %v265 = vunpack.c.l.b16 %v53
  %v266 = vunpack.c.l.b16 %v54
  %v267 = vunpack.c.l.b16 %v55
  %v268 = vunpack.c.l.b16 %v56
  %v269 = vunpack.c.l.b16 %v57
  %v270 = vunpack.c.l.b16 %v58
  %v271 = vunpack.c.l.b16 %v59
  %v272 = vunpack.c.l.b16 %v60
  %v273 = vunpack.c.l.b16 %v61
  %v274 = vunpack.c.l.b16 %v62
  %v275 = vunpack.c.l.b16 %v63
  %v276 = vunpack.c.l.b16 %v64
  %v277 = vunpack.c.l.b16 %v65
  %v278 = vunpack.c.l.b16 %v66
  %v279 = vunpack.c.l.b16 %v67
  %v280 = vunpack.c.l.b16 %v68
  %v281 = vunpack.c.l.b16 %v69
  %v282 = vunpack.c.l.b16 %v70
  %v283 = vunpack.c.l.b16 %v71
  %v284 = vunpack.c.l.b16 %v72
  %v285 = vunpack.c.l.b16 %v73
  %v286 = vunpack.c.l.b16 %v74
  %v287 = vunpack.c.l.b16 %v75
  %v288 = vunpack.c.l.b16 %v76
  %v289 = vunpack.c.l.b16 %v77
  %v290 = vunpack.c.l.b16 %v78
  %v291 = vunpack.c.l.b16 %v79
  %v292 = vunpack.c.l.b16 %v80
  %v293 = vunpack.c.l.b16 %v81
  %v294 = vunpack.c.l.b16 %v82
  %v295 = vunpack.c.l.b16 %v83
  %v296 = vunpack.c.l.b16 %v84
  %v297 = vunpack.c.l.b16 %v85
  %v298 = vunpack.c.l.b16 %v86
  %v299 = vunpack.c.l.b16 %v87
  %v300 = vunpack.c.l.b16 %v88
  %v301 = vunpack.c.l.b16 %v89
  %v302 = vunpack.c.l.b16 %v90
  %v303 = vunpack.c.l.b16 %v91
  %v304 = vunpack.c.l.b16 %v92
  %v305 = vunpack.c.l.b16 %v93
  %v306 = vunpack.c.l.b16 %v94
  %v307 = vunpack.c.l.b16 %v95
  %v308 = vunpack.c.l.b16 %v96
  %v309 = vunpack.c.l.b16 %v97
  %v310 = vunpack.c.l.b16 %v98
  %v311 = vunpack.c.l.b16 %v99
  %v312 = vunpack.c.l.b16 %v100
  %v313 = vunpack.c.l.b16 %v101
  %v314 = vunpack.c.l.b16 %v102
  %v315 = vunpack.c.l.b16 %v103
  %v316 = vunpack.c.l.b16 %v104
  %v317 = vunpack.c.l.b16 %v105
  %v318 = vunpack.c.l.b16 %v106
  %v319 = vunpack.c.l.b16 %v107
  %v320 = vunpack.c.l.b16 %v108
  %v321 = vunpack.c.l.b16 %v109
  %v322 = vunpack.c.l.b16 %v110
  %v323 = vunpack.c.l.b16 %v111
  %v324 = vunpack.c.l.b16 %v112
  %v325 = vunpack.c.l.b16 %v113
  %v326 = vunpack.c.l.b16 %v114
  %v327 = vunpack.c.l.b16 %v115
  %v328 = vunpack.c.l.b16 %v116
  %v329 = vunpack.c.l.b16 %v117
  %v330 = vunpack.c.l.b16 %v118
  %v331 = vunpack.c.l.b16 %v119
  %v332 = vunpack.c.l.b16 %v120
  %v333 = vunpack.c.l.b16 %v121
  %v334 = vpack.c.b16 %v255, %v254
  %v335 = vpack.c.b16 %v257, %v256
  %v336 = vpack.c.b16 %v259, %v258
  %v337 = vpack.c.b16 %v261, %v260
  %v338 = vpack.c.b16 %v263, %v262
  %v339 = vpack.c.b16 %v265, %v264
  %v340 = vpack.c.b16 %v267, %v266
  %v341 = vpack.c.b16 %v269, %v268
  %v342 = vpack.c.b16 %v271, %v270
  %v343 = vpack.c.b16 %v273, %v272
  %v344 = vpack.c.b16 %v275, %v274
  %v345 = vpack.c.b16 %v277, %v276
  %v346 = vpack.c.b16 %v279, %v278
  %v347 = vpack.c.b16 %v281, %v280
  %v348 = vpack.c.b16 %v283, %v282
  %v349 = vpack.c.b16 %v285, %v284
  %v350 = vpack.c.b16 %v287, %v286
  %v351 = vpack.c.b16 %v289, %v288
  %v352 = vpack.c.b16 %v291, %v290
  %v353 = vpack.c.b16 %v293, %v292
  %v354 = vpack.c.b16 %v295, %v294
  %v355 = vpack.c.b16 %v297, %v296
  %v356 = vpack.c.b16 %v299, %v298
  %v357 = vpack.c.b16 %v301, %v300
  %v358 = vpack.c.b16 %v303, %v302
  %v359 = vpack.c.b16 %v305, %v304
  %v360 = vpack.c.b16 %v307, %v306
  %v361 = vpack.c.b16 %v309, %v308
  %v362 = vpack.c.b16 %v311, %v310
  %v363 = vpack.c.b16 %v313, %v312
  %v364 = vpack.c.b16 %v315, %v314
  %v365 = vpack.c.b16 %v317, %v316
  %v366 = vpack.c.b16 %v319, %v318
  %v367 = vpack.c.b16 %v321, %v320
  %v368 = vpack.c.b16 %v323, %v322
  %v369 = vpack.c.b16 %v325, %v324
  %v370 = vpack.c.b16 %v327, %v326
  %v371 = vpack.c.b16 %v329, %v328
  %v372 = vpack.c.b16 %v331, %v330
  %v373 = vpack.c.b16 %v333, %v332
  %414 = vmatprep.subr.bf16.mxu0 0
  %415 = vmatpush1.bf16.msra.mxu0 %v334
  %416 = vmatprep.subr.bf16.mxu0 0
  %417 = vmatpush1.bf16.msra.mxu0 %v335
  %418 = vmatprep.subr.bf16.mxu0 0
  %419 = vmatpush1.bf16.msra.mxu0 %v336
  %420 = vmatprep.subr.bf16.mxu0 0
  %421 = vmatpush1.bf16.msra.mxu0 %v337
  %422 = vmatprep.subr.bf16.mxu0 0
  %423 = vmatpush1.bf16.msra.mxu0 %v338
  %424 = vmatprep.subr.bf16.mxu0 0
  %425 = vmatpush1.bf16.msra.mxu0 %v339
  %426 = vmatprep.subr.bf16.mxu0 0
  %427 = vmatpush1.bf16.msra.mxu0 %v340
  %428 = vmatprep.subr.bf16.mxu0 0
  %429 = vmatpush1.bf16.msra.mxu0 %v341
  %430 = vmatprep.subr.bf16.mxu0 0
  %431 = vmatpush1.bf16.msra.mxu0 %v342
  %432 = vmatprep.subr.bf16.mxu0 0
  %433 = vmatpush1.bf16.msra.mxu0 %v343
  %434 = vmatprep.subr.bf16.mxu0 0
  %435 = vmatpush1.bf16.msra.mxu0 %v344
  %436 = vmatprep.subr.bf16.mxu0 0
  %437 = vmatpush1.bf16.msra.mxu0 %v345
  %438 = vmatprep.subr.bf16.mxu0 0
  %439 = vmatpush1.bf16.msra.mxu0 %v346
  %440 = vmatprep.subr.bf16.mxu0 0
  %441 = vmatpush1.bf16.msra.mxu0 %v347
  %442 = vmatprep.subr.bf16.mxu0 0
  %443 = vmatpush1.bf16.msra.mxu0 %v348
  %444 = vmatprep.subr.bf16.mxu0 0
  %445 = vmatpush1.bf16.msra.mxu0 %v349
  %446 = vmatprep.mubr.bf16.mxu0 %v155
  %447 = vmatmul.mubr.bf16.gmra.mrb[0].mxu0 %v154
  %v448 = vpop.f32.mrb[0].mxu0
  %v449 = vadd.f32 0.0, %v448
  %v450 = vpop.f32.mrb[0].mxu0
  %v451 = vpop.f32.mrb[0].mxu0
  %v452 = vadd.f32 0.0, %v451
  %v453 = vpop.f32.mrb[0].mxu0
  %454 = vmatprep.mubr.bf16.mxu0 %v160
  %455 = vmatmul.mubr.bf16.gmra.mrb[0].mxu0 %v159
  %v456 = vpop.f32.mrb[0].mxu0
  %v457 = vadd.f32 0.0, %v456
  %v458 = vpop.f32.mrb[0].mxu0
  %v459 = vpop.f32.mrb[0].mxu0
  %v460 = vadd.f32 0.0, %v459
  %v461 = vpop.f32.mrb[0].mxu0
  %462 = vdwg.mxu0
  %463 = vmatprep.subr.bf16.mxu0 0
  %464 = vmatpush1.bf16.msra.mxu0 %v350
  %465 = vmatprep.subr.bf16.mxu0 0
  %466 = vmatpush1.bf16.msra.mxu0 %v351
  %467 = vmatprep.subr.bf16.mxu0 0
  %468 = vmatpush1.bf16.msra.mxu0 %v352
  %469 = vmatprep.subr.bf16.mxu0 0
  %470 = vmatpush1.bf16.msra.mxu0 %v353
  %471 = vmatprep.subr.bf16.mxu0 0
  %472 = vmatpush1.bf16.msra.mxu0 %v354
  %473 = vmatprep.subr.bf16.mxu0 0
  %474 = vmatpush1.bf16.msra.mxu0 %v355
  %475 = vmatprep.subr.bf16.mxu0 0
  %476 = vmatpush1.bf16.msra.mxu0 %v356
  %477 = vmatprep.subr.bf16.mxu0 0
  %478 = vmatpush1.bf16.msra.mxu0 %v357
  %479 = vmatprep.subr.bf16.mxu0 0
  %480 = vmatpush1.bf16.msra.mxu0 %v358
  %481 = vmatprep.subr.bf16.mxu0 0
  %482 = vmatpush1.bf16.msra.mxu0 %v359
  %483 = vmatprep.subr.bf16.mxu0 0
  %484 = vmatpush1.bf16.msra.mxu0 %v360
  %485 = vmatprep.subr.bf16.mxu0 0
  %486 = vmatpush1.bf16.msra.mxu0 %v361
  %487 = vmatprep.subr.bf16.mxu0 0
  %488 = vmatpush1.bf16.msra.mxu0 %v362
  %489 = vmatprep.subr.bf16.mxu0 0
  %490 = vmatpush1.bf16.msra.mxu0 %v363
  %491 = vmatprep.subr.bf16.mxu0 0
  %492 = vmatpush1.bf16.msra.mxu0 %v364
  %493 = vmatprep.subr.bf16.mxu0 0
  %494 = vmatpush1.bf16.msra.mxu0 %v365
  %495 = vmatprep.mubr.bf16.mxu0 %v157
  %496 = vmatmul.mubr.bf16.gmra.mrb[0].mxu0 %v156
  %v497 = vpop.f32.mrb[0].mxu0
  %v498 = vadd.f32 %v449, %v497
  %v499 = vpop.f32.mrb[0].mxu0
  %v500 = vpop.f32.mrb[0].mxu0
  %v501 = vadd.f32 %v452, %v500
  %v502 = vpop.f32.mrb[0].mxu0
  %503 = vmatprep.mubr.bf16.mxu0 %v162
  %504 = vmatmul.mubr.bf16.gmra.mrb[0].mxu0 %v161
  %v505 = vpop.f32.mrb[0].mxu0
  %v506 = vadd.f32 %v457, %v505
  %v507 = vpop.f32.mrb[0].mxu0
  %v508 = vpop.f32.mrb[0].mxu0
  %v509 = vadd.f32 %v460, %v508
  %v510 = vpop.f32.mrb[0].mxu0
  %511 = vdwg.mxu0
  %512 = vmatprep.subr.bf16.mxu0 0
  %513 = vmatpush1.bf16.msra.mxu0 %v366
  %514 = vmatprep.subr.bf16.mxu0 0
  %515 = vmatpush1.bf16.msra.mxu0 %v367
  %516 = vmatprep.subr.bf16.mxu0 0
  %517 = vmatpush1.bf16.msra.mxu0 %v368
  %518 = vmatprep.subr.bf16.mxu0 0
  %519 = vmatpush1.bf16.msra.mxu0 %v369
  %520 = vmatprep.subr.bf16.mxu0 0
  %521 = vmatpush1.bf16.msra.mxu0 %v370
  %522 = vmatprep.subr.bf16.mxu0 0
  %523 = vmatpush1.bf16.msra.mxu0 %v371
  %524 = vmatprep.subr.bf16.mxu0 0
  %525 = vmatpush1.bf16.msra.mxu0 %v372
  %526 = vmatprep.subr.bf16.mxu0 0
  %527 = vmatpush1.bf16.msra.mxu0 %v373
  %528 = vmatprep.subr.bf16.mxu0 0
  %529 = vmatpush1.bf16.msra.mxu0 0
  %530 = vmatprep.subr.bf16.mxu0 0
  %531 = vmatpush1.bf16.msra.mxu0 0
  %532 = vmatprep.subr.bf16.mxu0 0
  %533 = vmatpush1.bf16.msra.mxu0 0
  %534 = vmatprep.subr.bf16.mxu0 0
  %535 = vmatpush1.bf16.msra.mxu0 0
  %536 = vmatprep.subr.bf16.mxu0 0
  %537 = vmatpush1.bf16.msra.mxu0 0
  %538 = vmatprep.subr.bf16.mxu0 0
  %539 = vmatpush1.bf16.msra.mxu0 0
  %540 = vmatprep.subr.bf16.mxu0 0
  %541 = vmatpush1.bf16.msra.mxu0 0
  %542 = vmatprep.subr.bf16.mxu0 0
  %543 = vmatpush1.bf16.msra.mxu0 0
  %544 = vmatprep.mubr.bf16.mxu0 0
  %545 = vmatmul.mubr.bf16.gmra.mrb[0].mxu0 %v158
  %v546 = vpop.f32.mrb[0].mxu0
  %v547 = vadd.f32 %v498, %v546
  %v548 = vpop.f32.mrb[0].mxu0
  %v549 = vpop.f32.mrb[0].mxu0
  %v550 = vadd.f32 %v501, %v549
  %v551 = vpop.f32.mrb[0].mxu0
  %552 = vmatprep.mubr.bf16.mxu0 0
  %553 = vmatmul.mubr.bf16.gmra.mrb[0].mxu0 %v163
  %v554 = vpop.f32.mrb[0].mxu0
  %v555 = vadd.f32 %v506, %v554
  %v556 = vpop.f32.mrb[0].mxu0
  %v557 = vpop.f32.mrb[0].mxu0
  %v558 = vadd.f32 %v509, %v557
  %v559 = vpop.f32.mrb[0].mxu0
  %560 = vdwg.mxu0
  %v561 = vadd.f32 %v26, %v547
  %v562 = vadd.f32 %v27, %v550
  %v563 = vadd.f32 %v28, %v555
  %v564 = vadd.f32 %v29, %v558
  %565 = vst [vmem:[#allocation2] sm:$0xff] %v561
  %566 = vst [vmem:[#allocation2 + $0x8] sm:$0xff] %v562
  %567 = vst [vmem:[#allocation2 + $0x10] sm:$0xff] %v563
  %568 = vst [vmem:[#allocation2 + $0x18] sm:$0xff] %v564
  // Predicated region
  $region22: #{attanet_head_forward.9} parent=0 // pred_check
    %p569 = pneg %p18
  $region23: #{attanet_head_forward.9} parent=0 // pred_check_branch
    %571 = sbr.rel (%p569) target = $region25
  $region24: #{attanet_head_forward.9} parent=0 // pred_region
    %v572 = vld [vmem:[#allocation2] sm:$0xff]
    %v573 = vld [vmem:[#allocation2 + $0x8] sm:$0xff]
    %v574 = vld [vmem:[#allocation2 + $0x10] sm:$0xff]
    %v575 = vld [vmem:[#allocation2 + $0x18] sm:$0xff]
    %v576 = vld [vmem:[%s2] sm:$0x1]
    %v578 = vlaneseq
    %v579 = vshrl.u32 %v578, 7
    %v580 = vsub.s32 0, %v579
    %v581 = vrot.slane %v576, %v580
    %v583 = vmul.f32 %v572, %v581
    %v584 = vmul.f32 %v573, %v581
    %v585 = vmul.f32 %v574, %v581
    %v586 = vmul.f32 %v575, %v581
    %v587 = vld [vmem:[%s3] sm:$0x1]
    %v589 = vlaneseq
    %v590 = vshrl.u32 %v589, 7
    %v591 = vsub.s32 0, %v590
    %v592 = vrot.slane %v587, %v591
    %v594 = vadd.f32 %v583, %v592
    %v595 = vadd.f32 %v584, %v592
    %v596 = vadd.f32 %v585, %v592
    %v597 = vadd.f32 %v586, %v592
    %v598 = vmax.f32 %v594, 0.0
    %v599 = vmax.f32 %v595, 0.0
    %v600 = vmax.f32 %v596, 0.0
    %v601 = vmax.f32 %v597, 0.0
    %602 = vst [vmem:[%s4] sm:$0xff] %v598
    %603 = vst [vmem:[%s4 + $0x8] sm:$0xff] %v599
    %604 = vst [vmem:[%s4 + $0x10] sm:$0xff] %v600
    %605 = vst [vmem:[%s4 + $0x18] sm:$0xff] %v601
  $region25: #{attanet_head_forward.9} parent=0 // pred_fallthru
    _
  // Predicated region
  $region26: #{attanet_head_forward.9} parent=0 // pred_check
    _
  $region27: #{attanet_head_forward.9} parent=0 // pred_check_branch
    %607 = sbr.rel (0) target = $region29
  $region28: #{attanet_head_forward.9} parent=0 // pred_region
    _
  $region29: #{attanet_head_forward.9} parent=0 // pred_fallthru
    _
  // Predicated region
  $region30: #{attanet_head_forward.9} parent=0 // pred_check
    _
  $region31: #{attanet_head_forward.9} parent=0 // pred_check_branch
    %609 = sbr.rel (0) target = $region33
  $region32: #{attanet_head_forward.9} parent=0 // pred_region
    _
  $region33: #{attanet_head_forward.9} parent=0 // pred_fallthru
    _

// kernel: attanet_head_forward.8
$region0: #{attanet_head_forward.8}
  #allocation0 [shape = 'u32[]', space=smem, size = 0x4, offset = 0x4, fixed_abs, tag = 'smem constant byte address 0x4 - core index']
  #allocation1 [shape = 'u32[144,128]{1,0:T(1,128)}', space=vmem, size = 0x12000, scoped, tag = 'internal scratch']
  %s0 = inlined_call_operand.vmem [shape: f32[2,38,256], index: 0, kind: input, shape index: {}]
  %s1 = inlined_call_operand.hbm [shape: bf16[3,3,256,128], index: 1, kind: input, shape index: {}]
  %s2 = inlined_call_operand.hbm [shape: f32[1,128], index: 2, kind: input, shape index: {}]
  %s3 = inlined_call_operand.hbm [shape: f32[1,128], index: 3, kind: input, shape index: {}]
  %s4 = inlined_call_operand.vmem [shape: f32[2,24,128], index: 4, kind: output, shape index: {}]
  %s5 = sld [smem:[#allocation0]]
  $region61: #{attanet_head_forward.8} parent=0
    _
  %s7 = ssub.s32 1, %s5
  %s8 = scalar_select 0, %s7, %s5
  $region1: #{attanet_head_forward.8} parent=0
    #allocation2 [shape = 'u8[589824]{0}', space=vmem, size = 0x90000, scoped, tag = 'input window, operand 1, single buffered']
    #allocation3 [shape = 's32[2]{0}', space=sflag, size = 0x8, scoped, tag = 'scoped memory for attanet_head_forward.8']
    #allocation4 [shape = 'u8[512]{0}', space=vmem, size = 0x400, scoped, tag = 'input window, operand 2, single buffered']
    #allocation5 [shape = 's32[1]{0}', space=sflag, size = 0x4, scoped, tag = 'scoped memory for attanet_head_forward.8']
    #allocation6 [shape = 'u8[512]{0}', space=vmem, size = 0x400, scoped, tag = 'input window, operand 3, single buffered']
    %9 = vsyncpa [#allocation3], 0
    %10 = vsyncpa [#allocation5], 0
    loop: start=0, step=1, limit=4
    $region2: #{attanet_head_forward.8} parent=1 // loop_pre_header
      _
    $region3: #{attanet_head_forward.8} parent=1 // loop_header
      %s12 = sphi 0, %s16
      %p13 = scmp.ge.s32.totalorder %s12, 4
      %s22 = sphi 0, %s24
      %s25 = sphi 0, %s22
      %s26 = sphi 0, %s25
      %s42 = sphi 0, %s26
      %s46 = sphi 0, %s46
      %s48 = sphi 0, %s46
      %s49 = sphi 0, %s48
      %s63 = sphi 0, %s49
      %s67 = sphi 0, %s67
      %s69 = sphi 0, %s67
      %s70 = sphi 0, %s69
      %s84 = sphi 0, %s70
      %s88 = sphi 0, %s88
      %s90 = sphi 0, %s88
      %s91 = sphi 0, %s90
      %s105 = sphi 0, %s91
      %s111 = sphi 0, %s113
      %s114 = sphi 0, %s111
      %s115 = sphi 0, %s114
      %s131 = sphi 0, %s115
    $region4: #{attanet_head_forward.8} parent=1 // loop_header_branch
      %15 = sbr.rel (%p13) target = $region8
    $region5: #{attanet_head_forward.8} parent=1 // loop_body
      %s17 = ssub.s32 %s12, 1
      %s18 = ssub.s32 %s12, 2
      %s19 = sadd.s32 %s12, 1
      %s20 = ssub.s32 %s12, %s19
      %p21 = scmp.eq.s32.totalorder %s20, 0
      %s23 = sadd.s32 %s22, 1
      %s24 = scalar_select %p21, %s22, %s23
      %p27 = pneg %p21
      %p28 = scmp.eq.s32.totalorder %s12, 1
      %p29 = por %p27, %p28
      %p30 = scmp.ne.s32.totalorder %s22, %s25
      %p31 = scmp.eq.s32.totalorder %s12, 0
      %p32 = por %p30, %p31
      %p33 = scmp.ne.s32.totalorder %s22, %s25
      %p34 = scmp.eq.s32.totalorder %s17, 1
      %p35 = por %p33, %p34
      %p36 = scmp.ne.s32.totalorder %s25, %s26
      %p37 = scmp.eq.s32.totalorder %s17, 0
      %p38 = por %p36, %p37
      %p39 = scmp.ne.s32.totalorder %s25, %s26
      %p40 = scmp.eq.s32.totalorder %s18, 1
      %p41 = por %p39, %p40
      %p43 = scmp.ne.s32.totalorder %s26, %s42
      %p44 = scmp.eq.s32.totalorder %s18, 0
      %p45 = por %p43, %p44
      %s47 = sadd.s32 %s46, 1
      %p50 = scmp.eq.s32.totalorder %s12, 1
      %p51 = scmp.ne.s32.totalorder %s46, %s48
      %p52 = scmp.eq.s32.totalorder %s12, 0
      %p53 = por %p51, %p52
      %p54 = scmp.ne.s32.totalorder %s46, %s48
      %p55 = scmp.eq.s32.totalorder %s17, 1
      %p56 = por %p54, %p55
      %p57 = scmp.ne.s32.totalorder %s48, %s49
      %p58 = scmp.eq.s32.totalorder %s17, 0
      %p59 = por %p57, %p58
      %p60 = scmp.ne.s32.totalorder %s48, %s49
      %p61 = scmp.eq.s32.totalorder %s18, 1
      %p62 = por %p60, %p61
      %p64 = scmp.ne.s32.totalorder %s49, %s63
      %p65 = scmp.eq.s32.totalorder %s18, 0
      %p66 = por %p64, %p65
      %s68 = sadd.s32 %s67, 1
      %p71 = scmp.eq.s32.totalorder %s12, 1
      %p72 = scmp.ne.s32.totalorder %s67, %s69
      %p73 = scmp.eq.s32.totalorder %s12, 0
      %p74 = por %p72, %p73
      %p75 = scmp.ne.s32.totalorder %s67, %s69
      %p76 = scmp.eq.s32.totalorder %s17, 1
      %p77 = por %p75, %p76
      %p78 = scmp.ne.s32.totalorder %s69, %s70
      %p79 = scmp.eq.s32.totalorder %s17, 0
      %p80 = por %p78, %p79
      %p81 = scmp.ne.s32.totalorder %s69, %s70
      %p82 = scmp.eq.s32.totalorder %s18, 1
      %p83 = por %p81, %p82
      %p85 = scmp.ne.s32.totalorder %s70, %s84
      %p86 = scmp.eq.s32.totalorder %s18, 0
      %p87 = por %p85, %p86
      %s89 = sadd.s32 %s88, 1
      %p92 = scmp.eq.s32.totalorder %s12, 1
      %p93 = scmp.ne.s32.totalorder %s88, %s90
      %p94 = scmp.eq.s32.totalorder %s12, 0
      %p95 = por %p93, %p94
      %p96 = scmp.ne.s32.totalorder %s88, %s90
      %p97 = scmp.eq.s32.totalorder %s17, 1
      %p98 = por %p96, %p97
      %p99 = scmp.ne.s32.totalorder %s90, %s91
      %p100 = scmp.eq.s32.totalorder %s17, 0
      %p101 = por %p99, %p100
      %p102 = scmp.ne.s32.totalorder %s90, %s91
      %p103 = scmp.eq.s32.totalorder %s18, 1
      %p104 = por %p102, %p103
      %p106 = scmp.ne.s32.totalorder %s91, %s105
      %p107 = scmp.eq.s32.totalorder %s18, 0
      %p108 = por %p106, %p107
      %s109 = ssub.s32 %s12, %s19
      %p110 = scmp.eq.s32.totalorder %s109, 0
      %s112 = sadd.s32 %s111, 1
      %s113 = scalar_select %p110, %s111, %s112
      %p116 = pneg %p110
      %p117 = scmp.eq.s32.totalorder %s12, 1
      %p118 = por %p116, %p117
      %p119 = scmp.ne.s32.totalorder %s111, %s114
      %p120 = scmp.eq.s32.totalorder %s12, 0
      %p121 = por %p119, %p120
      %p122 = scmp.ne.s32.totalorder %s111, %s114
      %p123 = scmp.eq.s32.totalorder %s17, 1
      %p124 = por %p122, %p123
      %p125 = scmp.ne.s32.totalorder %s114, %s115
      %p126 = scmp.eq.s32.totalorder %s17, 0
      %p127 = por %p125, %p126
      %p128 = scmp.ne.s32.totalorder %s114, %s115
      %p129 = scmp.eq.s32.totalorder %s18, 1
      %p130 = por %p128, %p129
      %p132 = scmp.ne.s32.totalorder %s115, %s131
      %p133 = scmp.eq.s32.totalorder %s18, 0
      %p134 = por %p132, %p133
      %p135 = scmp.le.s32.totalorder 1, %s12
      %p136 = scmp.lt.s32.totalorder %s12, 3
      %p137 = pnand %p135, %p136
      %p138 = pneg %p137
      // Predicated region
      $region9: #{attanet_head_forward.8} parent=5 // pred_check
        _
      $region10: #{attanet_head_forward.8} parent=5 // pred_check_branch
        %140 = sbr.rel (%p137) target = $region12
      $region11: #{attanet_head_forward.8} parent=5 // pred_region
        %s141 = ssub.s32 %s12, 1
        // Predicated region
        $region13: #{attanet_head_forward.8} parent=11 // pred_check
          %p142 = pneg %p59
        $region14: #{attanet_head_forward.8} parent=11 // pred_check_branch
          %144 = sbr.rel (%p142) target = $region16
        $region15: #{attanet_head_forward.8} parent=11 // pred_region
          %s146 = ssub.s32 18432, 18432
          %147 = vsyncadd [#allocation3], %s146
          %s148 = sshll.u32 [#allocation2], 4
          %s149 = int_to_ptr.vmem [resolvable:$true] %s148
          %154 = dma.hbm_to_vmem [thread:$0]  %s1, 18432, %s149, [#allocation3], 64, 64, 4
        $region16: #{attanet_head_forward.8} parent=11 // pred_fallthru
          _
        // Predicated region
        $region17: #{attanet_head_forward.8} parent=11 // pred_check
          %p155 = pneg %p80
        $region18: #{attanet_head_forward.8} parent=11 // pred_check_branch
          %157 = sbr.rel (%p155) target = $region20
        $region19: #{attanet_head_forward.8} parent=11 // pred_region
          %s159 = ssub.s32 16, 16
          %160 = vsyncadd [#allocation5], %s159
          %s162 = sshll.u32 [#allocation4], 4
          %s163 = int_to_ptr.vmem [resolvable:$true] %s162
          %165 = dma.hbm_to_vmem [thread:$0]  %s2, 16, %s163, [#allocation5]
        $region20: #{attanet_head_forward.8} parent=11 // pred_fallthru
          _
        // Predicated region
        $region21: #{attanet_head_forward.8} parent=11 // pred_check
          %p166 = pneg %p101
        $region22: #{attanet_head_forward.8} parent=11 // pred_check_branch
          %168 = sbr.rel (%p166) target = $region24
        $region23: #{attanet_head_forward.8} parent=11 // pred_region
          %s170 = ssub.s32 16, 16
          %171 = vsyncadd [#allocation5], %s170
          %s173 = sshll.u32 [#allocation6], 4
          %s174 = int_to_ptr.vmem [resolvable:$true] %s173
          %176 = dma.hbm_to_vmem [thread:$0]  %s3, 16, %s174, [#allocation5]
        $region24: #{attanet_head_forward.8} parent=11 // pred_fallthru
          _
      $region12: #{attanet_head_forward.8} parent=5 // pred_fallthru
        _
      %p177 = scmp.lt.s32.totalorder %s12, 2
      // Predicated region
      $region25: #{attanet_head_forward.8} parent=5 // pred_check
        %p178 = pneg %p177
      $region26: #{attanet_head_forward.8} parent=5 // pred_check_branch
        %180 = sbr.rel (%p178) target = $region28
      $region27: #{attanet_head_forward.8} parent=5 // pred_region
        // Predicated region
        $region29: #{attanet_head_forward.8} parent=27 // pred_check
          %p181 = pneg %p32
        $region30: #{attanet_head_forward.8} parent=27 // pred_check_branch
          %183 = sbr.rel (%p181) target = $region32
        $region31: #{attanet_head_forward.8} parent=27 // pred_region
          %p184 = scmp.lt.s32.totalorder %s12, 1
          %s185 = scalar_select %p184, %s12, 1
          %s186 = smul.addr %s185, 10
          %s187 = smul.addr %s186, 8
          %s188 = scalar_lea.vmem %s0, %s187
        $region32: #{attanet_head_forward.8} parent=27 // pred_fallthru
          _
      $region28: #{attanet_head_forward.8} parent=5 // pred_fallthru
        _
      %p189 = scmp.le.s32.totalorder 1, %s12
      %p190 = scmp.lt.s32.totalorder %s12, 3
      %p191 = pnand %p189, %p190
      %p192 = pneg %p191
      // Predicated region
      $region33: #{attanet_head_forward.8} parent=5 // pred_check
        _
      $region34: #{attanet_head_forward.8} parent=5 // pred_check_branch
        %194 = sbr.rel (%p191) target = $region36
      $region35: #{attanet_head_forward.8} parent=5 // pred_region
        %s195 = ssub.s32 %s12, 1
        // Predicated region
        $region37: #{attanet_head_forward.8} parent=35 // pred_check
          %p196 = pneg %p59
        $region38: #{attanet_head_forward.8} parent=35 // pred_check_branch
          %198 = sbr.rel (%p196) target = $region40
        $region39: #{attanet_head_forward.8} parent=35 // pred_region
          %199 = dma.done [#allocation3], 18432
        $region40: #{attanet_head_forward.8} parent=35 // pred_fallthru
          _
        // Predicated region
        $region41: #{attanet_head_forward.8} parent=35 // pred_check
          %p200 = pneg %p80
        $region42: #{attanet_head_forward.8} parent=35 // pred_check_branch
          %202 = sbr.rel (%p200) target = $region44
        $region43: #{attanet_head_forward.8} parent=35 // pred_region
          %203 = dma.done [#allocation5], 16
        $region44: #{attanet_head_forward.8} parent=35 // pred_fallthru
          _
        // Predicated region
        $region45: #{attanet_head_forward.8} parent=35 // pred_check
          %p204 = pneg %p101
        $region46: #{attanet_head_forward.8} parent=35 // pred_check_branch
          %206 = sbr.rel (%p204) target = $region48
        $region47: #{attanet_head_forward.8} parent=35 // pred_region
          %207 = dma.done [#allocation5], 16
        $region48: #{attanet_head_forward.8} parent=35 // pred_fallthru
          _
        %p208 = scmp.lt.s32.totalorder %s17, 1
        %s209 = scalar_select %p208, %s17, 1
        %s210 = smul.addr %s209, 10
        %s211 = smul.addr %s210, 8
        %s212 = scalar_lea.vmem %s0, %s211
        %p213 = pneg %p38
        %p214 = pneg %p35
        %p215 = pneg %p59
        %p216 = pneg %p56
        %p217 = pneg %p80
        %p218 = pneg %p77
        %p219 = pneg %p101
        %p220 = pneg %p98
        %p221 = pneg %p127
        %p222 = pneg %p124
        %p223 = scmp.lt.s32.totalorder %s17, 1
        %s224 = scalar_select %p223, %s17, 1
        %s225 = smul.addr %s224, 3
        %s226 = smul.addr %s225, 8
        %s227 = scalar_lea.vmem %s4, %s226
        %p228 = scmp.lt.s32.totalorder %s17, 1
        %s229 = scalar_select %p228, %s17, 1
        %s230 = smul.addr %s229, 10
        %s231 = smul.addr %s230, 8
        %s232 = scalar_lea.vmem %s0, %s231
        %p233 = scmp.lt.s32.totalorder %s17, 1
        %s234 = scalar_select %p233, %s17, 1
        %s235 = smul.addr %s234, 3
        %s236 = smul.addr %s235, 8
        %s237 = scalar_lea.vmem %s4, %s236
        %v239 = vld [vmem:[%s232] sm:$0xff]
        %v240 = vld [vmem:[%s232 + $0x8] sm:$0xff]
        %v241 = vld [vmem:[%s232 + $0x10] sm:$0xff]
        %v242 = vld [vmem:[%s232 + $0x18] sm:$0xff]
        %v243 = vld [vmem:[%s232 + $0x20] sm:$0xff]
        %v244 = vld [vmem:[%s232 + $0x28] sm:$0xff]
        %v245 = vld [vmem:[%s232 + $0x30] sm:$0xff]
        %v246 = vld [vmem:[%s232 + $0x38] sm:$0xff]
        %v247 = vld [vmem:[%s232 + $0x40] sm:$0x3f]
        %v248 = vld [vmem:[%s232 + $0x48] sm:$0x3f]
        %v249 = vpack.c.bf16 %v241, %v239
        %v250 = vpack.c.bf16 %v242, %v240
        %v251 = vpack.c.bf16 %v243, %v243
        %v252 = vpack.c.bf16 %v244, %v244
        %v253 = vld [vmem:[#allocation2] sm:$0xf]
        %v254 = vld [vmem:[#allocation2 + $0x4] sm:$0xf]
        %v255 = vld [vmem:[#allocation2 + $0x8] sm:$0xf]
        %v256 = vld [vmem:[#allocation2 + $0xc] sm:$0xf]
        %v257 = vld [vmem:[#allocation2 + $0x10] sm:$0xf]
        %v258 = vld [vmem:[#allocation2 + $0x14] sm:$0xf]
        %v259 = vld [vmem:[#allocation2 + $0x18] sm:$0xf]
        %v260 = vld [vmem:[#allocation2 + $0x1c] sm:$0xf]
        %v261 = vld [vmem:[#allocation2 + $0x20] sm:$0xf]
        %v262 = vld [vmem:[#allocation2 + $0x24] sm:$0xf]
        %v263 = vld [vmem:[#allocation2 + $0x28] sm:$0xf]
        %v264 = vld [vmem:[#allocation2 + $0x2c] sm:$0xf]
        %v265 = vld [vmem:[#allocation2 + $0x30] sm:$0xf]
        %v266 = vld [vmem:[#allocation2 + $0x34] sm:$0xf]
        %v267 = vld [vmem:[#allocation2 + $0x38] sm:$0xf]
        %v268 = vld [vmem:[#allocation2 + $0x3c] sm:$0xf]
        %v269 = vld [vmem:[#allocation2 + $0x40] sm:$0xf]
        %v270 = vld [vmem:[#allocation2 + $0x44] sm:$0xf]
        %v271 = vld [vmem:[#allocation2 + $0x48] sm:$0xf]
        %v272 = vld [vmem:[#allocation2 + $0x4c] sm:$0xf]
        %v273 = vld [vmem:[#allocation2 + $0x50] sm:$0xf]
        %v274 = vld [vmem:[#allocation2 + $0x54] sm:$0xf]
        %v275 = vld [vmem:[#allocation2 + $0x58] sm:$0xf]
        %v276 = vld [vmem:[#allocation2 + $0x5c] sm:$0xf]
        %v277 = vld [vmem:[#allocation2 + $0x60] sm:$0xf]
        %v278 = vld [vmem:[#allocation2 + $0x64] sm:$0xf]
        %v279 = vld [vmem:[#allocation2 + $0x68] sm:$0xf]
        %v280 = vld [vmem:[#allocation2 + $0x6c] sm:$0xf]
        %v281 = vld [vmem:[#allocation2 + $0x70] sm:$0xf]
        %v282 = vld [vmem:[#allocation2 + $0x74] sm:$0xf]
        %v283 = vld [vmem:[#allocation2 + $0x78] sm:$0xf]
        %v284 = vld [vmem:[#allocation2 + $0x7c] sm:$0xf]
        %v285 = vpack.c.bf16 %v245, %v243
        %v286 = vpack.c.bf16 %v246, %v244
        %s287 = scalar_lea.vmem [#allocation2], 128
        %v288 = vld [vmem:[%s287] sm:$0xf]
        %v289 = vld [vmem:[%s287 + $0x4] sm:$0xf]
        %v290 = vld [vmem:[%s287 + $0x8] sm:$0xf]
        %v291 = vld [vmem:[%s287 + $0xc] sm:$0xf]
        %v292 = vld [vmem:[%s287 + $0x10] sm:$0xf]
        %v293 = vld [vmem:[%s287 + $0x14] sm:$0xf]
        %v294 = vld [vmem:[%s287 + $0x18] sm:$0xf]
        %v295 = vld [vmem:[%s287 + $0x1c] sm:$0xf]
        %v296 = vld [vmem:[%s287 + $0x20] sm:$0xf]
        %v297 = vld [vmem:[%s287 + $0x24] sm:$0xf]
        %v298 = vld [vmem:[%s287 + $0x28] sm:$0xf]
        %v299 = vld [vmem:[%s287 + $0x2c] sm:$0xf]
        %v300 = vld [vmem:[%s287 + $0x30] sm:$0xf]
        %v301 = vld [vmem:[%s287 + $0x34] sm:$0xf]
        %v302 = vld [vmem:[%s287 + $0x38] sm:$0xf]
        %v303 = vld [vmem:[%s287 + $0x3c] sm:$0xf]
        %v304 = vld [vmem:[%s287 + $0x40] sm:$0xf]
        %v305 = vld [vmem:[%s287 + $0x44] sm:$0xf]
        %v306 = vld [vmem:[%s287 + $0x48] sm:$0xf]
        %v307 = vld [vmem:[%s287 + $0x4c] sm:$0xf]
        %v308 = vld [vmem:[%s287 + $0x50] sm:$0xf]
        %v309 = vld [vmem:[%s287 + $0x54] sm:$0xf]
        %v310 = vld [vmem:[%s287 + $0x58] sm:$0xf]
        %v311 = vld [vmem:[%s287 + $0x5c] sm:$0xf]
        %v312 = vld [vmem:[%s287 + $0x60] sm:$0xf]
        %v313 = vld [vmem:[%s287 + $0x64] sm:$0xf]
        %v314 = vld [vmem:[%s287 + $0x68] sm:$0xf]
        %v315 = vld [vmem:[%s287 + $0x6c] sm:$0xf]
        %v316 = vld [vmem:[%s287 + $0x70] sm:$0xf]
        %v317 = vld [vmem:[%s287 + $0x74] sm:$0xf]
        %v318 = vld [vmem:[%s287 + $0x78] sm:$0xf]
        %v319 = vld [vmem:[%s287 + $0x7c] sm:$0xf]
        %vm320 = vsmask.f32 7424
        %v322 = vshrl.u32 %v249, 16
        %v324 = vshll.u32 %v249, 16
        %v326 = vrot.slane %v324, 1
        %v327 = vor.u32 %v322, %v326
        %v329 = vshll.u32 %v285, 16
        %v331 = vrot.slane %v329, 1
        %v332 = vsel %vm320, %v327, %v331
        %v334 = vshrl.u32 %v250, 16
        %v336 = vshll.u32 %v250, 16
        %v338 = vrot.slane %v336, 1
        %v339 = vor.u32 %v334, %v338
        %v341 = vshll.u32 %v286, 16
        %v343 = vrot.slane %v341, 1
        %v344 = vsel %vm320, %v339, %v343
        %v345 = vshrl.u32 %v285, 16
        %v347 = vor.u32 %v345, %v331
        %v348 = vshrl.u32 %v286, 16
        %v350 = vor.u32 %v348, %v343
        %v387 = vunpack.c.l.b16 %v288
        %v388 = vunpack.c.l.b16 %v289
        %v389 = vunpack.c.l.b16 %v290
        %v390 = vunpack.c.l.b16 %v291
        %v391 = vunpack.c.l.b16 %v292
        %v392 = vunpack.c.l.b16 %v293
        %v393 = vunpack.c.l.b16 %v294
        %v394 = vunpack.c.l.b16 %v295
        %v395 = vunpack.c.l.b16 %v296
        %v396 = vunpack.c.l.b16 %v297
        %v397 = vunpack.c.l.b16 %v298
        %v398 = vunpack.c.l.b16 %v299
        %v399 = vunpack.c.l.b16 %v300
        %v400 = vunpack.c.l.b16 %v301
        %v401 = vunpack.c.l.b16 %v302
        %v402 = vunpack.c.l.b16 %v303
        %v403 = vunpack.c.l.b16 %v304
        %v404 = vunpack.c.l.b16 %v305
        %v405 = vunpack.c.l.b16 %v306
        %v406 = vunpack.c.l.b16 %v307
        %v407 = vunpack.c.l.b16 %v308
        %v408 = vunpack.c.l.b16 %v309
        %v409 = vunpack.c.l.b16 %v310
        %v410 = vunpack.c.l.b16 %v311
        %v411 = vunpack.c.l.b16 %v312
        %v412 = vunpack.c.l.b16 %v313
        %v413 = vunpack.c.l.b16 %v314
        %v414 = vunpack.c.l.b16 %v315
        %v415 = vunpack.c.l.b16 %v316
        %v416 = vunpack.c.l.b16 %v317
        %v417 = vunpack.c.l.b16 %v318
        %v418 = vunpack.c.l.b16 %v319
        %v419 = vpack.c.b16 %v388, %v387
        %v420 = vpack.c.b16 %v390, %v389
        %v421 = vpack.c.b16 %v392, %v391
        %v422 = vpack.c.b16 %v394, %v393
        %v423 = vpack.c.b16 %v396, %v395
        %v424 = vpack.c.b16 %v398, %v397
        %v425 = vpack.c.b16 %v400, %v399
        %v426 = vpack.c.b16 %v402, %v401
        %v427 = vpack.c.b16 %v404, %v403
        %v428 = vpack.c.b16 %v406, %v405
        %v429 = vpack.c.b16 %v408, %v407
        %v430 = vpack.c.b16 %v410, %v409
        %v431 = vpack.c.b16 %v412, %v411
        %v432 = vpack.c.b16 %v414, %v413
        %v433 = vpack.c.b16 %v416, %v415
        %v434 = vpack.c.b16 %v418, %v417
        %451 = vmatprep.subr.bf16.mxu0 0
        %452 = vmatpush1.bf16.msra.mxu0 %v419
        %453 = vmatprep.subr.bf16.mxu0 0
        %454 = vmatpush1.bf16.msra.mxu0 %v420
        %455 = vmatprep.subr.bf16.mxu0 0
        %456 = vmatpush1.bf16.msra.mxu0 %v421
        %457 = vmatprep.subr.bf16.mxu0 0
        %458 = vmatpush1.bf16.msra.mxu0 %v422
        %459 = vmatprep.subr.bf16.mxu0 0
        %460 = vmatpush1.bf16.msra.mxu0 %v423
        %461 = vmatprep.subr.bf16.mxu0 0
        %462 = vmatpush1.bf16.msra.mxu0 %v424
        %463 = vmatprep.subr.bf16.mxu0 0
        %464 = vmatpush1.bf16.msra.mxu0 %v425
        %465 = vmatprep.subr.bf16.mxu0 0
        %466 = vmatpush1.bf16.msra.mxu0 %v426
        %467 = vmatprep.subr.bf16.mxu0 0
        %468 = vmatpush1.bf16.msra.mxu0 %v427
        %469 = vmatprep.subr.bf16.mxu0 0
        %470 = vmatpush1.bf16.msra.mxu0 %v428
        %471 = vmatprep.subr.bf16.mxu0 0
        %472 = vmatpush1.bf16.msra.mxu0 %v429
        %473 = vmatprep.subr.bf16.mxu0 0
        %474 = vmatpush1.bf16.msra.mxu0 %v430
        %475 = vmatprep.subr.bf16.mxu0 0
        %476 = vmatpush1.bf16.msra.mxu0 %v431
        %477 = vmatprep.subr.bf16.mxu0 0
        %478 = vmatpush1.bf16.msra.mxu0 %v432
        %479 = vmatprep.subr.bf16.mxu0 0
        %480 = vmatpush1.bf16.msra.mxu0 %v433
        %481 = vmatprep.subr.bf16.mxu0 0
        %482 = vmatpush1.bf16.msra.mxu0 %v434
        %483 = vmatprep.mubr.bf16.mxu0 %v344
        %484 = vmatmul.mubr.bf16.gmra.mrb[0].mxu0 %v332
        %v485 = vpop.f32.mrb[0].mxu0
        %v486 = vadd.f32 0.0, %v485
        %v487 = vpop.f32.mrb[0].mxu0
        %v488 = vpop.f32.mrb[0].mxu0
        %v489 = vadd.f32 0.0, %v488
        %v490 = vpop.f32.mrb[0].mxu0
        %491 = vmatprep.mubr.bf16.mxu0 %v350
        %492 = vmatmul.mubr.bf16.gmra.mrb[0].mxu0 %v347
        %v493 = vpop.f32.mrb[0].mxu0
        %v494 = vadd.f32 0.0, %v493
        %v495 = vpop.f32.mrb[0].mxu0
        %v496 = vpop.f32.mrb[0].mxu0
        %v497 = vpop.f32.mrb[0].mxu0
        %498 = vdwg.mxu0
        %v531 = vunpack.c.l.b16 %v253
        %v532 = vunpack.c.l.b16 %v254
        %v533 = vunpack.c.l.b16 %v255
        %v534 = vunpack.c.l.b16 %v256
        %v535 = vunpack.c.l.b16 %v257
        %v536 = vunpack.c.l.b16 %v258
        %v537 = vunpack.c.l.b16 %v259
        %v538 = vunpack.c.l.b16 %v260
        %v539 = vunpack.c.l.b16 %v261
        %v540 = vunpack.c.l.b16 %v262
        %v541 = vunpack.c.l.b16 %v263
        %v542 = vunpack.c.l.b16 %v264
        %v543 = vunpack.c.l.b16 %v265
        %v544 = vunpack.c.l.b16 %v266
        %v545 = vunpack.c.l.b16 %v267
        %v546 = vunpack.c.l.b16 %v268
        %v547 = vunpack.c.l.b16 %v269
        %v548 = vunpack.c.l.b16 %v270
        %v549 = vunpack.c.l.b16 %v271
        %v550 = vunpack.c.l.b16 %v272
        %v551 = vunpack.c.l.b16 %v273
        %v552 = vunpack.c.l.b16 %v274
        %v553 = vunpack.c.l.b16 %v275
        %v554 = vunpack.c.l.b16 %v276
        %v555 = vunpack.c.l.b16 %v277
        %v556 = vunpack.c.l.b16 %v278
        %v557 = vunpack.c.l.b16 %v279
        %v558 = vunpack.c.l.b16 %v280
        %v559 = vunpack.c.l.b16 %v281
        %v560 = vunpack.c.l.b16 %v282
        %v561 = vunpack.c.l.b16 %v283
        %v562 = vunpack.c.l.b16 %v284
        %v563 = vpack.c.b16 %v532, %v531
        %v564 = vpack.c.b16 %v534, %v533
        %v565 = vpack.c.b16 %v536, %v535
        %v566 = vpack.c.b16 %v538, %v537
        %v567 = vpack.c.b16 %v540, %v539
        %v568 = vpack.c.b16 %v542, %v541
        %v569 = vpack.c.b16 %v544, %v543
        %v570 = vpack.c.b16 %v546, %v545
        %v571 = vpack.c.b16 %v548, %v547
        %v572 = vpack.c.b16 %v550, %v549
        %v573 = vpack.c.b16 %v552, %v551
        %v574 = vpack.c.b16 %v554, %v553
        %v575 = vpack.c.b16 %v556, %v555
        %v576 = vpack.c.b16 %v558, %v557
        %v577 = vpack.c.b16 %v560, %v559
        %v578 = vpack.c.b16 %v562, %v561
        %595 = vmatprep.subr.bf16.mxu0 0
        %596 = vmatpush1.bf16.msra.mxu0 %v563
        %597 = vmatprep.subr.bf16.mxu0 0
        %598 = vmatpush1.bf16.msra.mxu0 %v564
        %599 = vmatprep.subr.bf16.mxu0 0
        %600 = vmatpush1.bf16.msra.mxu0 %v565
        %601 = vmatprep.subr.bf16.mxu0 0
        %602 = vmatpush1.bf16.msra.mxu0 %v566
        %603 = vmatprep.subr.bf16.mxu0 0
        %604 = vmatpush1.bf16.msra.mxu0 %v567
        %605 = vmatprep.subr.bf16.mxu0 0
        %606 = vmatpush1.bf16.msra.mxu0 %v568
        %607 = vmatprep.subr.bf16.mxu0 0
        %608 = vmatpush1.bf16.msra.mxu0 %v569
        %609 = vmatprep.subr.bf16.mxu0 0
        %610 = vmatpush1.bf16.msra.mxu0 %v570
        %611 = vmatprep.subr.bf16.mxu0 0
        %612 = vmatpush1.bf16.msra.mxu0 %v571
        %613 = vmatprep.subr.bf16.mxu0 0
        %614 = vmatpush1.bf16.msra.mxu0 %v572
        %615 = vmatprep.subr.bf16.mxu0 0
        %616 = vmatpush1.bf16.msra.mxu0 %v573
        %617 = vmatprep.subr.bf16.mxu0 0
        %618 = vmatpush1.bf16.msra.mxu0 %v574
        %619 = vmatprep.subr.bf16.mxu0 0
        %620 = vmatpush1.bf16.msra.mxu0 %v575
        %621 = vmatprep.subr.bf16.mxu0 0
        %622 = vmatpush1.bf16.msra.mxu0 %v576
        %623 = vmatprep.subr.bf16.mxu0 0
        %624 = vmatpush1.bf16.msra.mxu0 %v577
        %625 = vmatprep.subr.bf16.mxu0 0
        %626 = vmatpush1.bf16.msra.mxu0 %v578
        %627 = vmatprep.mubr.bf16.mxu0 %v250
        %628 = vmatmul.mubr.bf16.gmra.mrb[0].mxu0 %v249
        %v629 = vpop.f32.mrb[0].mxu0
        %v630 = vadd.f32 %v486, %v629
        %v631 = vpop.f32.mrb[0].mxu0
        %v632 = vpop.f32.mrb[0].mxu0
        %v633 = vadd.f32 %v489, %v632
        %v634 = vpop.f32.mrb[0].mxu0
        %635 = vmatprep.mubr.bf16.mxu0 %v252
        %636 = vmatmul.mubr.bf16.gmra.mrb[0].mxu0 %v251
        %v637 = vpop.f32.mrb[0].mxu0
        %v638 = vadd.f32 %v494, %v637
        %v639 = vpop.f32.mrb[0].mxu0
        %v640 = vpop.f32.mrb[0].mxu0
        %v641 = vpop.f32.mrb[0].mxu0
        %642 = vdwg.mxu0
        %s643 = scalar_lea.vmem [#allocation2], 256
        %v644 = vld [vmem:[%s643] sm:$0xf]
        %v645 = vld [vmem:[%s643 + $0x4] sm:$0xf]
        %v646 = vld [vmem:[%s643 + $0x8] sm:$0xf]
        %v647 = vld [vmem:[%s643 + $0xc] sm:$0xf]
        %v648 = vld [vmem:[%s643 + $0x10] sm:$0xf]
        %v649 = vld [vmem:[%s643 + $0x14] sm:$0xf]
        %v650 = vld [vmem:[%s643 + $0x18] sm:$0xf]
        %v651 = vld [vmem:[%s643 + $0x1c] sm:$0xf]
        %v652 = vld [vmem:[%s643 + $0x20] sm:$0xf]
        %v653 = vld [vmem:[%s643 + $0x24] sm:$0xf]
        %v654 = vld [vmem:[%s643 + $0x28] sm:$0xf]
        %v655 = vld [vmem:[%s643 + $0x2c] sm:$0xf]
        %v656 = vld [vmem:[%s643 + $0x30] sm:$0xf]
        %v657 = vld [vmem:[%s643 + $0x34] sm:$0xf]
        %v658 = vld [vmem:[%s643 + $0x38] sm:$0xf]
        %v659 = vld [vmem:[%s643 + $0x3c] sm:$0xf]
        %v660 = vld [vmem:[%s643 + $0x40] sm:$0xf]
        %v661 = vld [vmem:[%s643 + $0x44] sm:$0xf]
        %v662 = vld [vmem:[%s643 + $0x48] sm:$0xf]
        %v663 = vld [vmem:[%s643 + $0x4c] sm:$0xf]
        %v664 = vld [vmem:[%s643 + $0x50] sm:$0xf]
        %v665 = vld [vmem:[%s643 + $0x54] sm:$0xf]
        %v666 = vld [vmem:[%s643 + $0x58] sm:$0xf]
        %v667 = vld [vmem:[%s643 + $0x5c] sm:$0xf]
        %v668 = vld [vmem:[%s643 + $0x60] sm:$0xf]
        %v669 = vld [vmem:[%s643 + $0x64] sm:$0xf]
        %v670 = vld [vmem:[%s643 + $0x68] sm:$0xf]
        %v671 = vld [vmem:[%s643 + $0x6c] sm:$0xf]
        %v672 = vld [vmem:[%s643 + $0x70] sm:$0xf]
        %v673 = vld [vmem:[%s643 + $0x74] sm:$0xf]
        %v674 = vld [vmem:[%s643 + $0x78] sm:$0xf]
        %v675 = vld [vmem:[%s643 + $0x7c] sm:$0xf]
        %vm680 = vcmask 1046528
        %v681 = vrot.slane %v249, 1
        %v682 = vrot.slane %v285, 1
        %v683 = vsel %vm680, %v681, %v682
        %v684 = vrot.slane %v250, 1
        %v685 = vrot.slane %v286, 1
        %v686 = vsel %vm680, %v684, %v685
        %v723 = vunpack.c.l.b16 %v644
        %v724 = vunpack.c.l.b16 %v645
        %v725 = vunpack.c.l.b16 %v646
        %v726 = vunpack.c.l.b16 %v647
        %v727 = vunpack.c.l.b16 %v648
        %v728 = vunpack.c.l.b16 %v649
        %v729 = vunpack.c.l.b16 %v650
        %v730 = vunpack.c.l.b16 %v651
        %v731 = vunpack.c.l.b16 %v652
        %v732 = vunpack.c.l.b16 %v653
        %v733 = vunpack.c.l.b16 %v654
        %v734 = vunpack.c.l.b16 %v655
        %v735 = vunpack.c.l.b16 %v656
        %v736 = vunpack.c.l.b16 %v657
        %v737 = vunpack.c.l.b16 %v658
        %v738 = vunpack.c.l.b16 %v659
        %v739 = vunpack.c.l.b16 %v660
        %v740 = vunpack.c.l.b16 %v661
        %v741 = vunpack.c.l.b16 %v662
        %v742 = vunpack.c.l.b16 %v663
        %v743 = vunpack.c.l.b16 %v664
        %v744 = vunpack.c.l.b16 %v665
        %v745 = vunpack.c.l.b16 %v666
        %v746 = vunpack.c.l.b16 %v667
        %v747 = vunpack.c.l.b16 %v668
        %v748 = vunpack.c.l.b16 %v669
        %v749 = vunpack.c.l.b16 %v670
        %v750 = vunpack.c.l.b16 %v671
        %v751 = vunpack.c.l.b16 %v672
        %v752 = vunpack.c.l.b16 %v673
        %v753 = vunpack.c.l.b16 %v674
        %v754 = vunpack.c.l.b16 %v675
        %v755 = vpack.c.b16 %v724, %v723
        %v756 = vpack.c.b16 %v726, %v725
        %v757 = vpack.c.b16 %v728, %v727
        %v758 = vpack.c.b16 %v730, %v729
        %v759 = vpack.c.b16 %v732, %v731
        %v760 = vpack.c.b16 %v734, %v733
        %v761 = vpack.c.b16 %v736, %v735
        %v762 = vpack.c.b16 %v738, %v737
        %v763 = vpack.c.b16 %v740, %v739
        %v764 = vpack.c.b16 %v742, %v741
        %v765 = vpack.c.b16 %v744, %v743
        %v766 = vpack.c.b16 %v746, %v745
        %v767 = vpack.c.b16 %v748, %v747
        %v768 = vpack.c.b16 %v750, %v749
        %v769 = vpack.c.b16 %v752, %v751
        %v770 = vpack.c.b16 %v754, %v753
        %787 = vmatprep.subr.bf16.mxu0 0
        %788 = vmatpush1.bf16.msra.mxu0 %v755
        %789 = vmatprep.subr.bf16.mxu0 0
        %790 = vmatpush1.bf16.msra.mxu0 %v756
        %791 = vmatprep.subr.bf16.mxu0 0
        %792 = vmatpush1.bf16.msra.mxu0 %v757
        %793 = vmatprep.subr.bf16.mxu0 0
        %794 = vmatpush1.bf16.msra.mxu0 %v758
        %795 = vmatprep.subr.bf16.mxu0 0
        %796 = vmatpush1.bf16.msra.mxu0 %v759
        %797 = vmatprep.subr.bf16.mxu0 0
        %798 = vmatpush1.bf16.msra.mxu0 %v760
        %799 = vmatprep.subr.bf16.mxu0 0
        %800 = vmatpush1.bf16.msra.mxu0 %v761
        %801 = vmatprep.subr.bf16.mxu0 0
        %802 = vmatpush1.bf16.msra.mxu0 %v762
        %803 = vmatprep.subr.bf16.mxu0 0
        %804 = vmatpush1.bf16.msra.mxu0 %v763
        %805 = vmatprep.subr.bf16.mxu0 0
        %806 = vmatpush1.bf16.msra.mxu0 %v764
        %807 = vmatprep.subr.bf16.mxu0 0
        %808 = vmatpush1.bf16.msra.mxu0 %v765
        %809 = vmatprep.subr.bf16.mxu0 0
        %810 = vmatpush1.bf16.msra.mxu0 %v766
        %811 = vmatprep.subr.bf16.mxu0 0
        %812 = vmatpush1.bf16.msra.mxu0 %v767
        %813 = vmatprep.subr.bf16.mxu0 0
        %814 = vmatpush1.bf16.msra.mxu0 %v768
        %815 = vmatprep.subr.bf16.mxu0 0
        %816 = vmatpush1.bf16.msra.mxu0 %v769
        %817 = vmatprep.subr.bf16.mxu0 0
        %818 = vmatpush1.bf16.msra.mxu0 %v770
        %819 = vmatprep.mubr.bf16.mxu0 %v686
        %820 = vmatmul.mubr.bf16.gmra.mrb[0].mxu0 %v683
        %v821 = vpop.f32.mrb[0].mxu0
        %v822 = vadd.f32 0.0, %v821
        %v823 = vpop.f32.mrb[0].mxu0
        %v824 = vpop.f32.mrb[0].mxu0
        %v825 = vadd.f32 0.0, %v824
        %v826 = vpop.f32.mrb[0].mxu0
        %827 = vmatprep.mubr.bf16.mxu0 %v685
        %828 = vmatmul.mubr.bf16.gmra.mrb[0].mxu0 %v682
        %v829 = vpop.f32.mrb[0].mxu0
        %v830 = vadd.f32 0.0, %v829
        %v831 = vpop.f32.mrb[0].mxu0
        %v832 = vpop.f32.mrb[0].mxu0
        %v833 = vpop.f32.mrb[0].mxu0
        %834 = vdwg.mxu0
        %v835 = vadd.f32 %v630, %v822
        %v836 = vadd.f32 %v633, %v825
        %v837 = vadd.f32 %v638, %v830
        %s838 = scalar_lea.vmem [#allocation2], 384
        %v839 = vld [vmem:[%s838] sm:$0xf]
        %v840 = vld [vmem:[%s838 + $0x4] sm:$0xf]
        %v841 = vld [vmem:[%s838 + $0x8] sm:$0xf]
        %v842 = vld [vmem:[%s838 + $0xc] sm:$0xf]
        %v843 = vld [vmem:[%s838 + $0x10] sm:$0xf]
        %v844 = vld [vmem:[%s838 + $0x14] sm:$0xf]
        %v845 = vld [vmem:[%s838 + $0x18] sm:$0xf]
        %v846 = vld [vmem:[%s838 + $0x1c] sm:$0xf]
        %v847 = vld [vmem:[%s838 + $0x20] sm:$0xf]
        %v848 = vld [vmem:[%s838 + $0x24] sm:$0xf]
        %v849 = vld [vmem:[%s838 + $0x28] sm:$0xf]
        %v850 = vld [vmem:[%s838 + $0x2c] sm:$0xf]
        %v851 = vld [vmem:[%s838 + $0x30] sm:$0xf]
        %v852 = vld [vmem:[%s838 + $0x34] sm:$0xf]
        %v853 = vld [vmem:[%s838 + $0x38] sm:$0xf]
        %v854 = vld [vmem:[%s838 + $0x3c] sm:$0xf]
        %v855 = vld [vmem:[%s838 + $0x40] sm:$0xf]
        %v856 = vld [vmem:[%s838 + $0x44] sm:$0xf]
        %v857 = vld [vmem:[%s838 + $0x48] sm:$0xf]
        %v858 = vld [vmem:[%s838 + $0x4c] sm:$0xf]
        %v859 = vld [vmem:[%s838 + $0x50] sm:$0xf]
        %v860 = vld [vmem:[%s838 + $0x54] sm:$0xf]
        %v861 = vld [vmem:[%s838 + $0x58] sm:$0xf]
        %v862 = vld [vmem:[%s838 + $0x5c] sm:$0xf]
        %v863 = vld [vmem:[%s838 + $0x60] sm:$0xf]
        %v864 = vld [vmem:[%s838 + $0x64] sm:$0xf]
        %v865 = vld [vmem:[%s838 + $0x68] sm:$0xf]
        %v866 = vld [vmem:[%s838 + $0x6c] sm:$0xf]
        %v867 = vld [vmem:[%s838 + $0x70] sm:$0xf]
        %v868 = vld [vmem:[%s838 + $0x74] sm:$0xf]
        %v869 = vld [vmem:[%s838 + $0x78] sm:$0xf]
        %v870 = vld [vmem:[%s838 + $0x7c] sm:$0xf]
        %vm871 = vcmask 1044480
        %v872 = vrot.slane %v249, 3
        %v873 = vrot.slane %v285, 3
        %v874 = vsel %vm871, %v872, %v873
        %v875 = vrot.slane %v250, 3
        %v876 = vrot.slane %v286, 3
        %v877 = vsel %vm871, %v875, %v876
        %v914 = vunpack.c.l.b16 %v839
        %v915 = vunpack.c.l.b16 %v840
        %v916 = vunpack.c.l.b16 %v841
        %v917 = vunpack.c.l.b16 %v842
        %v918 = vunpack.c.l.b16 %v843
        %v919 = vunpack.c.l.b16 %v844
        %v920 = vunpack.c.l.b16 %v845
        %v921 = vunpack.c.l.b16 %v846
        %v922 = vunpack.c.l.b16 %v847
        %v923 = vunpack.c.l.b16 %v848
        %v924 = vunpack.c.l.b16 %v849
        %v925 = vunpack.c.l.b16 %v850
        %v926 = vunpack.c.l.b16 %v851
        %v927 = vunpack.c.l.b16 %v852
        %v928 = vunpack.c.l.b16 %v853
        %v929 = vunpack.c.l.b16 %v854
        %v930 = vunpack.c.l.b16 %v855
        %v931 = vunpack.c.l.b16 %v856
        %v932 = vunpack.c.l.b16 %v857
        %v933 = vunpack.c.l.b16 %v858
        %v934 = vunpack.c.l.b16 %v859
        %v935 = vunpack.c.l.b16 %v860
        %v936 = vunpack.c.l.b16 %v861
        %v937 = vunpack.c.l.b16 %v862
        %v938 = vunpack.c.l.b16 %v863
        %v939 = vunpack.c.l.b16 %v864
        %v940 = vunpack.c.l.b16 %v865
        %v941 = vunpack.c.l.b16 %v866
        %v942 = vunpack.c.l.b16 %v867
        %v943 = vunpack.c.l.b16 %v868
        %v944 = vunpack.c.l.b16 %v869
        %v945 = vunpack.c.l.b16 %v870
        %v946 = vpack.c.b16 %v915, %v914
        %v947 = vpack.c.b16 %v917, %v916
        %v948 = vpack.c.b16 %v919, %v918
        %v949 = vpack.c.b16 %v921, %v920
        %v950 = vpack.c.b16 %v923, %v922
        %v951 = vpack.c.b16 %v925, %v924
        %v952 = vpack.c.b16 %v927, %v926
        %v953 = vpack.c.b16 %v929, %v928
        %v954 = vpack.c.b16 %v931, %v930
        %v955 = vpack.c.b16 %v933, %v932
        %v956 = vpack.c.b16 %v935, %v934
        %v957 = vpack.c.b16 %v937, %v936
        %v958 = vpack.c.b16 %v939, %v938
        %v959 = vpack.c.b16 %v941, %v940
        %v960 = vpack.c.b16 %v943, %v942
        %v961 = vpack.c.b16 %v945, %v944
        %978 = vmatprep.subr.bf16.mxu0 0
        %979 = vmatpush1.bf16.msra.mxu0 %v946
        %980 = vmatprep.subr.bf16.mxu0 0
        %981 = vmatpush1.bf16.msra.mxu0 %v947
        %982 = vmatprep.subr.bf16.mxu0 0
        %983 = vmatpush1.bf16.msra.mxu0 %v948
        %984 = vmatprep.subr.bf16.mxu0 0
        %985 = vmatpush1.bf16.msra.mxu0 %v949
        %986 = vmatprep.subr.bf16.mxu0 0
        %987 = vmatpush1.bf16.msra.mxu0 %v950
        %988 = vmatprep.subr.bf16.mxu0 0
        %989 = vmatpush1.bf16.msra.mxu0 %v951
        %990 = vmatprep.subr.bf16.mxu0 0
        %991 = vmatpush1.bf16.msra.mxu0 %v952
        %992 = vmatprep.subr.bf16.mxu0 0
        %993 = vmatpush1.bf16.msra.mxu0 %v953
        %994 = vmatprep.subr.bf16.mxu0 0
        %995 = vmatpush1.bf16.msra.mxu0 %v954
        %996 = vmatprep.subr.bf16.mxu0 0
        %997 = vmatpush1.bf16.msra.mxu0 %v955
        %998 = vmatprep.subr.bf16.mxu0 0
        %999 = vmatpush1.bf16.msra.mxu0 %v956
        %1000 = vmatprep.subr.bf16.mxu0 0
        %1001 = vmatpush1.bf16.msra.mxu0 %v957
        %1002 = vmatprep.subr.bf16.mxu0 0
        %1003 = vmatpush1.bf16.msra.mxu0 %v958
        %1004 = vmatprep.subr.bf16.mxu0 0
        %1005 = vmatpush1.bf16.msra.mxu0 %v959
        %1006 = vmatprep.subr.bf16.mxu0 0
        %1007 = vmatpush1.bf16.msra.mxu0 %v960
        %1008 = vmatprep.subr.bf16.mxu0 0
        %1009 = vmatpush1.bf16.msra.mxu0 %v961
        %1010 = vmatprep.mubr.bf16.mxu0 %v877
        %1011 = vmatmul.mubr.bf16.gmra.mrb[0].mxu0 %v874
        %v1012 = vpop.f32.mrb[0].mxu0
        %v1013 = vadd.f32 0.0, %v1012
        %v1014 = vpop.f32.mrb[0].mxu0
        %v1015 = vpop.f32.mrb[0].mxu0
        %v1016 = vadd.f32 0.0, %v1015
        %v1017 = vpop.f32.mrb[0].mxu0
        %1018 = vmatprep.mubr.bf16.mxu0 %v876
        %1019 = vmatmul.mubr.bf16.gmra.mrb[0].mxu0 %v873
        %v1020 = vpop.f32.mrb[0].mxu0
        %v1021 = vadd.f32 0.0, %v1020
        %v1022 = vpop.f32.mrb[0].mxu0
        %v1023 = vpop.f32.mrb[0].mxu0
        %v1024 = vpop.f32.mrb[0].mxu0
        %1025 = vdwg.mxu0
        %v1026 = vadd.f32 %v835, %v1013
        %v1027 = vadd.f32 %v836, %v1016
        %v1028 = vadd.f32 %v837, %v1021
        %s1029 = scalar_lea.vmem [#allocation2], 512
        %v1030 = vld [vmem:[%s1029] sm:$0xf]
        %v1031 = vld [vmem:[%s1029 + $0x4] sm:$0xf]
        %v1032 = vld [vmem:[%s1029 + $0x8] sm:$0xf]
        %v1033 = vld [vmem:[%s1029 + $0xc] sm:$0xf]
        %v1034 = vld [vmem:[%s1029 + $0x10] sm:$0xf]
        %v1035 = vld [vmem:[%s1029 + $0x14] sm:$0xf]
        %v1036 = vld [vmem:[%s1029 + $0x18] sm:$0xf]
        %v1037 = vld [vmem:[%s1029 + $0x1c] sm:$0xf]
        %v1038 = vld [vmem:[%s1029 + $0x20] sm:$0xf]
        %v1039 = vld [vmem:[%s1029 + $0x24] sm:$0xf]
        %v1040 = vld [vmem:[%s1029 + $0x28] sm:$0xf]
        %v1041 = vld [vmem:[%s1029 + $0x2c] sm:$0xf]
        %v1042 = vld [vmem:[%s1029 + $0x30] sm:$0xf]
        %v1043 = vld [vmem:[%s1029 + $0x34] sm:$0xf]
        %v1044 = vld [vmem:[%s1029 + $0x38] sm:$0xf]
        %v1045 = vld [vmem:[%s1029 + $0x3c] sm:$0xf]
        %v1046 = vld [vmem:[%s1029 + $0x40] sm:$0xf]
        %v1047 = vld [vmem:[%s1029 + $0x44] sm:$0xf]
        %v1048 = vld [vmem:[%s1029 + $0x48] sm:$0xf]
        %v1049 = vld [vmem:[%s1029 + $0x4c] sm:$0xf]
        %v1050 = vld [vmem:[%s1029 + $0x50] sm:$0xf]
        %v1051 = vld [vmem:[%s1029 + $0x54] sm:$0xf]
        %v1052 = vld [vmem:[%s1029 + $0x58] sm:$0xf]
        %v1053 = vld [vmem:[%s1029 + $0x5c] sm:$0xf]
        %v1054 = vld [vmem:[%s1029 + $0x60] sm:$0xf]
        %v1055 = vld [vmem:[%s1029 + $0x64] sm:$0xf]
        %v1056 = vld [vmem:[%s1029 + $0x68] sm:$0xf]
        %v1057 = vld [vmem:[%s1029 + $0x6c] sm:$0xf]
        %v1058 = vld [vmem:[%s1029 + $0x70] sm:$0xf]
        %v1059 = vld [vmem:[%s1029 + $0x74] sm:$0xf]
        %v1060 = vld [vmem:[%s1029 + $0x78] sm:$0xf]
        %v1061 = vld [vmem:[%s1029 + $0x7c] sm:$0xf]
        %vm1062 = vsmask.f32 4352
        %v1063 = vrot.slane %v322, 3
        %v1064 = vrot.slane %v324, 4
        %v1065 = vor.u32 %v1063, %v1064
        %v1066 = vrot.slane %v345, 3
        %v1067 = vrot.slane %v329, 4
        %v1068 = vor.u32 %v1066, %v1067
        %v1069 = vsel %vm1062, %v1065, %v1068
        %v1070 = vrot.slane %v334, 3
        %v1071 = vrot.slane %v336, 4
        %v1072 = vor.u32 %v1070, %v1071
        %v1073 = vrot.slane %v348, 3
        %v1074 = vrot.slane %v341, 4
        %v1075 = vor.u32 %v1073, %v1074
        %v1076 = vsel %vm1062, %v1072, %v1075
        %v1113 = vunpack.c.l.b16 %v1030
        %v1114 = vunpack.c.l.b16 %v1031
        %v1115 = vunpack.c.l.b16 %v1032
        %v1116 = vunpack.c.l.b16 %v1033
        %v1117 = vunpack.c.l.b16 %v1034
        %v1118 = vunpack.c.l.b16 %v1035
        %v1119 = vunpack.c.l.b16 %v1036
        %v1120 = vunpack.c.l.b16 %v1037
        %v1121 = vunpack.c.l.b16 %v1038
        %v1122 = vunpack.c.l.b16 %v1039
        %v1123 = vunpack.c.l.b16 %v1040
        %v1124 = vunpack.c.l.b16 %v1041
        %v1125 = vunpack.c.l.b16 %v1042
        %v1126 = vunpack.c.l.b16 %v1043
        %v1127 = vunpack.c.l.b16 %v1044
        %v1128 = vunpack.c.l.b16 %v1045
        %v1129 = vunpack.c.l.b16 %v1046
        %v1130 = vunpack.c.l.b16 %v1047
        %v1131 = vunpack.c.l.b16 %v1048
        %v1132 = vunpack.c.l.b16 %v1049
        %v1133 = vunpack.c.l.b16 %v1050
        %v1134 = vunpack.c.l.b16 %v1051
        %v1135 = vunpack.c.l.b16 %v1052
        %v1136 = vunpack.c.l.b16 %v1053
        %v1137 = vunpack.c.l.b16 %v1054
        %v1138 = vunpack.c.l.b16 %v1055
        %v1139 = vunpack.c.l.b16 %v1056
        %v1140 = vunpack.c.l.b16 %v1057
        %v1141 = vunpack.c.l.b16 %v1058
        %v1142 = vunpack.c.l.b16 %v1059
        %v1143 = vunpack.c.l.b16 %v1060
        %v1144 = vunpack.c.l.b16 %v1061
        %v1145 = vpack.c.b16 %v1114, %v1113
        %v1146 = vpack.c.b16 %v1116, %v1115
        %v1147 = vpack.c.b16 %v1118, %v1117
        %v1148 = vpack.c.b16 %v1120, %v1119
        %v1149 = vpack.c.b16 %v1122, %v1121
        %v1150 = vpack.c.b16 %v1124, %v1123
        %v1151 = vpack.c.b16 %v1126, %v1125
        %v1152 = vpack.c.b16 %v1128, %v1127
        %v1153 = vpack.c.b16 %v1130, %v1129
        %v1154 = vpack.c.b16 %v1132, %v1131
        %v1155 = vpack.c.b16 %v1134, %v1133
        %v1156 = vpack.c.b16 %v1136, %v1135
        %v1157 = vpack.c.b16 %v1138, %v1137
        %v1158 = vpack.c.b16 %v1140, %v1139
        %v1159 = vpack.c.b16 %v1142, %v1141
        %v1160 = vpack.c.b16 %v1144, %v1143
        %1177 = vmatprep.subr.bf16.mxu0 0
        %1178 = vmatpush1.bf16.msra.mxu0 %v1145
        %1179 = vmatprep.subr.bf16.mxu0 0
        %1180 = vmatpush1.bf16.msra.mxu0 %v1146
        %1181 = vmatprep.subr.bf16.mxu0 0
        %1182 = vmatpush1.bf16.msra.mxu0 %v1147
        %1183 = vmatprep.subr.bf16.mxu0 0
        %1184 = vmatpush1.bf16.msra.mxu0 %v1148
        %1185 = vmatprep.subr.bf16.mxu0 0
        %1186 = vmatpush1.bf16.msra.mxu0 %v1149
        %1187 = vmatprep.subr.bf16.mxu0 0
        %1188 = vmatpush1.bf16.msra.mxu0 %v1150
        %1189 = vmatprep.subr.bf16.mxu0 0
        %1190 = vmatpush1.bf16.msra.mxu0 %v1151
        %1191 = vmatprep.subr.bf16.mxu0 0
        %1192 = vmatpush1.bf16.msra.mxu0 %v1152
        %1193 = vmatprep.subr.bf16.mxu0 0
        %1194 = vmatpush1.bf16.msra.mxu0 %v1153
        %1195 = vmatprep.subr.bf16.mxu0 0
        %1196 = vmatpush1.bf16.msra.mxu0 %v1154
        %1197 = vmatprep.subr.bf16.mxu0 0
        %1198 = vmatpush1.bf16.msra.mxu0 %v1155
        %1199 = vmatprep.subr.bf16.mxu0 0
        %1200 = vmatpush1.bf16.msra.mxu0 %v1156
        %1201 = vmatprep.subr.bf16.mxu0 0
        %1202 = vmatpush1.bf16.msra.mxu0 %v1157
        %1203 = vmatprep.subr.bf16.mxu0 0
        %1204 = vmatpush1.bf16.msra.mxu0 %v1158
        %1205 = vmatprep.subr.bf16.mxu0 0
        %1206 = vmatpush1.bf16.msra.mxu0 %v1159
        %1207 = vmatprep.subr.bf16.mxu0 0
        %1208 = vmatpush1.bf16.msra.mxu0 %v1160
        %1209 = vmatprep.mubr.bf16.mxu0 %v1076
        %1210 = vmatmul.mubr.bf16.gmra.mrb[0].mxu0 %v1069
        %v1211 = vpop.f32.mrb[0].mxu0
        %v1212 = vadd.f32 0.0, %v1211
        %v1213 = vpop.f32.mrb[0].mxu0
        %v1214 = vpop.f32.mrb[0].mxu0
        %v1215 = vadd.f32 0.0, %v1214
        %v1216 = vpop.f32.mrb[0].mxu0
        %1217 = vmatprep.mubr.bf16.mxu0 %v1075
        %1218 = vmatmul.mubr.bf16.gmra.mrb[0].mxu0 %v1068
        %v1219 = vpop.f32.mrb[0].mxu0
        %v1220 = vadd.f32 0.0, %v1219
        %v1221 = vpop.f32.mrb[0].mxu0
        %v1222 = vpop.f32.mrb[0].mxu0
        %v1223 = vpop.f32.mrb[0].mxu0
        %1224 = vdwg.mxu0
        %v1225 = vadd.f32 %v1026, %v1212
        %v1226 = vadd.f32 %v1027, %v1215
        %v1227 = vadd.f32 %v1028, %v1220
        %v1228 = vpack.c.bf16 %v243, %v241
        %v1229 = vpack.c.bf16 %v244, %v242
        %v1230 = vpack.c.bf16 %v245, %v245
        %v1231 = vpack.c.bf16 %v246, %v246
        %s1232 = scalar_lea.vmem [#allocation2], 640
        %v1233 = vld [vmem:[%s1232] sm:$0xf]
        %v1234 = vld [vmem:[%s1232 + $0x4] sm:$0xf]
        %v1235 = vld [vmem:[%s1232 + $0x8] sm:$0xf]
        %v1236 = vld [vmem:[%s1232 + $0xc] sm:$0xf]
        %v1237 = vld [vmem:[%s1232 + $0x10] sm:$0xf]
        %v1238 = vld [vmem:[%s1232 + $0x14] sm:$0xf]
        %v1239 = vld [vmem:[%s1232 + $0x18] sm:$0xf]
        %v1240 = vld [vmem:[%s1232 + $0x1c] sm:$0xf]
        %v1241 = vld [vmem:[%s1232 + $0x20] sm:$0xf]
        %v1242 = vld [vmem:[%s1232 + $0x24] sm:$0xf]
        %v1243 = vld [vmem:[%s1232 + $0x28] sm:$0xf]
        %v1244 = vld [vmem:[%s1232 + $0x2c] sm:$0xf]
        %v1245 = vld [vmem:[%s1232 + $0x30] sm:$0xf]
        %v1246 = vld [vmem:[%s1232 + $0x34] sm:$0xf]
        %v1247 = vld [vmem:[%s1232 + $0x38] sm:$0xf]
        %v1248 = vld [vmem:[%s1232 + $0x3c] sm:$0xf]
        %v1249 = vld [vmem:[%s1232 + $0x40] sm:$0xf]
        %v1250 = vld [vmem:[%s1232 + $0x44] sm:$0xf]
        %v1251 = vld [vmem:[%s1232 + $0x48] sm:$0xf]
        %v1252 = vld [vmem:[%s1232 + $0x4c] sm:$0xf]
        %v1253 = vld [vmem:[%s1232 + $0x50] sm:$0xf]
        %v1254 = vld [vmem:[%s1232 + $0x54] sm:$0xf]
        %v1255 = vld [vmem:[%s1232 + $0x58] sm:$0xf]
        %v1256 = vld [vmem:[%s1232 + $0x5c] sm:$0xf]
        %v1257 = vld [vmem:[%s1232 + $0x60] sm:$0xf]
        %v1258 = vld [vmem:[%s1232 + $0x64] sm:$0xf]
        %v1259 = vld [vmem:[%s1232 + $0x68] sm:$0xf]
        %v1260 = vld [vmem:[%s1232 + $0x6c] sm:$0xf]
        %v1261 = vld [vmem:[%s1232 + $0x70] sm:$0xf]
        %v1262 = vld [vmem:[%s1232 + $0x74] sm:$0xf]
        %v1263 = vld [vmem:[%s1232 + $0x78] sm:$0xf]
        %v1264 = vld [vmem:[%s1232 + $0x7c] sm:$0xf]
        %v1297 = vunpack.c.l.b16 %v1233
        %v1298 = vunpack.c.l.b16 %v1234
        %v1299 = vunpack.c.l.b16 %v1235
        %v1300 = vunpack.c.l.b16 %v1236
        %v1301 = vunpack.c.l.b16 %v1237
        %v1302 = vunpack.c.l.b16 %v1238
        %v1303 = vunpack.c.l.b16 %v1239
        %v1304 = vunpack.c.l.b16 %v1240
        %v1305 = vunpack.c.l.b16 %v1241
        %v1306 = vunpack.c.l.b16 %v1242
        %v1307 = vunpack.c.l.b16 %v1243
        %v1308 = vunpack.c.l.b16 %v1244
        %v1309 = vunpack.c.l.b16 %v1245
        %v1310 = vunpack.c.l.b16 %v1246
        %v1311 = vunpack.c.l.b16 %v1247
        %v1312 = vunpack.c.l.b16 %v1248
        %v1313 = vunpack.c.l.b16 %v1249
        %v1314 = vunpack.c.l.b16 %v1250
        %v1315 = vunpack.c.l.b16 %v1251
        %v1316 = vunpack.c.l.b16 %v1252
        %v1317 = vunpack.c.l.b16 %v1253
        %v1318 = vunpack.c.l.b16 %v1254
        %v1319 = vunpack.c.l.b16 %v1255
        %v1320 = vunpack.c.l.b16 %v1256
        %v1321 = vunpack.c.l.b16 %v1257
        %v1322 = vunpack.c.l.b16 %v1258
        %v1323 = vunpack.c.l.b16 %v1259
        %v1324 = vunpack.c.l.b16 %v1260
        %v1325 = vunpack.c.l.b16 %v1261
        %v1326 = vunpack.c.l.b16 %v1262
        %v1327 = vunpack.c.l.b16 %v1263
        %v1328 = vunpack.c.l.b16 %v1264
        %v1329 = vpack.c.b16 %v1298, %v1297
        %v1330 = vpack.c.b16 %v1300, %v1299
        %v1331 = vpack.c.b16 %v1302, %v1301
        %v1332 = vpack.c.b16 %v1304, %v1303
        %v1333 = vpack.c.b16 %v1306, %v1305
        %v1334 = vpack.c.b16 %v1308, %v1307
        %v1335 = vpack.c.b16 %v1310, %v1309
        %v1336 = vpack.c.b16 %v1312, %v1311
        %v1337 = vpack.c.b16 %v1314, %v1313
        %v1338 = vpack.c.b16 %v1316, %v1315
        %v1339 = vpack.c.b16 %v1318, %v1317
        %v1340 = vpack.c.b16 %v1320, %v1319
        %v1341 = vpack.c.b16 %v1322, %v1321
        %v1342 = vpack.c.b16 %v1324, %v1323
        %v1343 = vpack.c.b16 %v1326, %v1325
        %v1344 = vpack.c.b16 %v1328, %v1327
        %1361 = vmatprep.subr.bf16.mxu0 0
        %1362 = vmatpush1.bf16.msra.mxu0 %v1329
        %1363 = vmatprep.subr.bf16.mxu0 0
        %1364 = vmatpush1.bf16.msra.mxu0 %v1330
        %1365 = vmatprep.subr.bf16.mxu0 0
        %1366 = vmatpush1.bf16.msra.mxu0 %v1331
        %1367 = vmatprep.subr.bf16.mxu0 0
        %1368 = vmatpush1.bf16.msra.mxu0 %v1332
        %1369 = vmatprep.subr.bf16.mxu0 0
        %1370 = vmatpush1.bf16.msra.mxu0 %v1333
        %1371 = vmatprep.subr.bf16.mxu0 0
        %1372 = vmatpush1.bf16.msra.mxu0 %v1334
        %1373 = vmatprep.subr.bf16.mxu0 0
        %1374 = vmatpush1.bf16.msra.mxu0 %v1335
        %1375 = vmatprep.subr.bf16.mxu0 0
        %1376 = vmatpush1.bf16.msra.mxu0 %v1336
        %1377 = vmatprep.subr.bf16.mxu0 0
        %1378 = vmatpush1.bf16.msra.mxu0 %v1337
        %1379 = vmatprep.subr.bf16.mxu0 0
        %1380 = vmatpush1.bf16.msra.mxu0 %v1338
        %1381 = vmatprep.subr.bf16.mxu0 0
        %1382 = vmatpush1.bf16.msra.mxu0 %v1339
        %1383 = vmatprep.subr.bf16.mxu0 0
        %1384 = vmatpush1.bf16.msra.mxu0 %v1340
        %1385 = vmatprep.subr.bf16.mxu0 0
        %1386 = vmatpush1.bf16.msra.mxu0 %v1341
        %1387 = vmatprep.subr.bf16.mxu0 0
        %1388 = vmatpush1.bf16.msra.mxu0 %v1342
        %1389 = vmatprep.subr.bf16.mxu0 0
        %1390 = vmatpush1.bf16.msra.mxu0 %v1343
        %1391 = vmatprep.subr.bf16.mxu0 0
        %1392 = vmatpush1.bf16.msra.mxu0 %v1344
        %1393 = vmatprep.mubr.bf16.mxu0 %v1229
        %1394 = vmatmul.mubr.bf16.gmra.mrb[0].mxu0 %v1228
        %v1395 = vpop.f32.mrb[0].mxu0
        %v1396 = vadd.f32 0.0, %v1395
        %v1397 = vpop.f32.mrb[0].mxu0
        %v1398 = vpop.f32.mrb[0].mxu0
        %v1399 = vadd.f32 0.0, %v1398
        %v1400 = vpop.f32.mrb[0].mxu0
        %1401 = vmatprep.mubr.bf16.mxu0 %v1231
        %1402 = vmatmul.mubr.bf16.gmra.mrb[0].mxu0 %v1230
        %v1403 = vpop.f32.mrb[0].mxu0
        %v1404 = vadd.f32 0.0, %v1403
        %v1405 = vpop.f32.mrb[0].mxu0
        %v1406 = vpop.f32.mrb[0].mxu0
        %v1407 = vpop.f32.mrb[0].mxu0
        %1408 = vdwg.mxu0
        %v1409 = vadd.f32 %v1225, %v1396
        %v1410 = vadd.f32 %v1226, %v1399
        %v1411 = vadd.f32 %v1227, %v1404
        %v1412 = vpack.c.bf16 %v247, %v245
        %v1413 = vpack.c.bf16 %v248, %v246
        %s1414 = scalar_lea.vmem [#allocation2], 768
        %v1415 = vld [vmem:[%s1414] sm:$0xf]
        %v1416 = vld [vmem:[%s1414 + $0x4] sm:$0xf]
        %v1417 = vld [vmem:[%s1414 + $0x8] sm:$0xf]
        %v1418 = vld [vmem:[%s1414 + $0xc] sm:$0xf]
        %v1419 = vld [vmem:[%s1414 + $0x10] sm:$0xf]
        %v1420 = vld [vmem:[%s1414 + $0x14] sm:$0xf]
        %v1421 = vld [vmem:[%s1414 + $0x18] sm:$0xf]
        %v1422 = vld [vmem:[%s1414 + $0x1c] sm:$0xf]
        %v1423 = vld [vmem:[%s1414 + $0x20] sm:$0xf]
        %v1424 = vld [vmem:[%s1414 + $0x24] sm:$0xf]
        %v1425 = vld [vmem:[%s1414 + $0x28] sm:$0xf]
        %v1426 = vld [vmem:[%s1414 + $0x2c] sm:$0xf]
        %v1427 = vld [vmem:[%s1414 + $0x30] sm:$0xf]
        %v1428 = vld [vmem:[%s1414 + $0x34] sm:$0xf]
        %v1429 = vld [vmem:[%s1414 + $0x38] sm:$0xf]
        %v1430 = vld [vmem:[%s1414 + $0x3c] sm:$0xf]
        %v1431 = vld [vmem:[%s1414 + $0x40] sm:$0xf]
        %v1432 = vld [vmem:[%s1414 + $0x44] sm:$0xf]
        %v1433 = vld [vmem:[%s1414 + $0x48] sm:$0xf]
        %v1434 = vld [vmem:[%s1414 + $0x4c] sm:$0xf]
        %v1435 = vld [vmem:[%s1414 + $0x50] sm:$0xf]
        %v1436 = vld [vmem:[%s1414 + $0x54] sm:$0xf]
        %v1437 = vld [vmem:[%s1414 + $0x58] sm:$0xf]
        %v1438 = vld [vmem:[%s1414 + $0x5c] sm:$0xf]
        %v1439 = vld [vmem:[%s1414 + $0x60] sm:$0xf]
        %v1440 = vld [vmem:[%s1414 + $0x64] sm:$0xf]
        %v1441 = vld [vmem:[%s1414 + $0x68] sm:$0xf]
        %v1442 = vld [vmem:[%s1414 + $0x6c] sm:$0xf]
        %v1443 = vld [vmem:[%s1414 + $0x70] sm:$0xf]
        %v1444 = vld [vmem:[%s1414 + $0x74] sm:$0xf]
        %v1445 = vld [vmem:[%s1414 + $0x78] sm:$0xf]
        %v1446 = vld [vmem:[%s1414 + $0x7c] sm:$0xf]
        %vm1451 = vcmask 1045504
        %v1452 = vrot.slane %v1228, 2
        %v1453 = vrot.slane %v1412, 2
        %v1454 = vsel %vm1451, %v1452, %v1453
        %v1455 = vrot.slane %v1229, 2
        %v1456 = vrot.slane %v1413, 2
        %v1457 = vsel %vm1451, %v1455, %v1456
        %v1494 = vunpack.c.l.b16 %v1415
        %v1495 = vunpack.c.l.b16 %v1416
        %v1496 = vunpack.c.l.b16 %v1417
        %v1497 = vunpack.c.l.b16 %v1418
        %v1498 = vunpack.c.l.b16 %v1419
        %v1499 = vunpack.c.l.b16 %v1420
        %v1500 = vunpack.c.l.b16 %v1421
        %v1501 = vunpack.c.l.b16 %v1422
        %v1502 = vunpack.c.l.b16 %v1423
        %v1503 = vunpack.c.l.b16 %v1424
        %v1504 = vunpack.c.l.b16 %v1425
        %v1505 = vunpack.c.l.b16 %v1426
        %v1506 = vunpack.c.l.b16 %v1427
        %v1507 = vunpack.c.l.b16 %v1428
        %v1508 = vunpack.c.l.b16 %v1429
        %v1509 = vunpack.c.l.b16 %v1430
        %v1510 = vunpack.c.l.b16 %v1431
        %v1511 = vunpack.c.l.b16 %v1432
        %v1512 = vunpack.c.l.b16 %v1433
        %v1513 = vunpack.c.l.b16 %v1434
        %v1514 = vunpack.c.l.b16 %v1435
        %v1515 = vunpack.c.l.b16 %v1436
        %v1516 = vunpack.c.l.b16 %v1437
        %v1517 = vunpack.c.l.b16 %v1438
        %v1518 = vunpack.c.l.b16 %v1439
        %v1519 = vunpack.c.l.b16 %v1440
        %v1520 = vunpack.c.l.b16 %v1441
        %v1521 = vunpack.c.l.b16 %v1442
        %v1522 = vunpack.c.l.b16 %v1443
        %v1523 = vunpack.c.l.b16 %v1444
        %v1524 = vunpack.c.l.b16 %v1445
        %v1525 = vunpack.c.l.b16 %v1446
        %v1526 = vpack.c.b16 %v1495, %v1494
        %v1527 = vpack.c.b16 %v1497, %v1496
        %v1528 = vpack.c.b16 %v1499, %v1498
        %v1529 = vpack.c.b16 %v1501, %v1500
        %v1530 = vpack.c.b16 %v1503, %v1502
        %v1531 = vpack.c.b16 %v1505, %v1504
        %v1532 = vpack.c.b16 %v1507, %v1506
        %v1533 = vpack.c.b16 %v1509, %v1508
        %v1534 = vpack.c.b16 %v1511, %v1510
        %v1535 = vpack.c.b16 %v1513, %v1512
        %v1536 = vpack.c.b16 %v1515, %v1514
        %v1537 = vpack.c.b16 %v1517, %v1516
        %v1538 = vpack.c.b16 %v1519, %v1518
        %v1539 = vpack.c.b16 %v1521, %v1520
        %v1540 = vpack.c.b16 %v1523, %v1522
        %v1541 = vpack.c.b16 %v1525, %v1524
        %1558 = vmatprep.subr.bf16.mxu0 0
        %1559 = vmatpush1.bf16.msra.mxu0 %v1526
        %1560 = vmatprep.subr.bf16.mxu0 0
        %1561 = vmatpush1.bf16.msra.mxu0 %v1527
        %1562 = vmatprep.subr.bf16.mxu0 0
        %1563 = vmatpush1.bf16.msra.mxu0 %v1528
        %1564 = vmatprep.subr.bf16.mxu0 0
        %1565 = vmatpush1.bf16.msra.mxu0 %v1529
        %1566 = vmatprep.subr.bf16.mxu0 0
        %1567 = vmatpush1.bf16.msra.mxu0 %v1530
        %1568 = vmatprep.subr.bf16.mxu0 0
        %1569 = vmatpush1.bf16.msra.mxu0 %v1531
        %1570 = vmatprep.subr.bf16.mxu0 0
        %1571 = vmatpush1.bf16.msra.mxu0 %v1532
        %1572 = vmatprep.subr.bf16.mxu0 0
        %1573 = vmatpush1.bf16.msra.mxu0 %v1533
        %1574 = vmatprep.subr.bf16.mxu0 0
        %1575 = vmatpush1.bf16.msra.mxu0 %v1534
        %1576 = vmatprep.subr.bf16.mxu0 0
        %1577 = vmatpush1.bf16.msra.mxu0 %v1535
        %1578 = vmatprep.subr.bf16.mxu0 0
        %1579 = vmatpush1.bf16.msra.mxu0 %v1536
        %1580 = vmatprep.subr.bf16.mxu0 0
        %1581 = vmatpush1.bf16.msra.mxu0 %v1537
        %1582 = vmatprep.subr.bf16.mxu0 0
        %1583 = vmatpush1.bf16.msra.mxu0 %v1538
        %1584 = vmatprep.subr.bf16.mxu0 0
        %1585 = vmatpush1.bf16.msra.mxu0 %v1539
        %1586 = vmatprep.subr.bf16.mxu0 0
        %1587 = vmatpush1.bf16.msra.mxu0 %v1540
        %1588 = vmatprep.subr.bf16.mxu0 0
        %1589 = vmatpush1.bf16.msra.mxu0 %v1541
        %1590 = vmatprep.mubr.bf16.mxu0 %v1457
        %1591 = vmatmul.mubr.bf16.gmra.mrb[0].mxu0 %v1454
        %v1592 = vpop.f32.mrb[0].mxu0
        %v1593 = vadd.f32 0.0, %v1592
        %v1594 = vpop.f32.mrb[0].mxu0
        %v1595 = vpop.f32.mrb[0].mxu0
        %v1596 = vadd.f32 0.0, %v1595
        %v1597 = vpop.f32.mrb[0].mxu0
        %1598 = vmatprep.mubr.bf16.mxu0 %v1456
        %1599 = vmatmul.mubr.bf16.gmra.mrb[0].mxu0 %v1453
        %v1600 = vpop.f32.mrb[0].mxu0
        %v1601 = vadd.f32 0.0, %v1600
        %v1602 = vpop.f32.mrb[0].mxu0
        %v1603 = vpop.f32.mrb[0].mxu0
        %v1604 = vpop.f32.mrb[0].mxu0
        %1605 = vdwg.mxu0
        %v1606 = vadd.f32 %v1409, %v1593
        %v1607 = vadd.f32 %v1410, %v1596
        %v1608 = vadd.f32 %v1411, %v1601
        %s1609 = scalar_lea.vmem [#allocation2], 896
        %v1610 = vld [vmem:[%s1609] sm:$0xf]
        %v1611 = vld [vmem:[%s1609 + $0x4] sm:$0xf]
        %v1612 = vld [vmem:[%s1609 + $0x8] sm:$0xf]
        %v1613 = vld [vmem:[%s1609 + $0xc] sm:$0xf]
        %v1614 = vld [vmem:[%s1609 + $0x10] sm:$0xf]
        %v1615 = vld [vmem:[%s1609 + $0x14] sm:$0xf]
        %v1616 = vld [vmem:[%s1609 + $0x18] sm:$0xf]
        %v1617 = vld [vmem:[%s1609 + $0x1c] sm:$0xf]
        %v1618 = vld [vmem:[%s1609 + $0x20] sm:$0xf]
        %v1619 = vld [vmem:[%s1609 + $0x24] sm:$0xf]
        %v1620 = vld [vmem:[%s1609 + $0x28] sm:$0xf]
        %v1621 = vld [vmem:[%s1609 + $0x2c] sm:$0xf]
        %v1622 = vld [vmem:[%s1609 + $0x30] sm:$0xf]
        %v1623 = vld [vmem:[%s1609 + $0x34] sm:$0xf]
        %v1624 = vld [vmem:[%s1609 + $0x38] sm:$0xf]
        %v1625 = vld [vmem:[%s1609 + $0x3c] sm:$0xf]
        %v1626 = vld [vmem:[%s1609 + $0x40] sm:$0xf]
        %v1627 = vld [vmem:[%s1609 + $0x44] sm:$0xf]
        %v1628 = vld [vmem:[%s1609 + $0x48] sm:$0xf]
        %v1629 = vld [vmem:[%s1609 + $0x4c] sm:$0xf]
        %v1630 = vld [vmem:[%s1609 + $0x50] sm:$0xf]
        %v1631 = vld [vmem:[%s1609 + $0x54] sm:$0xf]
        %v1632 = vld [vmem:[%s1609 + $0x58] sm:$0xf]
        %v1633 = vld [vmem:[%s1609 + $0x5c] sm:$0xf]
        %v1634 = vld [vmem:[%s1609 + $0x60] sm:$0xf]
        %v1635 = vld [vmem:[%s1609 + $0x64] sm:$0xf]
        %v1636 = vld [vmem:[%s1609 + $0x68] sm:$0xf]
        %v1637 = vld [vmem:[%s1609 + $0x6c] sm:$0xf]
        %v1638 = vld [vmem:[%s1609 + $0x70] sm:$0xf]
        %v1639 = vld [vmem:[%s1609 + $0x74] sm:$0xf]
        %v1640 = vld [vmem:[%s1609 + $0x78] sm:$0xf]
        %v1641 = vld [vmem:[%s1609 + $0x7c] sm:$0xf]
        %vm1642 = vsmask.f32 5376
        %v1644 = vshrl.u32 %v1228, 16
        %v1646 = vrot.slane %v1644, 2
        %v1647 = vshll.u32 %v1228, 16
        %v1649 = vrot.slane %v1647, 3
        %v1650 = vor.u32 %v1646, %v1649
        %v1652 = vshrl.u32 %v1412, 16
        %v1654 = vrot.slane %v1652, 2
        %v1655 = vshll.u32 %v1412, 16
        %v1657 = vrot.slane %v1655, 3
        %v1658 = vor.u32 %v1654, %v1657
        %v1659 = vsel %vm1642, %v1650, %v1658
        %v1661 = vshrl.u32 %v1229, 16
        %v1663 = vrot.slane %v1661, 2
        %v1664 = vshll.u32 %v1229, 16
        %v1666 = vrot.slane %v1664, 3
        %v1667 = vor.u32 %v1663, %v1666
        %v1669 = vshrl.u32 %v1413, 16
        %v1671 = vrot.slane %v1669, 2
        %v1672 = vshll.u32 %v1413, 16
        %v1674 = vrot.slane %v1672, 3
        %v1675 = vor.u32 %v1671, %v1674
        %v1676 = vsel %vm1642, %v1667, %v1675
        %v1713 = vunpack.c.l.b16 %v1610
        %v1714 = vunpack.c.l.b16 %v1611
        %v1715 = vunpack.c.l.b16 %v1612
        %v1716 = vunpack.c.l.b16 %v1613
        %v1717 = vunpack.c.l.b16 %v1614
        %v1718 = vunpack.c.l.b16 %v1615
        %v1719 = vunpack.c.l.b16 %v1616
        %v1720 = vunpack.c.l.b16 %v1617
        %v1721 = vunpack.c.l.b16 %v1618
        %v1722 = vunpack.c.l.b16 %v1619
        %v1723 = vunpack.c.l.b16 %v1620
        %v1724 = vunpack.c.l.b16 %v1621
        %v1725 = vunpack.c.l.b16 %v1622
        %v1726 = vunpack.c.l.b16 %v1623
        %v1727 = vunpack.c.l.b16 %v1624
        %v1728 = vunpack.c.l.b16 %v1625
        %v1729 = vunpack.c.l.b16 %v1626
        %v1730 = vunpack.c.l.b16 %v1627
        %v1731 = vunpack.c.l.b16 %v1628
        %v1732 = vunpack.c.l.b16 %v1629
        %v1733 = vunpack.c.l.b16 %v1630
        %v1734 = vunpack.c.l.b16 %v1631
        %v1735 = vunpack.c.l.b16 %v1632
        %v1736 = vunpack.c.l.b16 %v1633
        %v1737 = vunpack.c.l.b16 %v1634
        %v1738 = vunpack.c.l.b16 %v1635
        %v1739 = vunpack.c.l.b16 %v1636
        %v1740 = vunpack.c.l.b16 %v1637
        %v1741 = vunpack.c.l.b16 %v1638
        %v1742 = vunpack.c.l.b16 %v1639
        %v1743 = vunpack.c.l.b16 %v1640
        %v1744 = vunpack.c.l.b16 %v1641
        %v1745 = vpack.c.b16 %v1714, %v1713
        %v1746 = vpack.c.b16 %v1716, %v1715
        %v1747 = vpack.c.b16 %v1718, %v1717
        %v1748 = vpack.c.b16 %v1720, %v1719
        %v1749 = vpack.c.b16 %v1722, %v1721
        %v1750 = vpack.c.b16 %v1724, %v1723
        %v1751 = vpack.c.b16 %v1726, %v1725
        %v1752 = vpack.c.b16 %v1728, %v1727
        %v1753 = vpack.c.b16 %v1730, %v1729
        %v1754 = vpack.c.b16 %v1732, %v1731
        %v1755 = vpack.c.b16 %v1734, %v1733
        %v1756 = vpack.c.b16 %v1736, %v1735
        %v1757 = vpack.c.b16 %v1738, %v1737
        %v1758 = vpack.c.b16 %v1740, %v1739
        %v1759 = vpack.c.b16 %v1742, %v1741
        %v1760 = vpack.c.b16 %v1744, %v1743
        %1777 = vmatprep.subr.bf16.mxu0 0
        %1778 = vmatpush1.bf16.msra.mxu0 %v1745
        %1779 = vmatprep.subr.bf16.mxu0 0
        %1780 = vmatpush1.bf16.msra.mxu0 %v1746
        %1781 = vmatprep.subr.bf16.mxu0 0
        %1782 = vmatpush1.bf16.msra.mxu0 %v1747
        %1783 = vmatprep.subr.bf16.mxu0 0
        %1784 = vmatpush1.bf16.msra.mxu0 %v1748
        %1785 = vmatprep.subr.bf16.mxu0 0
        %1786 = vmatpush1.bf16.msra.mxu0 %v1749
        %1787 = vmatprep.subr.bf16.mxu0 0
        %1788 = vmatpush1.bf16.msra.mxu0 %v1750
        %1789 = vmatprep.subr.bf16.mxu0 0
        %1790 = vmatpush1.bf16.msra.mxu0 %v1751
        %1791 = vmatprep.subr.bf16.mxu0 0
        %1792 = vmatpush1.bf16.msra.mxu0 %v1752
        %1793 = vmatprep.subr.bf16.mxu0 0
        %1794 = vmatpush1.bf16.msra.mxu0 %v1753
        %1795 = vmatprep.subr.bf16.mxu0 0
        %1796 = vmatpush1.bf16.msra.mxu0 %v1754
        %1797 = vmatprep.subr.bf16.mxu0 0
        %1798 = vmatpush1.bf16.msra.mxu0 %v1755
        %1799 = vmatprep.subr.bf16.mxu0 0
        %1800 = vmatpush1.bf16.msra.mxu0 %v1756
        %1801 = vmatprep.subr.bf16.mxu0 0
        %1802 = vmatpush1.bf16.msra.mxu0 %v1757
        %1803 = vmatprep.subr.bf16.mxu0 0
        %1804 = vmatpush1.bf16.msra.mxu0 %v1758
        %1805 = vmatprep.subr.bf16.mxu0 0
        %1806 = vmatpush1.bf16.msra.mxu0 %v1759
        %1807 = vmatprep.subr.bf16.mxu0 0
        %1808 = vmatpush1.bf16.msra.mxu0 %v1760
        %1809 = vmatprep.mubr.bf16.mxu0 %v1676
        %1810 = vmatmul.mubr.bf16.gmra.mrb[0].mxu0 %v1659
        %v1811 = vpop.f32.mrb[0].mxu0
        %v1812 = vadd.f32 0.0, %v1811
        %v1813 = vpop.f32.mrb[0].mxu0
        %v1814 = vpop.f32.mrb[0].mxu0
        %v1815 = vadd.f32 0.0, %v1814
        %v1816 = vpop.f32.mrb[0].mxu0
        %1817 = vmatprep.mubr.bf16.mxu0 %v1675
        %1818 = vmatmul.mubr.bf16.gmra.mrb[0].mxu0 %v1658
        %v1819 = vpop.f32.mrb[0].mxu0
        %v1820 = vadd.f32 0.0, %v1819
        %v1821 = vpop.f32.mrb[0].mxu0
        %v1822 = vpop.f32.mrb[0].mxu0
        %v1823 = vpop.f32.mrb[0].mxu0
        %1824 = vdwg.mxu0
        %v1825 = vadd.f32 %v1606, %v1812
        %v1826 = vadd.f32 %v1607, %v1815
        %v1827 = vadd.f32 %v1608, %v1820
        %s1828 = scalar_lea.vmem [#allocation2], 1024
        %v1829 = vld [vmem:[%s1828] sm:$0xf]
        %v1830 = vld [vmem:[%s1828 + $0x4] sm:$0xf]
        %v1831 = vld [vmem:[%s1828 + $0x8] sm:$0xf]
        %v1832 = vld [vmem:[%s1828 + $0xc] sm:$0xf]
        %v1833 = vld [vmem:[%s1828 + $0x10] sm:$0xf]
        %v1834 = vld [vmem:[%s1828 + $0x14] sm:$0xf]
        %v1835 = vld [vmem:[%s1828 + $0x18] sm:$0xf]
        %v1836 = vld [vmem:[%s1828 + $0x1c] sm:$0xf]
        %v1837 = vld [vmem:[%s1828 + $0x20] sm:$0xf]
        %v1838 = vld [vmem:[%s1828 + $0x24] sm:$0xf]
        %v1839 = vld [vmem:[%s1828 + $0x28] sm:$0xf]
        %v1840 = vld [vmem:[%s1828 + $0x2c] sm:$0xf]
        %v1841 = vld [vmem:[%s1828 + $0x30] sm:$0xf]
        %v1842 = vld [vmem:[%s1828 + $0x34] sm:$0xf]
        %v1843 = vld [vmem:[%s1828 + $0x38] sm:$0xf]
        %v1844 = vld [vmem:[%s1828 + $0x3c] sm:$0xf]
        %v1845 = vld [vmem:[%s1828 + $0x40] sm:$0xf]
        %v1846 = vld [vmem:[%s1828 + $0x44] sm:$0xf]
        %v1847 = vld [vmem:[%s1828 + $0x48] sm:$0xf]
        %v1848 = vld [vmem:[%s1828 + $0x4c] sm:$0xf]
        %v1849 = vld [vmem:[%s1828 + $0x50] sm:$0xf]
        %v1850 = vld [vmem:[%s1828 + $0x54] sm:$0xf]
        %v1851 = vld [vmem:[%s1828 + $0x58] sm:$0xf]
        %v1852 = vld [vmem:[%s1828 + $0x5c] sm:$0xf]
        %v1853 = vld [vmem:[%s1828 + $0x60] sm:$0xf]
        %v1854 = vld [vmem:[%s1828 + $0x64] sm:$0xf]
        %v1855 = vld [vmem:[%s1828 + $0x68] sm:$0xf]
        %v1856 = vld [vmem:[%s1828 + $0x6c] sm:$0xf]
        %v1857 = vld [vmem:[%s1828 + $0x70] sm:$0xf]
        %v1858 = vld [vmem:[%s1828 + $0x74] sm:$0xf]
        %v1859 = vld [vmem:[%s1828 + $0x78] sm:$0xf]
        %v1860 = vld [vmem:[%s1828 + $0x7c] sm:$0xf]
        %v1861 = vrot.slane %v1228, 3
        %v1862 = vrot.slane %v1412, 3
        %v1863 = vsel %vm871, %v1861, %v1862
        %v1864 = vrot.slane %v1229, 3
        %v1865 = vrot.slane %v1413, 3
        %v1866 = vsel %vm871, %v1864, %v1865
        %v1903 = vunpack.c.l.b16 %v1829
        %v1904 = vunpack.c.l.b16 %v1830
        %v1905 = vunpack.c.l.b16 %v1831
        %v1906 = vunpack.c.l.b16 %v1832
        %v1907 = vunpack.c.l.b16 %v1833
        %v1908 = vunpack.c.l.b16 %v1834
        %v1909 = vunpack.c.l.b16 %v1835
        %v1910 = vunpack.c.l.b16 %v1836
        %v1911 = vunpack.c.l.b16 %v1837
        %v1912 = vunpack.c.l.b16 %v1838
        %v1913 = vunpack.c.l.b16 %v1839
        %v1914 = vunpack.c.l.b16 %v1840
        %v1915 = vunpack.c.l.b16 %v1841
        %v1916 = vunpack.c.l.b16 %v1842
        %v1917 = vunpack.c.l.b16 %v1843
        %v1918 = vunpack.c.l.b16 %v1844
        %v1919 = vunpack.c.l.b16 %v1845
        %v1920 = vunpack.c.l.b16 %v1846
        %v1921 = vunpack.c.l.b16 %v1847
        %v1922 = vunpack.c.l.b16 %v1848
        %v1923 = vunpack.c.l.b16 %v1849
        %v1924 = vunpack.c.l.b16 %v1850
        %v1925 = vunpack.c.l.b16 %v1851
        %v1926 = vunpack.c.l.b16 %v1852
        %v1927 = vunpack.c.l.b16 %v1853
        %v1928 = vunpack.c.l.b16 %v1854
        %v1929 = vunpack.c.l.b16 %v1855
        %v1930 = vunpack.c.l.b16 %v1856
        %v1931 = vunpack.c.l.b16 %v1857
        %v1932 = vunpack.c.l.b16 %v1858
        %v1933 = vunpack.c.l.b16 %v1859
        %v1934 = vunpack.c.l.b16 %v1860
        %v1935 = vpack.c.b16 %v1904, %v1903
        %v1936 = vpack.c.b16 %v1906, %v1905
        %v1937 = vpack.c.b16 %v1908, %v1907
        %v1938 = vpack.c.b16 %v1910, %v1909
        %v1939 = vpack.c.b16 %v1912, %v1911
        %v1940 = vpack.c.b16 %v1914, %v1913
        %v1941 = vpack.c.b16 %v1916, %v1915
        %v1942 = vpack.c.b16 %v1918, %v1917
        %v1943 = vpack.c.b16 %v1920, %v1919
        %v1944 = vpack.c.b16 %v1922, %v1921
        %v1945 = vpack.c.b16 %v1924, %v1923
        %v1946 = vpack.c.b16 %v1926, %v1925
        %v1947 = vpack.c.b16 %v1928, %v1927
        %v1948 = vpack.c.b16 %v1930, %v1929
        %v1949 = vpack.c.b16 %v1932, %v1931
        %v1950 = vpack.c.b16 %v1934, %v1933
        %1967 = vmatprep.subr.bf16.mxu0 0
        %1968 = vmatpush1.bf16.msra.mxu0 %v1935
        %1969 = vmatprep.subr.bf16.mxu0 0
        %1970 = vmatpush1.bf16.msra.mxu0 %v1936
        %1971 = vmatprep.subr.bf16.mxu0 0
        %1972 = vmatpush1.bf16.msra.mxu0 %v1937
        %1973 = vmatprep.subr.bf16.mxu0 0
        %1974 = vmatpush1.bf16.msra.mxu0 %v1938
        %1975 = vmatprep.subr.bf16.mxu0 0
        %1976 = vmatpush1.bf16.msra.mxu0 %v1939
        %1977 = vmatprep.subr.bf16.mxu0 0
        %1978 = vmatpush1.bf16.msra.mxu0 %v1940
        %1979 = vmatprep.subr.bf16.mxu0 0
        %1980 = vmatpush1.bf16.msra.mxu0 %v1941
        %1981 = vmatprep.subr.bf16.mxu0 0
        %1982 = vmatpush1.bf16.msra.mxu0 %v1942
        %1983 = vmatprep.subr.bf16.mxu0 0
        %1984 = vmatpush1.bf16.msra.mxu0 %v1943
        %1985 = vmatprep.subr.bf16.mxu0 0
        %1986 = vmatpush1.bf16.msra.mxu0 %v1944
        %1987 = vmatprep.subr.bf16.mxu0 0
        %1988 = vmatpush1.bf16.msra.mxu0 %v1945
        %1989 = vmatprep.subr.bf16.mxu0 0
        %1990 = vmatpush1.bf16.msra.mxu0 %v1946
        %1991 = vmatprep.subr.bf16.mxu0 0
        %1992 = vmatpush1.bf16.msra.mxu0 %v1947
        %1993 = vmatprep.subr.bf16.mxu0 0
        %1994 = vmatpush1.bf16.msra.mxu0 %v1948
        %1995 = vmatprep.subr.bf16.mxu0 0
        %1996 = vmatpush1.bf16.msra.mxu0 %v1949
        %1997 = vmatprep.subr.bf16.mxu0 0
        %1998 = vmatpush1.bf16.msra.mxu0 %v1950
        %1999 = vmatprep.mubr.bf16.mxu0 %v1866
        %2000 = vmatmul.mubr.bf16.gmra.mrb[0].mxu0 %v1863
        %v2001 = vpop.f32.mrb[0].mxu0
        %v2002 = vadd.f32 0.0, %v2001
        %v2003 = vpop.f32.mrb[0].mxu0
        %v2004 = vpop.f32.mrb[0].mxu0
        %v2005 = vadd.f32 0.0, %v2004
        %v2006 = vpop.f32.mrb[0].mxu0
        %2007 = vmatprep.mubr.bf16.mxu0 %v1865
        %2008 = vmatmul.mubr.bf16.gmra.mrb[0].mxu0 %v1862
        %v2009 = vpop.f32.mrb[0].mxu0
        %v2010 = vadd.f32 0.0, %v2009
        %v2011 = vpop.f32.mrb[0].mxu0
        %v2012 = vpop.f32.mrb[0].mxu0
        %v2013 = vpop.f32.mrb[0].mxu0
        %2014 = vdwg.mxu0
        %v2015 = vadd.f32 %v1825, %v2002
        %v2016 = vadd.f32 %v1826, %v2005
        %v2017 = vadd.f32 %v1827, %v2010
        %v2018 = vld [vmem:[#allocation4] sm:$0x1]
        %v2020 = vlaneseq
        %v2021 = vshrl.u32 %v2020, 7
        %v2022 = vsub.s32 0, %v2021
        %v2023 = vrot.slane %v2018, %v2022
        %v2025 = vmul.f32 %v2015, %v2023
        %v2026 = vmul.f32 %v2016, %v2023
        %v2027 = vmul.f32 %v2017, %v2023
        %v2028 = vld [vmem:[#allocation6] sm:$0x1]
        %v2030 = vlaneseq
        %v2031 = vshrl.u32 %v2030, 7
        %v2032 = vsub.s32 0, %v2031
        %v2033 = vrot.slane %v2028, %v2032
        %v2035 = vadd.f32 %v2025, %v2033
        %v2036 = vadd.f32 %v2026, %v2033
        %v2037 = vadd.f32 %v2027, %v2033
        %v2038 = vmax.f32 %v2035, 0.0
        %v2039 = vmax.f32 %v2036, 0.0
        %v2040 = vmax.f32 %v2037, 0.0
        %2041 = vst [vmem:[%s237] sm:$0xff] %v2038
        %2042 = vst [vmem:[%s237 + $0x8] sm:$0xff] %v2039
        %2043 = vst [vmem:[%s237 + $0x10] sm:$0xff] %v2040
        %p2044 = scmp.lt.s32.totalorder %s17, 1
        %s2045 = scalar_select %p2044, %s17, 1
        %s2046 = smul.addr %s2045, 3
        %s2047 = smul.addr %s2046, 8
        %s2048 = scalar_lea.vmem %s4, %s2047
        // Predicated region
        $region49: #{attanet_head_forward.8} parent=35 // pred_check
          %p2049 = pneg %p124
        $region50: #{attanet_head_forward.8} parent=35 // pred_check_branch
          %2051 = sbr.rel (%p2049) target = $region52
        $region51: #{attanet_head_forward.8} parent=35 // pred_region
          _
        $region52: #{attanet_head_forward.8} parent=35 // pred_fallthru
          _
      $region36: #{attanet_head_forward.8} parent=5 // pred_fallthru
        _
      %p2052 = scmp.le.s32.totalorder 2, %s12
      // Predicated region
      $region53: #{attanet_head_forward.8} parent=5 // pred_check
        %p2053 = pneg %p2052
      $region54: #{attanet_head_forward.8} parent=5 // pred_check_branch
        %2055 = sbr.rel (%p2053) target = $region56
      $region55: #{attanet_head_forward.8} parent=5 // pred_region
        %s2056 = ssub.s32 %s12, 2
        // Predicated region
        $region57: #{attanet_head_forward.8} parent=55 // pred_check
          %p2057 = pneg %p130
        $region58: #{attanet_head_forward.8} parent=55 // pred_check_branch
          %2059 = sbr.rel (%p2057) target = $region60
        $region59: #{attanet_head_forward.8} parent=55 // pred_region
          %p2060 = scmp.lt.s32.totalorder %s18, 1
          %s2061 = scalar_select %p2060, %s18, 1
          %s2062 = smul.addr %s2061, 3
          %s2063 = smul.addr %s2062, 8
          %s2064 = scalar_lea.vmem %s4, %s2063
        $region60: #{attanet_head_forward.8} parent=55 // pred_fallthru
          _
      $region56: #{attanet_head_forward.8} parent=5 // pred_fallthru
        _
    $region6: #{attanet_head_forward.8} parent=1 // loop_footer
      %s16 = sadd.s32 1, %s12
    $region7: #{attanet_head_forward.8} parent=1 // loop_footer_branch
      %11 = sbr.rel target = $region3
    $region8: #{attanet_head_forward.8} parent=1 // loop_exit
      _
    %2065 = vsyncpa [#allocation3], 1
    %s2066 = scalar_lea.sflag [#allocation3], 1
    %2067 = vsyncpa %s2066, 1
    %2068 = vsyncpa [#allocation5], 1

// kernel: attanet_head_forward.13
$region0: #{attanet_head_forward.13}
  #allocation0 [shape = 'u32[]', space=smem, size = 0x4, offset = 0x4, fixed_abs, tag = 'smem constant byte address 0x4 - core index']
  #allocation1 [shape = 'u32[144,128]{1,0:T(1,128)}', space=vmem, size = 0x12000, scoped, tag = 'internal scratch']
  #allocation2 [shape = 'f32[32,256]{1,0:T(8,128)}', space=vmem, size = 0x8000, scoped, tag = 'scratch operand']
  %s0 = inlined_call_operand.vmem [shape: bf16[32,128], index: 0, kind: input, shape index: {}]
  %s1 = inlined_call_operand.vmem [shape: bf16[128,256], index: 1, kind: input, shape index: {}]
  %s2 = inlined_call_operand.vmem [shape: f32[1,256], index: 2, kind: input, shape index: {}]
  %s3 = inlined_call_operand.vmem [shape: f32[1,256], index: 3, kind: input, shape index: {}]
  %s4 = inlined_call_operand.vmem [shape: f32[32,256], index: 4, kind: output, shape index: {}]
  %s5 = sld [smem:[#allocation0]]
  $region34: #{attanet_head_forward.13} parent=0
    _
  %s7 = ssub.s32 1, %s5
  %s8 = scalar_select 0, %s7, %s5
  // Predicated region
  $region2: #{attanet_head_forward.13} parent=0 // pred_check
    _
  $region3: #{attanet_head_forward.13} parent=0 // pred_check_branch
    %10 = sbr.rel (0) target = $region5
  $region4: #{attanet_head_forward.13} parent=0 // pred_region
    _
  $region5: #{attanet_head_forward.13} parent=0 // pred_fallthru
    _
  // Predicated region
  $region6: #{attanet_head_forward.13} parent=0 // pred_check
    _
  $region7: #{attanet_head_forward.13} parent=0 // pred_check_branch
    %12 = sbr.rel (0) target = $region9
  $region8: #{attanet_head_forward.13} parent=0 // pred_region
    _
  $region9: #{attanet_head_forward.13} parent=0 // pred_fallthru
    _
  // Predicated region
  $region10: #{attanet_head_forward.13} parent=0 // pred_check
    _
  $region11: #{attanet_head_forward.13} parent=0 // pred_check_branch
    %14 = sbr.rel (0) target = $region13
  $region12: #{attanet_head_forward.13} parent=0 // pred_region
    _
  $region13: #{attanet_head_forward.13} parent=0 // pred_fallthru
    _
  // Predicated region
  $region14: #{attanet_head_forward.13} parent=0 // pred_check
    _
  $region15: #{attanet_head_forward.13} parent=0 // pred_check_branch
    %16 = sbr.rel (0) target = $region17
  $region16: #{attanet_head_forward.13} parent=0 // pred_region
    _
  $region17: #{attanet_head_forward.13} parent=0 // pred_fallthru
    _
  %p18 = scmp.eq.s32.totalorder 0, 0
  // Predicated region
  $region18: #{attanet_head_forward.13} parent=0 // pred_check
    %p19 = pneg %p18
  $region19: #{attanet_head_forward.13} parent=0 // pred_check_branch
    %21 = sbr.rel (%p19) target = $region21
  $region20: #{attanet_head_forward.13} parent=0 // pred_region
    %22 = vst [vmem:[#allocation2] sm:$0xff] 0.0
    %23 = vst [vmem:[#allocation2 + $0x8] sm:$0xff] 0.0
    %24 = vst [vmem:[#allocation2 + $0x10] sm:$0xff] 0.0
    %25 = vst [vmem:[#allocation2 + $0x18] sm:$0xff] 0.0
    %26 = vst [vmem:[#allocation2 + $0x20] sm:$0xff] 0.0
    %27 = vst [vmem:[#allocation2 + $0x28] sm:$0xff] 0.0
    %28 = vst [vmem:[#allocation2 + $0x30] sm:$0xff] 0.0
    %29 = vst [vmem:[#allocation2 + $0x38] sm:$0xff] 0.0
  $region21: #{attanet_head_forward.13} parent=0 // pred_fallthru
    _
  %v30 = vld [vmem:[#allocation2] sm:$0xff]
  %v31 = vld [vmem:[#allocation2 + $0x8] sm:$0xff]
  %v32 = vld [vmem:[#allocation2 + $0x10] sm:$0xff]
  %v33 = vld [vmem:[#allocation2 + $0x18] sm:$0xff]
  %v34 = vld [vmem:[#allocation2 + $0x20] sm:$0xff]
  %v35 = vld [vmem:[#allocation2 + $0x28] sm:$0xff]
  %v36 = vld [vmem:[#allocation2 + $0x30] sm:$0xff]
  %v37 = vld [vmem:[#allocation2 + $0x38] sm:$0xff]
  %v38 = vld [vmem:[%s0] sm:$0xf]
  %v39 = vld [vmem:[%s0 + $0x4] sm:$0xf]
  %v40 = vld [vmem:[%s0 + $0x8] sm:$0xf]
  %v41 = vld [vmem:[%s0 + $0xc] sm:$0xf]
  %v42 = vld [vmem:[%s1] sm:$0xff]
  %v43 = vld [vmem:[%s1 + $0x8] sm:$0xff]
  %v44 = vld [vmem:[%s1 + $0x10] sm:$0xff]
  %v45 = vld [vmem:[%s1 + $0x18] sm:$0xff]
  %v46 = vld [vmem:[%s1 + $0x20] sm:$0xff]
  %v47 = vld [vmem:[%s1 + $0x28] sm:$0xff]
  %v48 = vld [vmem:[%s1 + $0x30] sm:$0xff]
  %v49 = vld [vmem:[%s1 + $0x38] sm:$0xff]
  %v50 = vld [vmem:[%s1 + $0x40] sm:$0xff]
  %v51 = vld [vmem:[%s1 + $0x48] sm:$0xff]
  %v52 = vld [vmem:[%s1 + $0x50] sm:$0xff]
  %v53 = vld [vmem:[%s1 + $0x58] sm:$0xff]
  %v54 = vld [vmem:[%s1 + $0x60] sm:$0xff]
  %v55 = vld [vmem:[%s1 + $0x68] sm:$0xff]
  %v56 = vld [vmem:[%s1 + $0x70] sm:$0xff]
  %v57 = vld [vmem:[%s1 + $0x78] sm:$0xff]
  %v62 = vunpack.c.l.b16 %v38
  %v63 = vunpack.c.l.b16 %v39
  %v64 = vunpack.c.l.b16 %v40
  %v65 = vunpack.c.l.b16 %v41
  %v66 = vpack.c.b16 %v63, %v62
  %v67 = vpack.c.b16 %v65, %v64
  %v86 = vunpack.c.l.b16 %v42
  %v87 = vunpack.c.h.b16 %v42
  %v88 = vunpack.c.l.b16 %v43
  %v89 = vunpack.c.h.b16 %v43
  %v90 = vunpack.c.l.b16 %v44
  %v91 = vunpack.c.h.b16 %v44
  %v92 = vunpack.c.l.b16 %v45
  %v93 = vunpack.c.h.b16 %v45
  %v94 = vunpack.c.l.b16 %v46
  %v95 = vunpack.c.h.b16 %v46
  %v96 = vunpack.c.l.b16 %v47
  %v97 = vunpack.c.h.b16 %v47
  %v98 = vunpack.c.l.b16 %v48
  %v99 = vunpack.c.h.b16 %v48
  %v100 = vunpack.c.l.b16 %v49
  %v101 = vunpack.c.h.b16 %v49
  %v102 = vunpack.c.l.b16 %v50
  %v103 = vunpack.c.h.b16 %v50
  %v104 = vunpack.c.l.b16 %v51
  %v105 = vunpack.c.h.b16 %v51
  %v106 = vunpack.c.l.b16 %v52
  %v107 = vunpack.c.h.b16 %v52
  %v108 = vunpack.c.l.b16 %v53
  %v109 = vunpack.c.h.b16 %v53
  %v110 = vunpack.c.l.b16 %v54
  %v111 = vunpack.c.h.b16 %v54
  %v112 = vunpack.c.l.b16 %v55
  %v113 = vunpack.c.h.b16 %v55
  %v114 = vunpack.c.l.b16 %v56
  %v115 = vunpack.c.h.b16 %v56
  %v116 = vunpack.c.l.b16 %v57
  %v117 = vunpack.c.h.b16 %v57
  %v118 = vpack.c.b16 %v88, %v86
  %v119 = vpack.c.b16 %v89, %v87
  %v120 = vpack.c.b16 %v92, %v90
  %v121 = vpack.c.b16 %v93, %v91
  %v122 = vpack.c.b16 %v96, %v94
  %v123 = vpack.c.b16 %v97, %v95
  %v124 = vpack.c.b16 %v100, %v98
  %v125 = vpack.c.b16 %v101, %v99
  %v126 = vpack.c.b16 %v104, %v102
  %v127 = vpack.c.b16 %v105, %v103
  %v128 = vpack.c.b16 %v108, %v106
  %v129 = vpack.c.b16 %v109, %v107
  %v130 = vpack.c.b16 %v112, %v110
  %v131 = vpack.c.b16 %v113, %v111
  %v132 = vpack.c.b16 %v116, %v114
  %v133 = vpack.c.b16 %v117, %v115
  %150 = vmatprep.subr.bf16.mxu0 %v119
  %151 = vmatpush1.bf16.msra.mxu0 %v118
  %152 = vmatprep.subr.bf16.mxu0 %v121
  %153 = vmatpush1.bf16.msra.mxu0 %v120
  %154 = vmatprep.subr.bf16.mxu0 %v123
  %155 = vmatpush1.bf16.msra.mxu0 %v122
  %156 = vmatprep.subr.bf16.mxu0 %v125
  %157 = vmatpush1.bf16.msra.mxu0 %v124
  %158 = vmatprep.subr.bf16.mxu0 %v127
  %159 = vmatpush1.bf16.msra.mxu0 %v126
  %160 = vmatprep.subr.bf16.mxu0 %v129
  %161 = vmatpush1.bf16.msra.mxu0 %v128
  %162 = vmatprep.subr.bf16.mxu0 %v131
  %163 = vmatpush1.bf16.msra.mxu0 %v130
  %164 = vmatprep.subr.bf16.mxu0 %v133
  %165 = vmatpush1.bf16.msra.mxu0 %v132
  %166 = vmatprep.subr.bf16.mxu0 0
  %167 = vmatpush1.bf16.msra.mxu0 0
  %168 = vmatprep.subr.bf16.mxu0 0
  %169 = vmatpush1.bf16.msra.mxu0 0
  %170 = vmatprep.subr.bf16.mxu0 0
  %171 = vmatpush1.bf16.msra.mxu0 0
  %172 = vmatprep.subr.bf16.mxu0 0
  %173 = vmatpush1.bf16.msra.mxu0 0
  %174 = vmatprep.subr.bf16.mxu0 0
  %175 = vmatpush1.bf16.msra.mxu0 0
  %176 = vmatprep.subr.bf16.mxu0 0
  %177 = vmatpush1.bf16.msra.mxu0 0
  %178 = vmatprep.subr.bf16.mxu0 0
  %179 = vmatpush1.bf16.msra.mxu0 0
  %180 = vmatprep.subr.bf16.mxu0 0
  %181 = vmatpush1.bf16.msra.mxu0 0
  %182 = vmatprep.mubr.bf16.mxu0 0
  %183 = vmatmul.mubr.bf16.gmra.mrb[0].mxu0 %v66
  %v184 = vpop.f32.mrb[0].mxu0
  %v185 = vadd.f32 0.0, %v184
  %v186 = vpop.f32.mrb[0].mxu0
  %v187 = vadd.f32 0.0, %v186
  %v188 = vpop.f32.mrb[0].mxu0
  %v189 = vadd.f32 0.0, %v188
  %v190 = vpop.f32.mrb[0].mxu0
  %v191 = vadd.f32 0.0, %v190
  %192 = vmatprep.mubr.bf16.mxu0 0
  %193 = vmatmul.mubr.bf16.gmra.mrb[0].mxu0 %v67
  %v194 = vpop.f32.mrb[0].mxu0
  %v195 = vadd.f32 0.0, %v194
  %v196 = vpop.f32.mrb[0].mxu0
  %v197 = vadd.f32 0.0, %v196
  %v198 = vpop.f32.mrb[0].mxu0
  %v199 = vadd.f32 0.0, %v198
  %v200 = vpop.f32.mrb[0].mxu0
  %v201 = vadd.f32 0.0, %v200
  %202 = vdwg.mxu0
  %v203 = vadd.f32 %v30, %v185
  %v204 = vadd.f32 %v31, %v187
  %v205 = vadd.f32 %v32, %v189
  %v206 = vadd.f32 %v33, %v191
  %v207 = vadd.f32 %v34, %v195
  %v208 = vadd.f32 %v35, %v197
  %v209 = vadd.f32 %v36, %v199
  %v210 = vadd.f32 %v37, %v201
  %211 = vst [vmem:[#allocation2] sm:$0xff] %v203
  %212 = vst [vmem:[#allocation2 + $0x8] sm:$0xff] %v204
  %213 = vst [vmem:[#allocation2 + $0x10] sm:$0xff] %v205
  %214 = vst [vmem:[#allocation2 + $0x18] sm:$0xff] %v206
  %215 = vst [vmem:[#allocation2 + $0x20] sm:$0xff] %v207
  %216 = vst [vmem:[#allocation2 + $0x28] sm:$0xff] %v208
  %217 = vst [vmem:[#allocation2 + $0x30] sm:$0xff] %v209
  %218 = vst [vmem:[#allocation2 + $0x38] sm:$0xff] %v210
  // Predicated region
  $region22: #{attanet_head_forward.13} parent=0 // pred_check
    %p219 = pneg %p18
  $region23: #{attanet_head_forward.13} parent=0 // pred_check_branch
    %221 = sbr.rel (%p219) target = $region25
  $region24: #{attanet_head_forward.13} parent=0 // pred_region
    %v222 = vld [vmem:[#allocation2] sm:$0xff]
    %v223 = vld [vmem:[#allocation2 + $0x8] sm:$0xff]
    %v224 = vld [vmem:[#allocation2 + $0x10] sm:$0xff]
    %v225 = vld [vmem:[#allocation2 + $0x18] sm:$0xff]
    %v226 = vld [vmem:[#allocation2 + $0x20] sm:$0xff]
    %v227 = vld [vmem:[#allocation2 + $0x28] sm:$0xff]
    %v228 = vld [vmem:[#allocation2 + $0x30] sm:$0xff]
    %v229 = vld [vmem:[#allocation2 + $0x38] sm:$0xff]
    %v230 = vld [vmem:[%s2] sm:$0x3]
    %v232 = vlaneseq
    %v233 = vshrl.u32 %v232, 7
    %v234 = vsub.s32 0, %v233
    %v235 = vrot.slane %v230, %v234
    %v236 = vlaneseq
    %v237 = vshrl.u32 %v236, 7
    %v238 = vsub.s32 1, %v237
    %v239 = vrot.slane %v230, %v238
    %v242 = vmul.f32 %v222, %v235
    %v243 = vmul.f32 %v223, %v239
    %v244 = vmul.f32 %v224, %v235
    %v245 = vmul.f32 %v225, %v239
    %v246 = vmul.f32 %v226, %v235
    %v247 = vmul.f32 %v227, %v239
    %v248 = vmul.f32 %v228, %v235
    %v249 = vmul.f32 %v229, %v239
    %v250 = vld [vmem:[%s3] sm:$0x3]
    %v252 = vlaneseq
    %v253 = vshrl.u32 %v252, 7
    %v254 = vsub.s32 0, %v253
    %v255 = vrot.slane %v250, %v254
    %v256 = vlaneseq
    %v257 = vshrl.u32 %v256, 7
    %v258 = vsub.s32 1, %v257
    %v259 = vrot.slane %v250, %v258
    %v262 = vadd.f32 %v242, %v255
    %v263 = vadd.f32 %v243, %v259
    %v264 = vadd.f32 %v244, %v255
    %v265 = vadd.f32 %v245, %v259
    %v266 = vadd.f32 %v246, %v255
    %v267 = vadd.f32 %v247, %v259
    %v268 = vadd.f32 %v248, %v255
    %v269 = vadd.f32 %v249, %v259
    %v270 = vmax.f32 %v262, 0.0
    %v271 = vmax.f32 %v263, 0.0
    %v272 = vmax.f32 %v264, 0.0
    %v273 = vmax.f32 %v265, 0.0
    %v274 = vmax.f32 %v266, 0.0
    %v275 = vmax.f32 %v267, 0.0
    %v276 = vmax.f32 %v268, 0.0
    %v277 = vmax.f32 %v269, 0.0
    %278 = vst [vmem:[%s4] sm:$0xff] %v270
    %279 = vst [vmem:[%s4 + $0x8] sm:$0xff] %v271
    %280 = vst [vmem:[%s4 + $0x10] sm:$0xff] %v272
    %281 = vst [vmem:[%s4 + $0x18] sm:$0xff] %v273
    %282 = vst [vmem:[%s4 + $0x20] sm:$0xff] %v274
    %283 = vst [vmem:[%s4 + $0x28] sm:$0xff] %v275
    %284 = vst [vmem:[%s4 + $0x30] sm:$0xff] %v276
    %285 = vst [vmem:[%s4 + $0x38] sm:$0xff] %v277
  $region25: #{attanet_head_forward.13} parent=0 // pred_fallthru
    _
  // Predicated region
  $region26: #{attanet_head_forward.13} parent=0 // pred_check
    _
  $region27: #{attanet_head_forward.13} parent=0 // pred_check_branch
    %287 = sbr.rel (0) target = $region29
  $region28: #{attanet_head_forward.13} parent=0 // pred_region
    _
  $region29: #{attanet_head_forward.13} parent=0 // pred_fallthru
    _
  // Predicated region
  $region30: #{attanet_head_forward.13} parent=0 // pred_check
    _
  $region31: #{attanet_head_forward.13} parent=0 // pred_check_branch
    %289 = sbr.rel (0) target = $region33
  $region32: #{attanet_head_forward.13} parent=0 // pred_region
    _
  $region33: #{attanet_head_forward.13} parent=0 // pred_fallthru
    _

// kernel: attanet_head_forward.12
$region0: #{attanet_head_forward.12}
  #allocation0 [shape = 'u32[]', space=smem, size = 0x4, offset = 0x4, fixed_abs, tag = 'smem constant byte address 0x4 - core index']
  #allocation1 [shape = 'u32[144,128]{1,0:T(1,128)}', space=vmem, size = 0x12000, scoped, tag = 'internal scratch']
  %s0 = inlined_call_operand.vmem [shape: f32[2,38,128], index: 0, kind: input, shape index: {}]
  %s1 = inlined_call_operand.vmem [shape: bf16[3,3,128,128], index: 1, kind: input, shape index: {}]
  %s2 = inlined_call_operand.vmem [shape: f32[1,128], index: 2, kind: input, shape index: {}]
  %s3 = inlined_call_operand.vmem [shape: f32[1,128], index: 3, kind: input, shape index: {}]
  %s4 = inlined_call_operand.vmem [shape: f32[2,24,128], index: 4, kind: output, shape index: {}]
  %s5 = sld [smem:[#allocation0]]
  $region49: #{attanet_head_forward.12} parent=0
    _
  %s7 = ssub.s32 1, %s5
  %s8 = scalar_select 0, %s7, %s5
  loop: start=0, step=1, limit=4
  $region2: #{attanet_head_forward.12} parent=0 // loop_pre_header
    _
  $region3: #{attanet_head_forward.12} parent=0 // loop_header
    %s10 = sphi 0, %s14
    %p11 = scmp.ge.s32.totalorder %s10, 4
    %s20 = sphi 0, %s22
    %s23 = sphi 0, %s20
    %s24 = sphi 0, %s23
    %s40 = sphi 0, %s24
    %s44 = sphi 0, %s44
    %s46 = sphi 0, %s44
    %s47 = sphi 0, %s46
    %s61 = sphi 0, %s47
    %s65 = sphi 0, %s65
    %s67 = sphi 0, %s65
    %s68 = sphi 0, %s67
    %s82 = sphi 0, %s68
    %s86 = sphi 0, %s86
    %s88 = sphi 0, %s86
    %s89 = sphi 0, %s88
    %s103 = sphi 0, %s89
    %s109 = sphi 0, %s111
    %s112 = sphi 0, %s109
    %s113 = sphi 0, %s112
    %s129 = sphi 0, %s113
  $region4: #{attanet_head_forward.12} parent=0 // loop_header_branch
    %13 = sbr.rel (%p11) target = $region8
  $region5: #{attanet_head_forward.12} parent=0 // loop_body
    %s15 = ssub.s32 %s10, 1
    %s16 = ssub.s32 %s10, 2
    %s17 = sadd.s32 %s10, 1
    %s18 = ssub.s32 %s10, %s17
    %p19 = scmp.eq.s32.totalorder %s18, 0
    %s21 = sadd.s32 %s20, 1
    %s22 = scalar_select %p19, %s20, %s21
    %p25 = pneg %p19
    %p26 = scmp.eq.s32.totalorder %s10, 1
    %p27 = por %p25, %p26
    %p28 = scmp.ne.s32.totalorder %s20, %s23
    %p29 = scmp.eq.s32.totalorder %s10, 0
    %p30 = por %p28, %p29
    %p31 = scmp.ne.s32.totalorder %s20, %s23
    %p32 = scmp.eq.s32.totalorder %s15, 1
    %p33 = por %p31, %p32
    %p34 = scmp.ne.s32.totalorder %s23, %s24
    %p35 = scmp.eq.s32.totalorder %s15, 0
    %p36 = por %p34, %p35
    %p37 = scmp.ne.s32.totalorder %s23, %s24
    %p38 = scmp.eq.s32.totalorder %s16, 1
    %p39 = por %p37, %p38
    %p41 = scmp.ne.s32.totalorder %s24, %s40
    %p42 = scmp.eq.s32.totalorder %s16, 0
    %p43 = por %p41, %p42
    %s45 = sadd.s32 %s44, 1
    %p48 = scmp.eq.s32.totalorder %s10, 1
    %p49 = scmp.ne.s32.totalorder %s44, %s46
    %p50 = scmp.eq.s32.totalorder %s10, 0
    %p51 = por %p49, %p50
    %p52 = scmp.ne.s32.totalorder %s44, %s46
    %p53 = scmp.eq.s32.totalorder %s15, 1
    %p54 = por %p52, %p53
    %p55 = scmp.ne.s32.totalorder %s46, %s47
    %p56 = scmp.eq.s32.totalorder %s15, 0
    %p57 = por %p55, %p56
    %p58 = scmp.ne.s32.totalorder %s46, %s47
    %p59 = scmp.eq.s32.totalorder %s16, 1
    %p60 = por %p58, %p59
    %p62 = scmp.ne.s32.totalorder %s47, %s61
    %p63 = scmp.eq.s32.totalorder %s16, 0
    %p64 = por %p62, %p63
    %s66 = sadd.s32 %s65, 1
    %p69 = scmp.eq.s32.totalorder %s10, 1
    %p70 = scmp.ne.s32.totalorder %s65, %s67
    %p71 = scmp.eq.s32.totalorder %s10, 0
    %p72 = por %p70, %p71
    %p73 = scmp.ne.s32.totalorder %s65, %s67
    %p74 = scmp.eq.s32.totalorder %s15, 1
    %p75 = por %p73, %p74
    %p76 = scmp.ne.s32.totalorder %s67, %s68
    %p77 = scmp.eq.s32.totalorder %s15, 0
    %p78 = por %p76, %p77
    %p79 = scmp.ne.s32.totalorder %s67, %s68
    %p80 = scmp.eq.s32.totalorder %s16, 1
    %p81 = por %p79, %p80
    %p83 = scmp.ne.s32.totalorder %s68, %s82
    %p84 = scmp.eq.s32.totalorder %s16, 0
    %p85 = por %p83, %p84
    %s87 = sadd.s32 %s86, 1
    %p90 = scmp.eq.s32.totalorder %s10, 1
    %p91 = scmp.ne.s32.totalorder %s86, %s88
    %p92 = scmp.eq.s32.totalorder %s10, 0
    %p93 = por %p91, %p92
    %p94 = scmp.ne.s32.totalorder %s86, %s88
    %p95 = scmp.eq.s32.totalorder %s15, 1
    %p96 = por %p94, %p95
    %p97 = scmp.ne.s32.totalorder %s88, %s89
    %p98 = scmp.eq.s32.totalorder %s15, 0
    %p99 = por %p97, %p98
    %p100 = scmp.ne.s32.totalorder %s88, %s89
    %p101 = scmp.eq.s32.totalorder %s16, 1
    %p102 = por %p100, %p101
    %p104 = scmp.ne.s32.totalorder %s89, %s103
    %p105 = scmp.eq.s32.totalorder %s16, 0
    %p106 = por %p104, %p105
    %s107 = ssub.s32 %s10, %s17
    %p108 = scmp.eq.s32.totalorder %s107, 0
    %s110 = sadd.s32 %s109, 1
    %s111 = scalar_select %p108, %s109, %s110
    %p114 = pneg %p108
    %p115 = scmp.eq.s32.totalorder %s10, 1
    %p116 = por %p114, %p115
    %p117 = scmp.ne.s32.totalorder %s109, %s112
    %p118 = scmp.eq.s32.totalorder %s10, 0
    %p119 = por %p117, %p118
    %p120 = scmp.ne.s32.totalorder %s109, %s112
    %p121 = scmp.eq.s32.totalorder %s15, 1
    %p122 = por %p120, %p121
    %p123 = scmp.ne.s32.totalorder %s112, %s113
    %p124 = scmp.eq.s32.totalorder %s15, 0
    %p125 = por %p123, %p124
    %p126 = scmp.ne.s32.totalorder %s112, %s113
    %p127 = scmp.eq.s32.totalorder %s16, 1
    %p128 = por %p126, %p127
    %p130 = scmp.ne.s32.totalorder %s113, %s129
    %p131 = scmp.eq.s32.totalorder %s16, 0
    %p132 = por %p130, %p131
    %p133 = scmp.le.s32.totalorder 1, %s10
    %p134 = scmp.lt.s32.totalorder %s10, 3
    %p135 = pnand %p133, %p134
    %p136 = pneg %p135
    // Predicated region
    $region9: #{attanet_head_forward.12} parent=5 // pred_check
      _
    $region10: #{attanet_head_forward.12} parent=5 // pred_check_branch
      %138 = sbr.rel (%p135) target = $region12
    $region11: #{attanet_head_forward.12} parent=5 // pred_region
      %s139 = ssub.s32 %s10, 1
      // Predicated region
      $region13: #{attanet_head_forward.12} parent=11 // pred_check
        %p140 = pneg %p57
      $region14: #{attanet_head_forward.12} parent=11 // pred_check_branch
        %142 = sbr.rel (%p140) target = $region16
      $region15: #{attanet_head_forward.12} parent=11 // pred_region
        _
      $region16: #{attanet_head_forward.12} parent=11 // pred_fallthru
        _
      // Predicated region
      $region17: #{attanet_head_forward.12} parent=11 // pred_check
        %p143 = pneg %p78
      $region18: #{attanet_head_forward.12} parent=11 // pred_check_branch
        %145 = sbr.rel (%p143) target = $region20
      $region19: #{attanet_head_forward.12} parent=11 // pred_region
        _
      $region20: #{attanet_head_forward.12} parent=11 // pred_fallthru
        _
      // Predicated region
      $region21: #{attanet_head_forward.12} parent=11 // pred_check
        %p146 = pneg %p99
      $region22: #{attanet_head_forward.12} parent=11 // pred_check_branch
        %148 = sbr.rel (%p146) target = $region24
      $region23: #{attanet_head_forward.12} parent=11 // pred_region
        _
      $region24: #{attanet_head_forward.12} parent=11 // pred_fallthru
        _
    $region12: #{attanet_head_forward.12} parent=5 // pred_fallthru
      _
    %p149 = scmp.lt.s32.totalorder %s10, 2
    // Predicated region
    $region25: #{attanet_head_forward.12} parent=5 // pred_check
      %p150 = pneg %p149
    $region26: #{attanet_head_forward.12} parent=5 // pred_check_branch
      %152 = sbr.rel (%p150) target = $region28
    $region27: #{attanet_head_forward.12} parent=5 // pred_region
      // Predicated region
      $region29: #{attanet_head_forward.12} parent=27 // pred_check
        %p153 = pneg %p30
      $region30: #{attanet_head_forward.12} parent=27 // pred_check_branch
        %155 = sbr.rel (%p153) target = $region32
      $region31: #{attanet_head_forward.12} parent=27 // pred_region
        %p156 = scmp.lt.s32.totalorder %s10, 1
        %s157 = scalar_select %p156, %s10, 1
        %s158 = smul.addr %s157, 5
        %s159 = smul.addr %s158, 8
        %s160 = scalar_lea.vmem %s0, %s159
      $region32: #{attanet_head_forward.12} parent=27 // pred_fallthru
        _
    $region28: #{attanet_head_forward.12} parent=5 // pred_fallthru
      _
    %p161 = scmp.le.s32.totalorder 1, %s10
    %p162 = scmp.lt.s32.totalorder %s10, 3
    %p163 = pnand %p161, %p162
    %p164 = pneg %p163
    // Predicated region
    $region33: #{attanet_head_forward.12} parent=5 // pred_check
      _
    $region34: #{attanet_head_forward.12} parent=5 // pred_check_branch
      %166 = sbr.rel (%p163) target = $region36
    $region35: #{attanet_head_forward.12} parent=5 // pred_region
      %s167 = ssub.s32 %s10, 1
      %p168 = scmp.lt.s32.totalorder %s15, 1
      %s169 = scalar_select %p168, %s15, 1
      %s170 = smul.addr %s169, 5
      %s171 = smul.addr %s170, 8
      %s172 = scalar_lea.vmem %s0, %s171
      %p173 = pneg %p36
      %p174 = pneg %p33
      %p175 = pneg %p57
      %p176 = pneg %p54
      %p177 = pneg %p78
      %p178 = pneg %p75
      %p179 = pneg %p99
      %p180 = pneg %p96
      %p181 = pneg %p125
      %p182 = pneg %p122
      %p183 = scmp.lt.s32.totalorder %s15, 1
      %s184 = scalar_select %p183, %s15, 1
      %s185 = smul.addr %s184, 3
      %s186 = smul.addr %s185, 8
      %s187 = scalar_lea.vmem %s4, %s186
      %p188 = scmp.lt.s32.totalorder %s15, 1
      %s189 = scalar_select %p188, %s15, 1
      %s190 = smul.addr %s189, 5
      %s191 = smul.addr %s190, 8
      %s192 = scalar_lea.vmem %s0, %s191
      %p193 = scmp.lt.s32.totalorder %s15, 1
      %s194 = scalar_select %p193, %s15, 1
      %s195 = smul.addr %s194, 3
      %s196 = smul.addr %s195, 8
      %s197 = scalar_lea.vmem %s4, %s196
      %v199 = vld [vmem:[%s192] sm:$0xff]
      %v200 = vld [vmem:[%s192 + $0x8] sm:$0xff]
      %v201 = vld [vmem:[%s192 + $0x10] sm:$0xff]
      %v202 = vld [vmem:[%s192 + $0x18] sm:$0xff]
      %v203 = vld [vmem:[%s192 + $0x20] sm:$0x3f]
      %v204 = vpack.c.bf16 %v200, %v199
      %v205 = vpack.c.bf16 %v201, %v201
      %v206 = vld [vmem:[%s1] sm:$0xf]
      %v207 = vld [vmem:[%s1 + $0x4] sm:$0xf]
      %v208 = vld [vmem:[%s1 + $0x8] sm:$0xf]
      %v209 = vld [vmem:[%s1 + $0xc] sm:$0xf]
      %v210 = vld [vmem:[%s1 + $0x10] sm:$0xf]
      %v211 = vld [vmem:[%s1 + $0x14] sm:$0xf]
      %v212 = vld [vmem:[%s1 + $0x18] sm:$0xf]
      %v213 = vld [vmem:[%s1 + $0x1c] sm:$0xf]
      %v214 = vld [vmem:[%s1 + $0x20] sm:$0xf]
      %v215 = vld [vmem:[%s1 + $0x24] sm:$0xf]
      %v216 = vld [vmem:[%s1 + $0x28] sm:$0xf]
      %v217 = vld [vmem:[%s1 + $0x2c] sm:$0xf]
      %v218 = vld [vmem:[%s1 + $0x30] sm:$0xf]
      %v219 = vld [vmem:[%s1 + $0x34] sm:$0xf]
      %v220 = vld [vmem:[%s1 + $0x38] sm:$0xf]
      %v221 = vld [vmem:[%s1 + $0x3c] sm:$0xf]
      %v222 = vpack.c.bf16 %v202, %v201
      %s223 = scalar_lea.vmem %s1, 64
      %v224 = vld [vmem:[%s223] sm:$0xf]
      %v225 = vld [vmem:[%s223 + $0x4] sm:$0xf]
      %v226 = vld [vmem:[%s223 + $0x8] sm:$0xf]
      %v227 = vld [vmem:[%s223 + $0xc] sm:$0xf]
      %v228 = vld [vmem:[%s223 + $0x10] sm:$0xf]
      %v229 = vld [vmem:[%s223 + $0x14] sm:$0xf]
      %v230 = vld [vmem:[%s223 + $0x18] sm:$0xf]
      %v231 = vld [vmem:[%s223 + $0x1c] sm:$0xf]
      %v232 = vld [vmem:[%s223 + $0x20] sm:$0xf]
      %v233 = vld [vmem:[%s223 + $0x24] sm:$0xf]
      %v234 = vld [vmem:[%s223 + $0x28] sm:$0xf]
      %v235 = vld [vmem:[%s223 + $0x2c] sm:$0xf]
      %v236 = vld [vmem:[%s223 + $0x30] sm:$0xf]
      %v237 = vld [vmem:[%s223 + $0x34] sm:$0xf]
      %v238 = vld [vmem:[%s223 + $0x38] sm:$0xf]
      %v239 = vld [vmem:[%s223 + $0x3c] sm:$0xf]
      %vm240 = vsmask.f32 7424
      %v242 = vshrl.u32 %v204, 16
      %v244 = vshll.u32 %v204, 16
      %v246 = vrot.slane %v244, 1
      %v247 = vor.u32 %v242, %v246
      %v249 = vshll.u32 %v222, 16
      %v251 = vrot.slane %v249, 1
      %v252 = vsel %vm240, %v247, %v251
      %v253 = vshrl.u32 %v222, 16
      %v255 = vor.u32 %v253, %v251
      %v274 = vunpack.c.l.b16 %v224
      %v275 = vunpack.c.l.b16 %v225
      %v276 = vunpack.c.l.b16 %v226
      %v277 = vunpack.c.l.b16 %v227
      %v278 = vunpack.c.l.b16 %v228
      %v279 = vunpack.c.l.b16 %v229
      %v280 = vunpack.c.l.b16 %v230
      %v281 = vunpack.c.l.b16 %v231
      %v282 = vunpack.c.l.b16 %v232
      %v283 = vunpack.c.l.b16 %v233
      %v284 = vunpack.c.l.b16 %v234
      %v285 = vunpack.c.l.b16 %v235
      %v286 = vunpack.c.l.b16 %v236
      %v287 = vunpack.c.l.b16 %v237
      %v288 = vunpack.c.l.b16 %v238
      %v289 = vunpack.c.l.b16 %v239
      %v290 = vpack.c.b16 %v275, %v274
      %v291 = vpack.c.b16 %v277, %v276
      %v292 = vpack.c.b16 %v279, %v278
      %v293 = vpack.c.b16 %v281, %v280
      %v294 = vpack.c.b16 %v283, %v282
      %v295 = vpack.c.b16 %v285, %v284
      %v296 = vpack.c.b16 %v287, %v286
      %v297 = vpack.c.b16 %v289, %v288
      %306 = vmatprep.subr.bf16.mxu0 0
      %307 = vmatpush1.bf16.msra.mxu0 %v290
      %308 = vmatprep.subr.bf16.mxu0 0
      %309 = vmatpush1.bf16.msra.mxu0 %v291
      %310 = vmatprep.subr.bf16.mxu0 0
      %311 = vmatpush1.bf16.msra.mxu0 %v292
      %312 = vmatprep.subr.bf16.mxu0 0
      %313 = vmatpush1.bf16.msra.mxu0 %v293
      %314 = vmatprep.subr.bf16.mxu0 0
      %315 = vmatpush1.bf16.msra.mxu0 %v294
      %316 = vmatprep.subr.bf16.mxu0 0
      %317 = vmatpush1.bf16.msra.mxu0 %v295
      %318 = vmatprep.subr.bf16.mxu0 0
      %319 = vmatpush1.bf16.msra.mxu0 %v296
      %320 = vmatprep.subr.bf16.mxu0 0
      %321 = vmatpush1.bf16.msra.mxu0 %v297
      %322 = vmatprep.subr.bf16.mxu0 0
      %323 = vmatpush1.bf16.msra.mxu0 0
      %324 = vmatprep.subr.bf16.mxu0 0
      %325 = vmatpush1.bf16.msra.mxu0 0
      %326 = vmatprep.subr.bf16.mxu0 0
      %327 = vmatpush1.bf16.msra.mxu0 0
      %328 = vmatprep.subr.bf16.mxu0 0
      %329 = vmatpush1.bf16.msra.mxu0 0
      %330 = vmatprep.subr.bf16.mxu0 0
      %331 = vmatpush1.bf16.msra.mxu0 0
      %332 = vmatprep.subr.bf16.mxu0 0
      %333 = vmatpush1.bf16.msra.mxu0 0
      %334 = vmatprep.subr.bf16.mxu0 0
      %335 = vmatpush1.bf16.msra.mxu0 0
      %336 = vmatprep.subr.bf16.mxu0 0
      %337 = vmatpush1.bf16.msra.mxu0 0
      %338 = vmatprep.mubr.bf16.mxu0 0
      %339 = vmatmul.mubr.bf16.gmra.mrb[0].mxu0 %v252
      %v340 = vpop.f32.mrb[0].mxu0
      %v341 = vadd.f32 0.0, %v340
      %v342 = vpop.f32.mrb[0].mxu0
      %v343 = vpop.f32.mrb[0].mxu0
      %v344 = vadd.f32 0.0, %v343
      %v345 = vpop.f32.mrb[0].mxu0
      %346 = vmatprep.mubr.bf16.mxu0 0
      %347 = vmatmul.mubr.bf16.gmra.mrb[0].mxu0 %v255
      %v348 = vpop.f32.mrb[0].mxu0
      %v349 = vadd.f32 0.0, %v348
      %v350 = vpop.f32.mrb[0].mxu0
      %v351 = vpop.f32.mrb[0].mxu0
      %v352 = vpop.f32.mrb[0].mxu0
      %353 = vdwg.mxu0
      %v370 = vunpack.c.l.b16 %v206
      %v371 = vunpack.c.l.b16 %v207
      %v372 = vunpack.c.l.b16 %v208
      %v373 = vunpack.c.l.b16 %v209
      %v374 = vunpack.c.l.b16 %v210
      %v375 = vunpack.c.l.b16 %v211
      %v376 = vunpack.c.l.b16 %v212
      %v377 = vunpack.c.l.b16 %v213
      %v378 = vunpack.c.l.b16 %v214
      %v379 = vunpack.c.l.b16 %v215
      %v380 = vunpack.c.l.b16 %v216
      %v381 = vunpack.c.l.b16 %v217
      %v382 = vunpack.c.l.b16 %v218
      %v383 = vunpack.c.l.b16 %v219
      %v384 = vunpack.c.l.b16 %v220
      %v385 = vunpack.c.l.b16 %v221
      %v386 = vpack.c.b16 %v371, %v370
      %v387 = vpack.c.b16 %v373, %v372
      %v388 = vpack.c.b16 %v375, %v374
      %v389 = vpack.c.b16 %v377, %v376
      %v390 = vpack.c.b16 %v379, %v378
      %v391 = vpack.c.b16 %v381, %v380
      %v392 = vpack.c.b16 %v383, %v382
      %v393 = vpack.c.b16 %v385, %v384
      %402 = vmatprep.subr.bf16.mxu0 0
      %403 = vmatpush1.bf16.msra.mxu0 %v386
      %404 = vmatprep.subr.bf16.mxu0 0
      %405 = vmatpush1.bf16.msra.mxu0 %v387
      %406 = vmatprep.subr.bf16.mxu0 0
      %407 = vmatpush1.bf16.msra.mxu0 %v388
      %408 = vmatprep.subr.bf16.mxu0 0
      %409 = vmatpush1.bf16.msra.mxu0 %v389
      %410 = vmatprep.subr.bf16.mxu0 0
      %411 = vmatpush1.bf16.msra.mxu0 %v390
      %412 = vmatprep.subr.bf16.mxu0 0
      %413 = vmatpush1.bf16.msra.mxu0 %v391
      %414 = vmatprep.subr.bf16.mxu0 0
      %415 = vmatpush1.bf16.msra.mxu0 %v392
      %416 = vmatprep.subr.bf16.mxu0 0
      %417 = vmatpush1.bf16.msra.mxu0 %v393
      %418 = vmatprep.subr.bf16.mxu0 0
      %419 = vmatpush1.bf16.msra.mxu0 0
      %420 = vmatprep.subr.bf16.mxu0 0
      %421 = vmatpush1.bf16.msra.mxu0 0
      %422 = vmatprep.subr.bf16.mxu0 0
      %423 = vmatpush1.bf16.msra.mxu0 0
      %424 = vmatprep.subr.bf16.mxu0 0
      %425 = vmatpush1.bf16.msra.mxu0 0
      %426 = vmatprep.subr.bf16.mxu0 0
      %427 = vmatpush1.bf16.msra.mxu0 0
      %428 = vmatprep.subr.bf16.mxu0 0
      %429 = vmatpush1.bf16.msra.mxu0 0
      %430 = vmatprep.subr.bf16.mxu0 0
      %431 = vmatpush1.bf16.msra.mxu0 0
      %432 = vmatprep.subr.bf16.mxu0 0
      %433 = vmatpush1.bf16.msra.mxu0 0
      %434 = vmatprep.mubr.bf16.mxu0 0
      %435 = vmatmul.mubr.bf16.gmra.mrb[0].mxu0 %v204
      %v436 = vpop.f32.mrb[0].mxu0
      %v437 = vadd.f32 %v341, %v436
      %v438 = vpop.f32.mrb[0].mxu0
      %v439 = vpop.f32.mrb[0].mxu0
      %v440 = vadd.f32 %v344, %v439
      %v441 = vpop.f32.mrb[0].mxu0
      %442 = vmatprep.mubr.bf16.mxu0 0
      %443 = vmatmul.mubr.bf16.gmra.mrb[0].mxu0 %v205
      %v444 = vpop.f32.mrb[0].mxu0
      %v445 = vadd.f32 %v349, %v444
      %v446 = vpop.f32.mrb[0].mxu0
      %v447 = vpop.f32.mrb[0].mxu0
      %v448 = vpop.f32.mrb[0].mxu0
      %449 = vdwg.mxu0
      %s450 = scalar_lea.vmem %s1, 128
      %v451 = vld [vmem:[%s450] sm:$0xf]
      %v452 = vld [vmem:[%s450 + $0x4] sm:$0xf]
      %v453 = vld [vmem:[%s450 + $0x8] sm:$0xf]
      %v454 = vld [vmem:[%s450 + $0xc] sm:$0xf]
      %v455 = vld [vmem:[%s450 + $0x10] sm:$0xf]
      %v456 = vld [vmem:[%s450 + $0x14] sm:$0xf]
      %v457 = vld [vmem:[%s450 + $0x18] sm:$0xf]
      %v458 = vld [vmem:[%s450 + $0x1c] sm:$0xf]
      %v459 = vld [vmem:[%s450 + $0x20] sm:$0xf]
      %v460 = vld [vmem:[%s450 + $0x24] sm:$0xf]
      %v461 = vld [vmem:[%s450 + $0x28] sm:$0xf]
      %v462 = vld [vmem:[%s450 + $0x2c] sm:$0xf]
      %v463 = vld [vmem:[%s450 + $0x30] sm:$0xf]
      %v464 = vld [vmem:[%s450 + $0x34] sm:$0xf]
      %v465 = vld [vmem:[%s450 + $0x38] sm:$0xf]
      %v466 = vld [vmem:[%s450 + $0x3c] sm:$0xf]
      %vm469 = vcmask 1046528
      %v470 = vrot.slane %v204, 1
      %v471 = vrot.slane %v222, 1
      %v472 = vsel %vm469, %v470, %v471
      %v491 = vunpack.c.l.b16 %v451
      %v492 = vunpack.c.l.b16 %v452
      %v493 = vunpack.c.l.b16 %v453
      %v494 = vunpack.c.l.b16 %v454
      %v495 = vunpack.c.l.b16 %v455
      %v496 = vunpack.c.l.b16 %v456
      %v497 = vunpack.c.l.b16 %v457
      %v498 = vunpack.c.l.b16 %v458
      %v499 = vunpack.c.l.b16 %v459
      %v500 = vunpack.c.l.b16 %v460
      %v501 = vunpack.c.l.b16 %v461
      %v502 = vunpack.c.l.b16 %v462
      %v503 = vunpack.c.l.b16 %v463
      %v504 = vunpack.c.l.b16 %v464
      %v505 = vunpack.c.l.b16 %v465
      %v506 = vunpack.c.l.b16 %v466
      %v507 = vpack.c.b16 %v492, %v491
      %v508 = vpack.c.b16 %v494, %v493
      %v509 = vpack.c.b16 %v496, %v495
      %v510 = vpack.c.b16 %v498, %v497
      %v511 = vpack.c.b16 %v500, %v499
      %v512 = vpack.c.b16 %v502, %v501
      %v513 = vpack.c.b16 %v504, %v503
      %v514 = vpack.c.b16 %v506, %v505
      %523 = vmatprep.subr.bf16.mxu0 0
      %524 = vmatpush1.bf16.msra.mxu0 %v507
      %525 = vmatprep.subr.bf16.mxu0 0
      %526 = vmatpush1.bf16.msra.mxu0 %v508
      %527 = vmatprep.subr.bf16.mxu0 0
      %528 = vmatpush1.bf16.msra.mxu0 %v509
      %529 = vmatprep.subr.bf16.mxu0 0
      %530 = vmatpush1.bf16.msra.mxu0 %v510
      %531 = vmatprep.subr.bf16.mxu0 0
      %532 = vmatpush1.bf16.msra.mxu0 %v511
      %533 = vmatprep.subr.bf16.mxu0 0
      %534 = vmatpush1.bf16.msra.mxu0 %v512
      %535 = vmatprep.subr.bf16.mxu0 0
      %536 = vmatpush1.bf16.msra.mxu0 %v513
      %537 = vmatprep.subr.bf16.mxu0 0
      %538 = vmatpush1.bf16.msra.mxu0 %v514
      %539 = vmatprep.subr.bf16.mxu0 0
      %540 = vmatpush1.bf16.msra.mxu0 0
      %541 = vmatprep.subr.bf16.mxu0 0
      %542 = vmatpush1.bf16.msra.mxu0 0
      %543 = vmatprep.subr.bf16.mxu0 0
      %544 = vmatpush1.bf16.msra.mxu0 0
      %545 = vmatprep.subr.bf16.mxu0 0
      %546 = vmatpush1.bf16.msra.mxu0 0
      %547 = vmatprep.subr.bf16.mxu0 0
      %548 = vmatpush1.bf16.msra.mxu0 0
      %549 = vmatprep.subr.bf16.mxu0 0
      %550 = vmatpush1.bf16.msra.mxu0 0
      %551 = vmatprep.subr.bf16.mxu0 0
      %552 = vmatpush1.bf16.msra.mxu0 0
      %553 = vmatprep.subr.bf16.mxu0 0
      %554 = vmatpush1.bf16.msra.mxu0 0
      %555 = vmatprep.mubr.bf16.mxu0 0
      %556 = vmatmul.mubr.bf16.gmra.mrb[0].mxu0 %v472
      %v557 = vpop.f32.mrb[0].mxu0
      %v558 = vadd.f32 0.0, %v557
      %v559 = vpop.f32.mrb[0].mxu0
      %v560 = vpop.f32.mrb[0].mxu0
      %v561 = vadd.f32 0.0, %v560
      %v562 = vpop.f32.mrb[0].mxu0
      %563 = vmatprep.mubr.bf16.mxu0 0
      %564 = vmatmul.mubr.bf16.gmra.mrb[0].mxu0 %v471
      %v565 = vpop.f32.mrb[0].mxu0
      %v566 = vadd.f32 0.0, %v565
      %v567 = vpop.f32.mrb[0].mxu0
      %v568 = vpop.f32.mrb[0].mxu0
      %v569 = vpop.f32.mrb[0].mxu0
      %570 = vdwg.mxu0
      %v571 = vadd.f32 %v437, %v558
      %v572 = vadd.f32 %v440, %v561
      %v573 = vadd.f32 %v445, %v566
      %s574 = scalar_lea.vmem %s1, 192
      %v575 = vld [vmem:[%s574] sm:$0xf]
      %v576 = vld [vmem:[%s574 + $0x4] sm:$0xf]
      %v577 = vld [vmem:[%s574 + $0x8] sm:$0xf]
      %v578 = vld [vmem:[%s574 + $0xc] sm:$0xf]
      %v579 = vld [vmem:[%s574 + $0x10] sm:$0xf]
      %v580 = vld [vmem:[%s574 + $0x14] sm:$0xf]
      %v581 = vld [vmem:[%s574 + $0x18] sm:$0xf]
      %v582 = vld [vmem:[%s574 + $0x1c] sm:$0xf]
      %v583 = vld [vmem:[%s574 + $0x20] sm:$0xf]
      %v584 = vld [vmem:[%s574 + $0x24] sm:$0xf]
      %v585 = vld [vmem:[%s574 + $0x28] sm:$0xf]
      %v586 = vld [vmem:[%s574 + $0x2c] sm:$0xf]
      %v587 = vld [vmem:[%s574 + $0x30] sm:$0xf]
      %v588 = vld [vmem:[%s574 + $0x34] sm:$0xf]
      %v589 = vld [vmem:[%s574 + $0x38] sm:$0xf]
      %v590 = vld [vmem:[%s574 + $0x3c] sm:$0xf]
      %vm591 = vcmask 1044480
      %v592 = vrot.slane %v204, 3
      %v593 = vrot.slane %v222, 3
      %v594 = vsel %vm591, %v592, %v593
      %v613 = vunpack.c.l.b16 %v575
      %v614 = vunpack.c.l.b16 %v576
      %v615 = vunpack.c.l.b16 %v577
      %v616 = vunpack.c.l.b16 %v578
      %v617 = vunpack.c.l.b16 %v579
      %v618 = vunpack.c.l.b16 %v580
      %v619 = vunpack.c.l.b16 %v581
      %v620 = vunpack.c.l.b16 %v582
      %v621 = vunpack.c.l.b16 %v583
      %v622 = vunpack.c.l.b16 %v584
      %v623 = vunpack.c.l.b16 %v585
      %v624 = vunpack.c.l.b16 %v586
      %v625 = vunpack.c.l.b16 %v587
      %v626 = vunpack.c.l.b16 %v588
      %v627 = vunpack.c.l.b16 %v589
      %v628 = vunpack.c.l.b16 %v590
      %v629 = vpack.c.b16 %v614, %v613
      %v630 = vpack.c.b16 %v616, %v615
      %v631 = vpack.c.b16 %v618, %v617
      %v632 = vpack.c.b16 %v620, %v619
      %v633 = vpack.c.b16 %v622, %v621
      %v634 = vpack.c.b16 %v624, %v623
      %v635 = vpack.c.b16 %v626, %v625
      %v636 = vpack.c.b16 %v628, %v627
      %645 = vmatprep.subr.bf16.mxu0 0
      %646 = vmatpush1.bf16.msra.mxu0 %v629
      %647 = vmatprep.subr.bf16.mxu0 0
      %648 = vmatpush1.bf16.msra.mxu0 %v630
      %649 = vmatprep.subr.bf16.mxu0 0
      %650 = vmatpush1.bf16.msra.mxu0 %v631
      %651 = vmatprep.subr.bf16.mxu0 0
      %652 = vmatpush1.bf16.msra.mxu0 %v632
      %653 = vmatprep.subr.bf16.mxu0 0
      %654 = vmatpush1.bf16.msra.mxu0 %v633
      %655 = vmatprep.subr.bf16.mxu0 0
      %656 = vmatpush1.bf16.msra.mxu0 %v634
      %657 = vmatprep.subr.bf16.mxu0 0
      %658 = vmatpush1.bf16.msra.mxu0 %v635
      %659 = vmatprep.subr.bf16.mxu0 0
      %660 = vmatpush1.bf16.msra.mxu0 %v636
      %661 = vmatprep.subr.bf16.mxu0 0
      %662 = vmatpush1.bf16.msra.mxu0 0
      %663 = vmatprep.subr.bf16.mxu0 0
      %664 = vmatpush1.bf16.msra.mxu0 0
      %665 = vmatprep.subr.bf16.mxu0 0
      %666 = vmatpush1.bf16.msra.mxu0 0
      %667 = vmatprep.subr.bf16.mxu0 0
      %668 = vmatpush1.bf16.msra.mxu0 0
      %669 = vmatprep.subr.bf16.mxu0 0
      %670 = vmatpush1.bf16.msra.mxu0 0
      %671 = vmatprep.subr.bf16.mxu0 0
      %672 = vmatpush1.bf16.msra.mxu0 0
      %673 = vmatprep.subr.bf16.mxu0 0
      %674 = vmatpush1.bf16.msra.mxu0 0
      %675 = vmatprep.subr.bf16.mxu0 0
      %676 = vmatpush1.bf16.msra.mxu0 0
      %677 = vmatprep.mubr.bf16.mxu0 0
      %678 = vmatmul.mubr.bf16.gmra.mrb[0].mxu0 %v594
      %v679 = vpop.f32.mrb[0].mxu0
      %v680 = vadd.f32 0.0, %v679
      %v681 = vpop.f32.mrb[0].mxu0
      %v682 = vpop.f32.mrb[0].mxu0
      %v683 = vadd.f32 0.0, %v682
      %v684 = vpop.f32.mrb[0].mxu0
      %685 = vmatprep.mubr.bf16.mxu0 0
      %686 = vmatmul.mubr.bf16.gmra.mrb[0].mxu0 %v593
      %v687 = vpop.f32.mrb[0].mxu0
      %v688 = vadd.f32 0.0, %v687
      %v689 = vpop.f32.mrb[0].mxu0
      %v690 = vpop.f32.mrb[0].mxu0
      %v691 = vpop.f32.mrb[0].mxu0
      %692 = vdwg.mxu0
      %v693 = vadd.f32 %v571, %v680
      %v694 = vadd.f32 %v572, %v683
      %v695 = vadd.f32 %v573, %v688
      %s696 = scalar_lea.vmem %s1, 256
      %v697 = vld [vmem:[%s696] sm:$0xf]
      %v698 = vld [vmem:[%s696 + $0x4] sm:$0xf]
      %v699 = vld [vmem:[%s696 + $0x8] sm:$0xf]
      %v700 = vld [vmem:[%s696 + $0xc] sm:$0xf]
      %v701 = vld [vmem:[%s696 + $0x10] sm:$0xf]
      %v702 = vld [vmem:[%s696 + $0x14] sm:$0xf]
      %v703 = vld [vmem:[%s696 + $0x18] sm:$0xf]
      %v704 = vld [vmem:[%s696 + $0x1c] sm:$0xf]
      %v705 = vld [vmem:[%s696 + $0x20] sm:$0xf]
      %v706 = vld [vmem:[%s696 + $0x24] sm:$0xf]
      %v707 = vld [vmem:[%s696 + $0x28] sm:$0xf]
      %v708 = vld [vmem:[%s696 + $0x2c] sm:$0xf]
      %v709 = vld [vmem:[%s696 + $0x30] sm:$0xf]
      %v710 = vld [vmem:[%s696 + $0x34] sm:$0xf]
      %v711 = vld [vmem:[%s696 + $0x38] sm:$0xf]
      %v712 = vld [vmem:[%s696 + $0x3c] sm:$0xf]
      %vm713 = vsmask.f32 4352
      %v714 = vrot.slane %v242, 3
      %v715 = vrot.slane %v244, 4
      %v716 = vor.u32 %v714, %v715
      %v717 = vrot.slane %v253, 3
      %v718 = vrot.slane %v249, 4
      %v719 = vor.u32 %v717, %v718
      %v720 = vsel %vm713, %v716, %v719
      %v739 = vunpack.c.l.b16 %v697
      %v740 = vunpack.c.l.b16 %v698
      %v741 = vunpack.c.l.b16 %v699
      %v742 = vunpack.c.l.b16 %v700
      %v743 = vunpack.c.l.b16 %v701
      %v744 = vunpack.c.l.b16 %v702
      %v745 = vunpack.c.l.b16 %v703
      %v746 = vunpack.c.l.b16 %v704
      %v747 = vunpack.c.l.b16 %v705
      %v748 = vunpack.c.l.b16 %v706
      %v749 = vunpack.c.l.b16 %v707
      %v750 = vunpack.c.l.b16 %v708
      %v751 = vunpack.c.l.b16 %v709
      %v752 = vunpack.c.l.b16 %v710
      %v753 = vunpack.c.l.b16 %v711
      %v754 = vunpack.c.l.b16 %v712
      %v755 = vpack.c.b16 %v740, %v739
      %v756 = vpack.c.b16 %v742, %v741
      %v757 = vpack.c.b16 %v744, %v743
      %v758 = vpack.c.b16 %v746, %v745
      %v759 = vpack.c.b16 %v748, %v747
      %v760 = vpack.c.b16 %v750, %v749
      %v761 = vpack.c.b16 %v752, %v751
      %v762 = vpack.c.b16 %v754, %v753
      %771 = vmatprep.subr.bf16.mxu0 0
      %772 = vmatpush1.bf16.msra.mxu0 %v755
      %773 = vmatprep.subr.bf16.mxu0 0
      %774 = vmatpush1.bf16.msra.mxu0 %v756
      %775 = vmatprep.subr.bf16.mxu0 0
      %776 = vmatpush1.bf16.msra.mxu0 %v757
      %777 = vmatprep.subr.bf16.mxu0 0
      %778 = vmatpush1.bf16.msra.mxu0 %v758
      %779 = vmatprep.subr.bf16.mxu0 0
      %780 = vmatpush1.bf16.msra.mxu0 %v759
      %781 = vmatprep.subr.bf16.mxu0 0
      %782 = vmatpush1.bf16.msra.mxu0 %v760
      %783 = vmatprep.subr.bf16.mxu0 0
      %784 = vmatpush1.bf16.msra.mxu0 %v761
      %785 = vmatprep.subr.bf16.mxu0 0
      %786 = vmatpush1.bf16.msra.mxu0 %v762
      %787 = vmatprep.subr.bf16.mxu0 0
      %788 = vmatpush1.bf16.msra.mxu0 0
      %789 = vmatprep.subr.bf16.mxu0 0
      %790 = vmatpush1.bf16.msra.mxu0 0
      %791 = vmatprep.subr.bf16.mxu0 0
      %792 = vmatpush1.bf16.msra.mxu0 0
      %793 = vmatprep.subr.bf16.mxu0 0
      %794 = vmatpush1.bf16.msra.mxu0 0
      %795 = vmatprep.subr.bf16.mxu0 0
      %796 = vmatpush1.bf16.msra.mxu0 0
      %797 = vmatprep.subr.bf16.mxu0 0
      %798 = vmatpush1.bf16.msra.mxu0 0
      %799 = vmatprep.subr.bf16.mxu0 0
      %800 = vmatpush1.bf16.msra.mxu0 0
      %801 = vmatprep.subr.bf16.mxu0 0
      %802 = vmatpush1.bf16.msra.mxu0 0
      %803 = vmatprep.mubr.bf16.mxu0 0
      %804 = vmatmul.mubr.bf16.gmra.mrb[0].mxu0 %v720
      %v805 = vpop.f32.mrb[0].mxu0
      %v806 = vadd.f32 0.0, %v805
      %v807 = vpop.f32.mrb[0].mxu0
      %v808 = vpop.f32.mrb[0].mxu0
      %v809 = vadd.f32 0.0, %v808
      %v810 = vpop.f32.mrb[0].mxu0
      %811 = vmatprep.mubr.bf16.mxu0 0
      %812 = vmatmul.mubr.bf16.gmra.mrb[0].mxu0 %v719
      %v813 = vpop.f32.mrb[0].mxu0
      %v814 = vadd.f32 0.0, %v813
      %v815 = vpop.f32.mrb[0].mxu0
      %v816 = vpop.f32.mrb[0].mxu0
      %v817 = vpop.f32.mrb[0].mxu0
      %818 = vdwg.mxu0
      %v819 = vadd.f32 %v693, %v806
      %v820 = vadd.f32 %v694, %v809
      %v821 = vadd.f32 %v695, %v814
      %v822 = vpack.c.bf16 %v201, %v200
      %v823 = vpack.c.bf16 %v202, %v202
      %s824 = scalar_lea.vmem %s1, 320
      %v825 = vld [vmem:[%s824] sm:$0xf]
      %v826 = vld [vmem:[%s824 + $0x4] sm:$0xf]
      %v827 = vld [vmem:[%s824 + $0x8] sm:$0xf]
      %v828 = vld [vmem:[%s824 + $0xc] sm:$0xf]
      %v829 = vld [vmem:[%s824 + $0x10] sm:$0xf]
      %v830 = vld [vmem:[%s824 + $0x14] sm:$0xf]
      %v831 = vld [vmem:[%s824 + $0x18] sm:$0xf]
      %v832 = vld [vmem:[%s824 + $0x1c] sm:$0xf]
      %v833 = vld [vmem:[%s824 + $0x20] sm:$0xf]
      %v834 = vld [vmem:[%s824 + $0x24] sm:$0xf]
      %v835 = vld [vmem:[%s824 + $0x28] sm:$0xf]
      %v836 = vld [vmem:[%s824 + $0x2c] sm:$0xf]
      %v837 = vld [vmem:[%s824 + $0x30] sm:$0xf]
      %v838 = vld [vmem:[%s824 + $0x34] sm:$0xf]
      %v839 = vld [vmem:[%s824 + $0x38] sm:$0xf]
      %v840 = vld [vmem:[%s824 + $0x3c] sm:$0xf]
      %v857 = vunpack.c.l.b16 %v825
      %v858 = vunpack.c.l.b16 %v826
      %v859 = vunpack.c.l.b16 %v827
      %v860 = vunpack.c.l.b16 %v828
      %v861 = vunpack.c.l.b16 %v829
      %v862 = vunpack.c.l.b16 %v830
      %v863 = vunpack.c.l.b16 %v831
      %v864 = vunpack.c.l.b16 %v832
      %v865 = vunpack.c.l.b16 %v833
      %v866 = vunpack.c.l.b16 %v834
      %v867 = vunpack.c.l.b16 %v835
      %v868 = vunpack.c.l.b16 %v836
      %v869 = vunpack.c.l.b16 %v837
      %v870 = vunpack.c.l.b16 %v838
      %v871 = vunpack.c.l.b16 %v839
      %v872 = vunpack.c.l.b16 %v840
      %v873 = vpack.c.b16 %v858, %v857
      %v874 = vpack.c.b16 %v860, %v859
      %v875 = vpack.c.b16 %v862, %v861
      %v876 = vpack.c.b16 %v864, %v863
      %v877 = vpack.c.b16 %v866, %v865
      %v878 = vpack.c.b16 %v868, %v867
      %v879 = vpack.c.b16 %v870, %v869
      %v880 = vpack.c.b16 %v872, %v871
      %889 = vmatprep.subr.bf16.mxu0 0
      %890 = vmatpush1.bf16.msra.mxu0 %v873
      %891 = vmatprep.subr.bf16.mxu0 0
      %892 = vmatpush1.bf16.msra.mxu0 %v874
      %893 = vmatprep.subr.bf16.mxu0 0
      %894 = vmatpush1.bf16.msra.mxu0 %v875
      %895 = vmatprep.subr.bf16.mxu0 0
      %896 = vmatpush1.bf16.msra.mxu0 %v876
      %897 = vmatprep.subr.bf16.mxu0 0
      %898 = vmatpush1.bf16.msra.mxu0 %v877
      %899 = vmatprep.subr.bf16.mxu0 0
      %900 = vmatpush1.bf16.msra.mxu0 %v878
      %901 = vmatprep.subr.bf16.mxu0 0
      %902 = vmatpush1.bf16.msra.mxu0 %v879
      %903 = vmatprep.subr.bf16.mxu0 0
      %904 = vmatpush1.bf16.msra.mxu0 %v880
      %905 = vmatprep.subr.bf16.mxu0 0
      %906 = vmatpush1.bf16.msra.mxu0 0
      %907 = vmatprep.subr.bf16.mxu0 0
      %908 = vmatpush1.bf16.msra.mxu0 0
      %909 = vmatprep.subr.bf16.mxu0 0
      %910 = vmatpush1.bf16.msra.mxu0 0
      %911 = vmatprep.subr.bf16.mxu0 0
      %912 = vmatpush1.bf16.msra.mxu0 0
      %913 = vmatprep.subr.bf16.mxu0 0
      %914 = vmatpush1.bf16.msra.mxu0 0
      %915 = vmatprep.subr.bf16.mxu0 0
      %916 = vmatpush1.bf16.msra.mxu0 0
      %917 = vmatprep.subr.bf16.mxu0 0
      %918 = vmatpush1.bf16.msra.mxu0 0
      %919 = vmatprep.subr.bf16.mxu0 0
      %920 = vmatpush1.bf16.msra.mxu0 0
      %921 = vmatprep.mubr.bf16.mxu0 0
      %922 = vmatmul.mubr.bf16.gmra.mrb[0].mxu0 %v822
      %v923 = vpop.f32.mrb[0].mxu0
      %v924 = vadd.f32 0.0, %v923
      %v925 = vpop.f32.mrb[0].mxu0
      %v926 = vpop.f32.mrb[0].mxu0
      %v927 = vadd.f32 0.0, %v926
      %v928 = vpop.f32.mrb[0].mxu0
      %929 = vmatprep.mubr.bf16.mxu0 0
      %930 = vmatmul.mubr.bf16.gmra.mrb[0].mxu0 %v823
      %v931 = vpop.f32.mrb[0].mxu0
      %v932 = vadd.f32 0.0, %v931
      %v933 = vpop.f32.mrb[0].mxu0
      %v934 = vpop.f32.mrb[0].mxu0
      %v935 = vpop.f32.mrb[0].mxu0
      %936 = vdwg.mxu0
      %v937 = vadd.f32 %v819, %v924
      %v938 = vadd.f32 %v820, %v927
      %v939 = vadd.f32 %v821, %v932
      %v940 = vpack.c.bf16 %v203, %v202
      %s941 = scalar_lea.vmem %s1, 384
      %v942 = vld [vmem:[%s941] sm:$0xf]
      %v943 = vld [vmem:[%s941 + $0x4] sm:$0xf]
      %v944 = vld [vmem:[%s941 + $0x8] sm:$0xf]
      %v945 = vld [vmem:[%s941 + $0xc] sm:$0xf]
      %v946 = vld [vmem:[%s941 + $0x10] sm:$0xf]
      %v947 = vld [vmem:[%s941 + $0x14] sm:$0xf]
      %v948 = vld [vmem:[%s941 + $0x18] sm:$0xf]
      %v949 = vld [vmem:[%s941 + $0x1c] sm:$0xf]
      %v950 = vld [vmem:[%s941 + $0x20] sm:$0xf]
      %v951 = vld [vmem:[%s941 + $0x24] sm:$0xf]
      %v952 = vld [vmem:[%s941 + $0x28] sm:$0xf]
      %v953 = vld [vmem:[%s941 + $0x2c] sm:$0xf]
      %v954 = vld [vmem:[%s941 + $0x30] sm:$0xf]
      %v955 = vld [vmem:[%s941 + $0x34] sm:$0xf]
      %v956 = vld [vmem:[%s941 + $0x38] sm:$0xf]
      %v957 = vld [vmem:[%s941 + $0x3c] sm:$0xf]
      %vm960 = vcmask 1045504
      %v961 = vrot.slane %v822, 2
      %v962 = vrot.slane %v940, 2
      %v963 = vsel %vm960, %v961, %v962
      %v982 = vunpack.c.l.b16 %v942
      %v983 = vunpack.c.l.b16 %v943
      %v984 = vunpack.c.l.b16 %v944
      %v985 = vunpack.c.l.b16 %v945
      %v986 = vunpack.c.l.b16 %v946
      %v987 = vunpack.c.l.b16 %v947
      %v988 = vunpack.c.l.b16 %v948
      %v989 = vunpack.c.l.b16 %v949
      %v990 = vunpack.c.l.b16 %v950
      %v991 = vunpack.c.l.b16 %v951
      %v992 = vunpack.c.l.b16 %v952
      %v993 = vunpack.c.l.b16 %v953
      %v994 = vunpack.c.l.b16 %v954
      %v995 = vunpack.c.l.b16 %v955
      %v996 = vunpack.c.l.b16 %v956
      %v997 = vunpack.c.l.b16 %v957
      %v998 = vpack.c.b16 %v983, %v982
      %v999 = vpack.c.b16 %v985, %v984
      %v1000 = vpack.c.b16 %v987, %v986
      %v1001 = vpack.c.b16 %v989, %v988
      %v1002 = vpack.c.b16 %v991, %v990
      %v1003 = vpack.c.b16 %v993, %v992
      %v1004 = vpack.c.b16 %v995, %v994
      %v1005 = vpack.c.b16 %v997, %v996
      %1014 = vmatprep.subr.bf16.mxu0 0
      %1015 = vmatpush1.bf16.msra.mxu0 %v998
      %1016 = vmatprep.subr.bf16.mxu0 0
      %1017 = vmatpush1.bf16.msra.mxu0 %v999
      %1018 = vmatprep.subr.bf16.mxu0 0
      %1019 = vmatpush1.bf16.msra.mxu0 %v1000
      %1020 = vmatprep.subr.bf16.mxu0 0
      %1021 = vmatpush1.bf16.msra.mxu0 %v1001
      %1022 = vmatprep.subr.bf16.mxu0 0
      %1023 = vmatpush1.bf16.msra.mxu0 %v1002
      %1024 = vmatprep.subr.bf16.mxu0 0
      %1025 = vmatpush1.bf16.msra.mxu0 %v1003
      %1026 = vmatprep.subr.bf16.mxu0 0
      %1027 = vmatpush1.bf16.msra.mxu0 %v1004
      %1028 = vmatprep.subr.bf16.mxu0 0
      %1029 = vmatpush1.bf16.msra.mxu0 %v1005
      %1030 = vmatprep.subr.bf16.mxu0 0
      %1031 = vmatpush1.bf16.msra.mxu0 0
      %1032 = vmatprep.subr.bf16.mxu0 0
      %1033 = vmatpush1.bf16.msra.mxu0 0
      %1034 = vmatprep.subr.bf16.mxu0 0
      %1035 = vmatpush1.bf16.msra.mxu0 0
      %1036 = vmatprep.subr.bf16.mxu0 0
      %1037 = vmatpush1.bf16.msra.mxu0 0
      %1038 = vmatprep.subr.bf16.mxu0 0
      %1039 = vmatpush1.bf16.msra.mxu0 0
      %1040 = vmatprep.subr.bf16.mxu0 0
      %1041 = vmatpush1.bf16.msra.mxu0 0
      %1042 = vmatprep.subr.bf16.mxu0 0
      %1043 = vmatpush1.bf16.msra.mxu0 0
      %1044 = vmatprep.subr.bf16.mxu0 0
      %1045 = vmatpush1.bf16.msra.mxu0 0
      %1046 = vmatprep.mubr.bf16.mxu0 0
      %1047 = vmatmul.mubr.bf16.gmra.mrb[0].mxu0 %v963
      %v1048 = vpop.f32.mrb[0].mxu0
      %v1049 = vadd.f32 0.0, %v1048
      %v1050 = vpop.f32.mrb[0].mxu0
      %v1051 = vpop.f32.mrb[0].mxu0
      %v1052 = vadd.f32 0.0, %v1051
      %v1053 = vpop.f32.mrb[0].mxu0
      %1054 = vmatprep.mubr.bf16.mxu0 0
      %1055 = vmatmul.mubr.bf16.gmra.mrb[0].mxu0 %v962
      %v1056 = vpop.f32.mrb[0].mxu0
      %v1057 = vadd.f32 0.0, %v1056
      %v1058 = vpop.f32.mrb[0].mxu0
      %v1059 = vpop.f32.mrb[0].mxu0
      %v1060 = vpop.f32.mrb[0].mxu0
      %1061 = vdwg.mxu0
      %v1062 = vadd.f32 %v937, %v1049
      %v1063 = vadd.f32 %v938, %v1052
      %v1064 = vadd.f32 %v939, %v1057
      %s1065 = scalar_lea.vmem %s1, 448
      %v1066 = vld [vmem:[%s1065] sm:$0xf]
      %v1067 = vld [vmem:[%s1065 + $0x4] sm:$0xf]
      %v1068 = vld [vmem:[%s1065 + $0x8] sm:$0xf]
      %v1069 = vld [vmem:[%s1065 + $0xc] sm:$0xf]
      %v1070 = vld [vmem:[%s1065 + $0x10] sm:$0xf]
      %v1071 = vld [vmem:[%s1065 + $0x14] sm:$0xf]
      %v1072 = vld [vmem:[%s1065 + $0x18] sm:$0xf]
      %v1073 = vld [vmem:[%s1065 + $0x1c] sm:$0xf]
      %v1074 = vld [vmem:[%s1065 + $0x20] sm:$0xf]
      %v1075 = vld [vmem:[%s1065 + $0x24] sm:$0xf]
      %v1076 = vld [vmem:[%s1065 + $0x28] sm:$0xf]
      %v1077 = vld [vmem:[%s1065 + $0x2c] sm:$0xf]
      %v1078 = vld [vmem:[%s1065 + $0x30] sm:$0xf]
      %v1079 = vld [vmem:[%s1065 + $0x34] sm:$0xf]
      %v1080 = vld [vmem:[%s1065 + $0x38] sm:$0xf]
      %v1081 = vld [vmem:[%s1065 + $0x3c] sm:$0xf]
      %vm1082 = vsmask.f32 5376
      %v1084 = vshrl.u32 %v822, 16
      %v1086 = vrot.slane %v1084, 2
      %v1087 = vshll.u32 %v822, 16
      %v1089 = vrot.slane %v1087, 3
      %v1090 = vor.u32 %v1086, %v1089
      %v1092 = vshrl.u32 %v940, 16
      %v1094 = vrot.slane %v1092, 2
      %v1095 = vshll.u32 %v940, 16
      %v1097 = vrot.slane %v1095, 3
      %v1098 = vor.u32 %v1094, %v1097
      %v1099 = vsel %vm1082, %v1090, %v1098
      %v1118 = vunpack.c.l.b16 %v1066
      %v1119 = vunpack.c.l.b16 %v1067
      %v1120 = vunpack.c.l.b16 %v1068
      %v1121 = vunpack.c.l.b16 %v1069
      %v1122 = vunpack.c.l.b16 %v1070
      %v1123 = vunpack.c.l.b16 %v1071
      %v1124 = vunpack.c.l.b16 %v1072
      %v1125 = vunpack.c.l.b16 %v1073
      %v1126 = vunpack.c.l.b16 %v1074
      %v1127 = vunpack.c.l.b16 %v1075
      %v1128 = vunpack.c.l.b16 %v1076
      %v1129 = vunpack.c.l.b16 %v1077
      %v1130 = vunpack.c.l.b16 %v1078
      %v1131 = vunpack.c.l.b16 %v1079
      %v1132 = vunpack.c.l.b16 %v1080
      %v1133 = vunpack.c.l.b16 %v1081
      %v1134 = vpack.c.b16 %v1119, %v1118
      %v1135 = vpack.c.b16 %v1121, %v1120
      %v1136 = vpack.c.b16 %v1123, %v1122
      %v1137 = vpack.c.b16 %v1125, %v1124
      %v1138 = vpack.c.b16 %v1127, %v1126
      %v1139 = vpack.c.b16 %v1129, %v1128
      %v1140 = vpack.c.b16 %v1131, %v1130
      %v1141 = vpack.c.b16 %v1133, %v1132
      %1150 = vmatprep.subr.bf16.mxu0 0
      %1151 = vmatpush1.bf16.msra.mxu0 %v1134
      %1152 = vmatprep.subr.bf16.mxu0 0
      %1153 = vmatpush1.bf16.msra.mxu0 %v1135
      %1154 = vmatprep.subr.bf16.mxu0 0
      %1155 = vmatpush1.bf16.msra.mxu0 %v1136
      %1156 = vmatprep.subr.bf16.mxu0 0
      %1157 = vmatpush1.bf16.msra.mxu0 %v1137
      %1158 = vmatprep.subr.bf16.mxu0 0
      %1159 = vmatpush1.bf16.msra.mxu0 %v1138
      %1160 = vmatprep.subr.bf16.mxu0 0
      %1161 = vmatpush1.bf16.msra.mxu0 %v1139
      %1162 = vmatprep.subr.bf16.mxu0 0
      %1163 = vmatpush1.bf16.msra.mxu0 %v1140
      %1164 = vmatprep.subr.bf16.mxu0 0
      %1165 = vmatpush1.bf16.msra.mxu0 %v1141
      %1166 = vmatprep.subr.bf16.mxu0 0
      %1167 = vmatpush1.bf16.msra.mxu0 0
      %1168 = vmatprep.subr.bf16.mxu0 0
      %1169 = vmatpush1.bf16.msra.mxu0 0
      %1170 = vmatprep.subr.bf16.mxu0 0
      %1171 = vmatpush1.bf16.msra.mxu0 0
      %1172 = vmatprep.subr.bf16.mxu0 0
      %1173 = vmatpush1.bf16.msra.mxu0 0
      %1174 = vmatprep.subr.bf16.mxu0 0
      %1175 = vmatpush1.bf16.msra.mxu0 0
      %1176 = vmatprep.subr.bf16.mxu0 0
      %1177 = vmatpush1.bf16.msra.mxu0 0
      %1178 = vmatprep.subr.bf16.mxu0 0
      %1179 = vmatpush1.bf16.msra.mxu0 0
      %1180 = vmatprep.subr.bf16.mxu0 0
      %1181 = vmatpush1.bf16.msra.mxu0 0
      %1182 = vmatprep.mubr.bf16.mxu0 0
      %1183 = vmatmul.mubr.bf16.gmra.mrb[0].mxu0 %v1099
      %v1184 = vpop.f32.mrb[0].mxu0
      %v1185 = vadd.f32 0.0, %v1184
      %v1186 = vpop.f32.mrb[0].mxu0
      %v1187 = vpop.f32.mrb[0].mxu0
      %v1188 = vadd.f32 0.0, %v1187
      %v1189 = vpop.f32.mrb[0].mxu0
      %1190 = vmatprep.mubr.bf16.mxu0 0
      %1191 = vmatmul.mubr.bf16.gmra.mrb[0].mxu0 %v1098
      %v1192 = vpop.f32.mrb[0].mxu0
      %v1193 = vadd.f32 0.0, %v1192
      %v1194 = vpop.f32.mrb[0].mxu0
      %v1195 = vpop.f32.mrb[0].mxu0
      %v1196 = vpop.f32.mrb[0].mxu0
      %1197 = vdwg.mxu0
      %v1198 = vadd.f32 %v1062, %v1185
      %v1199 = vadd.f32 %v1063, %v1188
      %v1200 = vadd.f32 %v1064, %v1193
      %s1201 = scalar_lea.vmem %s1, 512
      %v1202 = vld [vmem:[%s1201] sm:$0xf]
      %v1203 = vld [vmem:[%s1201 + $0x4] sm:$0xf]
      %v1204 = vld [vmem:[%s1201 + $0x8] sm:$0xf]
      %v1205 = vld [vmem:[%s1201 + $0xc] sm:$0xf]
      %v1206 = vld [vmem:[%s1201 + $0x10] sm:$0xf]
      %v1207 = vld [vmem:[%s1201 + $0x14] sm:$0xf]
      %v1208 = vld [vmem:[%s1201 + $0x18] sm:$0xf]
      %v1209 = vld [vmem:[%s1201 + $0x1c] sm:$0xf]
      %v1210 = vld [vmem:[%s1201 + $0x20] sm:$0xf]
      %v1211 = vld [vmem:[%s1201 + $0x24] sm:$0xf]
      %v1212 = vld [vmem:[%s1201 + $0x28] sm:$0xf]
      %v1213 = vld [vmem:[%s1201 + $0x2c] sm:$0xf]
      %v1214 = vld [vmem:[%s1201 + $0x30] sm:$0xf]
      %v1215 = vld [vmem:[%s1201 + $0x34] sm:$0xf]
      %v1216 = vld [vmem:[%s1201 + $0x38] sm:$0xf]
      %v1217 = vld [vmem:[%s1201 + $0x3c] sm:$0xf]
      %v1218 = vrot.slane %v822, 3
      %v1219 = vrot.slane %v940, 3
      %v1220 = vsel %vm591, %v1218, %v1219
      %v1239 = vunpack.c.l.b16 %v1202
      %v1240 = vunpack.c.l.b16 %v1203
      %v1241 = vunpack.c.l.b16 %v1204
      %v1242 = vunpack.c.l.b16 %v1205
      %v1243 = vunpack.c.l.b16 %v1206
      %v1244 = vunpack.c.l.b16 %v1207
      %v1245 = vunpack.c.l.b16 %v1208
      %v1246 = vunpack.c.l.b16 %v1209
      %v1247 = vunpack.c.l.b16 %v1210
      %v1248 = vunpack.c.l.b16 %v1211
      %v1249 = vunpack.c.l.b16 %v1212
      %v1250 = vunpack.c.l.b16 %v1213
      %v1251 = vunpack.c.l.b16 %v1214
      %v1252 = vunpack.c.l.b16 %v1215
      %v1253 = vunpack.c.l.b16 %v1216
      %v1254 = vunpack.c.l.b16 %v1217
      %v1255 = vpack.c.b16 %v1240, %v1239
      %v1256 = vpack.c.b16 %v1242, %v1241
      %v1257 = vpack.c.b16 %v1244, %v1243
      %v1258 = vpack.c.b16 %v1246, %v1245
      %v1259 = vpack.c.b16 %v1248, %v1247
      %v1260 = vpack.c.b16 %v1250, %v1249
      %v1261 = vpack.c.b16 %v1252, %v1251
      %v1262 = vpack.c.b16 %v1254, %v1253
      %1271 = vmatprep.subr.bf16.mxu0 0
      %1272 = vmatpush1.bf16.msra.mxu0 %v1255
      %1273 = vmatprep.subr.bf16.mxu0 0
      %1274 = vmatpush1.bf16.msra.mxu0 %v1256
      %1275 = vmatprep.subr.bf16.mxu0 0
      %1276 = vmatpush1.bf16.msra.mxu0 %v1257
      %1277 = vmatprep.subr.bf16.mxu0 0
      %1278 = vmatpush1.bf16.msra.mxu0 %v1258
      %1279 = vmatprep.subr.bf16.mxu0 0
      %1280 = vmatpush1.bf16.msra.mxu0 %v1259
      %1281 = vmatprep.subr.bf16.mxu0 0
      %1282 = vmatpush1.bf16.msra.mxu0 %v1260
      %1283 = vmatprep.subr.bf16.mxu0 0
      %1284 = vmatpush1.bf16.msra.mxu0 %v1261
      %1285 = vmatprep.subr.bf16.mxu0 0
      %1286 = vmatpush1.bf16.msra.mxu0 %v1262
      %1287 = vmatprep.subr.bf16.mxu0 0
      %1288 = vmatpush1.bf16.msra.mxu0 0
      %1289 = vmatprep.subr.bf16.mxu0 0
      %1290 = vmatpush1.bf16.msra.mxu0 0
      %1291 = vmatprep.subr.bf16.mxu0 0
      %1292 = vmatpush1.bf16.msra.mxu0 0
      %1293 = vmatprep.subr.bf16.mxu0 0
      %1294 = vmatpush1.bf16.msra.mxu0 0
      %1295 = vmatprep.subr.bf16.mxu0 0
      %1296 = vmatpush1.bf16.msra.mxu0 0
      %1297 = vmatprep.subr.bf16.mxu0 0
      %1298 = vmatpush1.bf16.msra.mxu0 0
      %1299 = vmatprep.subr.bf16.mxu0 0
      %1300 = vmatpush1.bf16.msra.mxu0 0
      %1301 = vmatprep.subr.bf16.mxu0 0
      %1302 = vmatpush1.bf16.msra.mxu0 0
      %1303 = vmatprep.mubr.bf16.mxu0 0
      %1304 = vmatmul.mubr.bf16.gmra.mrb[0].mxu0 %v1220
      %v1305 = vpop.f32.mrb[0].mxu0
      %v1306 = vadd.f32 0.0, %v1305
      %v1307 = vpop.f32.mrb[0].mxu0
      %v1308 = vpop.f32.mrb[0].mxu0
      %v1309 = vadd.f32 0.0, %v1308
      %v1310 = vpop.f32.mrb[0].mxu0
      %1311 = vmatprep.mubr.bf16.mxu0 0
      %1312 = vmatmul.mubr.bf16.gmra.mrb[0].mxu0 %v1219
      %v1313 = vpop.f32.mrb[0].mxu0
      %v1314 = vadd.f32 0.0, %v1313
      %v1315 = vpop.f32.mrb[0].mxu0
      %v1316 = vpop.f32.mrb[0].mxu0
      %v1317 = vpop.f32.mrb[0].mxu0
      %1318 = vdwg.mxu0
      %v1319 = vadd.f32 %v1198, %v1306
      %v1320 = vadd.f32 %v1199, %v1309
      %v1321 = vadd.f32 %v1200, %v1314
      %v1322 = vld [vmem:[%s2] sm:$0x1]
      %v1324 = vlaneseq
      %v1325 = vshrl.u32 %v1324, 7
      %v1326 = vsub.s32 0, %v1325
      %v1327 = vrot.slane %v1322, %v1326
      %v1329 = vmul.f32 %v1319, %v1327
      %v1330 = vmul.f32 %v1320, %v1327
      %v1331 = vmul.f32 %v1321, %v1327
      %v1332 = vld [vmem:[%s3] sm:$0x1]
      %v1334 = vlaneseq
      %v1335 = vshrl.u32 %v1334, 7
      %v1336 = vsub.s32 0, %v1335
      %v1337 = vrot.slane %v1332, %v1336
      %v1339 = vadd.f32 %v1329, %v1337
      %v1340 = vadd.f32 %v1330, %v1337
      %v1341 = vadd.f32 %v1331, %v1337
      %v1342 = vmax.f32 %v1339, 0.0
      %v1343 = vmax.f32 %v1340, 0.0
      %v1344 = vmax.f32 %v1341, 0.0
      %1345 = vst [vmem:[%s197] sm:$0xff] %v1342
      %1346 = vst [vmem:[%s197 + $0x8] sm:$0xff] %v1343
      %1347 = vst [vmem:[%s197 + $0x10] sm:$0xff] %v1344
      %p1348 = scmp.lt.s32.totalorder %s15, 1
      %s1349 = scalar_select %p1348, %s15, 1
      %s1350 = smul.addr %s1349, 3
      %s1351 = smul.addr %s1350, 8
      %s1352 = scalar_lea.vmem %s4, %s1351
      // Predicated region
      $region37: #{attanet_head_forward.12} parent=35 // pred_check
        %p1353 = pneg %p122
      $region38: #{attanet_head_forward.12} parent=35 // pred_check_branch
        %1355 = sbr.rel (%p1353) target = $region40
      $region39: #{attanet_head_forward.12} parent=35 // pred_region
        _
      $region40: #{attanet_head_forward.12} parent=35 // pred_fallthru
        _
    $region36: #{attanet_head_forward.12} parent=5 // pred_fallthru
      _
    %p1356 = scmp.le.s32.totalorder 2, %s10
    // Predicated region
    $region41: #{attanet_head_forward.12} parent=5 // pred_check
      %p1357 = pneg %p1356
    $region42: #{attanet_head_forward.12} parent=5 // pred_check_branch
      %1359 = sbr.rel (%p1357) target = $region44
    $region43: #{attanet_head_forward.12} parent=5 // pred_region
      %s1360 = ssub.s32 %s10, 2
      // Predicated region
      $region45: #{attanet_head_forward.12} parent=43 // pred_check
        %p1361 = pneg %p128
      $region46: #{attanet_head_forward.12} parent=43 // pred_check_branch
        %1363 = sbr.rel (%p1361) target = $region48
      $region47: #{attanet_head_forward.12} parent=43 // pred_region
        %p1364 = scmp.lt.s32.totalorder %s16, 1
        %s1365 = scalar_select %p1364, %s16, 1
        %s1366 = smul.addr %s1365, 3
        %s1367 = smul.addr %s1366, 8
        %s1368 = scalar_lea.vmem %s4, %s1367
      $region48: #{attanet_head_forward.12} parent=43 // pred_fallthru
        _
    $region44: #{attanet_head_forward.12} parent=5 // pred_fallthru
      _
  $region6: #{attanet_head_forward.12} parent=0 // loop_footer
    %s14 = sadd.s32 1, %s10
  $region7: #{attanet_head_forward.12} parent=0 // loop_footer_branch
    %9 = sbr.rel target = $region3
  $region8: #{attanet_head_forward.12} parent=0 // loop_exit
    _

// kernel: attanet_head_forward.10
$region0: #{attanet_head_forward.10}
  #allocation0 [shape = 'u32[]', space=smem, size = 0x4, offset = 0x4, fixed_abs, tag = 'smem constant byte address 0x4 - core index']
  #allocation1 [shape = 'u32[144,128]{1,0:T(1,128)}', space=vmem, size = 0x12000, scoped, tag = 'internal scratch']
  %s0 = inlined_call_operand.vmem [shape: f32[2,18,512], index: 0, kind: input, shape index: {}]
  %s1 = inlined_call_operand.vmem [shape: bf16[3,3,512,128], index: 1, kind: input, shape index: {}]
  %s2 = inlined_call_operand.vmem [shape: f32[1,128], index: 2, kind: input, shape index: {}]
  %s3 = inlined_call_operand.vmem [shape: f32[1,128], index: 3, kind: input, shape index: {}]
  %s4 = inlined_call_operand.vmem [shape: f32[2,8,128], index: 4, kind: output, shape index: {}]
  %s5 = sld [smem:[#allocation0]]
  $region49: #{attanet_head_forward.10} parent=0
    _
  %s7 = ssub.s32 1, %s5
  %s8 = scalar_select 0, %s7, %s5
  loop: start=0, step=1, limit=4
  $region2: #{attanet_head_forward.10} parent=0 // loop_pre_header
    _
  $region3: #{attanet_head_forward.10} parent=0 // loop_header
    %s10 = sphi 0, %s14
    %p11 = scmp.ge.s32.totalorder %s10, 4
    %s20 = sphi 0, %s22
    %s23 = sphi 0, %s20
    %s24 = sphi 0, %s23
    %s40 = sphi 0, %s24
    %s44 = sphi 0, %s44
    %s46 = sphi 0, %s44
    %s47 = sphi 0, %s46
    %s61 = sphi 0, %s47
    %s65 = sphi 0, %s65
    %s67 = sphi 0, %s65
    %s68 = sphi 0, %s67
    %s82 = sphi 0, %s68
    %s86 = sphi 0, %s86
    %s88 = sphi 0, %s86
    %s89 = sphi 0, %s88
    %s103 = sphi 0, %s89
    %s109 = sphi 0, %s111
    %s112 = sphi 0, %s109
    %s113 = sphi 0, %s112
    %s129 = sphi 0, %s113
  $region4: #{attanet_head_forward.10} parent=0 // loop_header_branch
    %13 = sbr.rel (%p11) target = $region8
  $region5: #{attanet_head_forward.10} parent=0 // loop_body
    %s15 = ssub.s32 %s10, 1
    %s16 = ssub.s32 %s10, 2
    %s17 = sadd.s32 %s10, 1
    %s18 = ssub.s32 %s10, %s17
    %p19 = scmp.eq.s32.totalorder %s18, 0
    %s21 = sadd.s32 %s20, 1
    %s22 = scalar_select %p19, %s20, %s21
    %p25 = pneg %p19
    %p26 = scmp.eq.s32.totalorder %s10, 1
    %p27 = por %p25, %p26
    %p28 = scmp.ne.s32.totalorder %s20, %s23
    %p29 = scmp.eq.s32.totalorder %s10, 0
    %p30 = por %p28, %p29
    %p31 = scmp.ne.s32.totalorder %s20, %s23
    %p32 = scmp.eq.s32.totalorder %s15, 1
    %p33 = por %p31, %p32
    %p34 = scmp.ne.s32.totalorder %s23, %s24
    %p35 = scmp.eq.s32.totalorder %s15, 0
    %p36 = por %p34, %p35
    %p37 = scmp.ne.s32.totalorder %s23, %s24
    %p38 = scmp.eq.s32.totalorder %s16, 1
    %p39 = por %p37, %p38
    %p41 = scmp.ne.s32.totalorder %s24, %s40
    %p42 = scmp.eq.s32.totalorder %s16, 0
    %p43 = por %p41, %p42
    %s45 = sadd.s32 %s44, 1
    %p48 = scmp.eq.s32.totalorder %s10, 1
    %p49 = scmp.ne.s32.totalorder %s44, %s46
    %p50 = scmp.eq.s32.totalorder %s10, 0
    %p51 = por %p49, %p50
    %p52 = scmp.ne.s32.totalorder %s44, %s46
    %p53 = scmp.eq.s32.totalorder %s15, 1
    %p54 = por %p52, %p53
    %p55 = scmp.ne.s32.totalorder %s46, %s47
    %p56 = scmp.eq.s32.totalorder %s15, 0
    %p57 = por %p55, %p56
    %p58 = scmp.ne.s32.totalorder %s46, %s47
    %p59 = scmp.eq.s32.totalorder %s16, 1
    %p60 = por %p58, %p59
    %p62 = scmp.ne.s32.totalorder %s47, %s61
    %p63 = scmp.eq.s32.totalorder %s16, 0
    %p64 = por %p62, %p63
    %s66 = sadd.s32 %s65, 1
    %p69 = scmp.eq.s32.totalorder %s10, 1
    %p70 = scmp.ne.s32.totalorder %s65, %s67
    %p71 = scmp.eq.s32.totalorder %s10, 0
    %p72 = por %p70, %p71
    %p73 = scmp.ne.s32.totalorder %s65, %s67
    %p74 = scmp.eq.s32.totalorder %s15, 1
    %p75 = por %p73, %p74
    %p76 = scmp.ne.s32.totalorder %s67, %s68
    %p77 = scmp.eq.s32.totalorder %s15, 0
    %p78 = por %p76, %p77
    %p79 = scmp.ne.s32.totalorder %s67, %s68
    %p80 = scmp.eq.s32.totalorder %s16, 1
    %p81 = por %p79, %p80
    %p83 = scmp.ne.s32.totalorder %s68, %s82
    %p84 = scmp.eq.s32.totalorder %s16, 0
    %p85 = por %p83, %p84
    %s87 = sadd.s32 %s86, 1
    %p90 = scmp.eq.s32.totalorder %s10, 1
    %p91 = scmp.ne.s32.totalorder %s86, %s88
    %p92 = scmp.eq.s32.totalorder %s10, 0
    %p93 = por %p91, %p92
    %p94 = scmp.ne.s32.totalorder %s86, %s88
    %p95 = scmp.eq.s32.totalorder %s15, 1
    %p96 = por %p94, %p95
    %p97 = scmp.ne.s32.totalorder %s88, %s89
    %p98 = scmp.eq.s32.totalorder %s15, 0
    %p99 = por %p97, %p98
    %p100 = scmp.ne.s32.totalorder %s88, %s89
    %p101 = scmp.eq.s32.totalorder %s16, 1
    %p102 = por %p100, %p101
    %p104 = scmp.ne.s32.totalorder %s89, %s103
    %p105 = scmp.eq.s32.totalorder %s16, 0
    %p106 = por %p104, %p105
    %s107 = ssub.s32 %s10, %s17
    %p108 = scmp.eq.s32.totalorder %s107, 0
    %s110 = sadd.s32 %s109, 1
    %s111 = scalar_select %p108, %s109, %s110
    %p114 = pneg %p108
    %p115 = scmp.eq.s32.totalorder %s10, 1
    %p116 = por %p114, %p115
    %p117 = scmp.ne.s32.totalorder %s109, %s112
    %p118 = scmp.eq.s32.totalorder %s10, 0
    %p119 = por %p117, %p118
    %p120 = scmp.ne.s32.totalorder %s109, %s112
    %p121 = scmp.eq.s32.totalorder %s15, 1
    %p122 = por %p120, %p121
    %p123 = scmp.ne.s32.totalorder %s112, %s113
    %p124 = scmp.eq.s32.totalorder %s15, 0
    %p125 = por %p123, %p124
    %p126 = scmp.ne.s32.totalorder %s112, %s113
    %p127 = scmp.eq.s32.totalorder %s16, 1
    %p128 = por %p126, %p127
    %p130 = scmp.ne.s32.totalorder %s113, %s129
    %p131 = scmp.eq.s32.totalorder %s16, 0
    %p132 = por %p130, %p131
    %p133 = scmp.le.s32.totalorder 1, %s10
    %p134 = scmp.lt.s32.totalorder %s10, 3
    %p135 = pnand %p133, %p134
    %p136 = pneg %p135
    // Predicated region
    $region9: #{attanet_head_forward.10} parent=5 // pred_check
      _
    $region10: #{attanet_head_forward.10} parent=5 // pred_check_branch
      %138 = sbr.rel (%p135) target = $region12
    $region11: #{attanet_head_forward.10} parent=5 // pred_region
      %s139 = ssub.s32 %s10, 1
      // Predicated region
      $region13: #{attanet_head_forward.10} parent=11 // pred_check
        %p140 = pneg %p57
      $region14: #{attanet_head_forward.10} parent=11 // pred_check_branch
        %142 = sbr.rel (%p140) target = $region16
      $region15: #{attanet_head_forward.10} parent=11 // pred_region
        _
      $region16: #{attanet_head_forward.10} parent=11 // pred_fallthru
        _
      // Predicated region
      $region17: #{attanet_head_forward.10} parent=11 // pred_check
        %p143 = pneg %p78
      $region18: #{attanet_head_forward.10} parent=11 // pred_check_branch
        %145 = sbr.rel (%p143) target = $region20
      $region19: #{attanet_head_forward.10} parent=11 // pred_region
        _
      $region20: #{attanet_head_forward.10} parent=11 // pred_fallthru
        _
      // Predicated region
      $region21: #{attanet_head_forward.10} parent=11 // pred_check
        %p146 = pneg %p99
      $region22: #{attanet_head_forward.10} parent=11 // pred_check_branch
        %148 = sbr.rel (%p146) target = $region24
      $region23: #{attanet_head_forward.10} parent=11 // pred_region
        _
      $region24: #{attanet_head_forward.10} parent=11 // pred_fallthru
        _
    $region12: #{attanet_head_forward.10} parent=5 // pred_fallthru
      _
    %p149 = scmp.lt.s32.totalorder %s10, 2
    // Predicated region
    $region25: #{attanet_head_forward.10} parent=5 // pred_check
      %p150 = pneg %p149
    $region26: #{attanet_head_forward.10} parent=5 // pred_check_branch
      %152 = sbr.rel (%p150) target = $region28
    $region27: #{attanet_head_forward.10} parent=5 // pred_region
      // Predicated region
      $region29: #{attanet_head_forward.10} parent=27 // pred_check
        %p153 = pneg %p30
      $region30: #{attanet_head_forward.10} parent=27 // pred_check_branch
        %155 = sbr.rel (%p153) target = $region32
      $region31: #{attanet_head_forward.10} parent=27 // pred_region
        %p156 = scmp.lt.s32.totalorder %s10, 1
        %s157 = scalar_select %p156, %s10, 1
        %s158 = smul.addr %s157, 12
        %s159 = smul.addr %s158, 8
        %s160 = scalar_lea.vmem %s0, %s159
      $region32: #{attanet_head_forward.10} parent=27 // pred_fallthru
        _
    $region28: #{attanet_head_forward.10} parent=5 // pred_fallthru
      _
    %p161 = scmp.le.s32.totalorder 1, %s10
    %p162 = scmp.lt.s32.totalorder %s10, 3
    %p163 = pnand %p161, %p162
    %p164 = pneg %p163
    // Predicated region
    $region33: #{attanet_head_forward.10} parent=5 // pred_check
      _
    $region34: #{attanet_head_forward.10} parent=5 // pred_check_branch
      %166 = sbr.rel (%p163) target = $region36
    $region35: #{attanet_head_forward.10} parent=5 // pred_region
      %s167 = ssub.s32 %s10, 1
      %p168 = scmp.lt.s32.totalorder %s15, 1
      %s169 = scalar_select %p168, %s15, 1
      %s170 = smul.addr %s169, 12
      %s171 = smul.addr %s170, 8
      %s172 = scalar_lea.vmem %s0, %s171
      %p173 = pneg %p36
      %p174 = pneg %p33
      %p175 = pneg %p57
      %p176 = pneg %p54
      %p177 = pneg %p78
      %p178 = pneg %p75
      %p179 = pneg %p99
      %p180 = pneg %p96
      %p181 = pneg %p125
      %p182 = pneg %p122
      %p183 = scmp.lt.s32.totalorder %s15, 1
      %s184 = scalar_select %p183, %s15, 1
      %s185 = smul.addr %s184, 8
      %s186 = scalar_lea.vmem %s4, %s185
      %p187 = scmp.lt.s32.totalorder %s15, 1
      %s188 = scalar_select %p187, %s15, 1
      %s189 = smul.addr %s188, 12
      %s190 = smul.addr %s189, 8
      %s191 = scalar_lea.vmem %s0, %s190
      %p192 = scmp.lt.s32.totalorder %s15, 1
      %s193 = scalar_select %p192, %s15, 1
      %s194 = smul.addr %s193, 8
      %s195 = scalar_lea.vmem %s4, %s194
      %v197 = vld [vmem:[%s191] sm:$0xff]
      %v198 = vld [vmem:[%s191 + $0x8] sm:$0xff]
      %v199 = vld [vmem:[%s191 + $0x10] sm:$0xff]
      %v200 = vld [vmem:[%s191 + $0x18] sm:$0xff]
      %v201 = vld [vmem:[%s191 + $0x20] sm:$0xff]
      %v202 = vld [vmem:[%s191 + $0x28] sm:$0xff]
      %v203 = vld [vmem:[%s191 + $0x30] sm:$0xff]
      %v204 = vld [vmem:[%s191 + $0x38] sm:$0xff]
      %v205 = vld [vmem:[%s191 + $0x40] sm:$0x3]
      %v206 = vld [vmem:[%s191 + $0x48] sm:$0x3]
      %v207 = vld [vmem:[%s191 + $0x50] sm:$0x3]
      %v208 = vld [vmem:[%s191 + $0x58] sm:$0x3]
      %v209 = vpack.c.bf16 %v197, %v197
      %v210 = vpack.c.bf16 %v198, %v198
      %v211 = vpack.c.bf16 %v199, %v199
      %v212 = vpack.c.bf16 %v200, %v200
      %v213 = vld [vmem:[%s1] sm:$0xf]
      %v214 = vld [vmem:[%s1 + $0x4] sm:$0xf]
      %v215 = vld [vmem:[%s1 + $0x8] sm:$0xf]
      %v216 = vld [vmem:[%s1 + $0xc] sm:$0xf]
      %v217 = vld [vmem:[%s1 + $0x10] sm:$0xf]
      %v218 = vld [vmem:[%s1 + $0x14] sm:$0xf]
      %v219 = vld [vmem:[%s1 + $0x18] sm:$0xf]
      %v220 = vld [vmem:[%s1 + $0x1c] sm:$0xf]
      %v221 = vld [vmem:[%s1 + $0x20] sm:$0xf]
      %v222 = vld [vmem:[%s1 + $0x24] sm:$0xf]
      %v223 = vld [vmem:[%s1 + $0x28] sm:$0xf]
      %v224 = vld [vmem:[%s1 + $0x2c] sm:$0xf]
      %v225 = vld [vmem:[%s1 + $0x30] sm:$0xf]
      %v226 = vld [vmem:[%s1 + $0x34] sm:$0xf]
      %v227 = vld [vmem:[%s1 + $0x38] sm:$0xf]
      %v228 = vld [vmem:[%s1 + $0x3c] sm:$0xf]
      %v229 = vld [vmem:[%s1 + $0x40] sm:$0xf]
      %v230 = vld [vmem:[%s1 + $0x44] sm:$0xf]
      %v231 = vld [vmem:[%s1 + $0x48] sm:$0xf]
      %v232 = vld [vmem:[%s1 + $0x4c] sm:$0xf]
      %v233 = vld [vmem:[%s1 + $0x50] sm:$0xf]
      %v234 = vld [vmem:[%s1 + $0x54] sm:$0xf]
      %v235 = vld [vmem:[%s1 + $0x58] sm:$0xf]
      %v236 = vld [vmem:[%s1 + $0x5c] sm:$0xf]
      %v237 = vld [vmem:[%s1 + $0x60] sm:$0xf]
      %v238 = vld [vmem:[%s1 + $0x64] sm:$0xf]
      %v239 = vld [vmem:[%s1 + $0x68] sm:$0xf]
      %v240 = vld [vmem:[%s1 + $0x6c] sm:$0xf]
      %v241 = vld [vmem:[%s1 + $0x70] sm:$0xf]
      %v242 = vld [vmem:[%s1 + $0x74] sm:$0xf]
      %v243 = vld [vmem:[%s1 + $0x78] sm:$0xf]
      %v244 = vld [vmem:[%s1 + $0x7c] sm:$0xf]
      %v245 = vld [vmem:[%s1 + $0x80] sm:$0xf]
      %v246 = vld [vmem:[%s1 + $0x84] sm:$0xf]
      %v247 = vld [vmem:[%s1 + $0x88] sm:$0xf]
      %v248 = vld [vmem:[%s1 + $0x8c] sm:$0xf]
      %v249 = vld [vmem:[%s1 + $0x90] sm:$0xf]
      %v250 = vld [vmem:[%s1 + $0x94] sm:$0xf]
      %v251 = vld [vmem:[%s1 + $0x98] sm:$0xf]
      %v252 = vld [vmem:[%s1 + $0x9c] sm:$0xf]
      %v253 = vld [vmem:[%s1 + $0xa0] sm:$0xf]
      %v254 = vld [vmem:[%s1 + $0xa4] sm:$0xf]
      %v255 = vld [vmem:[%s1 + $0xa8] sm:$0xf]
      %v256 = vld [vmem:[%s1 + $0xac] sm:$0xf]
      %v257 = vld [vmem:[%s1 + $0xb0] sm:$0xf]
      %v258 = vld [vmem:[%s1 + $0xb4] sm:$0xf]
      %v259 = vld [vmem:[%s1 + $0xb8] sm:$0xf]
      %v260 = vld [vmem:[%s1 + $0xbc] sm:$0xf]
      %v261 = vld [vmem:[%s1 + $0xc0] sm:$0xf]
      %v262 = vld [vmem:[%s1 + $0xc4] sm:$0xf]
      %v263 = vld [vmem:[%s1 + $0xc8] sm:$0xf]
      %v264 = vld [vmem:[%s1 + $0xcc] sm:$0xf]
      %v265 = vld [vmem:[%s1 + $0xd0] sm:$0xf]
      %v266 = vld [vmem:[%s1 + $0xd4] sm:$0xf]
      %v267 = vld [vmem:[%s1 + $0xd8] sm:$0xf]
      %v268 = vld [vmem:[%s1 + $0xdc] sm:$0xf]
      %v269 = vld [vmem:[%s1 + $0xe0] sm:$0xf]
      %v270 = vld [vmem:[%s1 + $0xe4] sm:$0xf]
      %v271 = vld [vmem:[%s1 + $0xe8] sm:$0xf]
      %v272 = vld [vmem:[%s1 + $0xec] sm:$0xf]
      %v273 = vld [vmem:[%s1 + $0xf0] sm:$0xf]
      %v274 = vld [vmem:[%s1 + $0xf4] sm:$0xf]
      %v275 = vld [vmem:[%s1 + $0xf8] sm:$0xf]
      %v276 = vld [vmem:[%s1 + $0xfc] sm:$0xf]
      %v277 = vpack.c.bf16 %v201, %v197
      %v278 = vpack.c.bf16 %v202, %v198
      %v279 = vpack.c.bf16 %v203, %v199
      %v280 = vpack.c.bf16 %v204, %v200
      %s281 = scalar_lea.vmem %s1, 256
      %v282 = vld [vmem:[%s281] sm:$0xf]
      %v283 = vld [vmem:[%s281 + $0x4] sm:$0xf]
      %v284 = vld [vmem:[%s281 + $0x8] sm:$0xf]
      %v285 = vld [vmem:[%s281 + $0xc] sm:$0xf]
      %v286 = vld [vmem:[%s281 + $0x10] sm:$0xf]
      %v287 = vld [vmem:[%s281 + $0x14] sm:$0xf]
      %v288 = vld [vmem:[%s281 + $0x18] sm:$0xf]
      %v289 = vld [vmem:[%s281 + $0x1c] sm:$0xf]
      %v290 = vld [vmem:[%s281 + $0x20] sm:$0xf]
      %v291 = vld [vmem:[%s281 + $0x24] sm:$0xf]
      %v292 = vld [vmem:[%s281 + $0x28] sm:$0xf]
      %v293 = vld [vmem:[%s281 + $0x2c] sm:$0xf]
      %v294 = vld [vmem:[%s281 + $0x30] sm:$0xf]
      %v295 = vld [vmem:[%s281 + $0x34] sm:$0xf]
      %v296 = vld [vmem:[%s281 + $0x38] sm:$0xf]
      %v297 = vld [vmem:[%s281 + $0x3c] sm:$0xf]
      %v298 = vld [vmem:[%s281 + $0x40] sm:$0xf]
      %v299 = vld [vmem:[%s281 + $0x44] sm:$0xf]
      %v300 = vld [vmem:[%s281 + $0x48] sm:$0xf]
      %v301 = vld [vmem:[%s281 + $0x4c] sm:$0xf]
      %v302 = vld [vmem:[%s281 + $0x50] sm:$0xf]
      %v303 = vld [vmem:[%s281 + $0x54] sm:$0xf]
      %v304 = vld [vmem:[%s281 + $0x58] sm:$0xf]
      %v305 = vld [vmem:[%s281 + $0x5c] sm:$0xf]
      %v306 = vld [vmem:[%s281 + $0x60] sm:$0xf]
      %v307 = vld [vmem:[%s281 + $0x64] sm:$0xf]
      %v308 = vld [vmem:[%s281 + $0x68] sm:$0xf]
      %v309 = vld [vmem:[%s281 + $0x6c] sm:$0xf]
      %v310 = vld [vmem:[%s281 + $0x70] sm:$0xf]
      %v311 = vld [vmem:[%s281 + $0x74] sm:$0xf]
      %v312 = vld [vmem:[%s281 + $0x78] sm:$0xf]
      %v313 = vld [vmem:[%s281 + $0x7c] sm:$0xf]
      %v314 = vld [vmem:[%s281 + $0x80] sm:$0xf]
      %v315 = vld [vmem:[%s281 + $0x84] sm:$0xf]
      %v316 = vld [vmem:[%s281 + $0x88] sm:$0xf]
      %v317 = vld [vmem:[%s281 + $0x8c] sm:$0xf]
      %v318 = vld [vmem:[%s281 + $0x90] sm:$0xf]
      %v319 = vld [vmem:[%s281 + $0x94] sm:$0xf]
      %v320 = vld [vmem:[%s281 + $0x98] sm:$0xf]
      %v321 = vld [vmem:[%s281 + $0x9c] sm:$0xf]
      %v322 = vld [vmem:[%s281 + $0xa0] sm:$0xf]
      %v323 = vld [vmem:[%s281 + $0xa4] sm:$0xf]
      %v324 = vld [vmem:[%s281 + $0xa8] sm:$0xf]
      %v325 = vld [vmem:[%s281 + $0xac] sm:$0xf]
      %v326 = vld [vmem:[%s281 + $0xb0] sm:$0xf]
      %v327 = vld [vmem:[%s281 + $0xb4] sm:$0xf]
      %v328 = vld [vmem:[%s281 + $0xb8] sm:$0xf]
      %v329 = vld [vmem:[%s281 + $0xbc] sm:$0xf]
      %v330 = vld [vmem:[%s281 + $0xc0] sm:$0xf]
      %v331 = vld [vmem:[%s281 + $0xc4] sm:$0xf]
      %v332 = vld [vmem:[%s281 + $0xc8] sm:$0xf]
      %v333 = vld [vmem:[%s281 + $0xcc] sm:$0xf]
      %v334 = vld [vmem:[%s281 + $0xd0] sm:$0xf]
      %v335 = vld [vmem:[%s281 + $0xd4] sm:$0xf]
      %v336 = vld [vmem:[%s281 + $0xd8] sm:$0xf]
      %v337 = vld [vmem:[%s281 + $0xdc] sm:$0xf]
      %v338 = vld [vmem:[%s281 + $0xe0] sm:$0xf]
      %v339 = vld [vmem:[%s281 + $0xe4] sm:$0xf]
      %v340 = vld [vmem:[%s281 + $0xe8] sm:$0xf]
      %v341 = vld [vmem:[%s281 + $0xec] sm:$0xf]
      %v342 = vld [vmem:[%s281 + $0xf0] sm:$0xf]
      %v343 = vld [vmem:[%s281 + $0xf4] sm:$0xf]
      %v344 = vld [vmem:[%s281 + $0xf8] sm:$0xf]
      %v345 = vld [vmem:[%s281 + $0xfc] sm:$0xf]
      %v347 = vshrl.u32 %v277, 16
      %v349 = vshll.u32 %v277, 16
      %v351 = vrot.slane %v349, 1
      %v352 = vor.u32 %v347, %v351
      %v354 = vshrl.u32 %v278, 16
      %v356 = vshll.u32 %v278, 16
      %v358 = vrot.slane %v356, 1
      %v359 = vor.u32 %v354, %v358
      %v361 = vshrl.u32 %v279, 16
      %v363 = vshll.u32 %v279, 16
      %v365 = vrot.slane %v363, 1
      %v366 = vor.u32 %v361, %v365
      %v368 = vshrl.u32 %v280, 16
      %v370 = vshll.u32 %v280, 16
      %v372 = vrot.slane %v370, 1
      %v373 = vor.u32 %v368, %v372
      %v442 = vunpack.c.l.b16 %v282
      %v443 = vunpack.c.l.b16 %v283
      %v444 = vunpack.c.l.b16 %v284
      %v445 = vunpack.c.l.b16 %v285
      %v446 = vunpack.c.l.b16 %v286
      %v447 = vunpack.c.l.b16 %v287
      %v448 = vunpack.c.l.b16 %v288
      %v449 = vunpack.c.l.b16 %v289
      %v450 = vunpack.c.l.b16 %v290
      %v451 = vunpack.c.l.b16 %v291
      %v452 = vunpack.c.l.b16 %v292
      %v453 = vunpack.c.l.b16 %v293
      %v454 = vunpack.c.l.b16 %v294
      %v455 = vunpack.c.l.b16 %v295
      %v456 = vunpack.c.l.b16 %v296
      %v457 = vunpack.c.l.b16 %v297
      %v458 = vunpack.c.l.b16 %v298
      %v459 = vunpack.c.l.b16 %v299
      %v460 = vunpack.c.l.b16 %v300
      %v461 = vunpack.c.l.b16 %v301
      %v462 = vunpack.c.l.b16 %v302
      %v463 = vunpack.c.l.b16 %v303
      %v464 = vunpack.c.l.b16 %v304
      %v465 = vunpack.c.l.b16 %v305
      %v466 = vunpack.c.l.b16 %v306
      %v467 = vunpack.c.l.b16 %v307
      %v468 = vunpack.c.l.b16 %v308
      %v469 = vunpack.c.l.b16 %v309
      %v470 = vunpack.c.l.b16 %v310
      %v471 = vunpack.c.l.b16 %v311
      %v472 = vunpack.c.l.b16 %v312
      %v473 = vunpack.c.l.b16 %v313
      %v474 = vunpack.c.l.b16 %v314
      %v475 = vunpack.c.l.b16 %v315
      %v476 = vunpack.c.l.b16 %v316
      %v477 = vunpack.c.l.b16 %v317
      %v478 = vunpack.c.l.b16 %v318
      %v479 = vunpack.c.l.b16 %v319
      %v480 = vunpack.c.l.b16 %v320
      %v481 = vunpack.c.l.b16 %v321
      %v482 = vunpack.c.l.b16 %v322
      %v483 = vunpack.c.l.b16 %v323
      %v484 = vunpack.c.l.b16 %v324
      %v485 = vunpack.c.l.b16 %v325
      %v486 = vunpack.c.l.b16 %v326
      %v487 = vunpack.c.l.b16 %v327
      %v488 = vunpack.c.l.b16 %v328
      %v489 = vunpack.c.l.b16 %v329
      %v490 = vunpack.c.l.b16 %v330
      %v491 = vunpack.c.l.b16 %v331
      %v492 = vunpack.c.l.b16 %v332
      %v493 = vunpack.c.l.b16 %v333
      %v494 = vunpack.c.l.b16 %v334
      %v495 = vunpack.c.l.b16 %v335
      %v496 = vunpack.c.l.b16 %v336
      %v497 = vunpack.c.l.b16 %v337
      %v498 = vunpack.c.l.b16 %v338
      %v499 = vunpack.c.l.b16 %v339
      %v500 = vunpack.c.l.b16 %v340
      %v501 = vunpack.c.l.b16 %v341
      %v502 = vunpack.c.l.b16 %v342
      %v503 = vunpack.c.l.b16 %v343
      %v504 = vunpack.c.l.b16 %v344
      %v505 = vunpack.c.l.b16 %v345
      %v506 = vpack.c.b16 %v443, %v442
      %v507 = vpack.c.b16 %v445, %v444
      %v508 = vpack.c.b16 %v447, %v446
      %v509 = vpack.c.b16 %v449, %v448
      %v510 = vpack.c.b16 %v451, %v450
      %v511 = vpack.c.b16 %v453, %v452
      %v512 = vpack.c.b16 %v455, %v454
      %v513 = vpack.c.b16 %v457, %v456
      %v514 = vpack.c.b16 %v459, %v458
      %v515 = vpack.c.b16 %v461, %v460
      %v516 = vpack.c.b16 %v463, %v462
      %v517 = vpack.c.b16 %v465, %v464
      %v518 = vpack.c.b16 %v467, %v466
      %v519 = vpack.c.b16 %v469, %v468
      %v520 = vpack.c.b16 %v471, %v470
      %v521 = vpack.c.b16 %v473, %v472
      %v522 = vpack.c.b16 %v475, %v474
      %v523 = vpack.c.b16 %v477, %v476
      %v524 = vpack.c.b16 %v479, %v478
      %v525 = vpack.c.b16 %v481, %v480
      %v526 = vpack.c.b16 %v483, %v482
      %v527 = vpack.c.b16 %v485, %v484
      %v528 = vpack.c.b16 %v487, %v486
      %v529 = vpack.c.b16 %v489, %v488
      %v530 = vpack.c.b16 %v491, %v490
      %v531 = vpack.c.b16 %v493, %v492
      %v532 = vpack.c.b16 %v495, %v494
      %v533 = vpack.c.b16 %v497, %v496
      %v534 = vpack.c.b16 %v499, %v498
      %v535 = vpack.c.b16 %v501, %v500
      %v536 = vpack.c.b16 %v503, %v502
      %v537 = vpack.c.b16 %v505, %v504
      %570 = vmatprep.subr.bf16.mxu0 0
      %571 = vmatpush1.bf16.msra.mxu0 %v506
      %572 = vmatprep.subr.bf16.mxu0 0
      %573 = vmatpush1.bf16.msra.mxu0 %v507
      %574 = vmatprep.subr.bf16.mxu0 0
      %575 = vmatpush1.bf16.msra.mxu0 %v508
      %576 = vmatprep.subr.bf16.mxu0 0
      %577 = vmatpush1.bf16.msra.mxu0 %v509
      %578 = vmatprep.subr.bf16.mxu0 0
      %579 = vmatpush1.bf16.msra.mxu0 %v510
      %580 = vmatprep.subr.bf16.mxu0 0
      %581 = vmatpush1.bf16.msra.mxu0 %v511
      %582 = vmatprep.subr.bf16.mxu0 0
      %583 = vmatpush1.bf16.msra.mxu0 %v512
      %584 = vmatprep.subr.bf16.mxu0 0
      %585 = vmatpush1.bf16.msra.mxu0 %v513
      %586 = vmatprep.subr.bf16.mxu0 0
      %587 = vmatpush1.bf16.msra.mxu0 %v514
      %588 = vmatprep.subr.bf16.mxu0 0
      %589 = vmatpush1.bf16.msra.mxu0 %v515
      %590 = vmatprep.subr.bf16.mxu0 0
      %591 = vmatpush1.bf16.msra.mxu0 %v516
      %592 = vmatprep.subr.bf16.mxu0 0
      %593 = vmatpush1.bf16.msra.mxu0 %v517
      %594 = vmatprep.subr.bf16.mxu0 0
      %595 = vmatpush1.bf16.msra.mxu0 %v518
      %596 = vmatprep.subr.bf16.mxu0 0
      %597 = vmatpush1.bf16.msra.mxu0 %v519
      %598 = vmatprep.subr.bf16.mxu0 0
      %599 = vmatpush1.bf16.msra.mxu0 %v520
      %600 = vmatprep.subr.bf16.mxu0 0
      %601 = vmatpush1.bf16.msra.mxu0 %v521
      %602 = vmatprep.mubr.bf16.mxu0 %v359
      %603 = vmatmul.mubr.bf16.gmra.mrb[0].mxu0 %v352
      %v604 = vpop.f32.mrb[0].mxu0
      %v605 = vadd.f32 0.0, %v604
      %v606 = vpop.f32.mrb[0].mxu0
      %v607 = vpop.f32.mrb[0].mxu0
      %v608 = vpop.f32.mrb[0].mxu0
      %609 = vdwg.mxu0
      %610 = vmatprep.subr.bf16.mxu0 0
      %611 = vmatpush1.bf16.msra.mxu0 %v522
      %612 = vmatprep.subr.bf16.mxu0 0
      %613 = vmatpush1.bf16.msra.mxu0 %v523
      %614 = vmatprep.subr.bf16.mxu0 0
      %615 = vmatpush1.bf16.msra.mxu0 %v524
      %616 = vmatprep.subr.bf16.mxu0 0
      %617 = vmatpush1.bf16.msra.mxu0 %v525
      %618 = vmatprep.subr.bf16.mxu0 0
      %619 = vmatpush1.bf16.msra.mxu0 %v526
      %620 = vmatprep.subr.bf16.mxu0 0
      %621 = vmatpush1.bf16.msra.mxu0 %v527
      %622 = vmatprep.subr.bf16.mxu0 0
      %623 = vmatpush1.bf16.msra.mxu0 %v528
      %624 = vmatprep.subr.bf16.mxu0 0
      %625 = vmatpush1.bf16.msra.mxu0 %v529
      %626 = vmatprep.subr.bf16.mxu0 0
      %627 = vmatpush1.bf16.msra.mxu0 %v530
      %628 = vmatprep.subr.bf16.mxu0 0
      %629 = vmatpush1.bf16.msra.mxu0 %v531
      %630 = vmatprep.subr.bf16.mxu0 0
      %631 = vmatpush1.bf16.msra.mxu0 %v532
      %632 = vmatprep.subr.bf16.mxu0 0
      %633 = vmatpush1.bf16.msra.mxu0 %v533
      %634 = vmatprep.subr.bf16.mxu0 0
      %635 = vmatpush1.bf16.msra.mxu0 %v534
      %636 = vmatprep.subr.bf16.mxu0 0
      %637 = vmatpush1.bf16.msra.mxu0 %v535
      %638 = vmatprep.subr.bf16.mxu0 0
      %639 = vmatpush1.bf16.msra.mxu0 %v536
      %640 = vmatprep.subr.bf16.mxu0 0
      %641 = vmatpush1.bf16.msra.mxu0 %v537
      %642 = vmatprep.mubr.bf16.mxu0 %v373
      %643 = vmatmul.mubr.bf16.gmra.mrb[0].mxu0 %v366
      %v644 = vpop.f32.mrb[0].mxu0
      %v645 = vadd.f32 %v605, %v644
      %v646 = vpop.f32.mrb[0].mxu0
      %v647 = vpop.f32.mrb[0].mxu0
      %v648 = vpop.f32.mrb[0].mxu0
      %649 = vdwg.mxu0
      %v714 = vunpack.c.l.b16 %v213
      %v715 = vunpack.c.l.b16 %v214
      %v716 = vunpack.c.l.b16 %v215
      %v717 = vunpack.c.l.b16 %v216
      %v718 = vunpack.c.l.b16 %v217
      %v719 = vunpack.c.l.b16 %v218
      %v720 = vunpack.c.l.b16 %v219
      %v721 = vunpack.c.l.b16 %v220
      %v722 = vunpack.c.l.b16 %v221
      %v723 = vunpack.c.l.b16 %v222
      %v724 = vunpack.c.l.b16 %v223
      %v725 = vunpack.c.l.b16 %v224
      %v726 = vunpack.c.l.b16 %v225
      %v727 = vunpack.c.l.b16 %v226
      %v728 = vunpack.c.l.b16 %v227
      %v729 = vunpack.c.l.b16 %v228
      %v730 = vunpack.c.l.b16 %v229
      %v731 = vunpack.c.l.b16 %v230
      %v732 = vunpack.c.l.b16 %v231
      %v733 = vunpack.c.l.b16 %v232
      %v734 = vunpack.c.l.b16 %v233
      %v735 = vunpack.c.l.b16 %v234
      %v736 = vunpack.c.l.b16 %v235
      %v737 = vunpack.c.l.b16 %v236
      %v738 = vunpack.c.l.b16 %v237
      %v739 = vunpack.c.l.b16 %v238
      %v740 = vunpack.c.l.b16 %v239
      %v741 = vunpack.c.l.b16 %v240
      %v742 = vunpack.c.l.b16 %v241
      %v743 = vunpack.c.l.b16 %v242
      %v744 = vunpack.c.l.b16 %v243
      %v745 = vunpack.c.l.b16 %v244
      %v746 = vunpack.c.l.b16 %v245
      %v747 = vunpack.c.l.b16 %v246
      %v748 = vunpack.c.l.b16 %v247
      %v749 = vunpack.c.l.b16 %v248
      %v750 = vunpack.c.l.b16 %v249
      %v751 = vunpack.c.l.b16 %v250
      %v752 = vunpack.c.l.b16 %v251
      %v753 = vunpack.c.l.b16 %v252
      %v754 = vunpack.c.l.b16 %v253
      %v755 = vunpack.c.l.b16 %v254
      %v756 = vunpack.c.l.b16 %v255
      %v757 = vunpack.c.l.b16 %v256
      %v758 = vunpack.c.l.b16 %v257
      %v759 = vunpack.c.l.b16 %v258
      %v760 = vunpack.c.l.b16 %v259
      %v761 = vunpack.c.l.b16 %v260
      %v762 = vunpack.c.l.b16 %v261
      %v763 = vunpack.c.l.b16 %v262
      %v764 = vunpack.c.l.b16 %v263
      %v765 = vunpack.c.l.b16 %v264
      %v766 = vunpack.c.l.b16 %v265
      %v767 = vunpack.c.l.b16 %v266
      %v768 = vunpack.c.l.b16 %v267
      %v769 = vunpack.c.l.b16 %v268
      %v770 = vunpack.c.l.b16 %v269
      %v771 = vunpack.c.l.b16 %v270
      %v772 = vunpack.c.l.b16 %v271
      %v773 = vunpack.c.l.b16 %v272
      %v774 = vunpack.c.l.b16 %v273
      %v775 = vunpack.c.l.b16 %v274
      %v776 = vunpack.c.l.b16 %v275
      %v777 = vunpack.c.l.b16 %v276
      %v778 = vpack.c.b16 %v715, %v714
      %v779 = vpack.c.b16 %v717, %v716
      %v780 = vpack.c.b16 %v719, %v718
      %v781 = vpack.c.b16 %v721, %v720
      %v782 = vpack.c.b16 %v723, %v722
      %v783 = vpack.c.b16 %v725, %v724
      %v784 = vpack.c.b16 %v727, %v726
      %v785 = vpack.c.b16 %v729, %v728
      %v786 = vpack.c.b16 %v731, %v730
      %v787 = vpack.c.b16 %v733, %v732
      %v788 = vpack.c.b16 %v735, %v734
      %v789 = vpack.c.b16 %v737, %v736
      %v790 = vpack.c.b16 %v739, %v738
      %v791 = vpack.c.b16 %v741, %v740
      %v792 = vpack.c.b16 %v743, %v742
      %v793 = vpack.c.b16 %v745, %v744
      %v794 = vpack.c.b16 %v747, %v746
      %v795 = vpack.c.b16 %v749, %v748
      %v796 = vpack.c.b16 %v751, %v750
      %v797 = vpack.c.b16 %v753, %v752
      %v798 = vpack.c.b16 %v755, %v754
      %v799 = vpack.c.b16 %v757, %v756
      %v800 = vpack.c.b16 %v759, %v758
      %v801 = vpack.c.b16 %v761, %v760
      %v802 = vpack.c.b16 %v763, %v762
      %v803 = vpack.c.b16 %v765, %v764
      %v804 = vpack.c.b16 %v767, %v766
      %v805 = vpack.c.b16 %v769, %v768
      %v806 = vpack.c.b16 %v771, %v770
      %v807 = vpack.c.b16 %v773, %v772
      %v808 = vpack.c.b16 %v775, %v774
      %v809 = vpack.c.b16 %v777, %v776
      %842 = vmatprep.subr.bf16.mxu0 0
      %843 = vmatpush1.bf16.msra.mxu0 %v778
      %844 = vmatprep.subr.bf16.mxu0 0
      %845 = vmatpush1.bf16.msra.mxu0 %v779
      %846 = vmatprep.subr.bf16.mxu0 0
      %847 = vmatpush1.bf16.msra.mxu0 %v780
      %848 = vmatprep.subr.bf16.mxu0 0
      %849 = vmatpush1.bf16.msra.mxu0 %v781
      %850 = vmatprep.subr.bf16.mxu0 0
      %851 = vmatpush1.bf16.msra.mxu0 %v782
      %852 = vmatprep.subr.bf16.mxu0 0
      %853 = vmatpush1.bf16.msra.mxu0 %v783
      %854 = vmatprep.subr.bf16.mxu0 0
      %855 = vmatpush1.bf16.msra.mxu0 %v784
      %856 = vmatprep.subr.bf16.mxu0 0
      %857 = vmatpush1.bf16.msra.mxu0 %v785
      %858 = vmatprep.subr.bf16.mxu0 0
      %859 = vmatpush1.bf16.msra.mxu0 %v786
      %860 = vmatprep.subr.bf16.mxu0 0
      %861 = vmatpush1.bf16.msra.mxu0 %v787
      %862 = vmatprep.subr.bf16.mxu0 0
      %863 = vmatpush1.bf16.msra.mxu0 %v788
      %864 = vmatprep.subr.bf16.mxu0 0
      %865 = vmatpush1.bf16.msra.mxu0 %v789
      %866 = vmatprep.subr.bf16.mxu0 0
      %867 = vmatpush1.bf16.msra.mxu0 %v790
      %868 = vmatprep.subr.bf16.mxu0 0
      %869 = vmatpush1.bf16.msra.mxu0 %v791
      %870 = vmatprep.subr.bf16.mxu0 0
      %871 = vmatpush1.bf16.msra.mxu0 %v792
      %872 = vmatprep.subr.bf16.mxu0 0
      %873 = vmatpush1.bf16.msra.mxu0 %v793
      %874 = vmatprep.mubr.bf16.mxu0 %v210
      %875 = vmatmul.mubr.bf16.gmra.mrb[0].mxu0 %v209
      %v876 = vpop.f32.mrb[0].mxu0
      %v877 = vadd.f32 %v645, %v876
      %v878 = vpop.f32.mrb[0].mxu0
      %v879 = vpop.f32.mrb[0].mxu0
      %v880 = vpop.f32.mrb[0].mxu0
      %881 = vdwg.mxu0
      %882 = vmatprep.subr.bf16.mxu0 0
      %883 = vmatpush1.bf16.msra.mxu0 %v794
      %884 = vmatprep.subr.bf16.mxu0 0
      %885 = vmatpush1.bf16.msra.mxu0 %v795
      %886 = vmatprep.subr.bf16.mxu0 0
      %887 = vmatpush1.bf16.msra.mxu0 %v796
      %888 = vmatprep.subr.bf16.mxu0 0
      %889 = vmatpush1.bf16.msra.mxu0 %v797
      %890 = vmatprep.subr.bf16.mxu0 0
      %891 = vmatpush1.bf16.msra.mxu0 %v798
      %892 = vmatprep.subr.bf16.mxu0 0
      %893 = vmatpush1.bf16.msra.mxu0 %v799
      %894 = vmatprep.subr.bf16.mxu0 0
      %895 = vmatpush1.bf16.msra.mxu0 %v800
      %896 = vmatprep.subr.bf16.mxu0 0
      %897 = vmatpush1.bf16.msra.mxu0 %v801
      %898 = vmatprep.subr.bf16.mxu0 0
      %899 = vmatpush1.bf16.msra.mxu0 %v802
      %900 = vmatprep.subr.bf16.mxu0 0
      %901 = vmatpush1.bf16.msra.mxu0 %v803
      %902 = vmatprep.subr.bf16.mxu0 0
      %903 = vmatpush1.bf16.msra.mxu0 %v804
      %904 = vmatprep.subr.bf16.mxu0 0
      %905 = vmatpush1.bf16.msra.mxu0 %v805
      %906 = vmatprep.subr.bf16.mxu0 0
      %907 = vmatpush1.bf16.msra.mxu0 %v806
      %908 = vmatprep.subr.bf16.mxu0 0
      %909 = vmatpush1.bf16.msra.mxu0 %v807
      %910 = vmatprep.subr.bf16.mxu0 0
      %911 = vmatpush1.bf16.msra.mxu0 %v808
      %912 = vmatprep.subr.bf16.mxu0 0
      %913 = vmatpush1.bf16.msra.mxu0 %v809
      %914 = vmatprep.mubr.bf16.mxu0 %v212
      %915 = vmatmul.mubr.bf16.gmra.mrb[0].mxu0 %v211
      %v916 = vpop.f32.mrb[0].mxu0
      %v917 = vadd.f32 %v877, %v916
      %v918 = vpop.f32.mrb[0].mxu0
      %v919 = vpop.f32.mrb[0].mxu0
      %v920 = vpop.f32.mrb[0].mxu0
      %921 = vdwg.mxu0
      %s922 = scalar_lea.vmem %s1, 512
      %v923 = vld [vmem:[%s922] sm:$0xf]
      %v924 = vld [vmem:[%s922 + $0x4] sm:$0xf]
      %v925 = vld [vmem:[%s922 + $0x8] sm:$0xf]
      %v926 = vld [vmem:[%s922 + $0xc] sm:$0xf]
      %v927 = vld [vmem:[%s922 + $0x10] sm:$0xf]
      %v928 = vld [vmem:[%s922 + $0x14] sm:$0xf]
      %v929 = vld [vmem:[%s922 + $0x18] sm:$0xf]
      %v930 = vld [vmem:[%s922 + $0x1c] sm:$0xf]
      %v931 = vld [vmem:[%s922 + $0x20] sm:$0xf]
      %v932 = vld [vmem:[%s922 + $0x24] sm:$0xf]
      %v933 = vld [vmem:[%s922 + $0x28] sm:$0xf]
      %v934 = vld [vmem:[%s922 + $0x2c] sm:$0xf]
      %v935 = vld [vmem:[%s922 + $0x30] sm:$0xf]
      %v936 = vld [vmem:[%s922 + $0x34] sm:$0xf]
      %v937 = vld [vmem:[%s922 + $0x38] sm:$0xf]
      %v938 = vld [vmem:[%s922 + $0x3c] sm:$0xf]
      %v939 = vld [vmem:[%s922 + $0x40] sm:$0xf]
      %v940 = vld [vmem:[%s922 + $0x44] sm:$0xf]
      %v941 = vld [vmem:[%s922 + $0x48] sm:$0xf]
      %v942 = vld [vmem:[%s922 + $0x4c] sm:$0xf]
      %v943 = vld [vmem:[%s922 + $0x50] sm:$0xf]
      %v944 = vld [vmem:[%s922 + $0x54] sm:$0xf]
      %v945 = vld [vmem:[%s922 + $0x58] sm:$0xf]
      %v946 = vld [vmem:[%s922 + $0x5c] sm:$0xf]
      %v947 = vld [vmem:[%s922 + $0x60] sm:$0xf]
      %v948 = vld [vmem:[%s922 + $0x64] sm:$0xf]
      %v949 = vld [vmem:[%s922 + $0x68] sm:$0xf]
      %v950 = vld [vmem:[%s922 + $0x6c] sm:$0xf]
      %v951 = vld [vmem:[%s922 + $0x70] sm:$0xf]
      %v952 = vld [vmem:[%s922 + $0x74] sm:$0xf]
      %v953 = vld [vmem:[%s922 + $0x78] sm:$0xf]
      %v954 = vld [vmem:[%s922 + $0x7c] sm:$0xf]
      %v955 = vld [vmem:[%s922 + $0x80] sm:$0xf]
      %v956 = vld [vmem:[%s922 + $0x84] sm:$0xf]
      %v957 = vld [vmem:[%s922 + $0x88] sm:$0xf]
      %v958 = vld [vmem:[%s922 + $0x8c] sm:$0xf]
      %v959 = vld [vmem:[%s922 + $0x90] sm:$0xf]
      %v960 = vld [vmem:[%s922 + $0x94] sm:$0xf]
      %v961 = vld [vmem:[%s922 + $0x98] sm:$0xf]
      %v962 = vld [vmem:[%s922 + $0x9c] sm:$0xf]
      %v963 = vld [vmem:[%s922 + $0xa0] sm:$0xf]
      %v964 = vld [vmem:[%s922 + $0xa4] sm:$0xf]
      %v965 = vld [vmem:[%s922 + $0xa8] sm:$0xf]
      %v966 = vld [vmem:[%s922 + $0xac] sm:$0xf]
      %v967 = vld [vmem:[%s922 + $0xb0] sm:$0xf]
      %v968 = vld [vmem:[%s922 + $0xb4] sm:$0xf]
      %v969 = vld [vmem:[%s922 + $0xb8] sm:$0xf]
      %v970 = vld [vmem:[%s922 + $0xbc] sm:$0xf]
      %v971 = vld [vmem:[%s922 + $0xc0] sm:$0xf]
      %v972 = vld [vmem:[%s922 + $0xc4] sm:$0xf]
      %v973 = vld [vmem:[%s922 + $0xc8] sm:$0xf]
      %v974 = vld [vmem:[%s922 + $0xcc] sm:$0xf]
      %v975 = vld [vmem:[%s922 + $0xd0] sm:$0xf]
      %v976 = vld [vmem:[%s922 + $0xd4] sm:$0xf]
      %v977 = vld [vmem:[%s922 + $0xd8] sm:$0xf]
      %v978 = vld [vmem:[%s922 + $0xdc] sm:$0xf]
      %v979 = vld [vmem:[%s922 + $0xe0] sm:$0xf]
      %v980 = vld [vmem:[%s922 + $0xe4] sm:$0xf]
      %v981 = vld [vmem:[%s922 + $0xe8] sm:$0xf]
      %v982 = vld [vmem:[%s922 + $0xec] sm:$0xf]
      %v983 = vld [vmem:[%s922 + $0xf0] sm:$0xf]
      %v984 = vld [vmem:[%s922 + $0xf4] sm:$0xf]
      %v985 = vld [vmem:[%s922 + $0xf8] sm:$0xf]
      %v986 = vld [vmem:[%s922 + $0xfc] sm:$0xf]
      %v991 = vrot.slane %v277, 1
      %v992 = vrot.slane %v278, 1
      %v993 = vrot.slane %v279, 1
      %v994 = vrot.slane %v280, 1
      %v1063 = vunpack.c.l.b16 %v923
      %v1064 = vunpack.c.l.b16 %v924
      %v1065 = vunpack.c.l.b16 %v925
      %v1066 = vunpack.c.l.b16 %v926
      %v1067 = vunpack.c.l.b16 %v927
      %v1068 = vunpack.c.l.b16 %v928
      %v1069 = vunpack.c.l.b16 %v929
      %v1070 = vunpack.c.l.b16 %v930
      %v1071 = vunpack.c.l.b16 %v931
      %v1072 = vunpack.c.l.b16 %v932
      %v1073 = vunpack.c.l.b16 %v933
      %v1074 = vunpack.c.l.b16 %v934
      %v1075 = vunpack.c.l.b16 %v935
      %v1076 = vunpack.c.l.b16 %v936
      %v1077 = vunpack.c.l.b16 %v937
      %v1078 = vunpack.c.l.b16 %v938
      %v1079 = vunpack.c.l.b16 %v939
      %v1080 = vunpack.c.l.b16 %v940
      %v1081 = vunpack.c.l.b16 %v941
      %v1082 = vunpack.c.l.b16 %v942
      %v1083 = vunpack.c.l.b16 %v943
      %v1084 = vunpack.c.l.b16 %v944
      %v1085 = vunpack.c.l.b16 %v945
      %v1086 = vunpack.c.l.b16 %v946
      %v1087 = vunpack.c.l.b16 %v947
      %v1088 = vunpack.c.l.b16 %v948
      %v1089 = vunpack.c.l.b16 %v949
      %v1090 = vunpack.c.l.b16 %v950
      %v1091 = vunpack.c.l.b16 %v951
      %v1092 = vunpack.c.l.b16 %v952
      %v1093 = vunpack.c.l.b16 %v953
      %v1094 = vunpack.c.l.b16 %v954
      %v1095 = vunpack.c.l.b16 %v955
      %v1096 = vunpack.c.l.b16 %v956
      %v1097 = vunpack.c.l.b16 %v957
      %v1098 = vunpack.c.l.b16 %v958
      %v1099 = vunpack.c.l.b16 %v959
      %v1100 = vunpack.c.l.b16 %v960
      %v1101 = vunpack.c.l.b16 %v961
      %v1102 = vunpack.c.l.b16 %v962
      %v1103 = vunpack.c.l.b16 %v963
      %v1104 = vunpack.c.l.b16 %v964
      %v1105 = vunpack.c.l.b16 %v965
      %v1106 = vunpack.c.l.b16 %v966
      %v1107 = vunpack.c.l.b16 %v967
      %v1108 = vunpack.c.l.b16 %v968
      %v1109 = vunpack.c.l.b16 %v969
      %v1110 = vunpack.c.l.b16 %v970
      %v1111 = vunpack.c.l.b16 %v971
      %v1112 = vunpack.c.l.b16 %v972
      %v1113 = vunpack.c.l.b16 %v973
      %v1114 = vunpack.c.l.b16 %v974
      %v1115 = vunpack.c.l.b16 %v975
      %v1116 = vunpack.c.l.b16 %v976
      %v1117 = vunpack.c.l.b16 %v977
      %v1118 = vunpack.c.l.b16 %v978
      %v1119 = vunpack.c.l.b16 %v979
      %v1120 = vunpack.c.l.b16 %v980
      %v1121 = vunpack.c.l.b16 %v981
      %v1122 = vunpack.c.l.b16 %v982
      %v1123 = vunpack.c.l.b16 %v983
      %v1124 = vunpack.c.l.b16 %v984
      %v1125 = vunpack.c.l.b16 %v985
      %v1126 = vunpack.c.l.b16 %v986
      %v1127 = vpack.c.b16 %v1064, %v1063
      %v1128 = vpack.c.b16 %v1066, %v1065
      %v1129 = vpack.c.b16 %v1068, %v1067
      %v1130 = vpack.c.b16 %v1070, %v1069
      %v1131 = vpack.c.b16 %v1072, %v1071
      %v1132 = vpack.c.b16 %v1074, %v1073
      %v1133 = vpack.c.b16 %v1076, %v1075
      %v1134 = vpack.c.b16 %v1078, %v1077
      %v1135 = vpack.c.b16 %v1080, %v1079
      %v1136 = vpack.c.b16 %v1082, %v1081
      %v1137 = vpack.c.b16 %v1084, %v1083
      %v1138 = vpack.c.b16 %v1086, %v1085
      %v1139 = vpack.c.b16 %v1088, %v1087
      %v1140 = vpack.c.b16 %v1090, %v1089
      %v1141 = vpack.c.b16 %v1092, %v1091
      %v1142 = vpack.c.b16 %v1094, %v1093
      %v1143 = vpack.c.b16 %v1096, %v1095
      %v1144 = vpack.c.b16 %v1098, %v1097
      %v1145 = vpack.c.b16 %v1100, %v1099
      %v1146 = vpack.c.b16 %v1102, %v1101
      %v1147 = vpack.c.b16 %v1104, %v1103
      %v1148 = vpack.c.b16 %v1106, %v1105
      %v1149 = vpack.c.b16 %v1108, %v1107
      %v1150 = vpack.c.b16 %v1110, %v1109
      %v1151 = vpack.c.b16 %v1112, %v1111
      %v1152 = vpack.c.b16 %v1114, %v1113
      %v1153 = vpack.c.b16 %v1116, %v1115
      %v1154 = vpack.c.b16 %v1118, %v1117
      %v1155 = vpack.c.b16 %v1120, %v1119
      %v1156 = vpack.c.b16 %v1122, %v1121
      %v1157 = vpack.c.b16 %v1124, %v1123
      %v1158 = vpack.c.b16 %v1126, %v1125
      %1191 = vmatprep.subr.bf16.mxu0 0
      %1192 = vmatpush1.bf16.msra.mxu0 %v1127
      %1193 = vmatprep.subr.bf16.mxu0 0
      %1194 = vmatpush1.bf16.msra.mxu0 %v1128
      %1195 = vmatprep.subr.bf16.mxu0 0
      %1196 = vmatpush1.bf16.msra.mxu0 %v1129
      %1197 = vmatprep.subr.bf16.mxu0 0
      %1198 = vmatpush1.bf16.msra.mxu0 %v1130
      %1199 = vmatprep.subr.bf16.mxu0 0
      %1200 = vmatpush1.bf16.msra.mxu0 %v1131
      %1201 = vmatprep.subr.bf16.mxu0 0
      %1202 = vmatpush1.bf16.msra.mxu0 %v1132
      %1203 = vmatprep.subr.bf16.mxu0 0
      %1204 = vmatpush1.bf16.msra.mxu0 %v1133
      %1205 = vmatprep.subr.bf16.mxu0 0
      %1206 = vmatpush1.bf16.msra.mxu0 %v1134
      %1207 = vmatprep.subr.bf16.mxu0 0
      %1208 = vmatpush1.bf16.msra.mxu0 %v1135
      %1209 = vmatprep.subr.bf16.mxu0 0
      %1210 = vmatpush1.bf16.msra.mxu0 %v1136
      %1211 = vmatprep.subr.bf16.mxu0 0
      %1212 = vmatpush1.bf16.msra.mxu0 %v1137
      %1213 = vmatprep.subr.bf16.mxu0 0
      %1214 = vmatpush1.bf16.msra.mxu0 %v1138
      %1215 = vmatprep.subr.bf16.mxu0 0
      %1216 = vmatpush1.bf16.msra.mxu0 %v1139
      %1217 = vmatprep.subr.bf16.mxu0 0
      %1218 = vmatpush1.bf16.msra.mxu0 %v1140
      %1219 = vmatprep.subr.bf16.mxu0 0
      %1220 = vmatpush1.bf16.msra.mxu0 %v1141
      %1221 = vmatprep.subr.bf16.mxu0 0
      %1222 = vmatpush1.bf16.msra.mxu0 %v1142
      %1223 = vmatprep.mubr.bf16.mxu0 %v992
      %1224 = vmatmul.mubr.bf16.gmra.mrb[0].mxu0 %v991
      %v1225 = vpop.f32.mrb[0].mxu0
      %v1226 = vadd.f32 0.0, %v1225
      %v1227 = vpop.f32.mrb[0].mxu0
      %v1228 = vpop.f32.mrb[0].mxu0
      %v1229 = vpop.f32.mrb[0].mxu0
      %1230 = vdwg.mxu0
      %1231 = vmatprep.subr.bf16.mxu0 0
      %1232 = vmatpush1.bf16.msra.mxu0 %v1143
      %1233 = vmatprep.subr.bf16.mxu0 0
      %1234 = vmatpush1.bf16.msra.mxu0 %v1144
      %1235 = vmatprep.subr.bf16.mxu0 0
      %1236 = vmatpush1.bf16.msra.mxu0 %v1145
      %1237 = vmatprep.subr.bf16.mxu0 0
      %1238 = vmatpush1.bf16.msra.mxu0 %v1146
      %1239 = vmatprep.subr.bf16.mxu0 0
      %1240 = vmatpush1.bf16.msra.mxu0 %v1147
      %1241 = vmatprep.subr.bf16.mxu0 0
      %1242 = vmatpush1.bf16.msra.mxu0 %v1148
      %1243 = vmatprep.subr.bf16.mxu0 0
      %1244 = vmatpush1.bf16.msra.mxu0 %v1149
      %1245 = vmatprep.subr.bf16.mxu0 0
      %1246 = vmatpush1.bf16.msra.mxu0 %v1150
      %1247 = vmatprep.subr.bf16.mxu0 0
      %1248 = vmatpush1.bf16.msra.mxu0 %v1151
      %1249 = vmatprep.subr.bf16.mxu0 0
      %1250 = vmatpush1.bf16.msra.mxu0 %v1152
      %1251 = vmatprep.subr.bf16.mxu0 0
      %1252 = vmatpush1.bf16.msra.mxu0 %v1153
      %1253 = vmatprep.subr.bf16.mxu0 0
      %1254 = vmatpush1.bf16.msra.mxu0 %v1154
      %1255 = vmatprep.subr.bf16.mxu0 0
      %1256 = vmatpush1.bf16.msra.mxu0 %v1155
      %1257 = vmatprep.subr.bf16.mxu0 0
      %1258 = vmatpush1.bf16.msra.mxu0 %v1156
      %1259 = vmatprep.subr.bf16.mxu0 0
      %1260 = vmatpush1.bf16.msra.mxu0 %v1157
      %1261 = vmatprep.subr.bf16.mxu0 0
      %1262 = vmatpush1.bf16.msra.mxu0 %v1158
      %1263 = vmatprep.mubr.bf16.mxu0 %v994
      %1264 = vmatmul.mubr.bf16.gmra.mrb[0].mxu0 %v993
      %v1265 = vpop.f32.mrb[0].mxu0
      %v1266 = vadd.f32 %v1226, %v1265
      %v1267 = vpop.f32.mrb[0].mxu0
      %v1268 = vpop.f32.mrb[0].mxu0
      %v1269 = vpop.f32.mrb[0].mxu0
      %1270 = vdwg.mxu0
      %v1271 = vadd.f32 %v917, %v1266
      %s1272 = scalar_lea.vmem %s1, 768
      %v1273 = vld [vmem:[%s1272] sm:$0xf]
      %v1274 = vld [vmem:[%s1272 + $0x4] sm:$0xf]
      %v1275 = vld [vmem:[%s1272 + $0x8] sm:$0xf]
      %v1276 = vld [vmem:[%s1272 + $0xc] sm:$0xf]
      %v1277 = vld [vmem:[%s1272 + $0x10] sm:$0xf]
      %v1278 = vld [vmem:[%s1272 + $0x14] sm:$0xf]
      %v1279 = vld [vmem:[%s1272 + $0x18] sm:$0xf]
      %v1280 = vld [vmem:[%s1272 + $0x1c] sm:$0xf]
      %v1281 = vld [vmem:[%s1272 + $0x20] sm:$0xf]
      %v1282 = vld [vmem:[%s1272 + $0x24] sm:$0xf]
      %v1283 = vld [vmem:[%s1272 + $0x28] sm:$0xf]
      %v1284 = vld [vmem:[%s1272 + $0x2c] sm:$0xf]
      %v1285 = vld [vmem:[%s1272 + $0x30] sm:$0xf]
      %v1286 = vld [vmem:[%s1272 + $0x34] sm:$0xf]
      %v1287 = vld [vmem:[%s1272 + $0x38] sm:$0xf]
      %v1288 = vld [vmem:[%s1272 + $0x3c] sm:$0xf]
      %v1289 = vld [vmem:[%s1272 + $0x40] sm:$0xf]
      %v1290 = vld [vmem:[%s1272 + $0x44] sm:$0xf]
      %v1291 = vld [vmem:[%s1272 + $0x48] sm:$0xf]
      %v1292 = vld [vmem:[%s1272 + $0x4c] sm:$0xf]
      %v1293 = vld [vmem:[%s1272 + $0x50] sm:$0xf]
      %v1294 = vld [vmem:[%s1272 + $0x54] sm:$0xf]
      %v1295 = vld [vmem:[%s1272 + $0x58] sm:$0xf]
      %v1296 = vld [vmem:[%s1272 + $0x5c] sm:$0xf]
      %v1297 = vld [vmem:[%s1272 + $0x60] sm:$0xf]
      %v1298 = vld [vmem:[%s1272 + $0x64] sm:$0xf]
      %v1299 = vld [vmem:[%s1272 + $0x68] sm:$0xf]
      %v1300 = vld [vmem:[%s1272 + $0x6c] sm:$0xf]
      %v1301 = vld [vmem:[%s1272 + $0x70] sm:$0xf]
      %v1302 = vld [vmem:[%s1272 + $0x74] sm:$0xf]
      %v1303 = vld [vmem:[%s1272 + $0x78] sm:$0xf]
      %v1304 = vld [vmem:[%s1272 + $0x7c] sm:$0xf]
      %v1305 = vld [vmem:[%s1272 + $0x80] sm:$0xf]
      %v1306 = vld [vmem:[%s1272 + $0x84] sm:$0xf]
      %v1307 = vld [vmem:[%s1272 + $0x88] sm:$0xf]
      %v1308 = vld [vmem:[%s1272 + $0x8c] sm:$0xf]
      %v1309 = vld [vmem:[%s1272 + $0x90] sm:$0xf]
      %v1310 = vld [vmem:[%s1272 + $0x94] sm:$0xf]
      %v1311 = vld [vmem:[%s1272 + $0x98] sm:$0xf]
      %v1312 = vld [vmem:[%s1272 + $0x9c] sm:$0xf]
      %v1313 = vld [vmem:[%s1272 + $0xa0] sm:$0xf]
      %v1314 = vld [vmem:[%s1272 + $0xa4] sm:$0xf]
      %v1315 = vld [vmem:[%s1272 + $0xa8] sm:$0xf]
      %v1316 = vld [vmem:[%s1272 + $0xac] sm:$0xf]
      %v1317 = vld [vmem:[%s1272 + $0xb0] sm:$0xf]
      %v1318 = vld [vmem:[%s1272 + $0xb4] sm:$0xf]
      %v1319 = vld [vmem:[%s1272 + $0xb8] sm:$0xf]
      %v1320 = vld [vmem:[%s1272 + $0xbc] sm:$0xf]
      %v1321 = vld [vmem:[%s1272 + $0xc0] sm:$0xf]
      %v1322 = vld [vmem:[%s1272 + $0xc4] sm:$0xf]
      %v1323 = vld [vmem:[%s1272 + $0xc8] sm:$0xf]
      %v1324 = vld [vmem:[%s1272 + $0xcc] sm:$0xf]
      %v1325 = vld [vmem:[%s1272 + $0xd0] sm:$0xf]
      %v1326 = vld [vmem:[%s1272 + $0xd4] sm:$0xf]
      %v1327 = vld [vmem:[%s1272 + $0xd8] sm:$0xf]
      %v1328 = vld [vmem:[%s1272 + $0xdc] sm:$0xf]
      %v1329 = vld [vmem:[%s1272 + $0xe0] sm:$0xf]
      %v1330 = vld [vmem:[%s1272 + $0xe4] sm:$0xf]
      %v1331 = vld [vmem:[%s1272 + $0xe8] sm:$0xf]
      %v1332 = vld [vmem:[%s1272 + $0xec] sm:$0xf]
      %v1333 = vld [vmem:[%s1272 + $0xf0] sm:$0xf]
      %v1334 = vld [vmem:[%s1272 + $0xf4] sm:$0xf]
      %v1335 = vld [vmem:[%s1272 + $0xf8] sm:$0xf]
      %v1336 = vld [vmem:[%s1272 + $0xfc] sm:$0xf]
      %v1337 = vrot.slane %v277, 2
      %v1338 = vrot.slane %v278, 2
      %v1339 = vrot.slane %v279, 2
      %v1340 = vrot.slane %v280, 2
      %v1409 = vunpack.c.l.b16 %v1273
      %v1410 = vunpack.c.l.b16 %v1274
      %v1411 = vunpack.c.l.b16 %v1275
      %v1412 = vunpack.c.l.b16 %v1276
      %v1413 = vunpack.c.l.b16 %v1277
      %v1414 = vunpack.c.l.b16 %v1278
      %v1415 = vunpack.c.l.b16 %v1279
      %v1416 = vunpack.c.l.b16 %v1280
      %v1417 = vunpack.c.l.b16 %v1281
      %v1418 = vunpack.c.l.b16 %v1282
      %v1419 = vunpack.c.l.b16 %v1283
      %v1420 = vunpack.c.l.b16 %v1284
      %v1421 = vunpack.c.l.b16 %v1285
      %v1422 = vunpack.c.l.b16 %v1286
      %v1423 = vunpack.c.l.b16 %v1287
      %v1424 = vunpack.c.l.b16 %v1288
      %v1425 = vunpack.c.l.b16 %v1289
      %v1426 = vunpack.c.l.b16 %v1290
      %v1427 = vunpack.c.l.b16 %v1291
      %v1428 = vunpack.c.l.b16 %v1292
      %v1429 = vunpack.c.l.b16 %v1293
      %v1430 = vunpack.c.l.b16 %v1294
      %v1431 = vunpack.c.l.b16 %v1295
      %v1432 = vunpack.c.l.b16 %v1296
      %v1433 = vunpack.c.l.b16 %v1297
      %v1434 = vunpack.c.l.b16 %v1298
      %v1435 = vunpack.c.l.b16 %v1299
      %v1436 = vunpack.c.l.b16 %v1300
      %v1437 = vunpack.c.l.b16 %v1301
      %v1438 = vunpack.c.l.b16 %v1302
      %v1439 = vunpack.c.l.b16 %v1303
      %v1440 = vunpack.c.l.b16 %v1304
      %v1441 = vunpack.c.l.b16 %v1305
      %v1442 = vunpack.c.l.b16 %v1306
      %v1443 = vunpack.c.l.b16 %v1307
      %v1444 = vunpack.c.l.b16 %v1308
      %v1445 = vunpack.c.l.b16 %v1309
      %v1446 = vunpack.c.l.b16 %v1310
      %v1447 = vunpack.c.l.b16 %v1311
      %v1448 = vunpack.c.l.b16 %v1312
      %v1449 = vunpack.c.l.b16 %v1313
      %v1450 = vunpack.c.l.b16 %v1314
      %v1451 = vunpack.c.l.b16 %v1315
      %v1452 = vunpack.c.l.b16 %v1316
      %v1453 = vunpack.c.l.b16 %v1317
      %v1454 = vunpack.c.l.b16 %v1318
      %v1455 = vunpack.c.l.b16 %v1319
      %v1456 = vunpack.c.l.b16 %v1320
      %v1457 = vunpack.c.l.b16 %v1321
      %v1458 = vunpack.c.l.b16 %v1322
      %v1459 = vunpack.c.l.b16 %v1323
      %v1460 = vunpack.c.l.b16 %v1324
      %v1461 = vunpack.c.l.b16 %v1325
      %v1462 = vunpack.c.l.b16 %v1326
      %v1463 = vunpack.c.l.b16 %v1327
      %v1464 = vunpack.c.l.b16 %v1328
      %v1465 = vunpack.c.l.b16 %v1329
      %v1466 = vunpack.c.l.b16 %v1330
      %v1467 = vunpack.c.l.b16 %v1331
      %v1468 = vunpack.c.l.b16 %v1332
      %v1469 = vunpack.c.l.b16 %v1333
      %v1470 = vunpack.c.l.b16 %v1334
      %v1471 = vunpack.c.l.b16 %v1335
      %v1472 = vunpack.c.l.b16 %v1336
      %v1473 = vpack.c.b16 %v1410, %v1409
      %v1474 = vpack.c.b16 %v1412, %v1411
      %v1475 = vpack.c.b16 %v1414, %v1413
      %v1476 = vpack.c.b16 %v1416, %v1415
      %v1477 = vpack.c.b16 %v1418, %v1417
      %v1478 = vpack.c.b16 %v1420, %v1419
      %v1479 = vpack.c.b16 %v1422, %v1421
      %v1480 = vpack.c.b16 %v1424, %v1423
      %v1481 = vpack.c.b16 %v1426, %v1425
      %v1482 = vpack.c.b16 %v1428, %v1427
      %v1483 = vpack.c.b16 %v1430, %v1429
      %v1484 = vpack.c.b16 %v1432, %v1431
      %v1485 = vpack.c.b16 %v1434, %v1433
      %v1486 = vpack.c.b16 %v1436, %v1435
      %v1487 = vpack.c.b16 %v1438, %v1437
      %v1488 = vpack.c.b16 %v1440, %v1439
      %v1489 = vpack.c.b16 %v1442, %v1441
      %v1490 = vpack.c.b16 %v1444, %v1443
      %v1491 = vpack.c.b16 %v1446, %v1445
      %v1492 = vpack.c.b16 %v1448, %v1447
      %v1493 = vpack.c.b16 %v1450, %v1449
      %v1494 = vpack.c.b16 %v1452, %v1451
      %v1495 = vpack.c.b16 %v1454, %v1453
      %v1496 = vpack.c.b16 %v1456, %v1455
      %v1497 = vpack.c.b16 %v1458, %v1457
      %v1498 = vpack.c.b16 %v1460, %v1459
      %v1499 = vpack.c.b16 %v1462, %v1461
      %v1500 = vpack.c.b16 %v1464, %v1463
      %v1501 = vpack.c.b16 %v1466, %v1465
      %v1502 = vpack.c.b16 %v1468, %v1467
      %v1503 = vpack.c.b16 %v1470, %v1469
      %v1504 = vpack.c.b16 %v1472, %v1471
      %1537 = vmatprep.subr.bf16.mxu0 0
      %1538 = vmatpush1.bf16.msra.mxu0 %v1473
      %1539 = vmatprep.subr.bf16.mxu0 0
      %1540 = vmatpush1.bf16.msra.mxu0 %v1474
      %1541 = vmatprep.subr.bf16.mxu0 0
      %1542 = vmatpush1.bf16.msra.mxu0 %v1475
      %1543 = vmatprep.subr.bf16.mxu0 0
      %1544 = vmatpush1.bf16.msra.mxu0 %v1476
      %1545 = vmatprep.subr.bf16.mxu0 0
      %1546 = vmatpush1.bf16.msra.mxu0 %v1477
      %1547 = vmatprep.subr.bf16.mxu0 0
      %1548 = vmatpush1.bf16.msra.mxu0 %v1478
      %1549 = vmatprep.subr.bf16.mxu0 0
      %1550 = vmatpush1.bf16.msra.mxu0 %v1479
      %1551 = vmatprep.subr.bf16.mxu0 0
      %1552 = vmatpush1.bf16.msra.mxu0 %v1480
      %1553 = vmatprep.subr.bf16.mxu0 0
      %1554 = vmatpush1.bf16.msra.mxu0 %v1481
      %1555 = vmatprep.subr.bf16.mxu0 0
      %1556 = vmatpush1.bf16.msra.mxu0 %v1482
      %1557 = vmatprep.subr.bf16.mxu0 0
      %1558 = vmatpush1.bf16.msra.mxu0 %v1483
      %1559 = vmatprep.subr.bf16.mxu0 0
      %1560 = vmatpush1.bf16.msra.mxu0 %v1484
      %1561 = vmatprep.subr.bf16.mxu0 0
      %1562 = vmatpush1.bf16.msra.mxu0 %v1485
      %1563 = vmatprep.subr.bf16.mxu0 0
      %1564 = vmatpush1.bf16.msra.mxu0 %v1486
      %1565 = vmatprep.subr.bf16.mxu0 0
      %1566 = vmatpush1.bf16.msra.mxu0 %v1487
      %1567 = vmatprep.subr.bf16.mxu0 0
      %1568 = vmatpush1.bf16.msra.mxu0 %v1488
      %1569 = vmatprep.mubr.bf16.mxu0 %v1338
      %1570 = vmatmul.mubr.bf16.gmra.mrb[0].mxu0 %v1337
      %v1571 = vpop.f32.mrb[0].mxu0
      %v1572 = vadd.f32 0.0, %v1571
      %v1573 = vpop.f32.mrb[0].mxu0
      %v1574 = vpop.f32.mrb[0].mxu0
      %v1575 = vpop.f32.mrb[0].mxu0
      %1576 = vdwg.mxu0
      %1577 = vmatprep.subr.bf16.mxu0 0
      %1578 = vmatpush1.bf16.msra.mxu0 %v1489
      %1579 = vmatprep.subr.bf16.mxu0 0
      %1580 = vmatpush1.bf16.msra.mxu0 %v1490
      %1581 = vmatprep.subr.bf16.mxu0 0
      %1582 = vmatpush1.bf16.msra.mxu0 %v1491
      %1583 = vmatprep.subr.bf16.mxu0 0
      %1584 = vmatpush1.bf16.msra.mxu0 %v1492
      %1585 = vmatprep.subr.bf16.mxu0 0
      %1586 = vmatpush1.bf16.msra.mxu0 %v1493
      %1587 = vmatprep.subr.bf16.mxu0 0
      %1588 = vmatpush1.bf16.msra.mxu0 %v1494
      %1589 = vmatprep.subr.bf16.mxu0 0
      %1590 = vmatpush1.bf16.msra.mxu0 %v1495
      %1591 = vmatprep.subr.bf16.mxu0 0
      %1592 = vmatpush1.bf16.msra.mxu0 %v1496
      %1593 = vmatprep.subr.bf16.mxu0 0
      %1594 = vmatpush1.bf16.msra.mxu0 %v1497
      %1595 = vmatprep.subr.bf16.mxu0 0
      %1596 = vmatpush1.bf16.msra.mxu0 %v1498
      %1597 = vmatprep.subr.bf16.mxu0 0
      %1598 = vmatpush1.bf16.msra.mxu0 %v1499
      %1599 = vmatprep.subr.bf16.mxu0 0
      %1600 = vmatpush1.bf16.msra.mxu0 %v1500
      %1601 = vmatprep.subr.bf16.mxu0 0
      %1602 = vmatpush1.bf16.msra.mxu0 %v1501
      %1603 = vmatprep.subr.bf16.mxu0 0
      %1604 = vmatpush1.bf16.msra.mxu0 %v1502
      %1605 = vmatprep.subr.bf16.mxu0 0
      %1606 = vmatpush1.bf16.msra.mxu0 %v1503
      %1607 = vmatprep.subr.bf16.mxu0 0
      %1608 = vmatpush1.bf16.msra.mxu0 %v1504
      %1609 = vmatprep.mubr.bf16.mxu0 %v1340
      %1610 = vmatmul.mubr.bf16.gmra.mrb[0].mxu0 %v1339
      %v1611 = vpop.f32.mrb[0].mxu0
      %v1612 = vadd.f32 %v1572, %v1611
      %v1613 = vpop.f32.mrb[0].mxu0
      %v1614 = vpop.f32.mrb[0].mxu0
      %v1615 = vpop.f32.mrb[0].mxu0
      %1616 = vdwg.mxu0
      %v1617 = vadd.f32 %v1271, %v1612
      %s1618 = scalar_lea.vmem %s1, 1024
      %v1619 = vld [vmem:[%s1618] sm:$0xf]
      %v1620 = vld [vmem:[%s1618 + $0x4] sm:$0xf]
      %v1621 = vld [vmem:[%s1618 + $0x8] sm:$0xf]
      %v1622 = vld [vmem:[%s1618 + $0xc] sm:$0xf]
      %v1623 = vld [vmem:[%s1618 + $0x10] sm:$0xf]
      %v1624 = vld [vmem:[%s1618 + $0x14] sm:$0xf]
      %v1625 = vld [vmem:[%s1618 + $0x18] sm:$0xf]
      %v1626 = vld [vmem:[%s1618 + $0x1c] sm:$0xf]
      %v1627 = vld [vmem:[%s1618 + $0x20] sm:$0xf]
      %v1628 = vld [vmem:[%s1618 + $0x24] sm:$0xf]
      %v1629 = vld [vmem:[%s1618 + $0x28] sm:$0xf]
      %v1630 = vld [vmem:[%s1618 + $0x2c] sm:$0xf]
      %v1631 = vld [vmem:[%s1618 + $0x30] sm:$0xf]
      %v1632 = vld [vmem:[%s1618 + $0x34] sm:$0xf]
      %v1633 = vld [vmem:[%s1618 + $0x38] sm:$0xf]
      %v1634 = vld [vmem:[%s1618 + $0x3c] sm:$0xf]
      %v1635 = vld [vmem:[%s1618 + $0x40] sm:$0xf]
      %v1636 = vld [vmem:[%s1618 + $0x44] sm:$0xf]
      %v1637 = vld [vmem:[%s1618 + $0x48] sm:$0xf]
      %v1638 = vld [vmem:[%s1618 + $0x4c] sm:$0xf]
      %v1639 = vld [vmem:[%s1618 + $0x50] sm:$0xf]
      %v1640 = vld [vmem:[%s1618 + $0x54] sm:$0xf]
      %v1641 = vld [vmem:[%s1618 + $0x58] sm:$0xf]
      %v1642 = vld [vmem:[%s1618 + $0x5c] sm:$0xf]
      %v1643 = vld [vmem:[%s1618 + $0x60] sm:$0xf]
      %v1644 = vld [vmem:[%s1618 + $0x64] sm:$0xf]
      %v1645 = vld [vmem:[%s1618 + $0x68] sm:$0xf]
      %v1646 = vld [vmem:[%s1618 + $0x6c] sm:$0xf]
      %v1647 = vld [vmem:[%s1618 + $0x70] sm:$0xf]
      %v1648 = vld [vmem:[%s1618 + $0x74] sm:$0xf]
      %v1649 = vld [vmem:[%s1618 + $0x78] sm:$0xf]
      %v1650 = vld [vmem:[%s1618 + $0x7c] sm:$0xf]
      %v1651 = vld [vmem:[%s1618 + $0x80] sm:$0xf]
      %v1652 = vld [vmem:[%s1618 + $0x84] sm:$0xf]
      %v1653 = vld [vmem:[%s1618 + $0x88] sm:$0xf]
      %v1654 = vld [vmem:[%s1618 + $0x8c] sm:$0xf]
      %v1655 = vld [vmem:[%s1618 + $0x90] sm:$0xf]
      %v1656 = vld [vmem:[%s1618 + $0x94] sm:$0xf]
      %v1657 = vld [vmem:[%s1618 + $0x98] sm:$0xf]
      %v1658 = vld [vmem:[%s1618 + $0x9c] sm:$0xf]
      %v1659 = vld [vmem:[%s1618 + $0xa0] sm:$0xf]
      %v1660 = vld [vmem:[%s1618 + $0xa4] sm:$0xf]
      %v1661 = vld [vmem:[%s1618 + $0xa8] sm:$0xf]
      %v1662 = vld [vmem:[%s1618 + $0xac] sm:$0xf]
      %v1663 = vld [vmem:[%s1618 + $0xb0] sm:$0xf]
      %v1664 = vld [vmem:[%s1618 + $0xb4] sm:$0xf]
      %v1665 = vld [vmem:[%s1618 + $0xb8] sm:$0xf]
      %v1666 = vld [vmem:[%s1618 + $0xbc] sm:$0xf]
      %v1667 = vld [vmem:[%s1618 + $0xc0] sm:$0xf]
      %v1668 = vld [vmem:[%s1618 + $0xc4] sm:$0xf]
      %v1669 = vld [vmem:[%s1618 + $0xc8] sm:$0xf]
      %v1670 = vld [vmem:[%s1618 + $0xcc] sm:$0xf]
      %v1671 = vld [vmem:[%s1618 + $0xd0] sm:$0xf]
      %v1672 = vld [vmem:[%s1618 + $0xd4] sm:$0xf]
      %v1673 = vld [vmem:[%s1618 + $0xd8] sm:$0xf]
      %v1674 = vld [vmem:[%s1618 + $0xdc] sm:$0xf]
      %v1675 = vld [vmem:[%s1618 + $0xe0] sm:$0xf]
      %v1676 = vld [vmem:[%s1618 + $0xe4] sm:$0xf]
      %v1677 = vld [vmem:[%s1618 + $0xe8] sm:$0xf]
      %v1678 = vld [vmem:[%s1618 + $0xec] sm:$0xf]
      %v1679 = vld [vmem:[%s1618 + $0xf0] sm:$0xf]
      %v1680 = vld [vmem:[%s1618 + $0xf4] sm:$0xf]
      %v1681 = vld [vmem:[%s1618 + $0xf8] sm:$0xf]
      %v1682 = vld [vmem:[%s1618 + $0xfc] sm:$0xf]
      %v1683 = vrot.slane %v347, 2
      %v1684 = vrot.slane %v349, 3
      %v1685 = vor.u32 %v1683, %v1684
      %v1686 = vrot.slane %v354, 2
      %v1687 = vrot.slane %v356, 3
      %v1688 = vor.u32 %v1686, %v1687
      %v1689 = vrot.slane %v361, 2
      %v1690 = vrot.slane %v363, 3
      %v1691 = vor.u32 %v1689, %v1690
      %v1692 = vrot.slane %v368, 2
      %v1693 = vrot.slane %v370, 3
      %v1694 = vor.u32 %v1692, %v1693
      %v1763 = vunpack.c.l.b16 %v1619
      %v1764 = vunpack.c.l.b16 %v1620
      %v1765 = vunpack.c.l.b16 %v1621
      %v1766 = vunpack.c.l.b16 %v1622
      %v1767 = vunpack.c.l.b16 %v1623
      %v1768 = vunpack.c.l.b16 %v1624
      %v1769 = vunpack.c.l.b16 %v1625
      %v1770 = vunpack.c.l.b16 %v1626
      %v1771 = vunpack.c.l.b16 %v1627
      %v1772 = vunpack.c.l.b16 %v1628
      %v1773 = vunpack.c.l.b16 %v1629
      %v1774 = vunpack.c.l.b16 %v1630
      %v1775 = vunpack.c.l.b16 %v1631
      %v1776 = vunpack.c.l.b16 %v1632
      %v1777 = vunpack.c.l.b16 %v1633
      %v1778 = vunpack.c.l.b16 %v1634
      %v1779 = vunpack.c.l.b16 %v1635
      %v1780 = vunpack.c.l.b16 %v1636
      %v1781 = vunpack.c.l.b16 %v1637
      %v1782 = vunpack.c.l.b16 %v1638
      %v1783 = vunpack.c.l.b16 %v1639
      %v1784 = vunpack.c.l.b16 %v1640
      %v1785 = vunpack.c.l.b16 %v1641
      %v1786 = vunpack.c.l.b16 %v1642
      %v1787 = vunpack.c.l.b16 %v1643
      %v1788 = vunpack.c.l.b16 %v1644
      %v1789 = vunpack.c.l.b16 %v1645
      %v1790 = vunpack.c.l.b16 %v1646
      %v1791 = vunpack.c.l.b16 %v1647
      %v1792 = vunpack.c.l.b16 %v1648
      %v1793 = vunpack.c.l.b16 %v1649
      %v1794 = vunpack.c.l.b16 %v1650
      %v1795 = vunpack.c.l.b16 %v1651
      %v1796 = vunpack.c.l.b16 %v1652
      %v1797 = vunpack.c.l.b16 %v1653
      %v1798 = vunpack.c.l.b16 %v1654
      %v1799 = vunpack.c.l.b16 %v1655
      %v1800 = vunpack.c.l.b16 %v1656
      %v1801 = vunpack.c.l.b16 %v1657
      %v1802 = vunpack.c.l.b16 %v1658
      %v1803 = vunpack.c.l.b16 %v1659
      %v1804 = vunpack.c.l.b16 %v1660
      %v1805 = vunpack.c.l.b16 %v1661
      %v1806 = vunpack.c.l.b16 %v1662
      %v1807 = vunpack.c.l.b16 %v1663
      %v1808 = vunpack.c.l.b16 %v1664
      %v1809 = vunpack.c.l.b16 %v1665
      %v1810 = vunpack.c.l.b16 %v1666
      %v1811 = vunpack.c.l.b16 %v1667
      %v1812 = vunpack.c.l.b16 %v1668
      %v1813 = vunpack.c.l.b16 %v1669
      %v1814 = vunpack.c.l.b16 %v1670
      %v1815 = vunpack.c.l.b16 %v1671
      %v1816 = vunpack.c.l.b16 %v1672
      %v1817 = vunpack.c.l.b16 %v1673
      %v1818 = vunpack.c.l.b16 %v1674
      %v1819 = vunpack.c.l.b16 %v1675
      %v1820 = vunpack.c.l.b16 %v1676
      %v1821 = vunpack.c.l.b16 %v1677
      %v1822 = vunpack.c.l.b16 %v1678
      %v1823 = vunpack.c.l.b16 %v1679
      %v1824 = vunpack.c.l.b16 %v1680
      %v1825 = vunpack.c.l.b16 %v1681
      %v1826 = vunpack.c.l.b16 %v1682
      %v1827 = vpack.c.b16 %v1764, %v1763
      %v1828 = vpack.c.b16 %v1766, %v1765
      %v1829 = vpack.c.b16 %v1768, %v1767
      %v1830 = vpack.c.b16 %v1770, %v1769
      %v1831 = vpack.c.b16 %v1772, %v1771
      %v1832 = vpack.c.b16 %v1774, %v1773
      %v1833 = vpack.c.b16 %v1776, %v1775
      %v1834 = vpack.c.b16 %v1778, %v1777
      %v1835 = vpack.c.b16 %v1780, %v1779
      %v1836 = vpack.c.b16 %v1782, %v1781
      %v1837 = vpack.c.b16 %v1784, %v1783
      %v1838 = vpack.c.b16 %v1786, %v1785
      %v1839 = vpack.c.b16 %v1788, %v1787
      %v1840 = vpack.c.b16 %v1790, %v1789
      %v1841 = vpack.c.b16 %v1792, %v1791
      %v1842 = vpack.c.b16 %v1794, %v1793
      %v1843 = vpack.c.b16 %v1796, %v1795
      %v1844 = vpack.c.b16 %v1798, %v1797
      %v1845 = vpack.c.b16 %v1800, %v1799
      %v1846 = vpack.c.b16 %v1802, %v1801
      %v1847 = vpack.c.b16 %v1804, %v1803
      %v1848 = vpack.c.b16 %v1806, %v1805
      %v1849 = vpack.c.b16 %v1808, %v1807
      %v1850 = vpack.c.b16 %v1810, %v1809
      %v1851 = vpack.c.b16 %v1812, %v1811
      %v1852 = vpack.c.b16 %v1814, %v1813
      %v1853 = vpack.c.b16 %v1816, %v1815
      %v1854 = vpack.c.b16 %v1818, %v1817
      %v1855 = vpack.c.b16 %v1820, %v1819
      %v1856 = vpack.c.b16 %v1822, %v1821
      %v1857 = vpack.c.b16 %v1824, %v1823
      %v1858 = vpack.c.b16 %v1826, %v1825
      %1891 = vmatprep.subr.bf16.mxu0 0
      %1892 = vmatpush1.bf16.msra.mxu0 %v1827
      %1893 = vmatprep.subr.bf16.mxu0 0
      %1894 = vmatpush1.bf16.msra.mxu0 %v1828
      %1895 = vmatprep.subr.bf16.mxu0 0
      %1896 = vmatpush1.bf16.msra.mxu0 %v1829
      %1897 = vmatprep.subr.bf16.mxu0 0
      %1898 = vmatpush1.bf16.msra.mxu0 %v1830
      %1899 = vmatprep.subr.bf16.mxu0 0
      %1900 = vmatpush1.bf16.msra.mxu0 %v1831
      %1901 = vmatprep.subr.bf16.mxu0 0
      %1902 = vmatpush1.bf16.msra.mxu0 %v1832
      %1903 = vmatprep.subr.bf16.mxu0 0
      %1904 = vmatpush1.bf16.msra.mxu0 %v1833
      %1905 = vmatprep.subr.bf16.mxu0 0
      %1906 = vmatpush1.bf16.msra.mxu0 %v1834
      %1907 = vmatprep.subr.bf16.mxu0 0
      %1908 = vmatpush1.bf16.msra.mxu0 %v1835
      %1909 = vmatprep.subr.bf16.mxu0 0
      %1910 = vmatpush1.bf16.msra.mxu0 %v1836
      %1911 = vmatprep.subr.bf16.mxu0 0
      %1912 = vmatpush1.bf16.msra.mxu0 %v1837
      %1913 = vmatprep.subr.bf16.mxu0 0
      %1914 = vmatpush1.bf16.msra.mxu0 %v1838
      %1915 = vmatprep.subr.bf16.mxu0 0
      %1916 = vmatpush1.bf16.msra.mxu0 %v1839
      %1917 = vmatprep.subr.bf16.mxu0 0
      %1918 = vmatpush1.bf16.msra.mxu0 %v1840
      %1919 = vmatprep.subr.bf16.mxu0 0
      %1920 = vmatpush1.bf16.msra.mxu0 %v1841
      %1921 = vmatprep.subr.bf16.mxu0 0
      %1922 = vmatpush1.bf16.msra.mxu0 %v1842
      %1923 = vmatprep.mubr.bf16.mxu0 %v1688
      %1924 = vmatmul.mubr.bf16.gmra.mrb[0].mxu0 %v1685
      %v1925 = vpop.f32.mrb[0].mxu0
      %v1926 = vadd.f32 0.0, %v1925
      %v1927 = vpop.f32.mrb[0].mxu0
      %v1928 = vpop.f32.mrb[0].mxu0
      %v1929 = vpop.f32.mrb[0].mxu0
      %1930 = vdwg.mxu0
      %1931 = vmatprep.subr.bf16.mxu0 0
      %1932 = vmatpush1.bf16.msra.mxu0 %v1843
      %1933 = vmatprep.subr.bf16.mxu0 0
      %1934 = vmatpush1.bf16.msra.mxu0 %v1844
      %1935 = vmatprep.subr.bf16.mxu0 0
      %1936 = vmatpush1.bf16.msra.mxu0 %v1845
      %1937 = vmatprep.subr.bf16.mxu0 0
      %1938 = vmatpush1.bf16.msra.mxu0 %v1846
      %1939 = vmatprep.subr.bf16.mxu0 0
      %1940 = vmatpush1.bf16.msra.mxu0 %v1847
      %1941 = vmatprep.subr.bf16.mxu0 0
      %1942 = vmatpush1.bf16.msra.mxu0 %v1848
      %1943 = vmatprep.subr.bf16.mxu0 0
      %1944 = vmatpush1.bf16.msra.mxu0 %v1849
      %1945 = vmatprep.subr.bf16.mxu0 0
      %1946 = vmatpush1.bf16.msra.mxu0 %v1850
      %1947 = vmatprep.subr.bf16.mxu0 0
      %1948 = vmatpush1.bf16.msra.mxu0 %v1851
      %1949 = vmatprep.subr.bf16.mxu0 0
      %1950 = vmatpush1.bf16.msra.mxu0 %v1852
      %1951 = vmatprep.subr.bf16.mxu0 0
      %1952 = vmatpush1.bf16.msra.mxu0 %v1853
      %1953 = vmatprep.subr.bf16.mxu0 0
      %1954 = vmatpush1.bf16.msra.mxu0 %v1854
      %1955 = vmatprep.subr.bf16.mxu0 0
      %1956 = vmatpush1.bf16.msra.mxu0 %v1855
      %1957 = vmatprep.subr.bf16.mxu0 0
      %1958 = vmatpush1.bf16.msra.mxu0 %v1856
      %1959 = vmatprep.subr.bf16.mxu0 0
      %1960 = vmatpush1.bf16.msra.mxu0 %v1857
      %1961 = vmatprep.subr.bf16.mxu0 0
      %1962 = vmatpush1.bf16.msra.mxu0 %v1858
      %1963 = vmatprep.mubr.bf16.mxu0 %v1694
      %1964 = vmatmul.mubr.bf16.gmra.mrb[0].mxu0 %v1691
      %v1965 = vpop.f32.mrb[0].mxu0
      %v1966 = vadd.f32 %v1926, %v1965
      %v1967 = vpop.f32.mrb[0].mxu0
      %v1968 = vpop.f32.mrb[0].mxu0
      %v1969 = vpop.f32.mrb[0].mxu0
      %1970 = vdwg.mxu0
      %v1971 = vadd.f32 %v1617, %v1966
      %s1972 = scalar_lea.vmem %s1, 1280
      %v1973 = vld [vmem:[%s1972] sm:$0xf]
      %v1974 = vld [vmem:[%s1972 + $0x4] sm:$0xf]
      %v1975 = vld [vmem:[%s1972 + $0x8] sm:$0xf]
      %v1976 = vld [vmem:[%s1972 + $0xc] sm:$0xf]
      %v1977 = vld [vmem:[%s1972 + $0x10] sm:$0xf]
      %v1978 = vld [vmem:[%s1972 + $0x14] sm:$0xf]
      %v1979 = vld [vmem:[%s1972 + $0x18] sm:$0xf]
      %v1980 = vld [vmem:[%s1972 + $0x1c] sm:$0xf]
      %v1981 = vld [vmem:[%s1972 + $0x20] sm:$0xf]
      %v1982 = vld [vmem:[%s1972 + $0x24] sm:$0xf]
      %v1983 = vld [vmem:[%s1972 + $0x28] sm:$0xf]
      %v1984 = vld [vmem:[%s1972 + $0x2c] sm:$0xf]
      %v1985 = vld [vmem:[%s1972 + $0x30] sm:$0xf]
      %v1986 = vld [vmem:[%s1972 + $0x34] sm:$0xf]
      %v1987 = vld [vmem:[%s1972 + $0x38] sm:$0xf]
      %v1988 = vld [vmem:[%s1972 + $0x3c] sm:$0xf]
      %v1989 = vld [vmem:[%s1972 + $0x40] sm:$0xf]
      %v1990 = vld [vmem:[%s1972 + $0x44] sm:$0xf]
      %v1991 = vld [vmem:[%s1972 + $0x48] sm:$0xf]
      %v1992 = vld [vmem:[%s1972 + $0x4c] sm:$0xf]
      %v1993 = vld [vmem:[%s1972 + $0x50] sm:$0xf]
      %v1994 = vld [vmem:[%s1972 + $0x54] sm:$0xf]
      %v1995 = vld [vmem:[%s1972 + $0x58] sm:$0xf]
      %v1996 = vld [vmem:[%s1972 + $0x5c] sm:$0xf]
      %v1997 = vld [vmem:[%s1972 + $0x60] sm:$0xf]
      %v1998 = vld [vmem:[%s1972 + $0x64] sm:$0xf]
      %v1999 = vld [vmem:[%s1972 + $0x68] sm:$0xf]
      %v2000 = vld [vmem:[%s1972 + $0x6c] sm:$0xf]
      %v2001 = vld [vmem:[%s1972 + $0x70] sm:$0xf]
      %v2002 = vld [vmem:[%s1972 + $0x74] sm:$0xf]
      %v2003 = vld [vmem:[%s1972 + $0x78] sm:$0xf]
      %v2004 = vld [vmem:[%s1972 + $0x7c] sm:$0xf]
      %v2005 = vld [vmem:[%s1972 + $0x80] sm:$0xf]
      %v2006 = vld [vmem:[%s1972 + $0x84] sm:$0xf]
      %v2007 = vld [vmem:[%s1972 + $0x88] sm:$0xf]
      %v2008 = vld [vmem:[%s1972 + $0x8c] sm:$0xf]
      %v2009 = vld [vmem:[%s1972 + $0x90] sm:$0xf]
      %v2010 = vld [vmem:[%s1972 + $0x94] sm:$0xf]
      %v2011 = vld [vmem:[%s1972 + $0x98] sm:$0xf]
      %v2012 = vld [vmem:[%s1972 + $0x9c] sm:$0xf]
      %v2013 = vld [vmem:[%s1972 + $0xa0] sm:$0xf]
      %v2014 = vld [vmem:[%s1972 + $0xa4] sm:$0xf]
      %v2015 = vld [vmem:[%s1972 + $0xa8] sm:$0xf]
      %v2016 = vld [vmem:[%s1972 + $0xac] sm:$0xf]
      %v2017 = vld [vmem:[%s1972 + $0xb0] sm:$0xf]
      %v2018 = vld [vmem:[%s1972 + $0xb4] sm:$0xf]
      %v2019 = vld [vmem:[%s1972 + $0xb8] sm:$0xf]
      %v2020 = vld [vmem:[%s1972 + $0xbc] sm:$0xf]
      %v2021 = vld [vmem:[%s1972 + $0xc0] sm:$0xf]
      %v2022 = vld [vmem:[%s1972 + $0xc4] sm:$0xf]
      %v2023 = vld [vmem:[%s1972 + $0xc8] sm:$0xf]
      %v2024 = vld [vmem:[%s1972 + $0xcc] sm:$0xf]
      %v2025 = vld [vmem:[%s1972 + $0xd0] sm:$0xf]
      %v2026 = vld [vmem:[%s1972 + $0xd4] sm:$0xf]
      %v2027 = vld [vmem:[%s1972 + $0xd8] sm:$0xf]
      %v2028 = vld [vmem:[%s1972 + $0xdc] sm:$0xf]
      %v2029 = vld [vmem:[%s1972 + $0xe0] sm:$0xf]
      %v2030 = vld [vmem:[%s1972 + $0xe4] sm:$0xf]
      %v2031 = vld [vmem:[%s1972 + $0xe8] sm:$0xf]
      %v2032 = vld [vmem:[%s1972 + $0xec] sm:$0xf]
      %v2033 = vld [vmem:[%s1972 + $0xf0] sm:$0xf]
      %v2034 = vld [vmem:[%s1972 + $0xf4] sm:$0xf]
      %v2035 = vld [vmem:[%s1972 + $0xf8] sm:$0xf]
      %v2036 = vld [vmem:[%s1972 + $0xfc] sm:$0xf]
      %v2037 = vrot.slane %v277, 3
      %v2038 = vrot.slane %v278, 3
      %v2039 = vrot.slane %v279, 3
      %v2040 = vrot.slane %v280, 3
      %v2109 = vunpack.c.l.b16 %v1973
      %v2110 = vunpack.c.l.b16 %v1974
      %v2111 = vunpack.c.l.b16 %v1975
      %v2112 = vunpack.c.l.b16 %v1976
      %v2113 = vunpack.c.l.b16 %v1977
      %v2114 = vunpack.c.l.b16 %v1978
      %v2115 = vunpack.c.l.b16 %v1979
      %v2116 = vunpack.c.l.b16 %v1980
      %v2117 = vunpack.c.l.b16 %v1981
      %v2118 = vunpack.c.l.b16 %v1982
      %v2119 = vunpack.c.l.b16 %v1983
      %v2120 = vunpack.c.l.b16 %v1984
      %v2121 = vunpack.c.l.b16 %v1985
      %v2122 = vunpack.c.l.b16 %v1986
      %v2123 = vunpack.c.l.b16 %v1987
      %v2124 = vunpack.c.l.b16 %v1988
      %v2125 = vunpack.c.l.b16 %v1989
      %v2126 = vunpack.c.l.b16 %v1990
      %v2127 = vunpack.c.l.b16 %v1991
      %v2128 = vunpack.c.l.b16 %v1992
      %v2129 = vunpack.c.l.b16 %v1993
      %v2130 = vunpack.c.l.b16 %v1994
      %v2131 = vunpack.c.l.b16 %v1995
      %v2132 = vunpack.c.l.b16 %v1996
      %v2133 = vunpack.c.l.b16 %v1997
      %v2134 = vunpack.c.l.b16 %v1998
      %v2135 = vunpack.c.l.b16 %v1999
      %v2136 = vunpack.c.l.b16 %v2000
      %v2137 = vunpack.c.l.b16 %v2001
      %v2138 = vunpack.c.l.b16 %v2002
      %v2139 = vunpack.c.l.b16 %v2003
      %v2140 = vunpack.c.l.b16 %v2004
      %v2141 = vunpack.c.l.b16 %v2005
      %v2142 = vunpack.c.l.b16 %v2006
      %v2143 = vunpack.c.l.b16 %v2007
      %v2144 = vunpack.c.l.b16 %v2008
      %v2145 = vunpack.c.l.b16 %v2009
      %v2146 = vunpack.c.l.b16 %v2010
      %v2147 = vunpack.c.l.b16 %v2011
      %v2148 = vunpack.c.l.b16 %v2012
      %v2149 = vunpack.c.l.b16 %v2013
      %v2150 = vunpack.c.l.b16 %v2014
      %v2151 = vunpack.c.l.b16 %v2015
      %v2152 = vunpack.c.l.b16 %v2016
      %v2153 = vunpack.c.l.b16 %v2017
      %v2154 = vunpack.c.l.b16 %v2018
      %v2155 = vunpack.c.l.b16 %v2019
      %v2156 = vunpack.c.l.b16 %v2020
      %v2157 = vunpack.c.l.b16 %v2021
      %v2158 = vunpack.c.l.b16 %v2022
      %v2159 = vunpack.c.l.b16 %v2023
      %v2160 = vunpack.c.l.b16 %v2024
      %v2161 = vunpack.c.l.b16 %v2025
      %v2162 = vunpack.c.l.b16 %v2026
      %v2163 = vunpack.c.l.b16 %v2027
      %v2164 = vunpack.c.l.b16 %v2028
      %v2165 = vunpack.c.l.b16 %v2029
      %v2166 = vunpack.c.l.b16 %v2030
      %v2167 = vunpack.c.l.b16 %v2031
      %v2168 = vunpack.c.l.b16 %v2032
      %v2169 = vunpack.c.l.b16 %v2033
      %v2170 = vunpack.c.l.b16 %v2034
      %v2171 = vunpack.c.l.b16 %v2035
      %v2172 = vunpack.c.l.b16 %v2036
      %v2173 = vpack.c.b16 %v2110, %v2109
      %v2174 = vpack.c.b16 %v2112, %v2111
      %v2175 = vpack.c.b16 %v2114, %v2113
      %v2176 = vpack.c.b16 %v2116, %v2115
      %v2177 = vpack.c.b16 %v2118, %v2117
      %v2178 = vpack.c.b16 %v2120, %v2119
      %v2179 = vpack.c.b16 %v2122, %v2121
      %v2180 = vpack.c.b16 %v2124, %v2123
      %v2181 = vpack.c.b16 %v2126, %v2125
      %v2182 = vpack.c.b16 %v2128, %v2127
      %v2183 = vpack.c.b16 %v2130, %v2129
      %v2184 = vpack.c.b16 %v2132, %v2131
      %v2185 = vpack.c.b16 %v2134, %v2133
      %v2186 = vpack.c.b16 %v2136, %v2135
      %v2187 = vpack.c.b16 %v2138, %v2137
      %v2188 = vpack.c.b16 %v2140, %v2139
      %v2189 = vpack.c.b16 %v2142, %v2141
      %v2190 = vpack.c.b16 %v2144, %v2143
      %v2191 = vpack.c.b16 %v2146, %v2145
      %v2192 = vpack.c.b16 %v2148, %v2147
      %v2193 = vpack.c.b16 %v2150, %v2149
      %v2194 = vpack.c.b16 %v2152, %v2151
      %v2195 = vpack.c.b16 %v2154, %v2153
      %v2196 = vpack.c.b16 %v2156, %v2155
      %v2197 = vpack.c.b16 %v2158, %v2157
      %v2198 = vpack.c.b16 %v2160, %v2159
      %v2199 = vpack.c.b16 %v2162, %v2161
      %v2200 = vpack.c.b16 %v2164, %v2163
      %v2201 = vpack.c.b16 %v2166, %v2165
      %v2202 = vpack.c.b16 %v2168, %v2167
      %v2203 = vpack.c.b16 %v2170, %v2169
      %v2204 = vpack.c.b16 %v2172, %v2171
      %2237 = vmatprep.subr.bf16.mxu0 0
      %2238 = vmatpush1.bf16.msra.mxu0 %v2173
      %2239 = vmatprep.subr.bf16.mxu0 0
      %2240 = vmatpush1.bf16.msra.mxu0 %v2174
      %2241 = vmatprep.subr.bf16.mxu0 0
      %2242 = vmatpush1.bf16.msra.mxu0 %v2175
      %2243 = vmatprep.subr.bf16.mxu0 0
      %2244 = vmatpush1.bf16.msra.mxu0 %v2176
      %2245 = vmatprep.subr.bf16.mxu0 0
      %2246 = vmatpush1.bf16.msra.mxu0 %v2177
      %2247 = vmatprep.subr.bf16.mxu0 0
      %2248 = vmatpush1.bf16.msra.mxu0 %v2178
      %2249 = vmatprep.subr.bf16.mxu0 0
      %2250 = vmatpush1.bf16.msra.mxu0 %v2179
      %2251 = vmatprep.subr.bf16.mxu0 0
      %2252 = vmatpush1.bf16.msra.mxu0 %v2180
      %2253 = vmatprep.subr.bf16.mxu0 0
      %2254 = vmatpush1.bf16.msra.mxu0 %v2181
      %2255 = vmatprep.subr.bf16.mxu0 0
      %2256 = vmatpush1.bf16.msra.mxu0 %v2182
      %2257 = vmatprep.subr.bf16.mxu0 0
      %2258 = vmatpush1.bf16.msra.mxu0 %v2183
      %2259 = vmatprep.subr.bf16.mxu0 0
      %2260 = vmatpush1.bf16.msra.mxu0 %v2184
      %2261 = vmatprep.subr.bf16.mxu0 0
      %2262 = vmatpush1.bf16.msra.mxu0 %v2185
      %2263 = vmatprep.subr.bf16.mxu0 0
      %2264 = vmatpush1.bf16.msra.mxu0 %v2186
      %2265 = vmatprep.subr.bf16.mxu0 0
      %2266 = vmatpush1.bf16.msra.mxu0 %v2187
      %2267 = vmatprep.subr.bf16.mxu0 0
      %2268 = vmatpush1.bf16.msra.mxu0 %v2188
      %2269 = vmatprep.mubr.bf16.mxu0 %v2038
      %2270 = vmatmul.mubr.bf16.gmra.mrb[0].mxu0 %v2037
      %v2271 = vpop.f32.mrb[0].mxu0
      %v2272 = vadd.f32 0.0, %v2271
      %v2273 = vpop.f32.mrb[0].mxu0
      %v2274 = vpop.f32.mrb[0].mxu0
      %v2275 = vpop.f32.mrb[0].mxu0
      %2276 = vdwg.mxu0
      %2277 = vmatprep.subr.bf16.mxu0 0
      %2278 = vmatpush1.bf16.msra.mxu0 %v2189
      %2279 = vmatprep.subr.bf16.mxu0 0
      %2280 = vmatpush1.bf16.msra.mxu0 %v2190
      %2281 = vmatprep.subr.bf16.mxu0 0
      %2282 = vmatpush1.bf16.msra.mxu0 %v2191
      %2283 = vmatprep.subr.bf16.mxu0 0
      %2284 = vmatpush1.bf16.msra.mxu0 %v2192
      %2285 = vmatprep.subr.bf16.mxu0 0
      %2286 = vmatpush1.bf16.msra.mxu0 %v2193
      %2287 = vmatprep.subr.bf16.mxu0 0
      %2288 = vmatpush1.bf16.msra.mxu0 %v2194
      %2289 = vmatprep.subr.bf16.mxu0 0
      %2290 = vmatpush1.bf16.msra.mxu0 %v2195
      %2291 = vmatprep.subr.bf16.mxu0 0
      %2292 = vmatpush1.bf16.msra.mxu0 %v2196
      %2293 = vmatprep.subr.bf16.mxu0 0
      %2294 = vmatpush1.bf16.msra.mxu0 %v2197
      %2295 = vmatprep.subr.bf16.mxu0 0
      %2296 = vmatpush1.bf16.msra.mxu0 %v2198
      %2297 = vmatprep.subr.bf16.mxu0 0
      %2298 = vmatpush1.bf16.msra.mxu0 %v2199
      %2299 = vmatprep.subr.bf16.mxu0 0
      %2300 = vmatpush1.bf16.msra.mxu0 %v2200
      %2301 = vmatprep.subr.bf16.mxu0 0
      %2302 = vmatpush1.bf16.msra.mxu0 %v2201
      %2303 = vmatprep.subr.bf16.mxu0 0
      %2304 = vmatpush1.bf16.msra.mxu0 %v2202
      %2305 = vmatprep.subr.bf16.mxu0 0
      %2306 = vmatpush1.bf16.msra.mxu0 %v2203
      %2307 = vmatprep.subr.bf16.mxu0 0
      %2308 = vmatpush1.bf16.msra.mxu0 %v2204
      %2309 = vmatprep.mubr.bf16.mxu0 %v2040
      %2310 = vmatmul.mubr.bf16.gmra.mrb[0].mxu0 %v2039
      %v2311 = vpop.f32.mrb[0].mxu0
      %v2312 = vadd.f32 %v2272, %v2311
      %v2313 = vpop.f32.mrb[0].mxu0
      %v2314 = vpop.f32.mrb[0].mxu0
      %v2315 = vpop.f32.mrb[0].mxu0
      %2316 = vdwg.mxu0
      %v2317 = vadd.f32 %v1971, %v2312
      %v2318 = vpack.c.bf16 %v201, %v201
      %v2319 = vpack.c.bf16 %v202, %v202
      %v2320 = vpack.c.bf16 %v203, %v203
      %v2321 = vpack.c.bf16 %v204, %v204
      %s2322 = scalar_lea.vmem %s1, 1536
      %v2323 = vld [vmem:[%s2322] sm:$0xf]
      %v2324 = vld [vmem:[%s2322 + $0x4] sm:$0xf]
      %v2325 = vld [vmem:[%s2322 + $0x8] sm:$0xf]
      %v2326 = vld [vmem:[%s2322 + $0xc] sm:$0xf]
      %v2327 = vld [vmem:[%s2322 + $0x10] sm:$0xf]
      %v2328 = vld [vmem:[%s2322 + $0x14] sm:$0xf]
      %v2329 = vld [vmem:[%s2322 + $0x18] sm:$0xf]
      %v2330 = vld [vmem:[%s2322 + $0x1c] sm:$0xf]
      %v2331 = vld [vmem:[%s2322 + $0x20] sm:$0xf]
      %v2332 = vld [vmem:[%s2322 + $0x24] sm:$0xf]
      %v2333 = vld [vmem:[%s2322 + $0x28] sm:$0xf]
      %v2334 = vld [vmem:[%s2322 + $0x2c] sm:$0xf]
      %v2335 = vld [vmem:[%s2322 + $0x30] sm:$0xf]
      %v2336 = vld [vmem:[%s2322 + $0x34] sm:$0xf]
      %v2337 = vld [vmem:[%s2322 + $0x38] sm:$0xf]
      %v2338 = vld [vmem:[%s2322 + $0x3c] sm:$0xf]
      %v2339 = vld [vmem:[%s2322 + $0x40] sm:$0xf]
      %v2340 = vld [vmem:[%s2322 + $0x44] sm:$0xf]
      %v2341 = vld [vmem:[%s2322 + $0x48] sm:$0xf]
      %v2342 = vld [vmem:[%s2322 + $0x4c] sm:$0xf]
      %v2343 = vld [vmem:[%s2322 + $0x50] sm:$0xf]
      %v2344 = vld [vmem:[%s2322 + $0x54] sm:$0xf]
      %v2345 = vld [vmem:[%s2322 + $0x58] sm:$0xf]
      %v2346 = vld [vmem:[%s2322 + $0x5c] sm:$0xf]
      %v2347 = vld [vmem:[%s2322 + $0x60] sm:$0xf]
      %v2348 = vld [vmem:[%s2322 + $0x64] sm:$0xf]
      %v2349 = vld [vmem:[%s2322 + $0x68] sm:$0xf]
      %v2350 = vld [vmem:[%s2322 + $0x6c] sm:$0xf]
      %v2351 = vld [vmem:[%s2322 + $0x70] sm:$0xf]
      %v2352 = vld [vmem:[%s2322 + $0x74] sm:$0xf]
      %v2353 = vld [vmem:[%s2322 + $0x78] sm:$0xf]
      %v2354 = vld [vmem:[%s2322 + $0x7c] sm:$0xf]
      %v2355 = vld [vmem:[%s2322 + $0x80] sm:$0xf]
      %v2356 = vld [vmem:[%s2322 + $0x84] sm:$0xf]
      %v2357 = vld [vmem:[%s2322 + $0x88] sm:$0xf]
      %v2358 = vld [vmem:[%s2322 + $0x8c] sm:$0xf]
      %v2359 = vld [vmem:[%s2322 + $0x90] sm:$0xf]
      %v2360 = vld [vmem:[%s2322 + $0x94] sm:$0xf]
      %v2361 = vld [vmem:[%s2322 + $0x98] sm:$0xf]
      %v2362 = vld [vmem:[%s2322 + $0x9c] sm:$0xf]
      %v2363 = vld [vmem:[%s2322 + $0xa0] sm:$0xf]
      %v2364 = vld [vmem:[%s2322 + $0xa4] sm:$0xf]
      %v2365 = vld [vmem:[%s2322 + $0xa8] sm:$0xf]
      %v2366 = vld [vmem:[%s2322 + $0xac] sm:$0xf]
      %v2367 = vld [vmem:[%s2322 + $0xb0] sm:$0xf]
      %v2368 = vld [vmem:[%s2322 + $0xb4] sm:$0xf]
      %v2369 = vld [vmem:[%s2322 + $0xb8] sm:$0xf]
      %v2370 = vld [vmem:[%s2322 + $0xbc] sm:$0xf]
      %v2371 = vld [vmem:[%s2322 + $0xc0] sm:$0xf]
      %v2372 = vld [vmem:[%s2322 + $0xc4] sm:$0xf]
      %v2373 = vld [vmem:[%s2322 + $0xc8] sm:$0xf]
      %v2374 = vld [vmem:[%s2322 + $0xcc] sm:$0xf]
      %v2375 = vld [vmem:[%s2322 + $0xd0] sm:$0xf]
      %v2376 = vld [vmem:[%s2322 + $0xd4] sm:$0xf]
      %v2377 = vld [vmem:[%s2322 + $0xd8] sm:$0xf]
      %v2378 = vld [vmem:[%s2322 + $0xdc] sm:$0xf]
      %v2379 = vld [vmem:[%s2322 + $0xe0] sm:$0xf]
      %v2380 = vld [vmem:[%s2322 + $0xe4] sm:$0xf]
      %v2381 = vld [vmem:[%s2322 + $0xe8] sm:$0xf]
      %v2382 = vld [vmem:[%s2322 + $0xec] sm:$0xf]
      %v2383 = vld [vmem:[%s2322 + $0xf0] sm:$0xf]
      %v2384 = vld [vmem:[%s2322 + $0xf4] sm:$0xf]
      %v2385 = vld [vmem:[%s2322 + $0xf8] sm:$0xf]
      %v2386 = vld [vmem:[%s2322 + $0xfc] sm:$0xf]
      %v2451 = vunpack.c.l.b16 %v2323
      %v2452 = vunpack.c.l.b16 %v2324
      %v2453 = vunpack.c.l.b16 %v2325
      %v2454 = vunpack.c.l.b16 %v2326
      %v2455 = vunpack.c.l.b16 %v2327
      %v2456 = vunpack.c.l.b16 %v2328
      %v2457 = vunpack.c.l.b16 %v2329
      %v2458 = vunpack.c.l.b16 %v2330
      %v2459 = vunpack.c.l.b16 %v2331
      %v2460 = vunpack.c.l.b16 %v2332
      %v2461 = vunpack.c.l.b16 %v2333
      %v2462 = vunpack.c.l.b16 %v2334
      %v2463 = vunpack.c.l.b16 %v2335
      %v2464 = vunpack.c.l.b16 %v2336
      %v2465 = vunpack.c.l.b16 %v2337
      %v2466 = vunpack.c.l.b16 %v2338
      %v2467 = vunpack.c.l.b16 %v2339
      %v2468 = vunpack.c.l.b16 %v2340
      %v2469 = vunpack.c.l.b16 %v2341
      %v2470 = vunpack.c.l.b16 %v2342
      %v2471 = vunpack.c.l.b16 %v2343
      %v2472 = vunpack.c.l.b16 %v2344
      %v2473 = vunpack.c.l.b16 %v2345
      %v2474 = vunpack.c.l.b16 %v2346
      %v2475 = vunpack.c.l.b16 %v2347
      %v2476 = vunpack.c.l.b16 %v2348
      %v2477 = vunpack.c.l.b16 %v2349
      %v2478 = vunpack.c.l.b16 %v2350
      %v2479 = vunpack.c.l.b16 %v2351
      %v2480 = vunpack.c.l.b16 %v2352
      %v2481 = vunpack.c.l.b16 %v2353
      %v2482 = vunpack.c.l.b16 %v2354
      %v2483 = vunpack.c.l.b16 %v2355
      %v2484 = vunpack.c.l.b16 %v2356
      %v2485 = vunpack.c.l.b16 %v2357
      %v2486 = vunpack.c.l.b16 %v2358
      %v2487 = vunpack.c.l.b16 %v2359
      %v2488 = vunpack.c.l.b16 %v2360
      %v2489 = vunpack.c.l.b16 %v2361
      %v2490 = vunpack.c.l.b16 %v2362
      %v2491 = vunpack.c.l.b16 %v2363
      %v2492 = vunpack.c.l.b16 %v2364
      %v2493 = vunpack.c.l.b16 %v2365
      %v2494 = vunpack.c.l.b16 %v2366
      %v2495 = vunpack.c.l.b16 %v2367
      %v2496 = vunpack.c.l.b16 %v2368
      %v2497 = vunpack.c.l.b16 %v2369
      %v2498 = vunpack.c.l.b16 %v2370
      %v2499 = vunpack.c.l.b16 %v2371
      %v2500 = vunpack.c.l.b16 %v2372
      %v2501 = vunpack.c.l.b16 %v2373
      %v2502 = vunpack.c.l.b16 %v2374
      %v2503 = vunpack.c.l.b16 %v2375
      %v2504 = vunpack.c.l.b16 %v2376
      %v2505 = vunpack.c.l.b16 %v2377
      %v2506 = vunpack.c.l.b16 %v2378
      %v2507 = vunpack.c.l.b16 %v2379
      %v2508 = vunpack.c.l.b16 %v2380
      %v2509 = vunpack.c.l.b16 %v2381
      %v2510 = vunpack.c.l.b16 %v2382
      %v2511 = vunpack.c.l.b16 %v2383
      %v2512 = vunpack.c.l.b16 %v2384
      %v2513 = vunpack.c.l.b16 %v2385
      %v2514 = vunpack.c.l.b16 %v2386
      %v2515 = vpack.c.b16 %v2452, %v2451
      %v2516 = vpack.c.b16 %v2454, %v2453
      %v2517 = vpack.c.b16 %v2456, %v2455
      %v2518 = vpack.c.b16 %v2458, %v2457
      %v2519 = vpack.c.b16 %v2460, %v2459
      %v2520 = vpack.c.b16 %v2462, %v2461
      %v2521 = vpack.c.b16 %v2464, %v2463
      %v2522 = vpack.c.b16 %v2466, %v2465
      %v2523 = vpack.c.b16 %v2468, %v2467
      %v2524 = vpack.c.b16 %v2470, %v2469
      %v2525 = vpack.c.b16 %v2472, %v2471
      %v2526 = vpack.c.b16 %v2474, %v2473
      %v2527 = vpack.c.b16 %v2476, %v2475
      %v2528 = vpack.c.b16 %v2478, %v2477
      %v2529 = vpack.c.b16 %v2480, %v2479
      %v2530 = vpack.c.b16 %v2482, %v2481
      %v2531 = vpack.c.b16 %v2484, %v2483
      %v2532 = vpack.c.b16 %v2486, %v2485
      %v2533 = vpack.c.b16 %v2488, %v2487
      %v2534 = vpack.c.b16 %v2490, %v2489
      %v2535 = vpack.c.b16 %v2492, %v2491
      %v2536 = vpack.c.b16 %v2494, %v2493
      %v2537 = vpack.c.b16 %v2496, %v2495
      %v2538 = vpack.c.b16 %v2498, %v2497
      %v2539 = vpack.c.b16 %v2500, %v2499
      %v2540 = vpack.c.b16 %v2502, %v2501
      %v2541 = vpack.c.b16 %v2504, %v2503
      %v2542 = vpack.c.b16 %v2506, %v2505
      %v2543 = vpack.c.b16 %v2508, %v2507
      %v2544 = vpack.c.b16 %v2510, %v2509
      %v2545 = vpack.c.b16 %v2512, %v2511
      %v2546 = vpack.c.b16 %v2514, %v2513
      %2579 = vmatprep.subr.bf16.mxu0 0
      %2580 = vmatpush1.bf16.msra.mxu0 %v2515
      %2581 = vmatprep.subr.bf16.mxu0 0
      %2582 = vmatpush1.bf16.msra.mxu0 %v2516
      %2583 = vmatprep.subr.bf16.mxu0 0
      %2584 = vmatpush1.bf16.msra.mxu0 %v2517
      %2585 = vmatprep.subr.bf16.mxu0 0
      %2586 = vmatpush1.bf16.msra.mxu0 %v2518
      %2587 = vmatprep.subr.bf16.mxu0 0
      %2588 = vmatpush1.bf16.msra.mxu0 %v2519
      %2589 = vmatprep.subr.bf16.mxu0 0
      %2590 = vmatpush1.bf16.msra.mxu0 %v2520
      %2591 = vmatprep.subr.bf16.mxu0 0
      %2592 = vmatpush1.bf16.msra.mxu0 %v2521
      %2593 = vmatprep.subr.bf16.mxu0 0
      %2594 = vmatpush1.bf16.msra.mxu0 %v2522
      %2595 = vmatprep.subr.bf16.mxu0 0
      %2596 = vmatpush1.bf16.msra.mxu0 %v2523
      %2597 = vmatprep.subr.bf16.mxu0 0
      %2598 = vmatpush1.bf16.msra.mxu0 %v2524
      %2599 = vmatprep.subr.bf16.mxu0 0
      %2600 = vmatpush1.bf16.msra.mxu0 %v2525
      %2601 = vmatprep.subr.bf16.mxu0 0
      %2602 = vmatpush1.bf16.msra.mxu0 %v2526
      %2603 = vmatprep.subr.bf16.mxu0 0
      %2604 = vmatpush1.bf16.msra.mxu0 %v2527
      %2605 = vmatprep.subr.bf16.mxu0 0
      %2606 = vmatpush1.bf16.msra.mxu0 %v2528
      %2607 = vmatprep.subr.bf16.mxu0 0
      %2608 = vmatpush1.bf16.msra.mxu0 %v2529
      %2609 = vmatprep.subr.bf16.mxu0 0
      %2610 = vmatpush1.bf16.msra.mxu0 %v2530
      %2611 = vmatprep.mubr.bf16.mxu0 %v2319
      %2612 = vmatmul.mubr.bf16.gmra.mrb[0].mxu0 %v2318
      %v2613 = vpop.f32.mrb[0].mxu0
      %v2614 = vadd.f32 0.0, %v2613
      %v2615 = vpop.f32.mrb[0].mxu0
      %v2616 = vpop.f32.mrb[0].mxu0
      %v2617 = vpop.f32.mrb[0].mxu0
      %2618 = vdwg.mxu0
      %2619 = vmatprep.subr.bf16.mxu0 0
      %2620 = vmatpush1.bf16.msra.mxu0 %v2531
      %2621 = vmatprep.subr.bf16.mxu0 0
      %2622 = vmatpush1.bf16.msra.mxu0 %v2532
      %2623 = vmatprep.subr.bf16.mxu0 0
      %2624 = vmatpush1.bf16.msra.mxu0 %v2533
      %2625 = vmatprep.subr.bf16.mxu0 0
      %2626 = vmatpush1.bf16.msra.mxu0 %v2534
      %2627 = vmatprep.subr.bf16.mxu0 0
      %2628 = vmatpush1.bf16.msra.mxu0 %v2535
      %2629 = vmatprep.subr.bf16.mxu0 0
      %2630 = vmatpush1.bf16.msra.mxu0 %v2536
      %2631 = vmatprep.subr.bf16.mxu0 0
      %2632 = vmatpush1.bf16.msra.mxu0 %v2537
      %2633 = vmatprep.subr.bf16.mxu0 0
      %2634 = vmatpush1.bf16.msra.mxu0 %v2538
      %2635 = vmatprep.subr.bf16.mxu0 0
      %2636 = vmatpush1.bf16.msra.mxu0 %v2539
      %2637 = vmatprep.subr.bf16.mxu0 0
      %2638 = vmatpush1.bf16.msra.mxu0 %v2540
      %2639 = vmatprep.subr.bf16.mxu0 0
      %2640 = vmatpush1.bf16.msra.mxu0 %v2541
      %2641 = vmatprep.subr.bf16.mxu0 0
      %2642 = vmatpush1.bf16.msra.mxu0 %v2542
      %2643 = vmatprep.subr.bf16.mxu0 0
      %2644 = vmatpush1.bf16.msra.mxu0 %v2543
      %2645 = vmatprep.subr.bf16.mxu0 0
      %2646 = vmatpush1.bf16.msra.mxu0 %v2544
      %2647 = vmatprep.subr.bf16.mxu0 0
      %2648 = vmatpush1.bf16.msra.mxu0 %v2545
      %2649 = vmatprep.subr.bf16.mxu0 0
      %2650 = vmatpush1.bf16.msra.mxu0 %v2546
      %2651 = vmatprep.mubr.bf16.mxu0 %v2321
      %2652 = vmatmul.mubr.bf16.gmra.mrb[0].mxu0 %v2320
      %v2653 = vpop.f32.mrb[0].mxu0
      %v2654 = vadd.f32 %v2614, %v2653
      %v2655 = vpop.f32.mrb[0].mxu0
      %v2656 = vpop.f32.mrb[0].mxu0
      %v2657 = vpop.f32.mrb[0].mxu0
      %2658 = vdwg.mxu0
      %v2659 = vadd.f32 %v2317, %v2654
      %v2660 = vpack.c.bf16 %v205, %v201
      %v2661 = vpack.c.bf16 %v206, %v202
      %v2662 = vpack.c.bf16 %v207, %v203
      %v2663 = vpack.c.bf16 %v208, %v204
      %s2664 = scalar_lea.vmem %s1, 1792
      %v2665 = vld [vmem:[%s2664] sm:$0xf]
      %v2666 = vld [vmem:[%s2664 + $0x4] sm:$0xf]
      %v2667 = vld [vmem:[%s2664 + $0x8] sm:$0xf]
      %v2668 = vld [vmem:[%s2664 + $0xc] sm:$0xf]
      %v2669 = vld [vmem:[%s2664 + $0x10] sm:$0xf]
      %v2670 = vld [vmem:[%s2664 + $0x14] sm:$0xf]
      %v2671 = vld [vmem:[%s2664 + $0x18] sm:$0xf]
      %v2672 = vld [vmem:[%s2664 + $0x1c] sm:$0xf]
      %v2673 = vld [vmem:[%s2664 + $0x20] sm:$0xf]
      %v2674 = vld [vmem:[%s2664 + $0x24] sm:$0xf]
      %v2675 = vld [vmem:[%s2664 + $0x28] sm:$0xf]
      %v2676 = vld [vmem:[%s2664 + $0x2c] sm:$0xf]
      %v2677 = vld [vmem:[%s2664 + $0x30] sm:$0xf]
      %v2678 = vld [vmem:[%s2664 + $0x34] sm:$0xf]
      %v2679 = vld [vmem:[%s2664 + $0x38] sm:$0xf]
      %v2680 = vld [vmem:[%s2664 + $0x3c] sm:$0xf]
      %v2681 = vld [vmem:[%s2664 + $0x40] sm:$0xf]
      %v2682 = vld [vmem:[%s2664 + $0x44] sm:$0xf]
      %v2683 = vld [vmem:[%s2664 + $0x48] sm:$0xf]
      %v2684 = vld [vmem:[%s2664 + $0x4c] sm:$0xf]
      %v2685 = vld [vmem:[%s2664 + $0x50] sm:$0xf]
      %v2686 = vld [vmem:[%s2664 + $0x54] sm:$0xf]
      %v2687 = vld [vmem:[%s2664 + $0x58] sm:$0xf]
      %v2688 = vld [vmem:[%s2664 + $0x5c] sm:$0xf]
      %v2689 = vld [vmem:[%s2664 + $0x60] sm:$0xf]
      %v2690 = vld [vmem:[%s2664 + $0x64] sm:$0xf]
      %v2691 = vld [vmem:[%s2664 + $0x68] sm:$0xf]
      %v2692 = vld [vmem:[%s2664 + $0x6c] sm:$0xf]
      %v2693 = vld [vmem:[%s2664 + $0x70] sm:$0xf]
      %v2694 = vld [vmem:[%s2664 + $0x74] sm:$0xf]
      %v2695 = vld [vmem:[%s2664 + $0x78] sm:$0xf]
      %v2696 = vld [vmem:[%s2664 + $0x7c] sm:$0xf]
      %v2697 = vld [vmem:[%s2664 + $0x80] sm:$0xf]
      %v2698 = vld [vmem:[%s2664 + $0x84] sm:$0xf]
      %v2699 = vld [vmem:[%s2664 + $0x88] sm:$0xf]
      %v2700 = vld [vmem:[%s2664 + $0x8c] sm:$0xf]
      %v2701 = vld [vmem:[%s2664 + $0x90] sm:$0xf]
      %v2702 = vld [vmem:[%s2664 + $0x94] sm:$0xf]
      %v2703 = vld [vmem:[%s2664 + $0x98] sm:$0xf]
      %v2704 = vld [vmem:[%s2664 + $0x9c] sm:$0xf]
      %v2705 = vld [vmem:[%s2664 + $0xa0] sm:$0xf]
      %v2706 = vld [vmem:[%s2664 + $0xa4] sm:$0xf]
      %v2707 = vld [vmem:[%s2664 + $0xa8] sm:$0xf]
      %v2708 = vld [vmem:[%s2664 + $0xac] sm:$0xf]
      %v2709 = vld [vmem:[%s2664 + $0xb0] sm:$0xf]
      %v2710 = vld [vmem:[%s2664 + $0xb4] sm:$0xf]
      %v2711 = vld [vmem:[%s2664 + $0xb8] sm:$0xf]
      %v2712 = vld [vmem:[%s2664 + $0xbc] sm:$0xf]
      %v2713 = vld [vmem:[%s2664 + $0xc0] sm:$0xf]
      %v2714 = vld [vmem:[%s2664 + $0xc4] sm:$0xf]
      %v2715 = vld [vmem:[%s2664 + $0xc8] sm:$0xf]
      %v2716 = vld [vmem:[%s2664 + $0xcc] sm:$0xf]
      %v2717 = vld [vmem:[%s2664 + $0xd0] sm:$0xf]
      %v2718 = vld [vmem:[%s2664 + $0xd4] sm:$0xf]
      %v2719 = vld [vmem:[%s2664 + $0xd8] sm:$0xf]
      %v2720 = vld [vmem:[%s2664 + $0xdc] sm:$0xf]
      %v2721 = vld [vmem:[%s2664 + $0xe0] sm:$0xf]
      %v2722 = vld [vmem:[%s2664 + $0xe4] sm:$0xf]
      %v2723 = vld [vmem:[%s2664 + $0xe8] sm:$0xf]
      %v2724 = vld [vmem:[%s2664 + $0xec] sm:$0xf]
      %v2725 = vld [vmem:[%s2664 + $0xf0] sm:$0xf]
      %v2726 = vld [vmem:[%s2664 + $0xf4] sm:$0xf]
      %v2727 = vld [vmem:[%s2664 + $0xf8] sm:$0xf]
      %v2728 = vld [vmem:[%s2664 + $0xfc] sm:$0xf]
      %v2730 = vshrl.u32 %v2660, 16
      %v2732 = vshll.u32 %v2660, 16
      %v2734 = vrot.slane %v2732, 1
      %v2735 = vor.u32 %v2730, %v2734
      %v2737 = vshrl.u32 %v2661, 16
      %v2739 = vshll.u32 %v2661, 16
      %v2741 = vrot.slane %v2739, 1
      %v2742 = vor.u32 %v2737, %v2741
      %v2744 = vshrl.u32 %v2662, 16
      %v2746 = vshll.u32 %v2662, 16
      %v2748 = vrot.slane %v2746, 1
      %v2749 = vor.u32 %v2744, %v2748
      %v2751 = vshrl.u32 %v2663, 16
      %v2753 = vshll.u32 %v2663, 16
      %v2755 = vrot.slane %v2753, 1
      %v2756 = vor.u32 %v2751, %v2755
      %v2825 = vunpack.c.l.b16 %v2665
      %v2826 = vunpack.c.l.b16 %v2666
      %v2827 = vunpack.c.l.b16 %v2667
      %v2828 = vunpack.c.l.b16 %v2668
      %v2829 = vunpack.c.l.b16 %v2669
      %v2830 = vunpack.c.l.b16 %v2670
      %v2831 = vunpack.c.l.b16 %v2671
      %v2832 = vunpack.c.l.b16 %v2672
      %v2833 = vunpack.c.l.b16 %v2673
      %v2834 = vunpack.c.l.b16 %v2674
      %v2835 = vunpack.c.l.b16 %v2675
      %v2836 = vunpack.c.l.b16 %v2676
      %v2837 = vunpack.c.l.b16 %v2677
      %v2838 = vunpack.c.l.b16 %v2678
      %v2839 = vunpack.c.l.b16 %v2679
      %v2840 = vunpack.c.l.b16 %v2680
      %v2841 = vunpack.c.l.b16 %v2681
      %v2842 = vunpack.c.l.b16 %v2682
      %v2843 = vunpack.c.l.b16 %v2683
      %v2844 = vunpack.c.l.b16 %v2684
      %v2845 = vunpack.c.l.b16 %v2685
      %v2846 = vunpack.c.l.b16 %v2686
      %v2847 = vunpack.c.l.b16 %v2687
      %v2848 = vunpack.c.l.b16 %v2688
      %v2849 = vunpack.c.l.b16 %v2689
      %v2850 = vunpack.c.l.b16 %v2690
      %v2851 = vunpack.c.l.b16 %v2691
      %v2852 = vunpack.c.l.b16 %v2692
      %v2853 = vunpack.c.l.b16 %v2693
      %v2854 = vunpack.c.l.b16 %v2694
      %v2855 = vunpack.c.l.b16 %v2695
      %v2856 = vunpack.c.l.b16 %v2696
      %v2857 = vunpack.c.l.b16 %v2697
      %v2858 = vunpack.c.l.b16 %v2698
      %v2859 = vunpack.c.l.b16 %v2699
      %v2860 = vunpack.c.l.b16 %v2700
      %v2861 = vunpack.c.l.b16 %v2701
      %v2862 = vunpack.c.l.b16 %v2702
      %v2863 = vunpack.c.l.b16 %v2703
      %v2864 = vunpack.c.l.b16 %v2704
      %v2865 = vunpack.c.l.b16 %v2705
      %v2866 = vunpack.c.l.b16 %v2706
      %v2867 = vunpack.c.l.b16 %v2707
      %v2868 = vunpack.c.l.b16 %v2708
      %v2869 = vunpack.c.l.b16 %v2709
      %v2870 = vunpack.c.l.b16 %v2710
      %v2871 = vunpack.c.l.b16 %v2711
      %v2872 = vunpack.c.l.b16 %v2712
      %v2873 = vunpack.c.l.b16 %v2713
      %v2874 = vunpack.c.l.b16 %v2714
      %v2875 = vunpack.c.l.b16 %v2715
      %v2876 = vunpack.c.l.b16 %v2716
      %v2877 = vunpack.c.l.b16 %v2717
      %v2878 = vunpack.c.l.b16 %v2718
      %v2879 = vunpack.c.l.b16 %v2719
      %v2880 = vunpack.c.l.b16 %v2720
      %v2881 = vunpack.c.l.b16 %v2721
      %v2882 = vunpack.c.l.b16 %v2722
      %v2883 = vunpack.c.l.b16 %v2723
      %v2884 = vunpack.c.l.b16 %v2724
      %v2885 = vunpack.c.l.b16 %v2725
      %v2886 = vunpack.c.l.b16 %v2726
      %v2887 = vunpack.c.l.b16 %v2727
      %v2888 = vunpack.c.l.b16 %v2728
      %v2889 = vpack.c.b16 %v2826, %v2825
      %v2890 = vpack.c.b16 %v2828, %v2827
      %v2891 = vpack.c.b16 %v2830, %v2829
      %v2892 = vpack.c.b16 %v2832, %v2831
      %v2893 = vpack.c.b16 %v2834, %v2833
      %v2894 = vpack.c.b16 %v2836, %v2835
      %v2895 = vpack.c.b16 %v2838, %v2837
      %v2896 = vpack.c.b16 %v2840, %v2839
      %v2897 = vpack.c.b16 %v2842, %v2841
      %v2898 = vpack.c.b16 %v2844, %v2843
      %v2899 = vpack.c.b16 %v2846, %v2845
      %v2900 = vpack.c.b16 %v2848, %v2847
      %v2901 = vpack.c.b16 %v2850, %v2849
      %v2902 = vpack.c.b16 %v2852, %v2851
      %v2903 = vpack.c.b16 %v2854, %v2853
      %v2904 = vpack.c.b16 %v2856, %v2855
      %v2905 = vpack.c.b16 %v2858, %v2857
      %v2906 = vpack.c.b16 %v2860, %v2859
      %v2907 = vpack.c.b16 %v2862, %v2861
      %v2908 = vpack.c.b16 %v2864, %v2863
      %v2909 = vpack.c.b16 %v2866, %v2865
      %v2910 = vpack.c.b16 %v2868, %v2867
      %v2911 = vpack.c.b16 %v2870, %v2869
      %v2912 = vpack.c.b16 %v2872, %v2871
      %v2913 = vpack.c.b16 %v2874, %v2873
      %v2914 = vpack.c.b16 %v2876, %v2875
      %v2915 = vpack.c.b16 %v2878, %v2877
      %v2916 = vpack.c.b16 %v2880, %v2879
      %v2917 = vpack.c.b16 %v2882, %v2881
      %v2918 = vpack.c.b16 %v2884, %v2883
      %v2919 = vpack.c.b16 %v2886, %v2885
      %v2920 = vpack.c.b16 %v2888, %v2887
      %2953 = vmatprep.subr.bf16.mxu0 0
      %2954 = vmatpush1.bf16.msra.mxu0 %v2889
      %2955 = vmatprep.subr.bf16.mxu0 0
      %2956 = vmatpush1.bf16.msra.mxu0 %v2890
      %2957 = vmatprep.subr.bf16.mxu0 0
      %2958 = vmatpush1.bf16.msra.mxu0 %v2891
      %2959 = vmatprep.subr.bf16.mxu0 0
      %2960 = vmatpush1.bf16.msra.mxu0 %v2892
      %2961 = vmatprep.subr.bf16.mxu0 0
      %2962 = vmatpush1.bf16.msra.mxu0 %v2893
      %2963 = vmatprep.subr.bf16.mxu0 0
      %2964 = vmatpush1.bf16.msra.mxu0 %v2894
      %2965 = vmatprep.subr.bf16.mxu0 0
      %2966 = vmatpush1.bf16.msra.mxu0 %v2895
      %2967 = vmatprep.subr.bf16.mxu0 0
      %2968 = vmatpush1.bf16.msra.mxu0 %v2896
      %2969 = vmatprep.subr.bf16.mxu0 0
      %2970 = vmatpush1.bf16.msra.mxu0 %v2897
      %2971 = vmatprep.subr.bf16.mxu0 0
      %2972 = vmatpush1.bf16.msra.mxu0 %v2898
      %2973 = vmatprep.subr.bf16.mxu0 0
      %2974 = vmatpush1.bf16.msra.mxu0 %v2899
      %2975 = vmatprep.subr.bf16.mxu0 0
      %2976 = vmatpush1.bf16.msra.mxu0 %v2900
      %2977 = vmatprep.subr.bf16.mxu0 0
      %2978 = vmatpush1.bf16.msra.mxu0 %v2901
      %2979 = vmatprep.subr.bf16.mxu0 0
      %2980 = vmatpush1.bf16.msra.mxu0 %v2902
      %2981 = vmatprep.subr.bf16.mxu0 0
      %2982 = vmatpush1.bf16.msra.mxu0 %v2903
      %2983 = vmatprep.subr.bf16.mxu0 0
      %2984 = vmatpush1.bf16.msra.mxu0 %v2904
      %2985 = vmatprep.mubr.bf16.mxu0 %v2742
      %2986 = vmatmul.mubr.bf16.gmra.mrb[0].mxu0 %v2735
      %v2987 = vpop.f32.mrb[0].mxu0
      %v2988 = vadd.f32 0.0, %v2987
      %v2989 = vpop.f32.mrb[0].mxu0
      %v2990 = vpop.f32.mrb[0].mxu0
      %v2991 = vpop.f32.mrb[0].mxu0
      %2992 = vdwg.mxu0
      %2993 = vmatprep.subr.bf16.mxu0 0
      %2994 = vmatpush1.bf16.msra.mxu0 %v2905
      %2995 = vmatprep.subr.bf16.mxu0 0
      %2996 = vmatpush1.bf16.msra.mxu0 %v2906
      %2997 = vmatprep.subr.bf16.mxu0 0
      %2998 = vmatpush1.bf16.msra.mxu0 %v2907
      %2999 = vmatprep.subr.bf16.mxu0 0
      %3000 = vmatpush1.bf16.msra.mxu0 %v2908
      %3001 = vmatprep.subr.bf16.mxu0 0
      %3002 = vmatpush1.bf16.msra.mxu0 %v2909
      %3003 = vmatprep.subr.bf16.mxu0 0
      %3004 = vmatpush1.bf16.msra.mxu0 %v2910
      %3005 = vmatprep.subr.bf16.mxu0 0
      %3006 = vmatpush1.bf16.msra.mxu0 %v2911
      %3007 = vmatprep.subr.bf16.mxu0 0
      %3008 = vmatpush1.bf16.msra.mxu0 %v2912
      %3009 = vmatprep.subr.bf16.mxu0 0
      %3010 = vmatpush1.bf16.msra.mxu0 %v2913
      %3011 = vmatprep.subr.bf16.mxu0 0
      %3012 = vmatpush1.bf16.msra.mxu0 %v2914
      %3013 = vmatprep.subr.bf16.mxu0 0
      %3014 = vmatpush1.bf16.msra.mxu0 %v2915
      %3015 = vmatprep.subr.bf16.mxu0 0
      %3016 = vmatpush1.bf16.msra.mxu0 %v2916
      %3017 = vmatprep.subr.bf16.mxu0 0
      %3018 = vmatpush1.bf16.msra.mxu0 %v2917
      %3019 = vmatprep.subr.bf16.mxu0 0
      %3020 = vmatpush1.bf16.msra.mxu0 %v2918
      %3021 = vmatprep.subr.bf16.mxu0 0
      %3022 = vmatpush1.bf16.msra.mxu0 %v2919
      %3023 = vmatprep.subr.bf16.mxu0 0
      %3024 = vmatpush1.bf16.msra.mxu0 %v2920
      %3025 = vmatprep.mubr.bf16.mxu0 %v2756
      %3026 = vmatmul.mubr.bf16.gmra.mrb[0].mxu0 %v2749
      %v3027 = vpop.f32.mrb[0].mxu0
      %v3028 = vadd.f32 %v2988, %v3027
      %v3029 = vpop.f32.mrb[0].mxu0
      %v3030 = vpop.f32.mrb[0].mxu0
      %v3031 = vpop.f32.mrb[0].mxu0
      %3032 = vdwg.mxu0
      %v3033 = vadd.f32 %v2659, %v3028
      %s3034 = scalar_lea.vmem %s1, 2048
      %v3035 = vld [vmem:[%s3034] sm:$0xf]
      %v3036 = vld [vmem:[%s3034 + $0x4] sm:$0xf]
      %v3037 = vld [vmem:[%s3034 + $0x8] sm:$0xf]
      %v3038 = vld [vmem:[%s3034 + $0xc] sm:$0xf]
      %v3039 = vld [vmem:[%s3034 + $0x10] sm:$0xf]
      %v3040 = vld [vmem:[%s3034 + $0x14] sm:$0xf]
      %v3041 = vld [vmem:[%s3034 + $0x18] sm:$0xf]
      %v3042 = vld [vmem:[%s3034 + $0x1c] sm:$0xf]
      %v3043 = vld [vmem:[%s3034 + $0x20] sm:$0xf]
      %v3044 = vld [vmem:[%s3034 + $0x24] sm:$0xf]
      %v3045 = vld [vmem:[%s3034 + $0x28] sm:$0xf]
      %v3046 = vld [vmem:[%s3034 + $0x2c] sm:$0xf]
      %v3047 = vld [vmem:[%s3034 + $0x30] sm:$0xf]
      %v3048 = vld [vmem:[%s3034 + $0x34] sm:$0xf]
      %v3049 = vld [vmem:[%s3034 + $0x38] sm:$0xf]
      %v3050 = vld [vmem:[%s3034 + $0x3c] sm:$0xf]
      %v3051 = vld [vmem:[%s3034 + $0x40] sm:$0xf]
      %v3052 = vld [vmem:[%s3034 + $0x44] sm:$0xf]
      %v3053 = vld [vmem:[%s3034 + $0x48] sm:$0xf]
      %v3054 = vld [vmem:[%s3034 + $0x4c] sm:$0xf]
      %v3055 = vld [vmem:[%s3034 + $0x50] sm:$0xf]
      %v3056 = vld [vmem:[%s3034 + $0x54] sm:$0xf]
      %v3057 = vld [vmem:[%s3034 + $0x58] sm:$0xf]
      %v3058 = vld [vmem:[%s3034 + $0x5c] sm:$0xf]
      %v3059 = vld [vmem:[%s3034 + $0x60] sm:$0xf]
      %v3060 = vld [vmem:[%s3034 + $0x64] sm:$0xf]
      %v3061 = vld [vmem:[%s3034 + $0x68] sm:$0xf]
      %v3062 = vld [vmem:[%s3034 + $0x6c] sm:$0xf]
      %v3063 = vld [vmem:[%s3034 + $0x70] sm:$0xf]
      %v3064 = vld [vmem:[%s3034 + $0x74] sm:$0xf]
      %v3065 = vld [vmem:[%s3034 + $0x78] sm:$0xf]
      %v3066 = vld [vmem:[%s3034 + $0x7c] sm:$0xf]
      %v3067 = vld [vmem:[%s3034 + $0x80] sm:$0xf]
      %v3068 = vld [vmem:[%s3034 + $0x84] sm:$0xf]
      %v3069 = vld [vmem:[%s3034 + $0x88] sm:$0xf]
      %v3070 = vld [vmem:[%s3034 + $0x8c] sm:$0xf]
      %v3071 = vld [vmem:[%s3034 + $0x90] sm:$0xf]
      %v3072 = vld [vmem:[%s3034 + $0x94] sm:$0xf]
      %v3073 = vld [vmem:[%s3034 + $0x98] sm:$0xf]
      %v3074 = vld [vmem:[%s3034 + $0x9c] sm:$0xf]
      %v3075 = vld [vmem:[%s3034 + $0xa0] sm:$0xf]
      %v3076 = vld [vmem:[%s3034 + $0xa4] sm:$0xf]
      %v3077 = vld [vmem:[%s3034 + $0xa8] sm:$0xf]
      %v3078 = vld [vmem:[%s3034 + $0xac] sm:$0xf]
      %v3079 = vld [vmem:[%s3034 + $0xb0] sm:$0xf]
      %v3080 = vld [vmem:[%s3034 + $0xb4] sm:$0xf]
      %v3081 = vld [vmem:[%s3034 + $0xb8] sm:$0xf]
      %v3082 = vld [vmem:[%s3034 + $0xbc] sm:$0xf]
      %v3083 = vld [vmem:[%s3034 + $0xc0] sm:$0xf]
      %v3084 = vld [vmem:[%s3034 + $0xc4] sm:$0xf]
      %v3085 = vld [vmem:[%s3034 + $0xc8] sm:$0xf]
      %v3086 = vld [vmem:[%s3034 + $0xcc] sm:$0xf]
      %v3087 = vld [vmem:[%s3034 + $0xd0] sm:$0xf]
      %v3088 = vld [vmem:[%s3034 + $0xd4] sm:$0xf]
      %v3089 = vld [vmem:[%s3034 + $0xd8] sm:$0xf]
      %v3090 = vld [vmem:[%s3034 + $0xdc] sm:$0xf]
      %v3091 = vld [vmem:[%s3034 + $0xe0] sm:$0xf]
      %v3092 = vld [vmem:[%s3034 + $0xe4] sm:$0xf]
      %v3093 = vld [vmem:[%s3034 + $0xe8] sm:$0xf]
      %v3094 = vld [vmem:[%s3034 + $0xec] sm:$0xf]
      %v3095 = vld [vmem:[%s3034 + $0xf0] sm:$0xf]
      %v3096 = vld [vmem:[%s3034 + $0xf4] sm:$0xf]
      %v3097 = vld [vmem:[%s3034 + $0xf8] sm:$0xf]
      %v3098 = vld [vmem:[%s3034 + $0xfc] sm:$0xf]
      %v3103 = vrot.slane %v2660, 1
      %v3104 = vrot.slane %v2661, 1
      %v3105 = vrot.slane %v2662, 1
      %v3106 = vrot.slane %v2663, 1
      %v3175 = vunpack.c.l.b16 %v3035
      %v3176 = vunpack.c.l.b16 %v3036
      %v3177 = vunpack.c.l.b16 %v3037
      %v3178 = vunpack.c.l.b16 %v3038
      %v3179 = vunpack.c.l.b16 %v3039
      %v3180 = vunpack.c.l.b16 %v3040
      %v3181 = vunpack.c.l.b16 %v3041
      %v3182 = vunpack.c.l.b16 %v3042
      %v3183 = vunpack.c.l.b16 %v3043
      %v3184 = vunpack.c.l.b16 %v3044
      %v3185 = vunpack.c.l.b16 %v3045
      %v3186 = vunpack.c.l.b16 %v3046
      %v3187 = vunpack.c.l.b16 %v3047
      %v3188 = vunpack.c.l.b16 %v3048
      %v3189 = vunpack.c.l.b16 %v3049
      %v3190 = vunpack.c.l.b16 %v3050
      %v3191 = vunpack.c.l.b16 %v3051
      %v3192 = vunpack.c.l.b16 %v3052
      %v3193 = vunpack.c.l.b16 %v3053
      %v3194 = vunpack.c.l.b16 %v3054
      %v3195 = vunpack.c.l.b16 %v3055
      %v3196 = vunpack.c.l.b16 %v3056
      %v3197 = vunpack.c.l.b16 %v3057
      %v3198 = vunpack.c.l.b16 %v3058
      %v3199 = vunpack.c.l.b16 %v3059
      %v3200 = vunpack.c.l.b16 %v3060
      %v3201 = vunpack.c.l.b16 %v3061
      %v3202 = vunpack.c.l.b16 %v3062
      %v3203 = vunpack.c.l.b16 %v3063
      %v3204 = vunpack.c.l.b16 %v3064
      %v3205 = vunpack.c.l.b16 %v3065
      %v3206 = vunpack.c.l.b16 %v3066
      %v3207 = vunpack.c.l.b16 %v3067
      %v3208 = vunpack.c.l.b16 %v3068
      %v3209 = vunpack.c.l.b16 %v3069
      %v3210 = vunpack.c.l.b16 %v3070
      %v3211 = vunpack.c.l.b16 %v3071
      %v3212 = vunpack.c.l.b16 %v3072
      %v3213 = vunpack.c.l.b16 %v3073
      %v3214 = vunpack.c.l.b16 %v3074
      %v3215 = vunpack.c.l.b16 %v3075
      %v3216 = vunpack.c.l.b16 %v3076
      %v3217 = vunpack.c.l.b16 %v3077
      %v3218 = vunpack.c.l.b16 %v3078
      %v3219 = vunpack.c.l.b16 %v3079
      %v3220 = vunpack.c.l.b16 %v3080
      %v3221 = vunpack.c.l.b16 %v3081
      %v3222 = vunpack.c.l.b16 %v3082
      %v3223 = vunpack.c.l.b16 %v3083
      %v3224 = vunpack.c.l.b16 %v3084
      %v3225 = vunpack.c.l.b16 %v3085
      %v3226 = vunpack.c.l.b16 %v3086
      %v3227 = vunpack.c.l.b16 %v3087
      %v3228 = vunpack.c.l.b16 %v3088
      %v3229 = vunpack.c.l.b16 %v3089
      %v3230 = vunpack.c.l.b16 %v3090
      %v3231 = vunpack.c.l.b16 %v3091
      %v3232 = vunpack.c.l.b16 %v3092
      %v3233 = vunpack.c.l.b16 %v3093
      %v3234 = vunpack.c.l.b16 %v3094
      %v3235 = vunpack.c.l.b16 %v3095
      %v3236 = vunpack.c.l.b16 %v3096
      %v3237 = vunpack.c.l.b16 %v3097
      %v3238 = vunpack.c.l.b16 %v3098
      %v3239 = vpack.c.b16 %v3176, %v3175
      %v3240 = vpack.c.b16 %v3178, %v3177
      %v3241 = vpack.c.b16 %v3180, %v3179
      %v3242 = vpack.c.b16 %v3182, %v3181
      %v3243 = vpack.c.b16 %v3184, %v3183
      %v3244 = vpack.c.b16 %v3186, %v3185
      %v3245 = vpack.c.b16 %v3188, %v3187
      %v3246 = vpack.c.b16 %v3190, %v3189
      %v3247 = vpack.c.b16 %v3192, %v3191
      %v3248 = vpack.c.b16 %v3194, %v3193
      %v3249 = vpack.c.b16 %v3196, %v3195
      %v3250 = vpack.c.b16 %v3198, %v3197
      %v3251 = vpack.c.b16 %v3200, %v3199
      %v3252 = vpack.c.b16 %v3202, %v3201
      %v3253 = vpack.c.b16 %v3204, %v3203
      %v3254 = vpack.c.b16 %v3206, %v3205
      %v3255 = vpack.c.b16 %v3208, %v3207
      %v3256 = vpack.c.b16 %v3210, %v3209
      %v3257 = vpack.c.b16 %v3212, %v3211
      %v3258 = vpack.c.b16 %v3214, %v3213
      %v3259 = vpack.c.b16 %v3216, %v3215
      %v3260 = vpack.c.b16 %v3218, %v3217
      %v3261 = vpack.c.b16 %v3220, %v3219
      %v3262 = vpack.c.b16 %v3222, %v3221
      %v3263 = vpack.c.b16 %v3224, %v3223
      %v3264 = vpack.c.b16 %v3226, %v3225
      %v3265 = vpack.c.b16 %v3228, %v3227
      %v3266 = vpack.c.b16 %v3230, %v3229
      %v3267 = vpack.c.b16 %v3232, %v3231
      %v3268 = vpack.c.b16 %v3234, %v3233
      %v3269 = vpack.c.b16 %v3236, %v3235
      %v3270 = vpack.c.b16 %v3238, %v3237
      %3303 = vmatprep.subr.bf16.mxu0 0
      %3304 = vmatpush1.bf16.msra.mxu0 %v3239
      %3305 = vmatprep.subr.bf16.mxu0 0
      %3306 = vmatpush1.bf16.msra.mxu0 %v3240
      %3307 = vmatprep.subr.bf16.mxu0 0
      %3308 = vmatpush1.bf16.msra.mxu0 %v3241
      %3309 = vmatprep.subr.bf16.mxu0 0
      %3310 = vmatpush1.bf16.msra.mxu0 %v3242
      %3311 = vmatprep.subr.bf16.mxu0 0
      %3312 = vmatpush1.bf16.msra.mxu0 %v3243
      %3313 = vmatprep.subr.bf16.mxu0 0
      %3314 = vmatpush1.bf16.msra.mxu0 %v3244
      %3315 = vmatprep.subr.bf16.mxu0 0
      %3316 = vmatpush1.bf16.msra.mxu0 %v3245
      %3317 = vmatprep.subr.bf16.mxu0 0
      %3318 = vmatpush1.bf16.msra.mxu0 %v3246
      %3319 = vmatprep.subr.bf16.mxu0 0
      %3320 = vmatpush1.bf16.msra.mxu0 %v3247
      %3321 = vmatprep.subr.bf16.mxu0 0
      %3322 = vmatpush1.bf16.msra.mxu0 %v3248
      %3323 = vmatprep.subr.bf16.mxu0 0
      %3324 = vmatpush1.bf16.msra.mxu0 %v3249
      %3325 = vmatprep.subr.bf16.mxu0 0
      %3326 = vmatpush1.bf16.msra.mxu0 %v3250
      %3327 = vmatprep.subr.bf16.mxu0 0
      %3328 = vmatpush1.bf16.msra.mxu0 %v3251
      %3329 = vmatprep.subr.bf16.mxu0 0
      %3330 = vmatpush1.bf16.msra.mxu0 %v3252
      %3331 = vmatprep.subr.bf16.mxu0 0
      %3332 = vmatpush1.bf16.msra.mxu0 %v3253
      %3333 = vmatprep.subr.bf16.mxu0 0
      %3334 = vmatpush1.bf16.msra.mxu0 %v3254
      %3335 = vmatprep.mubr.bf16.mxu0 %v3104
      %3336 = vmatmul.mubr.bf16.gmra.mrb[0].mxu0 %v3103
      %v3337 = vpop.f32.mrb[0].mxu0
      %v3338 = vadd.f32 0.0, %v3337
      %v3339 = vpop.f32.mrb[0].mxu0
      %v3340 = vpop.f32.mrb[0].mxu0
      %v3341 = vpop.f32.mrb[0].mxu0
      %3342 = vdwg.mxu0
      %3343 = vmatprep.subr.bf16.mxu0 0
      %3344 = vmatpush1.bf16.msra.mxu0 %v3255
      %3345 = vmatprep.subr.bf16.mxu0 0
      %3346 = vmatpush1.bf16.msra.mxu0 %v3256
      %3347 = vmatprep.subr.bf16.mxu0 0
      %3348 = vmatpush1.bf16.msra.mxu0 %v3257
      %3349 = vmatprep.subr.bf16.mxu0 0
      %3350 = vmatpush1.bf16.msra.mxu0 %v3258
      %3351 = vmatprep.subr.bf16.mxu0 0
      %3352 = vmatpush1.bf16.msra.mxu0 %v3259
      %3353 = vmatprep.subr.bf16.mxu0 0
      %3354 = vmatpush1.bf16.msra.mxu0 %v3260
      %3355 = vmatprep.subr.bf16.mxu0 0
      %3356 = vmatpush1.bf16.msra.mxu0 %v3261
      %3357 = vmatprep.subr.bf16.mxu0 0
      %3358 = vmatpush1.bf16.msra.mxu0 %v3262
      %3359 = vmatprep.subr.bf16.mxu0 0
      %3360 = vmatpush1.bf16.msra.mxu0 %v3263
      %3361 = vmatprep.subr.bf16.mxu0 0
      %3362 = vmatpush1.bf16.msra.mxu0 %v3264
      %3363 = vmatprep.subr.bf16.mxu0 0
      %3364 = vmatpush1.bf16.msra.mxu0 %v3265
      %3365 = vmatprep.subr.bf16.mxu0 0
      %3366 = vmatpush1.bf16.msra.mxu0 %v3266
      %3367 = vmatprep.subr.bf16.mxu0 0
      %3368 = vmatpush1.bf16.msra.mxu0 %v3267
      %3369 = vmatprep.subr.bf16.mxu0 0
      %3370 = vmatpush1.bf16.msra.mxu0 %v3268
      %3371 = vmatprep.subr.bf16.mxu0 0
      %3372 = vmatpush1.bf16.msra.mxu0 %v3269
      %3373 = vmatprep.subr.bf16.mxu0 0
      %3374 = vmatpush1.bf16.msra.mxu0 %v3270
      %3375 = vmatprep.mubr.bf16.mxu0 %v3106
      %3376 = vmatmul.mubr.bf16.gmra.mrb[0].mxu0 %v3105
      %v3377 = vpop.f32.mrb[0].mxu0
      %v3378 = vadd.f32 %v3338, %v3377
      %v3379 = vpop.f32.mrb[0].mxu0
      %v3380 = vpop.f32.mrb[0].mxu0
      %v3381 = vpop.f32.mrb[0].mxu0
      %3382 = vdwg.mxu0
      %v3383 = vadd.f32 %v3033, %v3378
      %v3384 = vld [vmem:[%s2] sm:$0x1]
      %v3386 = vlaneseq
      %v3387 = vshrl.u32 %v3386, 7
      %v3388 = vsub.s32 0, %v3387
      %v3389 = vrot.slane %v3384, %v3388
      %v3391 = vmul.f32 %v3383, %v3389
      %v3392 = vld [vmem:[%s3] sm:$0x1]
      %v3394 = vlaneseq
      %v3395 = vshrl.u32 %v3394, 7
      %v3396 = vsub.s32 0, %v3395
      %v3397 = vrot.slane %v3392, %v3396
      %v3399 = vadd.f32 %v3391, %v3397
      %v3400 = vmax.f32 %v3399, 0.0
      %3401 = vst [vmem:[%s195] sm:$0xff] %v3400
      %p3402 = scmp.lt.s32.totalorder %s15, 1
      %s3403 = scalar_select %p3402, %s15, 1
      %s3404 = smul.addr %s3403, 8
      %s3405 = scalar_lea.vmem %s4, %s3404
      // Predicated region
      $region37: #{attanet_head_forward.10} parent=35 // pred_check
        %p3406 = pneg %p122
      $region38: #{attanet_head_forward.10} parent=35 // pred_check_branch
        %3408 = sbr.rel (%p3406) target = $region40
      $region39: #{attanet_head_forward.10} parent=35 // pred_region
        _
      $region40: #{attanet_head_forward.10} parent=35 // pred_fallthru
        _
    $region36: #{attanet_head_forward.10} parent=5 // pred_fallthru
      _
    %p3409 = scmp.le.s32.totalorder 2, %s10
    // Predicated region
    $region41: #{attanet_head_forward.10} parent=5 // pred_check
      %p3410 = pneg %p3409
    $region42: #{attanet_head_forward.10} parent=5 // pred_check_branch
      %3412 = sbr.rel (%p3410) target = $region44
    $region43: #{attanet_head_forward.10} parent=5 // pred_region
      %s3413 = ssub.s32 %s10, 2
      // Predicated region
      $region45: #{attanet_head_forward.10} parent=43 // pred_check
        %p3414 = pneg %p128
      $region46: #{attanet_head_forward.10} parent=43 // pred_check_branch
        %3416 = sbr.rel (%p3414) target = $region48
      $region47: #{attanet_head_forward.10} parent=43 // pred_region
        %p3417 = scmp.lt.s32.totalorder %s16, 1
        %s3418 = scalar_select %p3417, %s16, 1
        %s3419 = smul.addr %s3418, 8
        %s3420 = scalar_lea.vmem %s4, %s3419
      $region48: #{attanet_head_forward.10} parent=43 // pred_fallthru
        _
    $region44: #{attanet_head_forward.10} parent=5 // pred_fallthru
      _
  $region6: #{attanet_head_forward.10} parent=0 // loop_footer
    %s14 = sadd.s32 1, %s10
  $region7: #{attanet_head_forward.10} parent=0 // loop_footer_branch
    %9 = sbr.rel target = $region3
  $region8: #{attanet_head_forward.10} parent=0 // loop_exit
    _

// kernel: attanet_head_forward.14
$region0: #{attanet_head_forward.14}
  #allocation0 [shape = 'u32[]', space=smem, size = 0x4, offset = 0x4, fixed_abs, tag = 'smem constant byte address 0x4 - core index']
  #allocation1 [shape = 'u32[144,128]{1,0:T(1,128)}', space=vmem, size = 0x12000, scoped, tag = 'internal scratch']
  %s0 = inlined_call_operand.vmem [shape: bf16[2,4,64], index: 0, kind: input, shape index: {}]
  %s1 = inlined_call_operand.vmem [shape: bf16[2,64,16], index: 1, kind: input, shape index: {}]
  %s2 = inlined_call_operand.vmem [shape: bf16[2,128,4], index: 2, kind: input, shape index: {}]
  %s3 = inlined_call_operand.vmem [shape: f32[2,128,16], index: 3, kind: input, shape index: {}]
  %s4 = inlined_call_operand.vmem [shape: f32[2,128,16], index: 4, kind: output, shape index: {}]
  %s5 = sld [smem:[#allocation0]]
  $region49: #{attanet_head_forward.14} parent=0
    _
  %s7 = ssub.s32 1, %s5
  %s8 = scalar_select 0, %s7, %s5
  loop: start=0, step=1, limit=4
  $region2: #{attanet_head_forward.14} parent=0 // loop_pre_header
    _
  $region3: #{attanet_head_forward.14} parent=0 // loop_header
    %s10 = sphi 0, %s14
    %p11 = scmp.ge.s32.totalorder %s10, 4
    %s20 = sphi 0, %s22
    %s23 = sphi 0, %s20
    %s24 = sphi 0, %s23
    %s40 = sphi 0, %s24
    %s46 = sphi 0, %s48
    %s49 = sphi 0, %s46
    %s50 = sphi 0, %s49
    %s66 = sphi 0, %s50
    %s72 = sphi 0, %s74
    %s75 = sphi 0, %s72
    %s76 = sphi 0, %s75
    %s92 = sphi 0, %s76
    %s98 = sphi 0, %s100
    %s101 = sphi 0, %s98
    %s102 = sphi 0, %s101
    %s118 = sphi 0, %s102
    %s124 = sphi 0, %s126
    %s127 = sphi 0, %s124
    %s128 = sphi 0, %s127
    %s144 = sphi 0, %s128
  $region4: #{attanet_head_forward.14} parent=0 // loop_header_branch
    %13 = sbr.rel (%p11) target = $region8
  $region5: #{attanet_head_forward.14} parent=0 // loop_body
    %s15 = ssub.s32 %s10, 1
    %s16 = ssub.s32 %s10, 2
    %s17 = sadd.s32 %s10, 1
    %s18 = ssub.s32 %s10, %s17
    %p19 = scmp.eq.s32.totalorder %s18, 0
    %s21 = sadd.s32 %s20, 1
    %s22 = scalar_select %p19, %s20, %s21
    %p25 = pneg %p19
    %p26 = scmp.eq.s32.totalorder %s10, 1
    %p27 = por %p25, %p26
    %p28 = scmp.ne.s32.totalorder %s20, %s23
    %p29 = scmp.eq.s32.totalorder %s10, 0
    %p30 = por %p28, %p29
    %p31 = scmp.ne.s32.totalorder %s20, %s23
    %p32 = scmp.eq.s32.totalorder %s15, 1
    %p33 = por %p31, %p32
    %p34 = scmp.ne.s32.totalorder %s23, %s24
    %p35 = scmp.eq.s32.totalorder %s15, 0
    %p36 = por %p34, %p35
    %p37 = scmp.ne.s32.totalorder %s23, %s24
    %p38 = scmp.eq.s32.totalorder %s16, 1
    %p39 = por %p37, %p38
    %p41 = scmp.ne.s32.totalorder %s24, %s40
    %p42 = scmp.eq.s32.totalorder %s16, 0
    %p43 = por %p41, %p42
    %s44 = ssub.s32 %s10, %s17
    %p45 = scmp.eq.s32.totalorder %s44, 0
    %s47 = sadd.s32 %s46, 1
    %s48 = scalar_select %p45, %s46, %s47
    %p51 = pneg %p45
    %p52 = scmp.eq.s32.totalorder %s10, 1
    %p53 = por %p51, %p52
    %p54 = scmp.ne.s32.totalorder %s46, %s49
    %p55 = scmp.eq.s32.totalorder %s10, 0
    %p56 = por %p54, %p55
    %p57 = scmp.ne.s32.totalorder %s46, %s49
    %p58 = scmp.eq.s32.totalorder %s15, 1
    %p59 = por %p57, %p58
    %p60 = scmp.ne.s32.totalorder %s49, %s50
    %p61 = scmp.eq.s32.totalorder %s15, 0
    %p62 = por %p60, %p61
    %p63 = scmp.ne.s32.totalorder %s49, %s50
    %p64 = scmp.eq.s32.totalorder %s16, 1
    %p65 = por %p63, %p64
    %p67 = scmp.ne.s32.totalorder %s50, %s66
    %p68 = scmp.eq.s32.totalorder %s16, 0
    %p69 = por %p67, %p68
    %s70 = ssub.s32 %s10, %s17
    %p71 = scmp.eq.s32.totalorder %s70, 0
    %s73 = sadd.s32 %s72, 1
    %s74 = scalar_select %p71, %s72, %s73
    %p77 = pneg %p71
    %p78 = scmp.eq.s32.totalorder %s10, 1
    %p79 = por %p77, %p78
    %p80 = scmp.ne.s32.totalorder %s72, %s75
    %p81 = scmp.eq.s32.totalorder %s10, 0
    %p82 = por %p80, %p81
    %p83 = scmp.ne.s32.totalorder %s72, %s75
    %p84 = scmp.eq.s32.totalorder %s15, 1
    %p85 = por %p83, %p84
    %p86 = scmp.ne.s32.totalorder %s75, %s76
    %p87 = scmp.eq.s32.totalorder %s15, 0
    %p88 = por %p86, %p87
    %p89 = scmp.ne.s32.totalorder %s75, %s76
    %p90 = scmp.eq.s32.totalorder %s16, 1
    %p91 = por %p89, %p90
    %p93 = scmp.ne.s32.totalorder %s76, %s92
    %p94 = scmp.eq.s32.totalorder %s16, 0
    %p95 = por %p93, %p94
    %s96 = ssub.s32 %s10, %s17
    %p97 = scmp.eq.s32.totalorder %s96, 0
    %s99 = sadd.s32 %s98, 1
    %s100 = scalar_select %p97, %s98, %s99
    %p103 = pneg %p97
    %p104 = scmp.eq.s32.totalorder %s10, 1
    %p105 = por %p103, %p104
    %p106 = scmp.ne.s32.totalorder %s98, %s101
    %p107 = scmp.eq.s32.totalorder %s10, 0
    %p108 = por %p106, %p107
    %p109 = scmp.ne.s32.totalorder %s98, %s101
    %p110 = scmp.eq.s32.totalorder %s15, 1
    %p111 = por %p109, %p110
    %p112 = scmp.ne.s32.totalorder %s101, %s102
    %p113 = scmp.eq.s32.totalorder %s15, 0
    %p114 = por %p112, %p113
    %p115 = scmp.ne.s32.totalorder %s101, %s102
    %p116 = scmp.eq.s32.totalorder %s16, 1
    %p117 = por %p115, %p116
    %p119 = scmp.ne.s32.totalorder %s102, %s118
    %p120 = scmp.eq.s32.totalorder %s16, 0
    %p121 = por %p119, %p120
    %s122 = ssub.s32 %s10, %s17
    %p123 = scmp.eq.s32.totalorder %s122, 0
    %s125 = sadd.s32 %s124, 1
    %s126 = scalar_select %p123, %s124, %s125
    %p129 = pneg %p123
    %p130 = scmp.eq.s32.totalorder %s10, 1
    %p131 = por %p129, %p130
    %p132 = scmp.ne.s32.totalorder %s124, %s127
    %p133 = scmp.eq.s32.totalorder %s10, 0
    %p134 = por %p132, %p133
    %p135 = scmp.ne.s32.totalorder %s124, %s127
    %p136 = scmp.eq.s32.totalorder %s15, 1
    %p137 = por %p135, %p136
    %p138 = scmp.ne.s32.totalorder %s127, %s128
    %p139 = scmp.eq.s32.totalorder %s15, 0
    %p140 = por %p138, %p139
    %p141 = scmp.ne.s32.totalorder %s127, %s128
    %p142 = scmp.eq.s32.totalorder %s16, 1
    %p143 = por %p141, %p142
    %p145 = scmp.ne.s32.totalorder %s128, %s144
    %p146 = scmp.eq.s32.totalorder %s16, 0
    %p147 = por %p145, %p146
    %p148 = scmp.le.s32.totalorder 1, %s10
    %p149 = scmp.lt.s32.totalorder %s10, 3
    %p150 = pnand %p148, %p149
    %p151 = pneg %p150
    // Predicated region
    $region9: #{attanet_head_forward.14} parent=5 // pred_check
      _
    $region10: #{attanet_head_forward.14} parent=5 // pred_check_branch
      %153 = sbr.rel (%p150) target = $region12
    $region11: #{attanet_head_forward.14} parent=5 // pred_region
      %s154 = ssub.s32 %s10, 1
    $region12: #{attanet_head_forward.14} parent=5 // pred_fallthru
      _
    %p155 = scmp.lt.s32.totalorder %s10, 2
    // Predicated region
    $region13: #{attanet_head_forward.14} parent=5 // pred_check
      %p156 = pneg %p155
    $region14: #{attanet_head_forward.14} parent=5 // pred_check_branch
      %158 = sbr.rel (%p156) target = $region16
    $region15: #{attanet_head_forward.14} parent=5 // pred_region
      // Predicated region
      $region17: #{attanet_head_forward.14} parent=15 // pred_check
        %p159 = pneg %p30
      $region18: #{attanet_head_forward.14} parent=15 // pred_check_branch
        %161 = sbr.rel (%p159) target = $region20
      $region19: #{attanet_head_forward.14} parent=15 // pred_region
        %p162 = scmp.lt.s32.totalorder %s10, 1
        %s163 = scalar_select %p162, %s10, 1
        %s164 = smul.addr %s163, 2
        %s165 = scalar_lea.vmem %s0, %s164
      $region20: #{attanet_head_forward.14} parent=15 // pred_fallthru
        _
      // Predicated region
      $region21: #{attanet_head_forward.14} parent=15 // pred_check
        %p166 = pneg %p56
      $region22: #{attanet_head_forward.14} parent=15 // pred_check_branch
        %168 = sbr.rel (%p166) target = $region24
      $region23: #{attanet_head_forward.14} parent=15 // pred_region
        %p169 = scmp.lt.s32.totalorder %s10, 1
        %s170 = scalar_select %p169, %s10, 1
        %s171 = smul.addr %s170, 8
        %s172 = smul.addr %s171, 4
        %s173 = scalar_lea.vmem %s1, %s172
      $region24: #{attanet_head_forward.14} parent=15 // pred_fallthru
        _
      // Predicated region
      $region25: #{attanet_head_forward.14} parent=15 // pred_check
        %p174 = pneg %p82
      $region26: #{attanet_head_forward.14} parent=15 // pred_check_branch
        %176 = sbr.rel (%p174) target = $region28
      $region27: #{attanet_head_forward.14} parent=15 // pred_region
        %p177 = scmp.lt.s32.totalorder %s10, 1
        %s178 = scalar_select %p177, %s10, 1
        %s179 = smul.addr %s178, 16
        %s180 = smul.addr %s179, 4
        %s181 = scalar_lea.vmem %s2, %s180
      $region28: #{attanet_head_forward.14} parent=15 // pred_fallthru
        _
      // Predicated region
      $region29: #{attanet_head_forward.14} parent=15 // pred_check
        %p182 = pneg %p108
      $region30: #{attanet_head_forward.14} parent=15 // pred_check_branch
        %184 = sbr.rel (%p182) target = $region32
      $region31: #{attanet_head_forward.14} parent=15 // pred_region
        %p185 = scmp.lt.s32.totalorder %s10, 1
        %s186 = scalar_select %p185, %s10, 1
        %s187 = smul.addr %s186, 16
        %s188 = smul.addr %s187, 8
        %s189 = scalar_lea.vmem %s3, %s188
      $region32: #{attanet_head_forward.14} parent=15 // pred_fallthru
        _
    $region16: #{attanet_head_forward.14} parent=5 // pred_fallthru
      _
    %p190 = scmp.le.s32.totalorder 1, %s10
    %p191 = scmp.lt.s32.totalorder %s10, 3
    %p192 = pnand %p190, %p191
    %p193 = pneg %p192
    // Predicated region
    $region33: #{attanet_head_forward.14} parent=5 // pred_check
      _
    $region34: #{attanet_head_forward.14} parent=5 // pred_check_branch
      %195 = sbr.rel (%p192) target = $region36
    $region35: #{attanet_head_forward.14} parent=5 // pred_region
      %s196 = ssub.s32 %s10, 1
      %p197 = scmp.lt.s32.totalorder %s15, 1
      %s198 = scalar_select %p197, %s15, 1
      %s199 = smul.addr %s198, 2
      %s200 = scalar_lea.vmem %s0, %s199
      %p201 = pneg %p36
      %p202 = pneg %p33
      %p203 = scmp.lt.s32.totalorder %s15, 1
      %s204 = scalar_select %p203, %s15, 1
      %s205 = smul.addr %s204, 8
      %s206 = smul.addr %s205, 4
      %s207 = scalar_lea.vmem %s1, %s206
      %p208 = pneg %p62
      %p209 = pneg %p59
      %p210 = scmp.lt.s32.totalorder %s15, 1
      %s211 = scalar_select %p210, %s15, 1
      %s212 = smul.addr %s211, 16
      %s213 = smul.addr %s212, 4
      %s214 = scalar_lea.vmem %s2, %s213
      %p215 = pneg %p88
      %p216 = pneg %p85
      %p217 = scmp.lt.s32.totalorder %s15, 1
      %s218 = scalar_select %p217, %s15, 1
      %s219 = smul.addr %s218, 16
      %s220 = smul.addr %s219, 8
      %s221 = scalar_lea.vmem %s3, %s220
      %p222 = pneg %p114
      %p223 = pneg %p111
      %p224 = pneg %p140
      %p225 = pneg %p137
      %p226 = scmp.lt.s32.totalorder %s15, 1
      %s227 = scalar_select %p226, %s15, 1
      %s228 = smul.addr %s227, 16
      %s229 = smul.addr %s228, 8
      %s230 = scalar_lea.vmem %s4, %s229
      %p231 = scmp.lt.s32.totalorder %s15, 1
      %s232 = scalar_select %p231, %s15, 1
      %s233 = smul.addr %s232, 2
      %s234 = scalar_lea.vmem %s0, %s233
      %p235 = scmp.lt.s32.totalorder %s15, 1
      %s236 = scalar_select %p235, %s15, 1
      %s237 = smul.addr %s236, 8
      %s238 = smul.addr %s237, 4
      %s239 = scalar_lea.vmem %s1, %s238
      %p240 = scmp.lt.s32.totalorder %s15, 1
      %s241 = scalar_select %p240, %s15, 1
      %s242 = smul.addr %s241, 16
      %s243 = smul.addr %s242, 4
      %s244 = scalar_lea.vmem %s2, %s243
      %p245 = scmp.lt.s32.totalorder %s15, 1
      %s246 = scalar_select %p245, %s15, 1
      %s247 = smul.addr %s246, 16
      %s248 = smul.addr %s247, 8
      %s249 = scalar_lea.vmem %s3, %s248
      %p250 = scmp.lt.s32.totalorder %s15, 1
      %s251 = scalar_select %p250, %s15, 1
      %s252 = smul.addr %s251, 16
      %s253 = smul.addr %s252, 8
      %s254 = scalar_lea.vmem %s4, %s253
      %v256 = vld [vmem:[%s234] sm:$0x3]
      %v257 = vld [vmem:[%s239] sm:$0xf]
      %v258 = vld [vmem:[%s239 + $0x4] sm:$0xf]
      %v259 = vld [vmem:[%s239 + $0x8] sm:$0xf]
      %v260 = vld [vmem:[%s239 + $0xc] sm:$0xf]
      %v261 = vld [vmem:[%s239 + $0x10] sm:$0xf]
      %v262 = vld [vmem:[%s239 + $0x14] sm:$0xf]
      %v263 = vld [vmem:[%s239 + $0x18] sm:$0xf]
      %v264 = vld [vmem:[%s239 + $0x1c] sm:$0xf]
      %v265 = vld [vmem:[%s244] sm:$0xf]
      %v266 = vld [vmem:[%s244 + $0x4] sm:$0xf]
      %v267 = vld [vmem:[%s244 + $0x8] sm:$0xf]
      %v268 = vld [vmem:[%s244 + $0xc] sm:$0xf]
      %v269 = vld [vmem:[%s244 + $0x10] sm:$0xf]
      %v270 = vld [vmem:[%s244 + $0x14] sm:$0xf]
      %v271 = vld [vmem:[%s244 + $0x18] sm:$0xf]
      %v272 = vld [vmem:[%s244 + $0x1c] sm:$0xf]
      %v273 = vld [vmem:[%s244 + $0x20] sm:$0xf]
      %v274 = vld [vmem:[%s244 + $0x24] sm:$0xf]
      %v275 = vld [vmem:[%s244 + $0x28] sm:$0xf]
      %v276 = vld [vmem:[%s244 + $0x2c] sm:$0xf]
      %v277 = vld [vmem:[%s244 + $0x30] sm:$0xf]
      %v278 = vld [vmem:[%s244 + $0x34] sm:$0xf]
      %v279 = vld [vmem:[%s244 + $0x38] sm:$0xf]
      %v280 = vld [vmem:[%s244 + $0x3c] sm:$0xf]
      %v289 = vunpack.c.l.b16 %v257
      %v290 = vunpack.c.l.b16 %v258
      %v291 = vunpack.c.l.b16 %v259
      %v292 = vunpack.c.l.b16 %v260
      %v293 = vunpack.c.l.b16 %v261
      %v294 = vunpack.c.l.b16 %v262
      %v295 = vunpack.c.l.b16 %v263
      %v296 = vunpack.c.l.b16 %v264
      %v297 = vpack.c.b16 %v290, %v289
      %v298 = vpack.c.b16 %v292, %v291
      %v299 = vpack.c.b16 %v294, %v293
      %v300 = vpack.c.b16 %v296, %v295
      %vm305 = vcmask 523264
      %v307 = vsel %vm305, %v256, 0
      %309 = vmatprep.subr.bf16.mxu0 0
      %310 = vmatpush1.bf16.msra.mxu0 %v297
      %311 = vmatprep.subr.bf16.mxu0 0
      %312 = vmatpush1.bf16.msra.mxu0 %v298
      %313 = vmatprep.subr.bf16.mxu0 0
      %314 = vmatpush1.bf16.msra.mxu0 %v299
      %315 = vmatprep.subr.bf16.mxu0 0
      %316 = vmatpush1.bf16.msra.mxu0 %v300
      %317 = vmatprep.subr.bf16.mxu0 0
      %318 = vmatpush1.bf16.msra.mxu0 0
      %319 = vmatprep.subr.bf16.mxu0 0
      %320 = vmatpush1.bf16.msra.mxu0 0
      %321 = vmatprep.subr.bf16.mxu0 0
      %322 = vmatpush1.bf16.msra.mxu0 0
      %323 = vmatprep.subr.bf16.mxu0 0
      %324 = vmatpush1.bf16.msra.mxu0 0
      %325 = vmatprep.subr.bf16.mxu0 0
      %326 = vmatpush1.bf16.msra.mxu0 0
      %327 = vmatprep.subr.bf16.mxu0 0
      %328 = vmatpush1.bf16.msra.mxu0 0
      %329 = vmatprep.subr.bf16.mxu0 0
      %330 = vmatpush1.bf16.msra.mxu0 0
      %331 = vmatprep.subr.bf16.mxu0 0
      %332 = vmatpush1.bf16.msra.mxu0 0
      %333 = vmatprep.subr.bf16.mxu0 0
      %334 = vmatpush1.bf16.msra.mxu0 0
      %335 = vmatprep.subr.bf16.mxu0 0
      %336 = vmatpush1.bf16.msra.mxu0 0
      %337 = vmatprep.subr.bf16.mxu0 0
      %338 = vmatpush1.bf16.msra.mxu0 0
      %339 = vmatprep.subr.bf16.mxu0 0
      %340 = vmatpush1.bf16.msra.mxu0 0
      %341 = vmatprep.mubr.bf16.mxu0 0
      %342 = vmatmul.mubr.bf16.gmra.mrb[0].mxu0 %v307
      %v343 = vpop.f32.mrb[0].mxu0
      %v344 = vadd.f32 0.0, %v343
      %v345 = vpop.f32.mrb[0].mxu0
      %v346 = vpop.f32.mrb[0].mxu0
      %v347 = vpop.f32.mrb[0].mxu0
      %348 = vdwg.mxu0
      %vm349 = vcmask 125952
      %v350 = vsel %vm349, %v344, -inf
      %v351 = vrot.slane %v350, 4
      %v352 = vmax.f32 %v350, %v351
      %v353 = vrot.slane %v352, 2
      %v354 = vmax.f32 %v352, %v353
      %v355 = vrot.slane %v354, 1
      %v356 = vmax.f32 %v354, %v355
      %v357 = vsub.f32 %v344, %v356
      %v358 = vmul.f32 %v357, 1.442695
      %v359 = vpow.pop %v358
      %v360 = vsel %vm349, %v359, 0.0
      %v361 = vrot.slane %v360, 4
      %v362 = vadd.f32 %v360, %v361
      %v363 = vrot.slane %v362, 2
      %v364 = vadd.f32 %v362, %v363
      %v365 = vrot.slane %v364, 1
      %v366 = vadd.f32 %v364, %v365
      %v367 = vrcp.pop %v366
      %v368 = vmul.f32 %v359, %v367
      %v369 = vpack.c.bf16 %v368, %v368
      %v386 = vunpack.c.l.b16 %v265
      %v387 = vunpack.c.l.b16 %v266
      %v388 = vunpack.c.l.b16 %v267
      %v389 = vunpack.c.l.b16 %v268
      %v390 = vunpack.c.l.b16 %v269
      %v391 = vunpack.c.l.b16 %v270
      %v392 = vunpack.c.l.b16 %v271
      %v393 = vunpack.c.l.b16 %v272
      %v394 = vunpack.c.l.b16 %v273
      %v395 = vunpack.c.l.b16 %v274
      %v396 = vunpack.c.l.b16 %v275
      %v397 = vunpack.c.l.b16 %v276
      %v398 = vunpack.c.l.b16 %v277
      %v399 = vunpack.c.l.b16 %v278
      %v400 = vunpack.c.l.b16 %v279
      %v401 = vunpack.c.l.b16 %v280
      %v402 = vpack.c.b16 %v387, %v386
      %v403 = vpack.c.b16 %v389, %v388
      %v404 = vpack.c.b16 %v391, %v390
      %v405 = vpack.c.b16 %v393, %v392
      %v406 = vpack.c.b16 %v395, %v394
      %v407 = vpack.c.b16 %v397, %v396
      %v408 = vpack.c.b16 %v399, %v398
      %v409 = vpack.c.b16 %v401, %v400
      %vm410 = vcmask 31744
      %v412 = vsel %vm410, %v402, 0
      %v415 = vsel %vm410, %v403, 0
      %v418 = vsel %vm410, %v404, 0
      %v421 = vsel %vm410, %v405, 0
      %v424 = vsel %vm410, %v406, 0
      %v427 = vsel %vm410, %v407, 0
      %v430 = vsel %vm410, %v408, 0
      %v433 = vsel %vm410, %v409, 0
      %vm435 = vcmask 1041408
      %v437 = vsel %vm435, %v369, 0
      %439 = vmatprep.subr.bf16.mxu0 0
      %440 = vmatpush1.bf16.msra.mxu0 %v437
      %441 = vmatprep.subr.bf16.mxu0 0
      %442 = vmatpush1.bf16.msra.mxu0 0
      %443 = vmatprep.subr.bf16.mxu0 0
      %444 = vmatpush1.bf16.msra.mxu0 0
      %445 = vmatprep.subr.bf16.mxu0 0
      %446 = vmatpush1.bf16.msra.mxu0 0
      %447 = vmatprep.subr.bf16.mxu0 0
      %448 = vmatpush1.bf16.msra.mxu0 0
      %449 = vmatprep.subr.bf16.mxu0 0
      %450 = vmatpush1.bf16.msra.mxu0 0
      %451 = vmatprep.subr.bf16.mxu0 0
      %452 = vmatpush1.bf16.msra.mxu0 0
      %453 = vmatprep.subr.bf16.mxu0 0
      %454 = vmatpush1.bf16.msra.mxu0 0
      %455 = vmatprep.subr.bf16.mxu0 0
      %456 = vmatpush1.bf16.msra.mxu0 0
      %457 = vmatprep.subr.bf16.mxu0 0
      %458 = vmatpush1.bf16.msra.mxu0 0
      %459 = vmatprep.subr.bf16.mxu0 0
      %460 = vmatpush1.bf16.msra.mxu0 0
      %461 = vmatprep.subr.bf16.mxu0 0
      %462 = vmatpush1.bf16.msra.mxu0 0
      %463 = vmatprep.subr.bf16.mxu0 0
      %464 = vmatpush1.bf16.msra.mxu0 0
      %465 = vmatprep.subr.bf16.mxu0 0
      %466 = vmatpush1.bf16.msra.mxu0 0
      %467 = vmatprep.subr.bf16.mxu0 0
      %468 = vmatpush1.bf16.msra.mxu0 0
      %469 = vmatprep.subr.bf16.mxu0 0
      %470 = vmatpush1.bf16.msra.mxu0 0
      %471 = vmatprep.mubr.bf16.mxu0 0
      %472 = vmatmul.mubr.bf16.gmra.mrb[0].mxu0 %v412
      %v473 = vpop.f32.mrb[0].mxu0
      %v474 = vadd.f32 0.0, %v473
      %v475 = vpop.f32.mrb[0].mxu0
      %v476 = vpop.f32.mrb[0].mxu0
      %v477 = vadd.f32 0.0, %v476
      %v478 = vpop.f32.mrb[0].mxu0
      %479 = vmatprep.mubr.bf16.mxu0 0
      %480 = vmatmul.mubr.bf16.gmra.mrb[0].mxu0 %v415
      %v481 = vpop.f32.mrb[0].mxu0
      %v482 = vadd.f32 0.0, %v481
      %v483 = vpop.f32.mrb[0].mxu0
      %v484 = vpop.f32.mrb[0].mxu0
      %v485 = vadd.f32 0.0, %v484
      %v486 = vpop.f32.mrb[0].mxu0
      %487 = vmatprep.mubr.bf16.mxu0 0
      %488 = vmatmul.mubr.bf16.gmra.mrb[0].mxu0 %v418
      %v489 = vpop.f32.mrb[0].mxu0
      %v490 = vadd.f32 0.0, %v489
      %v491 = vpop.f32.mrb[0].mxu0
      %v492 = vpop.f32.mrb[0].mxu0
      %v493 = vadd.f32 0.0, %v492
      %v494 = vpop.f32.mrb[0].mxu0
      %495 = vmatprep.mubr.bf16.mxu0 0
      %496 = vmatmul.mubr.bf16.gmra.mrb[0].mxu0 %v421
      %v497 = vpop.f32.mrb[0].mxu0
      %v498 = vadd.f32 0.0, %v497
      %v499 = vpop.f32.mrb[0].mxu0
      %v500 = vpop.f32.mrb[0].mxu0
      %v501 = vadd.f32 0.0, %v500
      %v502 = vpop.f32.mrb[0].mxu0
      %503 = vmatprep.mubr.bf16.mxu0 0
      %504 = vmatmul.mubr.bf16.gmra.mrb[0].mxu0 %v424
      %v505 = vpop.f32.mrb[0].mxu0
      %v506 = vadd.f32 0.0, %v505
      %v507 = vpop.f32.mrb[0].mxu0
      %v508 = vpop.f32.mrb[0].mxu0
      %v509 = vadd.f32 0.0, %v508
      %v510 = vpop.f32.mrb[0].mxu0
      %511 = vmatprep.mubr.bf16.mxu0 0
      %512 = vmatmul.mubr.bf16.gmra.mrb[0].mxu0 %v427
      %v513 = vpop.f32.mrb[0].mxu0
      %v514 = vadd.f32 0.0, %v513
      %v515 = vpop.f32.mrb[0].mxu0
      %v516 = vpop.f32.mrb[0].mxu0
      %v517 = vadd.f32 0.0, %v516
      %v518 = vpop.f32.mrb[0].mxu0
      %519 = vmatprep.mubr.bf16.mxu0 0
      %520 = vmatmul.mubr.bf16.gmra.mrb[0].mxu0 %v430
      %v521 = vpop.f32.mrb[0].mxu0
      %v522 = vadd.f32 0.0, %v521
      %v523 = vpop.f32.mrb[0].mxu0
      %v524 = vpop.f32.mrb[0].mxu0
      %v525 = vadd.f32 0.0, %v524
      %v526 = vpop.f32.mrb[0].mxu0
      %527 = vmatprep.mubr.bf16.mxu0 0
      %528 = vmatmul.mubr.bf16.gmra.mrb[0].mxu0 %v433
      %v529 = vpop.f32.mrb[0].mxu0
      %v530 = vadd.f32 0.0, %v529
      %v531 = vpop.f32.mrb[0].mxu0
      %v532 = vpop.f32.mrb[0].mxu0
      %v533 = vadd.f32 0.0, %v532
      %v534 = vpop.f32.mrb[0].mxu0
      %535 = vdwg.mxu0
      %v536 = vld [vmem:[%s249] sm:$0xff]
      %v537 = vld [vmem:[%s249 + $0x8] sm:$0xff]
      %v538 = vld [vmem:[%s249 + $0x10] sm:$0xff]
      %v539 = vld [vmem:[%s249 + $0x18] sm:$0xff]
      %v540 = vld [vmem:[%s249 + $0x20] sm:$0xff]
      %v541 = vld [vmem:[%s249 + $0x28] sm:$0xff]
      %v542 = vld [vmem:[%s249 + $0x30] sm:$0xff]
      %v543 = vld [vmem:[%s249 + $0x38] sm:$0xff]
      %v544 = vld [vmem:[%s249 + $0x40] sm:$0xff]
      %v545 = vld [vmem:[%s249 + $0x48] sm:$0xff]
      %v546 = vld [vmem:[%s249 + $0x50] sm:$0xff]
      %v547 = vld [vmem:[%s249 + $0x58] sm:$0xff]
      %v548 = vld [vmem:[%s249 + $0x60] sm:$0xff]
      %v549 = vld [vmem:[%s249 + $0x68] sm:$0xff]
      %v550 = vld [vmem:[%s249 + $0x70] sm:$0xff]
      %v551 = vld [vmem:[%s249 + $0x78] sm:$0xff]
      %v552 = vadd.f32 %v536, %v474
      %v553 = vadd.f32 %v537, %v477
      %v554 = vadd.f32 %v538, %v482
      %v555 = vadd.f32 %v539, %v485
      %v556 = vadd.f32 %v540, %v490
      %v557 = vadd.f32 %v541, %v493
      %v558 = vadd.f32 %v542, %v498
      %v559 = vadd.f32 %v543, %v501
      %v560 = vadd.f32 %v544, %v506
      %v561 = vadd.f32 %v545, %v509
      %v562 = vadd.f32 %v546, %v514
      %v563 = vadd.f32 %v547, %v517
      %v564 = vadd.f32 %v548, %v522
      %v565 = vadd.f32 %v549, %v525
      %v566 = vadd.f32 %v550, %v530
      %v567 = vadd.f32 %v551, %v533
      %vm568 = vcmask 130048
      %569 = vst.msk [vmem:[%s254] sm:$0xff] %vm568, %v552
      %570 = vst.msk [vmem:[%s254 + $0x8] sm:$0xff] %vm568, %v553
      %571 = vst.msk [vmem:[%s254 + $0x10] sm:$0xff] %vm568, %v554
      %572 = vst.msk [vmem:[%s254 + $0x18] sm:$0xff] %vm568, %v555
      %573 = vst.msk [vmem:[%s254 + $0x20] sm:$0xff] %vm568, %v556
      %574 = vst.msk [vmem:[%s254 + $0x28] sm:$0xff] %vm568, %v557
      %575 = vst.msk [vmem:[%s254 + $0x30] sm:$0xff] %vm568, %v558
      %576 = vst.msk [vmem:[%s254 + $0x38] sm:$0xff] %vm568, %v559
      %577 = vst.msk [vmem:[%s254 + $0x40] sm:$0xff] %vm568, %v560
      %578 = vst.msk [vmem:[%s254 + $0x48] sm:$0xff] %vm568, %v561
      %579 = vst.msk [vmem:[%s254 + $0x50] sm:$0xff] %vm568, %v562
      %580 = vst.msk [vmem:[%s254 + $0x58] sm:$0xff] %vm568, %v563
      %581 = vst.msk [vmem:[%s254 + $0x60] sm:$0xff] %vm568, %v564
      %582 = vst.msk [vmem:[%s254 + $0x68] sm:$0xff] %vm568, %v565
      %583 = vst.msk [vmem:[%s254 + $0x70] sm:$0xff] %vm568, %v566
      %584 = vst.msk [vmem:[%s254 + $0x78] sm:$0xff] %vm568, %v567
      %p585 = scmp.lt.s32.totalorder %s15, 1
      %s586 = scalar_select %p585, %s15, 1
      %s587 = smul.addr %s586, 16
      %s588 = smul.addr %s587, 8
      %s589 = scalar_lea.vmem %s4, %s588
      // Predicated region
      $region37: #{attanet_head_forward.14} parent=35 // pred_check
        %p590 = pneg %p137
      $region38: #{attanet_head_forward.14} parent=35 // pred_check_branch
        %592 = sbr.rel (%p590) target = $region40
      $region39: #{attanet_head_forward.14} parent=35 // pred_region
        _
      $region40: #{attanet_head_forward.14} parent=35 // pred_fallthru
        _
    $region36: #{attanet_head_forward.14} parent=5 // pred_fallthru
      _
    %p593 = scmp.le.s32.totalorder 2, %s10
    // Predicated region
    $region41: #{attanet_head_forward.14} parent=5 // pred_check
      %p594 = pneg %p593
    $region42: #{attanet_head_forward.14} parent=5 // pred_check_branch
      %596 = sbr.rel (%p594) target = $region44
    $region43: #{attanet_head_forward.14} parent=5 // pred_region
      %s597 = ssub.s32 %s10, 2
      // Predicated region
      $region45: #{attanet_head_forward.14} parent=43 // pred_check
        %p598 = pneg %p143
      $region46: #{attanet_head_forward.14} parent=43 // pred_check_branch
        %600 = sbr.rel (%p598) target = $region48
      $region47: #{attanet_head_forward.14} parent=43 // pred_region
        %p601 = scmp.lt.s32.totalorder %s16, 1
        %s602 = scalar_select %p601, %s16, 1
        %s603 = smul.addr %s602, 16
        %s604 = smul.addr %s603, 8
        %s605 = scalar_lea.vmem %s4, %s604
      $region48: #{attanet_head_forward.14} parent=43 // pred_fallthru
        _
    $region44: #{attanet_head_forward.14} parent=5 // pred_fallthru
      _
  $region6: #{attanet_head_forward.14} parent=0 // loop_footer
    %s14 = sadd.s32 1, %s10
  $region7: #{attanet_head_forward.14} parent=0 // loop_footer_branch
    %9 = sbr.rel target = $region3
  $region8: #{attanet_head_forward.14} parent=0 // loop_exit
    _

// kernel: attanet_head_forward.15
$region0: #{attanet_head_forward.15}
  #allocation0 [shape = 'u32[]', space=smem, size = 0x4, offset = 0x4, fixed_abs, tag = 'smem constant byte address 0x4 - core index']
  #allocation1 [shape = 'u32[144,128]{1,0:T(1,128)}', space=vmem, size = 0x12000, scoped, tag = 'internal scratch']
  %s0 = inlined_call_operand.vmem [shape: f32[2,102,128], index: 0, kind: input, shape index: {}]
  %s1 = inlined_call_operand.vmem [shape: bf16[3,3,128,128], index: 1, kind: input, shape index: {}]
  %s2 = inlined_call_operand.vmem [shape: f32[1,128], index: 2, kind: input, shape index: {}]
  %s3 = inlined_call_operand.vmem [shape: f32[1,128], index: 3, kind: input, shape index: {}]
  %s4 = inlined_call_operand.vmem [shape: f32[2,80,128], index: 4, kind: output, shape index: {}]
  %s5 = sld [smem:[#allocation0]]
  $region49: #{attanet_head_forward.15} parent=0
    _
  %s7 = ssub.s32 1, %s5
  %s8 = scalar_select 0, %s7, %s5
  loop: start=0, step=1, limit=4
  $region2: #{attanet_head_forward.15} parent=0 // loop_pre_header
    _
  $region3: #{attanet_head_forward.15} parent=0 // loop_header
    %s10 = sphi 0, %s14
    %p11 = scmp.ge.s32.totalorder %s10, 4
    %s20 = sphi 0, %s22
    %s23 = sphi 0, %s20
    %s24 = sphi 0, %s23
    %s40 = sphi 0, %s24
    %s44 = sphi 0, %s44
    %s46 = sphi 0, %s44
    %s47 = sphi 0, %s46
    %s61 = sphi 0, %s47
    %s65 = sphi 0, %s65
    %s67 = sphi 0, %s65
    %s68 = sphi 0, %s67
    %s82 = sphi 0, %s68
    %s86 = sphi 0, %s86
    %s88 = sphi 0, %s86
    %s89 = sphi 0, %s88
    %s103 = sphi 0, %s89
    %s109 = sphi 0, %s111
    %s112 = sphi 0, %s109
    %s113 = sphi 0, %s112
    %s129 = sphi 0, %s113
  $region4: #{attanet_head_forward.15} parent=0 // loop_header_branch
    %13 = sbr.rel (%p11) target = $region8
  $region5: #{attanet_head_forward.15} parent=0 // loop_body
    %s15 = ssub.s32 %s10, 1
    %s16 = ssub.s32 %s10, 2
    %s17 = sadd.s32 %s10, 1
    %s18 = ssub.s32 %s10, %s17
    %p19 = scmp.eq.s32.totalorder %s18, 0
    %s21 = sadd.s32 %s20, 1
    %s22 = scalar_select %p19, %s20, %s21
    %p25 = pneg %p19
    %p26 = scmp.eq.s32.totalorder %s10, 1
    %p27 = por %p25, %p26
    %p28 = scmp.ne.s32.totalorder %s20, %s23
    %p29 = scmp.eq.s32.totalorder %s10, 0
    %p30 = por %p28, %p29
    %p31 = scmp.ne.s32.totalorder %s20, %s23
    %p32 = scmp.eq.s32.totalorder %s15, 1
    %p33 = por %p31, %p32
    %p34 = scmp.ne.s32.totalorder %s23, %s24
    %p35 = scmp.eq.s32.totalorder %s15, 0
    %p36 = por %p34, %p35
    %p37 = scmp.ne.s32.totalorder %s23, %s24
    %p38 = scmp.eq.s32.totalorder %s16, 1
    %p39 = por %p37, %p38
    %p41 = scmp.ne.s32.totalorder %s24, %s40
    %p42 = scmp.eq.s32.totalorder %s16, 0
    %p43 = por %p41, %p42
    %s45 = sadd.s32 %s44, 1
    %p48 = scmp.eq.s32.totalorder %s10, 1
    %p49 = scmp.ne.s32.totalorder %s44, %s46
    %p50 = scmp.eq.s32.totalorder %s10, 0
    %p51 = por %p49, %p50
    %p52 = scmp.ne.s32.totalorder %s44, %s46
    %p53 = scmp.eq.s32.totalorder %s15, 1
    %p54 = por %p52, %p53
    %p55 = scmp.ne.s32.totalorder %s46, %s47
    %p56 = scmp.eq.s32.totalorder %s15, 0
    %p57 = por %p55, %p56
    %p58 = scmp.ne.s32.totalorder %s46, %s47
    %p59 = scmp.eq.s32.totalorder %s16, 1
    %p60 = por %p58, %p59
    %p62 = scmp.ne.s32.totalorder %s47, %s61
    %p63 = scmp.eq.s32.totalorder %s16, 0
    %p64 = por %p62, %p63
    %s66 = sadd.s32 %s65, 1
    %p69 = scmp.eq.s32.totalorder %s10, 1
    %p70 = scmp.ne.s32.totalorder %s65, %s67
    %p71 = scmp.eq.s32.totalorder %s10, 0
    %p72 = por %p70, %p71
    %p73 = scmp.ne.s32.totalorder %s65, %s67
    %p74 = scmp.eq.s32.totalorder %s15, 1
    %p75 = por %p73, %p74
    %p76 = scmp.ne.s32.totalorder %s67, %s68
    %p77 = scmp.eq.s32.totalorder %s15, 0
    %p78 = por %p76, %p77
    %p79 = scmp.ne.s32.totalorder %s67, %s68
    %p80 = scmp.eq.s32.totalorder %s16, 1
    %p81 = por %p79, %p80
    %p83 = scmp.ne.s32.totalorder %s68, %s82
    %p84 = scmp.eq.s32.totalorder %s16, 0
    %p85 = por %p83, %p84
    %s87 = sadd.s32 %s86, 1
    %p90 = scmp.eq.s32.totalorder %s10, 1
    %p91 = scmp.ne.s32.totalorder %s86, %s88
    %p92 = scmp.eq.s32.totalorder %s10, 0
    %p93 = por %p91, %p92
    %p94 = scmp.ne.s32.totalorder %s86, %s88
    %p95 = scmp.eq.s32.totalorder %s15, 1
    %p96 = por %p94, %p95
    %p97 = scmp.ne.s32.totalorder %s88, %s89
    %p98 = scmp.eq.s32.totalorder %s15, 0
    %p99 = por %p97, %p98
    %p100 = scmp.ne.s32.totalorder %s88, %s89
    %p101 = scmp.eq.s32.totalorder %s16, 1
    %p102 = por %p100, %p101
    %p104 = scmp.ne.s32.totalorder %s89, %s103
    %p105 = scmp.eq.s32.totalorder %s16, 0
    %p106 = por %p104, %p105
    %s107 = ssub.s32 %s10, %s17
    %p108 = scmp.eq.s32.totalorder %s107, 0
    %s110 = sadd.s32 %s109, 1
    %s111 = scalar_select %p108, %s109, %s110
    %p114 = pneg %p108
    %p115 = scmp.eq.s32.totalorder %s10, 1
    %p116 = por %p114, %p115
    %p117 = scmp.ne.s32.totalorder %s109, %s112
    %p118 = scmp.eq.s32.totalorder %s10, 0
    %p119 = por %p117, %p118
    %p120 = scmp.ne.s32.totalorder %s109, %s112
    %p121 = scmp.eq.s32.totalorder %s15, 1
    %p122 = por %p120, %p121
    %p123 = scmp.ne.s32.totalorder %s112, %s113
    %p124 = scmp.eq.s32.totalorder %s15, 0
    %p125 = por %p123, %p124
    %p126 = scmp.ne.s32.totalorder %s112, %s113
    %p127 = scmp.eq.s32.totalorder %s16, 1
    %p128 = por %p126, %p127
    %p130 = scmp.ne.s32.totalorder %s113, %s129
    %p131 = scmp.eq.s32.totalorder %s16, 0
    %p132 = por %p130, %p131
    %p133 = scmp.le.s32.totalorder 1, %s10
    %p134 = scmp.lt.s32.totalorder %s10, 3
    %p135 = pnand %p133, %p134
    %p136 = pneg %p135
    // Predicated region
    $region9: #{attanet_head_forward.15} parent=5 // pred_check
      _
    $region10: #{attanet_head_forward.15} parent=5 // pred_check_branch
      %138 = sbr.rel (%p135) target = $region12
    $region11: #{attanet_head_forward.15} parent=5 // pred_region
      %s139 = ssub.s32 %s10, 1
      // Predicated region
      $region13: #{attanet_head_forward.15} parent=11 // pred_check
        %p140 = pneg %p57
      $region14: #{attanet_head_forward.15} parent=11 // pred_check_branch
        %142 = sbr.rel (%p140) target = $region16
      $region15: #{attanet_head_forward.15} parent=11 // pred_region
        _
      $region16: #{attanet_head_forward.15} parent=11 // pred_fallthru
        _
      // Predicated region
      $region17: #{attanet_head_forward.15} parent=11 // pred_check
        %p143 = pneg %p78
      $region18: #{attanet_head_forward.15} parent=11 // pred_check_branch
        %145 = sbr.rel (%p143) target = $region20
      $region19: #{attanet_head_forward.15} parent=11 // pred_region
        _
      $region20: #{attanet_head_forward.15} parent=11 // pred_fallthru
        _
      // Predicated region
      $region21: #{attanet_head_forward.15} parent=11 // pred_check
        %p146 = pneg %p99
      $region22: #{attanet_head_forward.15} parent=11 // pred_check_branch
        %148 = sbr.rel (%p146) target = $region24
      $region23: #{attanet_head_forward.15} parent=11 // pred_region
        _
      $region24: #{attanet_head_forward.15} parent=11 // pred_fallthru
        _
    $region12: #{attanet_head_forward.15} parent=5 // pred_fallthru
      _
    %p149 = scmp.lt.s32.totalorder %s10, 2
    // Predicated region
    $region25: #{attanet_head_forward.15} parent=5 // pred_check
      %p150 = pneg %p149
    $region26: #{attanet_head_forward.15} parent=5 // pred_check_branch
      %152 = sbr.rel (%p150) target = $region28
    $region27: #{attanet_head_forward.15} parent=5 // pred_region
      // Predicated region
      $region29: #{attanet_head_forward.15} parent=27 // pred_check
        %p153 = pneg %p30
      $region30: #{attanet_head_forward.15} parent=27 // pred_check_branch
        %155 = sbr.rel (%p153) target = $region32
      $region31: #{attanet_head_forward.15} parent=27 // pred_region
        %p156 = scmp.lt.s32.totalorder %s10, 1
        %s157 = scalar_select %p156, %s10, 1
        %s158 = smul.addr %s157, 13
        %s159 = smul.addr %s158, 8
        %s160 = scalar_lea.vmem %s0, %s159
      $region32: #{attanet_head_forward.15} parent=27 // pred_fallthru
        _
    $region28: #{attanet_head_forward.15} parent=5 // pred_fallthru
      _
    %p161 = scmp.le.s32.totalorder 1, %s10
    %p162 = scmp.lt.s32.totalorder %s10, 3
    %p163 = pnand %p161, %p162
    %p164 = pneg %p163
    // Predicated region
    $region33: #{attanet_head_forward.15} parent=5 // pred_check
      _
    $region34: #{attanet_head_forward.15} parent=5 // pred_check_branch
      %166 = sbr.rel (%p163) target = $region36
    $region35: #{attanet_head_forward.15} parent=5 // pred_region
      %s167 = ssub.s32 %s10, 1
      %p168 = scmp.lt.s32.totalorder %s15, 1
      %s169 = scalar_select %p168, %s15, 1
      %s170 = smul.addr %s169, 13
      %s171 = smul.addr %s170, 8
      %s172 = scalar_lea.vmem %s0, %s171
      %p173 = pneg %p36
      %p174 = pneg %p33
      %p175 = pneg %p57
      %p176 = pneg %p54
      %p177 = pneg %p78
      %p178 = pneg %p75
      %p179 = pneg %p99
      %p180 = pneg %p96
      %p181 = pneg %p125
      %p182 = pneg %p122
      %p183 = scmp.lt.s32.totalorder %s15, 1
      %s184 = scalar_select %p183, %s15, 1
      %s185 = smul.addr %s184, 10
      %s186 = smul.addr %s185, 8
      %s187 = scalar_lea.vmem %s4, %s186
      %p188 = scmp.lt.s32.totalorder %s15, 1
      %s189 = scalar_select %p188, %s15, 1
      %s190 = smul.addr %s189, 13
      %s191 = smul.addr %s190, 8
      %s192 = scalar_lea.vmem %s0, %s191
      %p193 = scmp.lt.s32.totalorder %s15, 1
      %s194 = scalar_select %p193, %s15, 1
      %s195 = smul.addr %s194, 10
      %s196 = smul.addr %s195, 8
      %s197 = scalar_lea.vmem %s4, %s196
      %v199 = vld [vmem:[%s192] sm:$0xff]
      %v200 = vld [vmem:[%s192 + $0x8] sm:$0xff]
      %v201 = vld [vmem:[%s192 + $0x10] sm:$0xff]
      %v202 = vld [vmem:[%s192 + $0x18] sm:$0xff]
      %v203 = vld [vmem:[%s192 + $0x20] sm:$0xff]
      %v204 = vld [vmem:[%s192 + $0x28] sm:$0xff]
      %v205 = vld [vmem:[%s192 + $0x30] sm:$0xff]
      %v206 = vld [vmem:[%s192 + $0x38] sm:$0xff]
      %v207 = vld [vmem:[%s192 + $0x40] sm:$0xff]
      %v208 = vld [vmem:[%s192 + $0x48] sm:$0xff]
      %v209 = vld [vmem:[%s192 + $0x50] sm:$0xff]
      %v210 = vld [vmem:[%s192 + $0x58] sm:$0xff]
      %v211 = vld [vmem:[%s192 + $0x60] sm:$0x3f]
      %v212 = vpack.c.bf16 %v200, %v199
      %v213 = vpack.c.bf16 %v202, %v201
      %v214 = vpack.c.bf16 %v204, %v203
      %v215 = vpack.c.bf16 %v206, %v205
      %v216 = vpack.c.bf16 %v208, %v207
      %v217 = vld [vmem:[%s1] sm:$0xf]
      %v218 = vld [vmem:[%s1 + $0x4] sm:$0xf]
      %v219 = vld [vmem:[%s1 + $0x8] sm:$0xf]
      %v220 = vld [vmem:[%s1 + $0xc] sm:$0xf]
      %v221 = vld [vmem:[%s1 + $0x10] sm:$0xf]
      %v222 = vld [vmem:[%s1 + $0x14] sm:$0xf]
      %v223 = vld [vmem:[%s1 + $0x18] sm:$0xf]
      %v224 = vld [vmem:[%s1 + $0x1c] sm:$0xf]
      %v225 = vld [vmem:[%s1 + $0x20] sm:$0xf]
      %v226 = vld [vmem:[%s1 + $0x24] sm:$0xf]
      %v227 = vld [vmem:[%s1 + $0x28] sm:$0xf]
      %v228 = vld [vmem:[%s1 + $0x2c] sm:$0xf]
      %v229 = vld [vmem:[%s1 + $0x30] sm:$0xf]
      %v230 = vld [vmem:[%s1 + $0x34] sm:$0xf]
      %v231 = vld [vmem:[%s1 + $0x38] sm:$0xf]
      %v232 = vld [vmem:[%s1 + $0x3c] sm:$0xf]
      %v233 = vpack.c.bf16 %v209, %v209
      %s234 = scalar_lea.vmem %s1, 64
      %v235 = vld [vmem:[%s234] sm:$0xf]
      %v236 = vld [vmem:[%s234 + $0x4] sm:$0xf]
      %v237 = vld [vmem:[%s234 + $0x8] sm:$0xf]
      %v238 = vld [vmem:[%s234 + $0xc] sm:$0xf]
      %v239 = vld [vmem:[%s234 + $0x10] sm:$0xf]
      %v240 = vld [vmem:[%s234 + $0x14] sm:$0xf]
      %v241 = vld [vmem:[%s234 + $0x18] sm:$0xf]
      %v242 = vld [vmem:[%s234 + $0x1c] sm:$0xf]
      %v243 = vld [vmem:[%s234 + $0x20] sm:$0xf]
      %v244 = vld [vmem:[%s234 + $0x24] sm:$0xf]
      %v245 = vld [vmem:[%s234 + $0x28] sm:$0xf]
      %v246 = vld [vmem:[%s234 + $0x2c] sm:$0xf]
      %v247 = vld [vmem:[%s234 + $0x30] sm:$0xf]
      %v248 = vld [vmem:[%s234 + $0x34] sm:$0xf]
      %v249 = vld [vmem:[%s234 + $0x38] sm:$0xf]
      %v250 = vld [vmem:[%s234 + $0x3c] sm:$0xf]
      %vm251 = vsmask.f32 7424
      %v253 = vshrl.u32 %v212, 16
      %v255 = vshll.u32 %v212, 16
      %v257 = vrot.slane %v255, 1
      %v258 = vor.u32 %v253, %v257
      %v260 = vshll.u32 %v213, 16
      %v262 = vrot.slane %v260, 1
      %v263 = vsel %vm251, %v258, %v262
      %v264 = vshrl.u32 %v213, 16
      %v266 = vor.u32 %v264, %v262
      %v268 = vshll.u32 %v214, 16
      %v270 = vrot.slane %v268, 1
      %v271 = vsel %vm251, %v266, %v270
      %v272 = vshrl.u32 %v214, 16
      %v274 = vor.u32 %v272, %v270
      %v276 = vshll.u32 %v215, 16
      %v278 = vrot.slane %v276, 1
      %v279 = vsel %vm251, %v274, %v278
      %v280 = vshrl.u32 %v215, 16
      %v282 = vor.u32 %v280, %v278
      %v284 = vshll.u32 %v216, 16
      %v286 = vrot.slane %v284, 1
      %v287 = vsel %vm251, %v282, %v286
      %v288 = vshrl.u32 %v216, 16
      %v290 = vor.u32 %v288, %v286
      %v292 = vshll.u32 %v233, 16
      %v294 = vrot.slane %v292, 1
      %v295 = vsel %vm251, %v290, %v294
      %v317 = vunpack.c.l.b16 %v235
      %v318 = vunpack.c.l.b16 %v236
      %v319 = vunpack.c.l.b16 %v237
      %v320 = vunpack.c.l.b16 %v238
      %v321 = vunpack.c.l.b16 %v239
      %v322 = vunpack.c.l.b16 %v240
      %v323 = vunpack.c.l.b16 %v241
      %v324 = vunpack.c.l.b16 %v242
      %v325 = vunpack.c.l.b16 %v243
      %v326 = vunpack.c.l.b16 %v244
      %v327 = vunpack.c.l.b16 %v245
      %v328 = vunpack.c.l.b16 %v246
      %v329 = vunpack.c.l.b16 %v247
      %v330 = vunpack.c.l.b16 %v248
      %v331 = vunpack.c.l.b16 %v249
      %v332 = vunpack.c.l.b16 %v250
      %v333 = vpack.c.b16 %v318, %v317
      %v334 = vpack.c.b16 %v320, %v319
      %v335 = vpack.c.b16 %v322, %v321
      %v336 = vpack.c.b16 %v324, %v323
      %v337 = vpack.c.b16 %v326, %v325
      %v338 = vpack.c.b16 %v328, %v327
      %v339 = vpack.c.b16 %v330, %v329
      %v340 = vpack.c.b16 %v332, %v331
      %349 = vmatprep.subr.bf16.mxu0 0
      %350 = vmatpush1.bf16.msra.mxu0 %v333
      %351 = vmatprep.subr.bf16.mxu0 0
      %352 = vmatpush1.bf16.msra.mxu0 %v334
      %353 = vmatprep.subr.bf16.mxu0 0
      %354 = vmatpush1.bf16.msra.mxu0 %v335
      %355 = vmatprep.subr.bf16.mxu0 0
      %356 = vmatpush1.bf16.msra.mxu0 %v336
      %357 = vmatprep.subr.bf16.mxu0 0
      %358 = vmatpush1.bf16.msra.mxu0 %v337
      %359 = vmatprep.subr.bf16.mxu0 0
      %360 = vmatpush1.bf16.msra.mxu0 %v338
      %361 = vmatprep.subr.bf16.mxu0 0
      %362 = vmatpush1.bf16.msra.mxu0 %v339
      %363 = vmatprep.subr.bf16.mxu0 0
      %364 = vmatpush1.bf16.msra.mxu0 %v340
      %365 = vmatprep.subr.bf16.mxu0 0
      %366 = vmatpush1.bf16.msra.mxu0 0
      %367 = vmatprep.subr.bf16.mxu0 0
      %368 = vmatpush1.bf16.msra.mxu0 0
      %369 = vmatprep.subr.bf16.mxu0 0
      %370 = vmatpush1.bf16.msra.mxu0 0
      %371 = vmatprep.subr.bf16.mxu0 0
      %372 = vmatpush1.bf16.msra.mxu0 0
      %373 = vmatprep.subr.bf16.mxu0 0
      %374 = vmatpush1.bf16.msra.mxu0 0
      %375 = vmatprep.subr.bf16.mxu0 0
      %376 = vmatpush1.bf16.msra.mxu0 0
      %377 = vmatprep.subr.bf16.mxu0 0
      %378 = vmatpush1.bf16.msra.mxu0 0
      %379 = vmatprep.subr.bf16.mxu0 0
      %380 = vmatpush1.bf16.msra.mxu0 0
      %381 = vmatprep.mubr.bf16.mxu0 0
      %382 = vmatmul.mubr.bf16.gmra.mrb[0].mxu0 %v263
      %v383 = vpop.f32.mrb[0].mxu0
      %v384 = vadd.f32 0.0, %v383
      %v385 = vpop.f32.mrb[0].mxu0
      %v386 = vpop.f32.mrb[0].mxu0
      %v387 = vadd.f32 0.0, %v386
      %v388 = vpop.f32.mrb[0].mxu0
      %389 = vmatprep.mubr.bf16.mxu0 0
      %390 = vmatmul.mubr.bf16.gmra.mrb[0].mxu0 %v271
      %v391 = vpop.f32.mrb[0].mxu0
      %v392 = vadd.f32 0.0, %v391
      %v393 = vpop.f32.mrb[0].mxu0
      %v394 = vpop.f32.mrb[0].mxu0
      %v395 = vadd.f32 0.0, %v394
      %v396 = vpop.f32.mrb[0].mxu0
      %397 = vmatprep.mubr.bf16.mxu0 0
      %398 = vmatmul.mubr.bf16.gmra.mrb[0].mxu0 %v279
      %v399 = vpop.f32.mrb[0].mxu0
      %v400 = vadd.f32 0.0, %v399
      %v401 = vpop.f32.mrb[0].mxu0
      %v402 = vpop.f32.mrb[0].mxu0
      %v403 = vadd.f32 0.0, %v402
      %v404 = vpop.f32.mrb[0].mxu0
      %405 = vmatprep.mubr.bf16.mxu0 0
      %406 = vmatmul.mubr.bf16.gmra.mrb[0].mxu0 %v287
      %v407 = vpop.f32.mrb[0].mxu0
      %v408 = vadd.f32 0.0, %v407
      %v409 = vpop.f32.mrb[0].mxu0
      %v410 = vpop.f32.mrb[0].mxu0
      %v411 = vadd.f32 0.0, %v410
      %v412 = vpop.f32.mrb[0].mxu0
      %413 = vmatprep.mubr.bf16.mxu0 0
      %414 = vmatmul.mubr.bf16.gmra.mrb[0].mxu0 %v295
      %v415 = vpop.f32.mrb[0].mxu0
      %v416 = vadd.f32 0.0, %v415
      %v417 = vpop.f32.mrb[0].mxu0
      %v418 = vpop.f32.mrb[0].mxu0
      %v419 = vadd.f32 0.0, %v418
      %v420 = vpop.f32.mrb[0].mxu0
      %421 = vdwg.mxu0
      %v438 = vunpack.c.l.b16 %v217
      %v439 = vunpack.c.l.b16 %v218
      %v440 = vunpack.c.l.b16 %v219
      %v441 = vunpack.c.l.b16 %v220
      %v442 = vunpack.c.l.b16 %v221
      %v443 = vunpack.c.l.b16 %v222
      %v444 = vunpack.c.l.b16 %v223
      %v445 = vunpack.c.l.b16 %v224
      %v446 = vunpack.c.l.b16 %v225
      %v447 = vunpack.c.l.b16 %v226
      %v448 = vunpack.c.l.b16 %v227
      %v449 = vunpack.c.l.b16 %v228
      %v450 = vunpack.c.l.b16 %v229
      %v451 = vunpack.c.l.b16 %v230
      %v452 = vunpack.c.l.b16 %v231
      %v453 = vunpack.c.l.b16 %v232
      %v454 = vpack.c.b16 %v439, %v438
      %v455 = vpack.c.b16 %v441, %v440
      %v456 = vpack.c.b16 %v443, %v442
      %v457 = vpack.c.b16 %v445, %v444
      %v458 = vpack.c.b16 %v447, %v446
      %v459 = vpack.c.b16 %v449, %v448
      %v460 = vpack.c.b16 %v451, %v450
      %v461 = vpack.c.b16 %v453, %v452
      %470 = vmatprep.subr.bf16.mxu0 0
      %471 = vmatpush1.bf16.msra.mxu0 %v454
      %472 = vmatprep.subr.bf16.mxu0 0
      %473 = vmatpush1.bf16.msra.mxu0 %v455
      %474 = vmatprep.subr.bf16.mxu0 0
      %475 = vmatpush1.bf16.msra.mxu0 %v456
      %476 = vmatprep.subr.bf16.mxu0 0
      %477 = vmatpush1.bf16.msra.mxu0 %v457
      %478 = vmatprep.subr.bf16.mxu0 0
      %479 = vmatpush1.bf16.msra.mxu0 %v458
      %480 = vmatprep.subr.bf16.mxu0 0
      %481 = vmatpush1.bf16.msra.mxu0 %v459
      %482 = vmatprep.subr.bf16.mxu0 0
      %483 = vmatpush1.bf16.msra.mxu0 %v460
      %484 = vmatprep.subr.bf16.mxu0 0
      %485 = vmatpush1.bf16.msra.mxu0 %v461
      %486 = vmatprep.subr.bf16.mxu0 0
      %487 = vmatpush1.bf16.msra.mxu0 0
      %488 = vmatprep.subr.bf16.mxu0 0
      %489 = vmatpush1.bf16.msra.mxu0 0
      %490 = vmatprep.subr.bf16.mxu0 0
      %491 = vmatpush1.bf16.msra.mxu0 0
      %492 = vmatprep.subr.bf16.mxu0 0
      %493 = vmatpush1.bf16.msra.mxu0 0
      %494 = vmatprep.subr.bf16.mxu0 0
      %495 = vmatpush1.bf16.msra.mxu0 0
      %496 = vmatprep.subr.bf16.mxu0 0
      %497 = vmatpush1.bf16.msra.mxu0 0
      %498 = vmatprep.subr.bf16.mxu0 0
      %499 = vmatpush1.bf16.msra.mxu0 0
      %500 = vmatprep.subr.bf16.mxu0 0
      %501 = vmatpush1.bf16.msra.mxu0 0
      %502 = vmatprep.mubr.bf16.mxu0 0
      %503 = vmatmul.mubr.bf16.gmra.mrb[0].mxu0 %v212
      %v504 = vpop.f32.mrb[0].mxu0
      %v505 = vadd.f32 %v384, %v504
      %v506 = vpop.f32.mrb[0].mxu0
      %v507 = vpop.f32.mrb[0].mxu0
      %v508 = vadd.f32 %v387, %v507
      %v509 = vpop.f32.mrb[0].mxu0
      %510 = vmatprep.mubr.bf16.mxu0 0
      %511 = vmatmul.mubr.bf16.gmra.mrb[0].mxu0 %v213
      %v512 = vpop.f32.mrb[0].mxu0
      %v513 = vadd.f32 %v392, %v512
      %v514 = vpop.f32.mrb[0].mxu0
      %v515 = vpop.f32.mrb[0].mxu0
      %v516 = vadd.f32 %v395, %v515
      %v517 = vpop.f32.mrb[0].mxu0
      %518 = vmatprep.mubr.bf16.mxu0 0
      %519 = vmatmul.mubr.bf16.gmra.mrb[0].mxu0 %v214
      %v520 = vpop.f32.mrb[0].mxu0
      %v521 = vadd.f32 %v400, %v520
      %v522 = vpop.f32.mrb[0].mxu0
      %v523 = vpop.f32.mrb[0].mxu0
      %v524 = vadd.f32 %v403, %v523
      %v525 = vpop.f32.mrb[0].mxu0
      %526 = vmatprep.mubr.bf16.mxu0 0
      %527 = vmatmul.mubr.bf16.gmra.mrb[0].mxu0 %v215
      %v528 = vpop.f32.mrb[0].mxu0
      %v529 = vadd.f32 %v408, %v528
      %v530 = vpop.f32.mrb[0].mxu0
      %v531 = vpop.f32.mrb[0].mxu0
      %v532 = vadd.f32 %v411, %v531
      %v533 = vpop.f32.mrb[0].mxu0
      %534 = vmatprep.mubr.bf16.mxu0 0
      %535 = vmatmul.mubr.bf16.gmra.mrb[0].mxu0 %v216
      %v536 = vpop.f32.mrb[0].mxu0
      %v537 = vadd.f32 %v416, %v536
      %v538 = vpop.f32.mrb[0].mxu0
      %v539 = vpop.f32.mrb[0].mxu0
      %v540 = vadd.f32 %v419, %v539
      %v541 = vpop.f32.mrb[0].mxu0
      %542 = vdwg.mxu0
      %s543 = scalar_lea.vmem %s1, 128
      %v544 = vld [vmem:[%s543] sm:$0xf]
      %v545 = vld [vmem:[%s543 + $0x4] sm:$0xf]
      %v546 = vld [vmem:[%s543 + $0x8] sm:$0xf]
      %v547 = vld [vmem:[%s543 + $0xc] sm:$0xf]
      %v548 = vld [vmem:[%s543 + $0x10] sm:$0xf]
      %v549 = vld [vmem:[%s543 + $0x14] sm:$0xf]
      %v550 = vld [vmem:[%s543 + $0x18] sm:$0xf]
      %v551 = vld [vmem:[%s543 + $0x1c] sm:$0xf]
      %v552 = vld [vmem:[%s543 + $0x20] sm:$0xf]
      %v553 = vld [vmem:[%s543 + $0x24] sm:$0xf]
      %v554 = vld [vmem:[%s543 + $0x28] sm:$0xf]
      %v555 = vld [vmem:[%s543 + $0x2c] sm:$0xf]
      %v556 = vld [vmem:[%s543 + $0x30] sm:$0xf]
      %v557 = vld [vmem:[%s543 + $0x34] sm:$0xf]
      %v558 = vld [vmem:[%s543 + $0x38] sm:$0xf]
      %v559 = vld [vmem:[%s543 + $0x3c] sm:$0xf]
      %vm566 = vcmask 1046528
      %v567 = vrot.slane %v212, 1
      %v568 = vrot.slane %v213, 1
      %v569 = vsel %vm566, %v567, %v568
      %v570 = vrot.slane %v214, 1
      %v571 = vsel %vm566, %v568, %v570
      %v572 = vrot.slane %v215, 1
      %v573 = vsel %vm566, %v570, %v572
      %v574 = vrot.slane %v216, 1
      %v575 = vsel %vm566, %v572, %v574
      %v576 = vrot.slane %v233, 1
      %v577 = vsel %vm566, %v574, %v576
      %v599 = vunpack.c.l.b16 %v544
      %v600 = vunpack.c.l.b16 %v545
      %v601 = vunpack.c.l.b16 %v546
      %v602 = vunpack.c.l.b16 %v547
      %v603 = vunpack.c.l.b16 %v548
      %v604 = vunpack.c.l.b16 %v549
      %v605 = vunpack.c.l.b16 %v550
      %v606 = vunpack.c.l.b16 %v551
      %v607 = vunpack.c.l.b16 %v552
      %v608 = vunpack.c.l.b16 %v553
      %v609 = vunpack.c.l.b16 %v554
      %v610 = vunpack.c.l.b16 %v555
      %v611 = vunpack.c.l.b16 %v556
      %v612 = vunpack.c.l.b16 %v557
      %v613 = vunpack.c.l.b16 %v558
      %v614 = vunpack.c.l.b16 %v559
      %v615 = vpack.c.b16 %v600, %v599
      %v616 = vpack.c.b16 %v602, %v601
      %v617 = vpack.c.b16 %v604, %v603
      %v618 = vpack.c.b16 %v606, %v605
      %v619 = vpack.c.b16 %v608, %v607
      %v620 = vpack.c.b16 %v610, %v609
      %v621 = vpack.c.b16 %v612, %v611
      %v622 = vpack.c.b16 %v614, %v613
      %631 = vmatprep.subr.bf16.mxu0 0
      %632 = vmatpush1.bf16.msra.mxu0 %v615
      %633 = vmatprep.subr.bf16.mxu0 0
      %634 = vmatpush1.bf16.msra.mxu0 %v616
      %635 = vmatprep.subr.bf16.mxu0 0
      %636 = vmatpush1.bf16.msra.mxu0 %v617
      %637 = vmatprep.subr.bf16.mxu0 0
      %638 = vmatpush1.bf16.msra.mxu0 %v618
      %639 = vmatprep.subr.bf16.mxu0 0
      %640 = vmatpush1.bf16.msra.mxu0 %v619
      %641 = vmatprep.subr.bf16.mxu0 0
      %642 = vmatpush1.bf16.msra.mxu0 %v620
      %643 = vmatprep.subr.bf16.mxu0 0
      %644 = vmatpush1.bf16.msra.mxu0 %v621
      %645 = vmatprep.subr.bf16.mxu0 0
      %646 = vmatpush1.bf16.msra.mxu0 %v622
      %647 = vmatprep.subr.bf16.mxu0 0
      %648 = vmatpush1.bf16.msra.mxu0 0
      %649 = vmatprep.subr.bf16.mxu0 0
      %650 = vmatpush1.bf16.msra.mxu0 0
      %651 = vmatprep.subr.bf16.mxu0 0
      %652 = vmatpush1.bf16.msra.mxu0 0
      %653 = vmatprep.subr.bf16.mxu0 0
      %654 = vmatpush1.bf16.msra.mxu0 0
      %655 = vmatprep.subr.bf16.mxu0 0
      %656 = vmatpush1.bf16.msra.mxu0 0
      %657 = vmatprep.subr.bf16.mxu0 0
      %658 = vmatpush1.bf16.msra.mxu0 0
      %659 = vmatprep.subr.bf16.mxu0 0
      %660 = vmatpush1.bf16.msra.mxu0 0
      %661 = vmatprep.subr.bf16.mxu0 0
      %662 = vmatpush1.bf16.msra.mxu0 0
      %663 = vmatprep.mubr.bf16.mxu0 0
      %664 = vmatmul.mubr.bf16.gmra.mrb[0].mxu0 %v569
      %v665 = vpop.f32.mrb[0].mxu0
      %v666 = vadd.f32 0.0, %v665
      %v667 = vpop.f32.mrb[0].mxu0
      %v668 = vpop.f32.mrb[0].mxu0
      %v669 = vadd.f32 0.0, %v668
      %v670 = vpop.f32.mrb[0].mxu0
      %671 = vmatprep.mubr.bf16.mxu0 0
      %672 = vmatmul.mubr.bf16.gmra.mrb[0].mxu0 %v571
      %v673 = vpop.f32.mrb[0].mxu0
      %v674 = vadd.f32 0.0, %v673
      %v675 = vpop.f32.mrb[0].mxu0
      %v676 = vpop.f32.mrb[0].mxu0
      %v677 = vadd.f32 0.0, %v676
      %v678 = vpop.f32.mrb[0].mxu0
      %679 = vmatprep.mubr.bf16.mxu0 0
      %680 = vmatmul.mubr.bf16.gmra.mrb[0].mxu0 %v573
      %v681 = vpop.f32.mrb[0].mxu0
      %v682 = vadd.f32 0.0, %v681
      %v683 = vpop.f32.mrb[0].mxu0
      %v684 = vpop.f32.mrb[0].mxu0
      %v685 = vadd.f32 0.0, %v684
      %v686 = vpop.f32.mrb[0].mxu0
      %687 = vmatprep.mubr.bf16.mxu0 0
      %688 = vmatmul.mubr.bf16.gmra.mrb[0].mxu0 %v575
      %v689 = vpop.f32.mrb[0].mxu0
      %v690 = vadd.f32 0.0, %v689
      %v691 = vpop.f32.mrb[0].mxu0
      %v692 = vpop.f32.mrb[0].mxu0
      %v693 = vadd.f32 0.0, %v692
      %v694 = vpop.f32.mrb[0].mxu0
      %695 = vmatprep.mubr.bf16.mxu0 0
      %696 = vmatmul.mubr.bf16.gmra.mrb[0].mxu0 %v577
      %v697 = vpop.f32.mrb[0].mxu0
      %v698 = vadd.f32 0.0, %v697
      %v699 = vpop.f32.mrb[0].mxu0
      %v700 = vpop.f32.mrb[0].mxu0
      %v701 = vadd.f32 0.0, %v700
      %v702 = vpop.f32.mrb[0].mxu0
      %703 = vdwg.mxu0
      %v704 = vadd.f32 %v505, %v666
      %v705 = vadd.f32 %v508, %v669
      %v706 = vadd.f32 %v513, %v674
      %v707 = vadd.f32 %v516, %v677
      %v708 = vadd.f32 %v521, %v682
      %v709 = vadd.f32 %v524, %v685
      %v710 = vadd.f32 %v529, %v690
      %v711 = vadd.f32 %v532, %v693
      %v712 = vadd.f32 %v537, %v698
      %v713 = vadd.f32 %v540, %v701
      %v714 = vpack.c.bf16 %v201, %v200
      %v715 = vpack.c.bf16 %v203, %v202
      %v716 = vpack.c.bf16 %v205, %v204
      %v717 = vpack.c.bf16 %v207, %v206
      %v718 = vpack.c.bf16 %v209, %v208
      %v719 = vpack.c.bf16 %v210, %v210
      %s720 = scalar_lea.vmem %s1, 192
      %v721 = vld [vmem:[%s720] sm:$0xf]
      %v722 = vld [vmem:[%s720 + $0x4] sm:$0xf]
      %v723 = vld [vmem:[%s720 + $0x8] sm:$0xf]
      %v724 = vld [vmem:[%s720 + $0xc] sm:$0xf]
      %v725 = vld [vmem:[%s720 + $0x10] sm:$0xf]
      %v726 = vld [vmem:[%s720 + $0x14] sm:$0xf]
      %v727 = vld [vmem:[%s720 + $0x18] sm:$0xf]
      %v728 = vld [vmem:[%s720 + $0x1c] sm:$0xf]
      %v729 = vld [vmem:[%s720 + $0x20] sm:$0xf]
      %v730 = vld [vmem:[%s720 + $0x24] sm:$0xf]
      %v731 = vld [vmem:[%s720 + $0x28] sm:$0xf]
      %v732 = vld [vmem:[%s720 + $0x2c] sm:$0xf]
      %v733 = vld [vmem:[%s720 + $0x30] sm:$0xf]
      %v734 = vld [vmem:[%s720 + $0x34] sm:$0xf]
      %v735 = vld [vmem:[%s720 + $0x38] sm:$0xf]
      %v736 = vld [vmem:[%s720 + $0x3c] sm:$0xf]
      %v743 = vrot.slane %v714, 1
      %v744 = vrot.slane %v715, 1
      %v745 = vsel %vm566, %v743, %v744
      %v746 = vrot.slane %v716, 1
      %v747 = vsel %vm566, %v744, %v746
      %v748 = vrot.slane %v717, 1
      %v749 = vsel %vm566, %v746, %v748
      %v750 = vrot.slane %v718, 1
      %v751 = vsel %vm566, %v748, %v750
      %v752 = vrot.slane %v719, 1
      %v753 = vsel %vm566, %v750, %v752
      %v775 = vunpack.c.l.b16 %v721
      %v776 = vunpack.c.l.b16 %v722
      %v777 = vunpack.c.l.b16 %v723
      %v778 = vunpack.c.l.b16 %v724
      %v779 = vunpack.c.l.b16 %v725
      %v780 = vunpack.c.l.b16 %v726
      %v781 = vunpack.c.l.b16 %v727
      %v782 = vunpack.c.l.b16 %v728
      %v783 = vunpack.c.l.b16 %v729
      %v784 = vunpack.c.l.b16 %v730
      %v785 = vunpack.c.l.b16 %v731
      %v786 = vunpack.c.l.b16 %v732
      %v787 = vunpack.c.l.b16 %v733
      %v788 = vunpack.c.l.b16 %v734
      %v789 = vunpack.c.l.b16 %v735
      %v790 = vunpack.c.l.b16 %v736
      %v791 = vpack.c.b16 %v776, %v775
      %v792 = vpack.c.b16 %v778, %v777
      %v793 = vpack.c.b16 %v780, %v779
      %v794 = vpack.c.b16 %v782, %v781
      %v795 = vpack.c.b16 %v784, %v783
      %v796 = vpack.c.b16 %v786, %v785
      %v797 = vpack.c.b16 %v788, %v787
      %v798 = vpack.c.b16 %v790, %v789
      %807 = vmatprep.subr.bf16.mxu0 0
      %808 = vmatpush1.bf16.msra.mxu0 %v791
      %809 = vmatprep.subr.bf16.mxu0 0
      %810 = vmatpush1.bf16.msra.mxu0 %v792
      %811 = vmatprep.subr.bf16.mxu0 0
      %812 = vmatpush1.bf16.msra.mxu0 %v793
      %813 = vmatprep.subr.bf16.mxu0 0
      %814 = vmatpush1.bf16.msra.mxu0 %v794
      %815 = vmatprep.subr.bf16.mxu0 0
      %816 = vmatpush1.bf16.msra.mxu0 %v795
      %817 = vmatprep.subr.bf16.mxu0 0
      %818 = vmatpush1.bf16.msra.mxu0 %v796
      %819 = vmatprep.subr.bf16.mxu0 0
      %820 = vmatpush1.bf16.msra.mxu0 %v797
      %821 = vmatprep.subr.bf16.mxu0 0
      %822 = vmatpush1.bf16.msra.mxu0 %v798
      %823 = vmatprep.subr.bf16.mxu0 0
      %824 = vmatpush1.bf16.msra.mxu0 0
      %825 = vmatprep.subr.bf16.mxu0 0
      %826 = vmatpush1.bf16.msra.mxu0 0
      %827 = vmatprep.subr.bf16.mxu0 0
      %828 = vmatpush1.bf16.msra.mxu0 0
      %829 = vmatprep.subr.bf16.mxu0 0
      %830 = vmatpush1.bf16.msra.mxu0 0
      %831 = vmatprep.subr.bf16.mxu0 0
      %832 = vmatpush1.bf16.msra.mxu0 0
      %833 = vmatprep.subr.bf16.mxu0 0
      %834 = vmatpush1.bf16.msra.mxu0 0
      %835 = vmatprep.subr.bf16.mxu0 0
      %836 = vmatpush1.bf16.msra.mxu0 0
      %837 = vmatprep.subr.bf16.mxu0 0
      %838 = vmatpush1.bf16.msra.mxu0 0
      %839 = vmatprep.mubr.bf16.mxu0 0
      %840 = vmatmul.mubr.bf16.gmra.mrb[0].mxu0 %v745
      %v841 = vpop.f32.mrb[0].mxu0
      %v842 = vadd.f32 0.0, %v841
      %v843 = vpop.f32.mrb[0].mxu0
      %v844 = vpop.f32.mrb[0].mxu0
      %v845 = vadd.f32 0.0, %v844
      %v846 = vpop.f32.mrb[0].mxu0
      %847 = vmatprep.mubr.bf16.mxu0 0
      %848 = vmatmul.mubr.bf16.gmra.mrb[0].mxu0 %v747
      %v849 = vpop.f32.mrb[0].mxu0
      %v850 = vadd.f32 0.0, %v849
      %v851 = vpop.f32.mrb[0].mxu0
      %v852 = vpop.f32.mrb[0].mxu0
      %v853 = vadd.f32 0.0, %v852
      %v854 = vpop.f32.mrb[0].mxu0
      %855 = vmatprep.mubr.bf16.mxu0 0
      %856 = vmatmul.mubr.bf16.gmra.mrb[0].mxu0 %v749
      %v857 = vpop.f32.mrb[0].mxu0
      %v858 = vadd.f32 0.0, %v857
      %v859 = vpop.f32.mrb[0].mxu0
      %v860 = vpop.f32.mrb[0].mxu0
      %v861 = vadd.f32 0.0, %v860
      %v862 = vpop.f32.mrb[0].mxu0
      %863 = vmatprep.mubr.bf16.mxu0 0
      %864 = vmatmul.mubr.bf16.gmra.mrb[0].mxu0 %v751
      %v865 = vpop.f32.mrb[0].mxu0
      %v866 = vadd.f32 0.0, %v865
      %v867 = vpop.f32.mrb[0].mxu0
      %v868 = vpop.f32.mrb[0].mxu0
      %v869 = vadd.f32 0.0, %v868
      %v870 = vpop.f32.mrb[0].mxu0
      %871 = vmatprep.mubr.bf16.mxu0 0
      %872 = vmatmul.mubr.bf16.gmra.mrb[0].mxu0 %v753
      %v873 = vpop.f32.mrb[0].mxu0
      %v874 = vadd.f32 0.0, %v873
      %v875 = vpop.f32.mrb[0].mxu0
      %v876 = vpop.f32.mrb[0].mxu0
      %v877 = vadd.f32 0.0, %v876
      %v878 = vpop.f32.mrb[0].mxu0
      %879 = vdwg.mxu0
      %v880 = vadd.f32 %v704, %v842
      %v881 = vadd.f32 %v705, %v845
      %v882 = vadd.f32 %v706, %v850
      %v883 = vadd.f32 %v707, %v853
      %v884 = vadd.f32 %v708, %v858
      %v885 = vadd.f32 %v709, %v861
      %v886 = vadd.f32 %v710, %v866
      %v887 = vadd.f32 %v711, %v869
      %v888 = vadd.f32 %v712, %v874
      %v889 = vadd.f32 %v713, %v877
      %s890 = scalar_lea.vmem %s1, 256
      %v891 = vld [vmem:[%s890] sm:$0xf]
      %v892 = vld [vmem:[%s890 + $0x4] sm:$0xf]
      %v893 = vld [vmem:[%s890 + $0x8] sm:$0xf]
      %v894 = vld [vmem:[%s890 + $0xc] sm:$0xf]
      %v895 = vld [vmem:[%s890 + $0x10] sm:$0xf]
      %v896 = vld [vmem:[%s890 + $0x14] sm:$0xf]
      %v897 = vld [vmem:[%s890 + $0x18] sm:$0xf]
      %v898 = vld [vmem:[%s890 + $0x1c] sm:$0xf]
      %v899 = vld [vmem:[%s890 + $0x20] sm:$0xf]
      %v900 = vld [vmem:[%s890 + $0x24] sm:$0xf]
      %v901 = vld [vmem:[%s890 + $0x28] sm:$0xf]
      %v902 = vld [vmem:[%s890 + $0x2c] sm:$0xf]
      %v903 = vld [vmem:[%s890 + $0x30] sm:$0xf]
      %v904 = vld [vmem:[%s890 + $0x34] sm:$0xf]
      %v905 = vld [vmem:[%s890 + $0x38] sm:$0xf]
      %v906 = vld [vmem:[%s890 + $0x3c] sm:$0xf]
      %vm907 = vsmask.f32 6400
      %v909 = vshrl.u32 %v714, 16
      %v911 = vrot.slane %v909, 1
      %v912 = vshll.u32 %v714, 16
      %v914 = vrot.slane %v912, 2
      %v915 = vor.u32 %v911, %v914
      %v917 = vshrl.u32 %v715, 16
      %v919 = vrot.slane %v917, 1
      %v920 = vshll.u32 %v715, 16
      %v922 = vrot.slane %v920, 2
      %v923 = vor.u32 %v919, %v922
      %v924 = vsel %vm907, %v915, %v923
      %v926 = vshrl.u32 %v716, 16
      %v928 = vrot.slane %v926, 1
      %v929 = vshll.u32 %v716, 16
      %v931 = vrot.slane %v929, 2
      %v932 = vor.u32 %v928, %v931
      %v933 = vsel %vm907, %v923, %v932
      %v935 = vshrl.u32 %v717, 16
      %v937 = vrot.slane %v935, 1
      %v938 = vshll.u32 %v717, 16
      %v940 = vrot.slane %v938, 2
      %v941 = vor.u32 %v937, %v940
      %v942 = vsel %vm907, %v932, %v941
      %v944 = vshrl.u32 %v718, 16
      %v946 = vrot.slane %v944, 1
      %v947 = vshll.u32 %v718, 16
      %v949 = vrot.slane %v947, 2
      %v950 = vor.u32 %v946, %v949
      %v951 = vsel %vm907, %v941, %v950
      %v953 = vshrl.u32 %v719, 16
      %v955 = vrot.slane %v953, 1
      %v956 = vshll.u32 %v719, 16
      %v958 = vrot.slane %v956, 2
      %v959 = vor.u32 %v955, %v958
      %v960 = vsel %vm907, %v950, %v959
      %v982 = vunpack.c.l.b16 %v891
      %v983 = vunpack.c.l.b16 %v892
      %v984 = vunpack.c.l.b16 %v893
      %v985 = vunpack.c.l.b16 %v894
      %v986 = vunpack.c.l.b16 %v895
      %v987 = vunpack.c.l.b16 %v896
      %v988 = vunpack.c.l.b16 %v897
      %v989 = vunpack.c.l.b16 %v898
      %v990 = vunpack.c.l.b16 %v899
      %v991 = vunpack.c.l.b16 %v900
      %v992 = vunpack.c.l.b16 %v901
      %v993 = vunpack.c.l.b16 %v902
      %v994 = vunpack.c.l.b16 %v903
      %v995 = vunpack.c.l.b16 %v904
      %v996 = vunpack.c.l.b16 %v905
      %v997 = vunpack.c.l.b16 %v906
      %v998 = vpack.c.b16 %v983, %v982
      %v999 = vpack.c.b16 %v985, %v984
      %v1000 = vpack.c.b16 %v987, %v986
      %v1001 = vpack.c.b16 %v989, %v988
      %v1002 = vpack.c.b16 %v991, %v990
      %v1003 = vpack.c.b16 %v993, %v992
      %v1004 = vpack.c.b16 %v995, %v994
      %v1005 = vpack.c.b16 %v997, %v996
      %1014 = vmatprep.subr.bf16.mxu0 0
      %1015 = vmatpush1.bf16.msra.mxu0 %v998
      %1016 = vmatprep.subr.bf16.mxu0 0
      %1017 = vmatpush1.bf16.msra.mxu0 %v999
      %1018 = vmatprep.subr.bf16.mxu0 0
      %1019 = vmatpush1.bf16.msra.mxu0 %v1000
      %1020 = vmatprep.subr.bf16.mxu0 0
      %1021 = vmatpush1.bf16.msra.mxu0 %v1001
      %1022 = vmatprep.subr.bf16.mxu0 0
      %1023 = vmatpush1.bf16.msra.mxu0 %v1002
      %1024 = vmatprep.subr.bf16.mxu0 0
      %1025 = vmatpush1.bf16.msra.mxu0 %v1003
      %1026 = vmatprep.subr.bf16.mxu0 0
      %1027 = vmatpush1.bf16.msra.mxu0 %v1004
      %1028 = vmatprep.subr.bf16.mxu0 0
      %1029 = vmatpush1.bf16.msra.mxu0 %v1005
      %1030 = vmatprep.subr.bf16.mxu0 0
      %1031 = vmatpush1.bf16.msra.mxu0 0
      %1032 = vmatprep.subr.bf16.mxu0 0
      %1033 = vmatpush1.bf16.msra.mxu0 0
      %1034 = vmatprep.subr.bf16.mxu0 0
      %1035 = vmatpush1.bf16.msra.mxu0 0
      %1036 = vmatprep.subr.bf16.mxu0 0
      %1037 = vmatpush1.bf16.msra.mxu0 0
      %1038 = vmatprep.subr.bf16.mxu0 0
      %1039 = vmatpush1.bf16.msra.mxu0 0
      %1040 = vmatprep.subr.bf16.mxu0 0
      %1041 = vmatpush1.bf16.msra.mxu0 0
      %1042 = vmatprep.subr.bf16.mxu0 0
      %1043 = vmatpush1.bf16.msra.mxu0 0
      %1044 = vmatprep.subr.bf16.mxu0 0
      %1045 = vmatpush1.bf16.msra.mxu0 0
      %1046 = vmatprep.mubr.bf16.mxu0 0
      %1047 = vmatmul.mubr.bf16.gmra.mrb[0].mxu0 %v924
      %v1048 = vpop.f32.mrb[0].mxu0
      %v1049 = vadd.f32 0.0, %v1048
      %v1050 = vpop.f32.mrb[0].mxu0
      %v1051 = vpop.f32.mrb[0].mxu0
      %v1052 = vadd.f32 0.0, %v1051
      %v1053 = vpop.f32.mrb[0].mxu0
      %1054 = vmatprep.mubr.bf16.mxu0 0
      %1055 = vmatmul.mubr.bf16.gmra.mrb[0].mxu0 %v933
      %v1056 = vpop.f32.mrb[0].mxu0
      %v1057 = vadd.f32 0.0, %v1056
      %v1058 = vpop.f32.mrb[0].mxu0
      %v1059 = vpop.f32.mrb[0].mxu0
      %v1060 = vadd.f32 0.0, %v1059
      %v1061 = vpop.f32.mrb[0].mxu0
      %1062 = vmatprep.mubr.bf16.mxu0 0
      %1063 = vmatmul.mubr.bf16.gmra.mrb[0].mxu0 %v942
      %v1064 = vpop.f32.mrb[0].mxu0
      %v1065 = vadd.f32 0.0, %v1064
      %v1066 = vpop.f32.mrb[0].mxu0
      %v1067 = vpop.f32.mrb[0].mxu0
      %v1068 = vadd.f32 0.0, %v1067
      %v1069 = vpop.f32.mrb[0].mxu0
      %1070 = vmatprep.mubr.bf16.mxu0 0
      %1071 = vmatmul.mubr.bf16.gmra.mrb[0].mxu0 %v951
      %v1072 = vpop.f32.mrb[0].mxu0
      %v1073 = vadd.f32 0.0, %v1072
      %v1074 = vpop.f32.mrb[0].mxu0
      %v1075 = vpop.f32.mrb[0].mxu0
      %v1076 = vadd.f32 0.0, %v1075
      %v1077 = vpop.f32.mrb[0].mxu0
      %1078 = vmatprep.mubr.bf16.mxu0 0
      %1079 = vmatmul.mubr.bf16.gmra.mrb[0].mxu0 %v960
      %v1080 = vpop.f32.mrb[0].mxu0
      %v1081 = vadd.f32 0.0, %v1080
      %v1082 = vpop.f32.mrb[0].mxu0
      %v1083 = vpop.f32.mrb[0].mxu0
      %v1084 = vadd.f32 0.0, %v1083
      %v1085 = vpop.f32.mrb[0].mxu0
      %1086 = vdwg.mxu0
      %v1087 = vadd.f32 %v880, %v1049
      %v1088 = vadd.f32 %v881, %v1052
      %v1089 = vadd.f32 %v882, %v1057
      %v1090 = vadd.f32 %v883, %v1060
      %v1091 = vadd.f32 %v884, %v1065
      %v1092 = vadd.f32 %v885, %v1068
      %v1093 = vadd.f32 %v886, %v1073
      %v1094 = vadd.f32 %v887, %v1076
      %v1095 = vadd.f32 %v888, %v1081
      %v1096 = vadd.f32 %v889, %v1084
      %s1097 = scalar_lea.vmem %s1, 320
      %v1098 = vld [vmem:[%s1097] sm:$0xf]
      %v1099 = vld [vmem:[%s1097 + $0x4] sm:$0xf]
      %v1100 = vld [vmem:[%s1097 + $0x8] sm:$0xf]
      %v1101 = vld [vmem:[%s1097 + $0xc] sm:$0xf]
      %v1102 = vld [vmem:[%s1097 + $0x10] sm:$0xf]
      %v1103 = vld [vmem:[%s1097 + $0x14] sm:$0xf]
      %v1104 = vld [vmem:[%s1097 + $0x18] sm:$0xf]
      %v1105 = vld [vmem:[%s1097 + $0x1c] sm:$0xf]
      %v1106 = vld [vmem:[%s1097 + $0x20] sm:$0xf]
      %v1107 = vld [vmem:[%s1097 + $0x24] sm:$0xf]
      %v1108 = vld [vmem:[%s1097 + $0x28] sm:$0xf]
      %v1109 = vld [vmem:[%s1097 + $0x2c] sm:$0xf]
      %v1110 = vld [vmem:[%s1097 + $0x30] sm:$0xf]
      %v1111 = vld [vmem:[%s1097 + $0x34] sm:$0xf]
      %v1112 = vld [vmem:[%s1097 + $0x38] sm:$0xf]
      %v1113 = vld [vmem:[%s1097 + $0x3c] sm:$0xf]
      %vm1114 = vcmask 1045504
      %v1115 = vrot.slane %v714, 2
      %v1116 = vrot.slane %v715, 2
      %v1117 = vsel %vm1114, %v1115, %v1116
      %v1118 = vrot.slane %v716, 2
      %v1119 = vsel %vm1114, %v1116, %v1118
      %v1120 = vrot.slane %v717, 2
      %v1121 = vsel %vm1114, %v1118, %v1120
      %v1122 = vrot.slane %v718, 2
      %v1123 = vsel %vm1114, %v1120, %v1122
      %v1124 = vrot.slane %v719, 2
      %v1125 = vsel %vm1114, %v1122, %v1124
      %v1147 = vunpack.c.l.b16 %v1098
      %v1148 = vunpack.c.l.b16 %v1099
      %v1149 = vunpack.c.l.b16 %v1100
      %v1150 = vunpack.c.l.b16 %v1101
      %v1151 = vunpack.c.l.b16 %v1102
      %v1152 = vunpack.c.l.b16 %v1103
      %v1153 = vunpack.c.l.b16 %v1104
      %v1154 = vunpack.c.l.b16 %v1105
      %v1155 = vunpack.c.l.b16 %v1106
      %v1156 = vunpack.c.l.b16 %v1107
      %v1157 = vunpack.c.l.b16 %v1108
      %v1158 = vunpack.c.l.b16 %v1109
      %v1159 = vunpack.c.l.b16 %v1110
      %v1160 = vunpack.c.l.b16 %v1111
      %v1161 = vunpack.c.l.b16 %v1112
      %v1162 = vunpack.c.l.b16 %v1113
      %v1163 = vpack.c.b16 %v1148, %v1147
      %v1164 = vpack.c.b16 %v1150, %v1149
      %v1165 = vpack.c.b16 %v1152, %v1151
      %v1166 = vpack.c.b16 %v1154, %v1153
      %v1167 = vpack.c.b16 %v1156, %v1155
      %v1168 = vpack.c.b16 %v1158, %v1157
      %v1169 = vpack.c.b16 %v1160, %v1159
      %v1170 = vpack.c.b16 %v1162, %v1161
      %1179 = vmatprep.subr.bf16.mxu0 0
      %1180 = vmatpush1.bf16.msra.mxu0 %v1163
      %1181 = vmatprep.subr.bf16.mxu0 0
      %1182 = vmatpush1.bf16.msra.mxu0 %v1164
      %1183 = vmatprep.subr.bf16.mxu0 0
      %1184 = vmatpush1.bf16.msra.mxu0 %v1165
      %1185 = vmatprep.subr.bf16.mxu0 0
      %1186 = vmatpush1.bf16.msra.mxu0 %v1166
      %1187 = vmatprep.subr.bf16.mxu0 0
      %1188 = vmatpush1.bf16.msra.mxu0 %v1167
      %1189 = vmatprep.subr.bf16.mxu0 0
      %1190 = vmatpush1.bf16.msra.mxu0 %v1168
      %1191 = vmatprep.subr.bf16.mxu0 0
      %1192 = vmatpush1.bf16.msra.mxu0 %v1169
      %1193 = vmatprep.subr.bf16.mxu0 0
      %1194 = vmatpush1.bf16.msra.mxu0 %v1170
      %1195 = vmatprep.subr.bf16.mxu0 0
      %1196 = vmatpush1.bf16.msra.mxu0 0
      %1197 = vmatprep.subr.bf16.mxu0 0
      %1198 = vmatpush1.bf16.msra.mxu0 0
      %1199 = vmatprep.subr.bf16.mxu0 0
      %1200 = vmatpush1.bf16.msra.mxu0 0
      %1201 = vmatprep.subr.bf16.mxu0 0
      %1202 = vmatpush1.bf16.msra.mxu0 0
      %1203 = vmatprep.subr.bf16.mxu0 0
      %1204 = vmatpush1.bf16.msra.mxu0 0
      %1205 = vmatprep.subr.bf16.mxu0 0
      %1206 = vmatpush1.bf16.msra.mxu0 0
      %1207 = vmatprep.subr.bf16.mxu0 0
      %1208 = vmatpush1.bf16.msra.mxu0 0
      %1209 = vmatprep.subr.bf16.mxu0 0
      %1210 = vmatpush1.bf16.msra.mxu0 0
      %1211 = vmatprep.mubr.bf16.mxu0 0
      %1212 = vmatmul.mubr.bf16.gmra.mrb[0].mxu0 %v1117
      %v1213 = vpop.f32.mrb[0].mxu0
      %v1214 = vadd.f32 0.0, %v1213
      %v1215 = vpop.f32.mrb[0].mxu0
      %v1216 = vpop.f32.mrb[0].mxu0
      %v1217 = vadd.f32 0.0, %v1216
      %v1218 = vpop.f32.mrb[0].mxu0
      %1219 = vmatprep.mubr.bf16.mxu0 0
      %1220 = vmatmul.mubr.bf16.gmra.mrb[0].mxu0 %v1119
      %v1221 = vpop.f32.mrb[0].mxu0
      %v1222 = vadd.f32 0.0, %v1221
      %v1223 = vpop.f32.mrb[0].mxu0
      %v1224 = vpop.f32.mrb[0].mxu0
      %v1225 = vadd.f32 0.0, %v1224
      %v1226 = vpop.f32.mrb[0].mxu0
      %1227 = vmatprep.mubr.bf16.mxu0 0
      %1228 = vmatmul.mubr.bf16.gmra.mrb[0].mxu0 %v1121
      %v1229 = vpop.f32.mrb[0].mxu0
      %v1230 = vadd.f32 0.0, %v1229
      %v1231 = vpop.f32.mrb[0].mxu0
      %v1232 = vpop.f32.mrb[0].mxu0
      %v1233 = vadd.f32 0.0, %v1232
      %v1234 = vpop.f32.mrb[0].mxu0
      %1235 = vmatprep.mubr.bf16.mxu0 0
      %1236 = vmatmul.mubr.bf16.gmra.mrb[0].mxu0 %v1123
      %v1237 = vpop.f32.mrb[0].mxu0
      %v1238 = vadd.f32 0.0, %v1237
      %v1239 = vpop.f32.mrb[0].mxu0
      %v1240 = vpop.f32.mrb[0].mxu0
      %v1241 = vadd.f32 0.0, %v1240
      %v1242 = vpop.f32.mrb[0].mxu0
      %1243 = vmatprep.mubr.bf16.mxu0 0
      %1244 = vmatmul.mubr.bf16.gmra.mrb[0].mxu0 %v1125
      %v1245 = vpop.f32.mrb[0].mxu0
      %v1246 = vadd.f32 0.0, %v1245
      %v1247 = vpop.f32.mrb[0].mxu0
      %v1248 = vpop.f32.mrb[0].mxu0
      %v1249 = vadd.f32 0.0, %v1248
      %v1250 = vpop.f32.mrb[0].mxu0
      %1251 = vdwg.mxu0
      %v1252 = vadd.f32 %v1087, %v1214
      %v1253 = vadd.f32 %v1088, %v1217
      %v1254 = vadd.f32 %v1089, %v1222
      %v1255 = vadd.f32 %v1090, %v1225
      %v1256 = vadd.f32 %v1091, %v1230
      %v1257 = vadd.f32 %v1092, %v1233
      %v1258 = vadd.f32 %v1093, %v1238
      %v1259 = vadd.f32 %v1094, %v1241
      %v1260 = vadd.f32 %v1095, %v1246
      %v1261 = vadd.f32 %v1096, %v1249
      %v1262 = vpack.c.bf16 %v210, %v209
      %v1263 = vpack.c.bf16 %v211, %v211
      %s1264 = scalar_lea.vmem %s1, 384
      %v1265 = vld [vmem:[%s1264] sm:$0xf]
      %v1266 = vld [vmem:[%s1264 + $0x4] sm:$0xf]
      %v1267 = vld [vmem:[%s1264 + $0x8] sm:$0xf]
      %v1268 = vld [vmem:[%s1264 + $0xc] sm:$0xf]
      %v1269 = vld [vmem:[%s1264 + $0x10] sm:$0xf]
      %v1270 = vld [vmem:[%s1264 + $0x14] sm:$0xf]
      %v1271 = vld [vmem:[%s1264 + $0x18] sm:$0xf]
      %v1272 = vld [vmem:[%s1264 + $0x1c] sm:$0xf]
      %v1273 = vld [vmem:[%s1264 + $0x20] sm:$0xf]
      %v1274 = vld [vmem:[%s1264 + $0x24] sm:$0xf]
      %v1275 = vld [vmem:[%s1264 + $0x28] sm:$0xf]
      %v1276 = vld [vmem:[%s1264 + $0x2c] sm:$0xf]
      %v1277 = vld [vmem:[%s1264 + $0x30] sm:$0xf]
      %v1278 = vld [vmem:[%s1264 + $0x34] sm:$0xf]
      %v1279 = vld [vmem:[%s1264 + $0x38] sm:$0xf]
      %v1280 = vld [vmem:[%s1264 + $0x3c] sm:$0xf]
      %v1283 = vrot.slane %v213, 2
      %v1284 = vrot.slane %v214, 2
      %v1285 = vsel %vm1114, %v1283, %v1284
      %v1286 = vrot.slane %v215, 2
      %v1287 = vsel %vm1114, %v1284, %v1286
      %v1288 = vrot.slane %v216, 2
      %v1289 = vsel %vm1114, %v1286, %v1288
      %v1290 = vrot.slane %v1262, 2
      %v1291 = vsel %vm1114, %v1288, %v1290
      %v1292 = vrot.slane %v1263, 2
      %v1293 = vsel %vm1114, %v1290, %v1292
      %v1315 = vunpack.c.l.b16 %v1265
      %v1316 = vunpack.c.l.b16 %v1266
      %v1317 = vunpack.c.l.b16 %v1267
      %v1318 = vunpack.c.l.b16 %v1268
      %v1319 = vunpack.c.l.b16 %v1269
      %v1320 = vunpack.c.l.b16 %v1270
      %v1321 = vunpack.c.l.b16 %v1271
      %v1322 = vunpack.c.l.b16 %v1272
      %v1323 = vunpack.c.l.b16 %v1273
      %v1324 = vunpack.c.l.b16 %v1274
      %v1325 = vunpack.c.l.b16 %v1275
      %v1326 = vunpack.c.l.b16 %v1276
      %v1327 = vunpack.c.l.b16 %v1277
      %v1328 = vunpack.c.l.b16 %v1278
      %v1329 = vunpack.c.l.b16 %v1279
      %v1330 = vunpack.c.l.b16 %v1280
      %v1331 = vpack.c.b16 %v1316, %v1315
      %v1332 = vpack.c.b16 %v1318, %v1317
      %v1333 = vpack.c.b16 %v1320, %v1319
      %v1334 = vpack.c.b16 %v1322, %v1321
      %v1335 = vpack.c.b16 %v1324, %v1323
      %v1336 = vpack.c.b16 %v1326, %v1325
      %v1337 = vpack.c.b16 %v1328, %v1327
      %v1338 = vpack.c.b16 %v1330, %v1329
      %1347 = vmatprep.subr.bf16.mxu0 0
      %1348 = vmatpush1.bf16.msra.mxu0 %v1331
      %1349 = vmatprep.subr.bf16.mxu0 0
      %1350 = vmatpush1.bf16.msra.mxu0 %v1332
      %1351 = vmatprep.subr.bf16.mxu0 0
      %1352 = vmatpush1.bf16.msra.mxu0 %v1333
      %1353 = vmatprep.subr.bf16.mxu0 0
      %1354 = vmatpush1.bf16.msra.mxu0 %v1334
      %1355 = vmatprep.subr.bf16.mxu0 0
      %1356 = vmatpush1.bf16.msra.mxu0 %v1335
      %1357 = vmatprep.subr.bf16.mxu0 0
      %1358 = vmatpush1.bf16.msra.mxu0 %v1336
      %1359 = vmatprep.subr.bf16.mxu0 0
      %1360 = vmatpush1.bf16.msra.mxu0 %v1337
      %1361 = vmatprep.subr.bf16.mxu0 0
      %1362 = vmatpush1.bf16.msra.mxu0 %v1338
      %1363 = vmatprep.subr.bf16.mxu0 0
      %1364 = vmatpush1.bf16.msra.mxu0 0
      %1365 = vmatprep.subr.bf16.mxu0 0
      %1366 = vmatpush1.bf16.msra.mxu0 0
      %1367 = vmatprep.subr.bf16.mxu0 0
      %1368 = vmatpush1.bf16.msra.mxu0 0
      %1369 = vmatprep.subr.bf16.mxu0 0
      %1370 = vmatpush1.bf16.msra.mxu0 0
      %1371 = vmatprep.subr.bf16.mxu0 0
      %1372 = vmatpush1.bf16.msra.mxu0 0
      %1373 = vmatprep.subr.bf16.mxu0 0
      %1374 = vmatpush1.bf16.msra.mxu0 0
      %1375 = vmatprep.subr.bf16.mxu0 0
      %1376 = vmatpush1.bf16.msra.mxu0 0
      %1377 = vmatprep.subr.bf16.mxu0 0
      %1378 = vmatpush1.bf16.msra.mxu0 0
      %1379 = vmatprep.mubr.bf16.mxu0 0
      %1380 = vmatmul.mubr.bf16.gmra.mrb[0].mxu0 %v1285
      %v1381 = vpop.f32.mrb[0].mxu0
      %v1382 = vadd.f32 0.0, %v1381
      %v1383 = vpop.f32.mrb[0].mxu0
      %v1384 = vpop.f32.mrb[0].mxu0
      %v1385 = vadd.f32 0.0, %v1384
      %v1386 = vpop.f32.mrb[0].mxu0
      %1387 = vmatprep.mubr.bf16.mxu0 0
      %1388 = vmatmul.mubr.bf16.gmra.mrb[0].mxu0 %v1287
      %v1389 = vpop.f32.mrb[0].mxu0
      %v1390 = vadd.f32 0.0, %v1389
      %v1391 = vpop.f32.mrb[0].mxu0
      %v1392 = vpop.f32.mrb[0].mxu0
      %v1393 = vadd.f32 0.0, %v1392
      %v1394 = vpop.f32.mrb[0].mxu0
      %1395 = vmatprep.mubr.bf16.mxu0 0
      %1396 = vmatmul.mubr.bf16.gmra.mrb[0].mxu0 %v1289
      %v1397 = vpop.f32.mrb[0].mxu0
      %v1398 = vadd.f32 0.0, %v1397
      %v1399 = vpop.f32.mrb[0].mxu0
      %v1400 = vpop.f32.mrb[0].mxu0
      %v1401 = vadd.f32 0.0, %v1400
      %v1402 = vpop.f32.mrb[0].mxu0
      %1403 = vmatprep.mubr.bf16.mxu0 0
      %1404 = vmatmul.mubr.bf16.gmra.mrb[0].mxu0 %v1291
      %v1405 = vpop.f32.mrb[0].mxu0
      %v1406 = vadd.f32 0.0, %v1405
      %v1407 = vpop.f32.mrb[0].mxu0
      %v1408 = vpop.f32.mrb[0].mxu0
      %v1409 = vadd.f32 0.0, %v1408
      %v1410 = vpop.f32.mrb[0].mxu0
      %1411 = vmatprep.mubr.bf16.mxu0 0
      %1412 = vmatmul.mubr.bf16.gmra.mrb[0].mxu0 %v1293
      %v1413 = vpop.f32.mrb[0].mxu0
      %v1414 = vadd.f32 0.0, %v1413
      %v1415 = vpop.f32.mrb[0].mxu0
      %v1416 = vpop.f32.mrb[0].mxu0
      %v1417 = vadd.f32 0.0, %v1416
      %v1418 = vpop.f32.mrb[0].mxu0
      %1419 = vdwg.mxu0
      %v1420 = vadd.f32 %v1252, %v1382
      %v1421 = vadd.f32 %v1253, %v1385
      %v1422 = vadd.f32 %v1254, %v1390
      %v1423 = vadd.f32 %v1255, %v1393
      %v1424 = vadd.f32 %v1256, %v1398
      %v1425 = vadd.f32 %v1257, %v1401
      %v1426 = vadd.f32 %v1258, %v1406
      %v1427 = vadd.f32 %v1259, %v1409
      %v1428 = vadd.f32 %v1260, %v1414
      %v1429 = vadd.f32 %v1261, %v1417
      %s1430 = scalar_lea.vmem %s1, 448
      %v1431 = vld [vmem:[%s1430] sm:$0xf]
      %v1432 = vld [vmem:[%s1430 + $0x4] sm:$0xf]
      %v1433 = vld [vmem:[%s1430 + $0x8] sm:$0xf]
      %v1434 = vld [vmem:[%s1430 + $0xc] sm:$0xf]
      %v1435 = vld [vmem:[%s1430 + $0x10] sm:$0xf]
      %v1436 = vld [vmem:[%s1430 + $0x14] sm:$0xf]
      %v1437 = vld [vmem:[%s1430 + $0x18] sm:$0xf]
      %v1438 = vld [vmem:[%s1430 + $0x1c] sm:$0xf]
      %v1439 = vld [vmem:[%s1430 + $0x20] sm:$0xf]
      %v1440 = vld [vmem:[%s1430 + $0x24] sm:$0xf]
      %v1441 = vld [vmem:[%s1430 + $0x28] sm:$0xf]
      %v1442 = vld [vmem:[%s1430 + $0x2c] sm:$0xf]
      %v1443 = vld [vmem:[%s1430 + $0x30] sm:$0xf]
      %v1444 = vld [vmem:[%s1430 + $0x34] sm:$0xf]
      %v1445 = vld [vmem:[%s1430 + $0x38] sm:$0xf]
      %v1446 = vld [vmem:[%s1430 + $0x3c] sm:$0xf]
      %vm1447 = vsmask.f32 5376
      %v1448 = vrot.slane %v264, 2
      %v1449 = vrot.slane %v260, 3
      %v1450 = vor.u32 %v1448, %v1449
      %v1451 = vrot.slane %v272, 2
      %v1452 = vrot.slane %v268, 3
      %v1453 = vor.u32 %v1451, %v1452
      %v1454 = vsel %vm1447, %v1450, %v1453
      %v1455 = vrot.slane %v280, 2
      %v1456 = vrot.slane %v276, 3
      %v1457 = vor.u32 %v1455, %v1456
      %v1458 = vsel %vm1447, %v1453, %v1457
      %v1459 = vrot.slane %v288, 2
      %v1460 = vrot.slane %v284, 3
      %v1461 = vor.u32 %v1459, %v1460
      %v1462 = vsel %vm1447, %v1457, %v1461
      %v1464 = vshrl.u32 %v1262, 16
      %v1466 = vrot.slane %v1464, 2
      %v1467 = vshll.u32 %v1262, 16
      %v1469 = vrot.slane %v1467, 3
      %v1470 = vor.u32 %v1466, %v1469
      %v1471 = vsel %vm1447, %v1461, %v1470
      %v1473 = vshrl.u32 %v1263, 16
      %v1475 = vrot.slane %v1473, 2
      %v1476 = vshll.u32 %v1263, 16
      %v1478 = vrot.slane %v1476, 3
      %v1479 = vor.u32 %v1475, %v1478
      %v1480 = vsel %vm1447, %v1470, %v1479
      %v1502 = vunpack.c.l.b16 %v1431
      %v1503 = vunpack.c.l.b16 %v1432
      %v1504 = vunpack.c.l.b16 %v1433
      %v1505 = vunpack.c.l.b16 %v1434
      %v1506 = vunpack.c.l.b16 %v1435
      %v1507 = vunpack.c.l.b16 %v1436
      %v1508 = vunpack.c.l.b16 %v1437
      %v1509 = vunpack.c.l.b16 %v1438
      %v1510 = vunpack.c.l.b16 %v1439
      %v1511 = vunpack.c.l.b16 %v1440
      %v1512 = vunpack.c.l.b16 %v1441
      %v1513 = vunpack.c.l.b16 %v1442
      %v1514 = vunpack.c.l.b16 %v1443
      %v1515 = vunpack.c.l.b16 %v1444
      %v1516 = vunpack.c.l.b16 %v1445
      %v1517 = vunpack.c.l.b16 %v1446
      %v1518 = vpack.c.b16 %v1503, %v1502
      %v1519 = vpack.c.b16 %v1505, %v1504
      %v1520 = vpack.c.b16 %v1507, %v1506
      %v1521 = vpack.c.b16 %v1509, %v1508
      %v1522 = vpack.c.b16 %v1511, %v1510
      %v1523 = vpack.c.b16 %v1513, %v1512
      %v1524 = vpack.c.b16 %v1515, %v1514
      %v1525 = vpack.c.b16 %v1517, %v1516
      %1534 = vmatprep.subr.bf16.mxu0 0
      %1535 = vmatpush1.bf16.msra.mxu0 %v1518
      %1536 = vmatprep.subr.bf16.mxu0 0
      %1537 = vmatpush1.bf16.msra.mxu0 %v1519
      %1538 = vmatprep.subr.bf16.mxu0 0
      %1539 = vmatpush1.bf16.msra.mxu0 %v1520
      %1540 = vmatprep.subr.bf16.mxu0 0
      %1541 = vmatpush1.bf16.msra.mxu0 %v1521
      %1542 = vmatprep.subr.bf16.mxu0 0
      %1543 = vmatpush1.bf16.msra.mxu0 %v1522
      %1544 = vmatprep.subr.bf16.mxu0 0
      %1545 = vmatpush1.bf16.msra.mxu0 %v1523
      %1546 = vmatprep.subr.bf16.mxu0 0
      %1547 = vmatpush1.bf16.msra.mxu0 %v1524
      %1548 = vmatprep.subr.bf16.mxu0 0
      %1549 = vmatpush1.bf16.msra.mxu0 %v1525
      %1550 = vmatprep.subr.bf16.mxu0 0
      %1551 = vmatpush1.bf16.msra.mxu0 0
      %1552 = vmatprep.subr.bf16.mxu0 0
      %1553 = vmatpush1.bf16.msra.mxu0 0
      %1554 = vmatprep.subr.bf16.mxu0 0
      %1555 = vmatpush1.bf16.msra.mxu0 0
      %1556 = vmatprep.subr.bf16.mxu0 0
      %1557 = vmatpush1.bf16.msra.mxu0 0
      %1558 = vmatprep.subr.bf16.mxu0 0
      %1559 = vmatpush1.bf16.msra.mxu0 0
      %1560 = vmatprep.subr.bf16.mxu0 0
      %1561 = vmatpush1.bf16.msra.mxu0 0
      %1562 = vmatprep.subr.bf16.mxu0 0
      %1563 = vmatpush1.bf16.msra.mxu0 0
      %1564 = vmatprep.subr.bf16.mxu0 0
      %1565 = vmatpush1.bf16.msra.mxu0 0
      %1566 = vmatprep.mubr.bf16.mxu0 0
      %1567 = vmatmul.mubr.bf16.gmra.mrb[0].mxu0 %v1454
      %v1568 = vpop.f32.mrb[0].mxu0
      %v1569 = vadd.f32 0.0, %v1568
      %v1570 = vpop.f32.mrb[0].mxu0
      %v1571 = vpop.f32.mrb[0].mxu0
      %v1572 = vadd.f32 0.0, %v1571
      %v1573 = vpop.f32.mrb[0].mxu0
      %1574 = vmatprep.mubr.bf16.mxu0 0
      %1575 = vmatmul.mubr.bf16.gmra.mrb[0].mxu0 %v1458
      %v1576 = vpop.f32.mrb[0].mxu0
      %v1577 = vadd.f32 0.0, %v1576
      %v1578 = vpop.f32.mrb[0].mxu0
      %v1579 = vpop.f32.mrb[0].mxu0
      %v1580 = vadd.f32 0.0, %v1579
      %v1581 = vpop.f32.mrb[0].mxu0
      %1582 = vmatprep.mubr.bf16.mxu0 0
      %1583 = vmatmul.mubr.bf16.gmra.mrb[0].mxu0 %v1462
      %v1584 = vpop.f32.mrb[0].mxu0
      %v1585 = vadd.f32 0.0, %v1584
      %v1586 = vpop.f32.mrb[0].mxu0
      %v1587 = vpop.f32.mrb[0].mxu0
      %v1588 = vadd.f32 0.0, %v1587
      %v1589 = vpop.f32.mrb[0].mxu0
      %1590 = vmatprep.mubr.bf16.mxu0 0
      %1591 = vmatmul.mubr.bf16.gmra.mrb[0].mxu0 %v1471
      %v1592 = vpop.f32.mrb[0].mxu0
      %v1593 = vadd.f32 0.0, %v1592
      %v1594 = vpop.f32.mrb[0].mxu0
      %v1595 = vpop.f32.mrb[0].mxu0
      %v1596 = vadd.f32 0.0, %v1595
      %v1597 = vpop.f32.mrb[0].mxu0
      %1598 = vmatprep.mubr.bf16.mxu0 0
      %1599 = vmatmul.mubr.bf16.gmra.mrb[0].mxu0 %v1480
      %v1600 = vpop.f32.mrb[0].mxu0
      %v1601 = vadd.f32 0.0, %v1600
      %v1602 = vpop.f32.mrb[0].mxu0
      %v1603 = vpop.f32.mrb[0].mxu0
      %v1604 = vadd.f32 0.0, %v1603
      %v1605 = vpop.f32.mrb[0].mxu0
      %1606 = vdwg.mxu0
      %v1607 = vadd.f32 %v1420, %v1569
      %v1608 = vadd.f32 %v1421, %v1572
      %v1609 = vadd.f32 %v1422, %v1577
      %v1610 = vadd.f32 %v1423, %v1580
      %v1611 = vadd.f32 %v1424, %v1585
      %v1612 = vadd.f32 %v1425, %v1588
      %v1613 = vadd.f32 %v1426, %v1593
      %v1614 = vadd.f32 %v1427, %v1596
      %v1615 = vadd.f32 %v1428, %v1601
      %v1616 = vadd.f32 %v1429, %v1604
      %s1617 = scalar_lea.vmem %s1, 512
      %v1618 = vld [vmem:[%s1617] sm:$0xf]
      %v1619 = vld [vmem:[%s1617 + $0x4] sm:$0xf]
      %v1620 = vld [vmem:[%s1617 + $0x8] sm:$0xf]
      %v1621 = vld [vmem:[%s1617 + $0xc] sm:$0xf]
      %v1622 = vld [vmem:[%s1617 + $0x10] sm:$0xf]
      %v1623 = vld [vmem:[%s1617 + $0x14] sm:$0xf]
      %v1624 = vld [vmem:[%s1617 + $0x18] sm:$0xf]
      %v1625 = vld [vmem:[%s1617 + $0x1c] sm:$0xf]
      %v1626 = vld [vmem:[%s1617 + $0x20] sm:$0xf]
      %v1627 = vld [vmem:[%s1617 + $0x24] sm:$0xf]
      %v1628 = vld [vmem:[%s1617 + $0x28] sm:$0xf]
      %v1629 = vld [vmem:[%s1617 + $0x2c] sm:$0xf]
      %v1630 = vld [vmem:[%s1617 + $0x30] sm:$0xf]
      %v1631 = vld [vmem:[%s1617 + $0x34] sm:$0xf]
      %v1632 = vld [vmem:[%s1617 + $0x38] sm:$0xf]
      %v1633 = vld [vmem:[%s1617 + $0x3c] sm:$0xf]
      %vm1634 = vcmask 1044480
      %v1635 = vrot.slane %v213, 3
      %v1636 = vrot.slane %v214, 3
      %v1637 = vsel %vm1634, %v1635, %v1636
      %v1638 = vrot.slane %v215, 3
      %v1639 = vsel %vm1634, %v1636, %v1638
      %v1640 = vrot.slane %v216, 3
      %v1641 = vsel %vm1634, %v1638, %v1640
      %v1642 = vrot.slane %v1262, 3
      %v1643 = vsel %vm1634, %v1640, %v1642
      %v1644 = vrot.slane %v1263, 3
      %v1645 = vsel %vm1634, %v1642, %v1644
      %v1667 = vunpack.c.l.b16 %v1618
      %v1668 = vunpack.c.l.b16 %v1619
      %v1669 = vunpack.c.l.b16 %v1620
      %v1670 = vunpack.c.l.b16 %v1621
      %v1671 = vunpack.c.l.b16 %v1622
      %v1672 = vunpack.c.l.b16 %v1623
      %v1673 = vunpack.c.l.b16 %v1624
      %v1674 = vunpack.c.l.b16 %v1625
      %v1675 = vunpack.c.l.b16 %v1626
      %v1676 = vunpack.c.l.b16 %v1627
      %v1677 = vunpack.c.l.b16 %v1628
      %v1678 = vunpack.c.l.b16 %v1629
      %v1679 = vunpack.c.l.b16 %v1630
      %v1680 = vunpack.c.l.b16 %v1631
      %v1681 = vunpack.c.l.b16 %v1632
      %v1682 = vunpack.c.l.b16 %v1633
      %v1683 = vpack.c.b16 %v1668, %v1667
      %v1684 = vpack.c.b16 %v1670, %v1669
      %v1685 = vpack.c.b16 %v1672, %v1671
      %v1686 = vpack.c.b16 %v1674, %v1673
      %v1687 = vpack.c.b16 %v1676, %v1675
      %v1688 = vpack.c.b16 %v1678, %v1677
      %v1689 = vpack.c.b16 %v1680, %v1679
      %v1690 = vpack.c.b16 %v1682, %v1681
      %1699 = vmatprep.subr.bf16.mxu0 0
      %1700 = vmatpush1.bf16.msra.mxu0 %v1683
      %1701 = vmatprep.subr.bf16.mxu0 0
      %1702 = vmatpush1.bf16.msra.mxu0 %v1684
      %1703 = vmatprep.subr.bf16.mxu0 0
      %1704 = vmatpush1.bf16.msra.mxu0 %v1685
      %1705 = vmatprep.subr.bf16.mxu0 0
      %1706 = vmatpush1.bf16.msra.mxu0 %v1686
      %1707 = vmatprep.subr.bf16.mxu0 0
      %1708 = vmatpush1.bf16.msra.mxu0 %v1687
      %1709 = vmatprep.subr.bf16.mxu0 0
      %1710 = vmatpush1.bf16.msra.mxu0 %v1688
      %1711 = vmatprep.subr.bf16.mxu0 0
      %1712 = vmatpush1.bf16.msra.mxu0 %v1689
      %1713 = vmatprep.subr.bf16.mxu0 0
      %1714 = vmatpush1.bf16.msra.mxu0 %v1690
      %1715 = vmatprep.subr.bf16.mxu0 0
      %1716 = vmatpush1.bf16.msra.mxu0 0
      %1717 = vmatprep.subr.bf16.mxu0 0
      %1718 = vmatpush1.bf16.msra.mxu0 0
      %1719 = vmatprep.subr.bf16.mxu0 0
      %1720 = vmatpush1.bf16.msra.mxu0 0
      %1721 = vmatprep.subr.bf16.mxu0 0
      %1722 = vmatpush1.bf16.msra.mxu0 0
      %1723 = vmatprep.subr.bf16.mxu0 0
      %1724 = vmatpush1.bf16.msra.mxu0 0
      %1725 = vmatprep.subr.bf16.mxu0 0
      %1726 = vmatpush1.bf16.msra.mxu0 0
      %1727 = vmatprep.subr.bf16.mxu0 0
      %1728 = vmatpush1.bf16.msra.mxu0 0
      %1729 = vmatprep.subr.bf16.mxu0 0
      %1730 = vmatpush1.bf16.msra.mxu0 0
      %1731 = vmatprep.mubr.bf16.mxu0 0
      %1732 = vmatmul.mubr.bf16.gmra.mrb[0].mxu0 %v1637
      %v1733 = vpop.f32.mrb[0].mxu0
      %v1734 = vadd.f32 0.0, %v1733
      %v1735 = vpop.f32.mrb[0].mxu0
      %v1736 = vpop.f32.mrb[0].mxu0
      %v1737 = vadd.f32 0.0, %v1736
      %v1738 = vpop.f32.mrb[0].mxu0
      %1739 = vmatprep.mubr.bf16.mxu0 0
      %1740 = vmatmul.mubr.bf16.gmra.mrb[0].mxu0 %v1639
      %v1741 = vpop.f32.mrb[0].mxu0
      %v1742 = vadd.f32 0.0, %v1741
      %v1743 = vpop.f32.mrb[0].mxu0
      %v1744 = vpop.f32.mrb[0].mxu0
      %v1745 = vadd.f32 0.0, %v1744
      %v1746 = vpop.f32.mrb[0].mxu0
      %1747 = vmatprep.mubr.bf16.mxu0 0
      %1748 = vmatmul.mubr.bf16.gmra.mrb[0].mxu0 %v1641
      %v1749 = vpop.f32.mrb[0].mxu0
      %v1750 = vadd.f32 0.0, %v1749
      %v1751 = vpop.f32.mrb[0].mxu0
      %v1752 = vpop.f32.mrb[0].mxu0
      %v1753 = vadd.f32 0.0, %v1752
      %v1754 = vpop.f32.mrb[0].mxu0
      %1755 = vmatprep.mubr.bf16.mxu0 0
      %1756 = vmatmul.mubr.bf16.gmra.mrb[0].mxu0 %v1643
      %v1757 = vpop.f32.mrb[0].mxu0
      %v1758 = vadd.f32 0.0, %v1757
      %v1759 = vpop.f32.mrb[0].mxu0
      %v1760 = vpop.f32.mrb[0].mxu0
      %v1761 = vadd.f32 0.0, %v1760
      %v1762 = vpop.f32.mrb[0].mxu0
      %1763 = vmatprep.mubr.bf16.mxu0 0
      %1764 = vmatmul.mubr.bf16.gmra.mrb[0].mxu0 %v1645
      %v1765 = vpop.f32.mrb[0].mxu0
      %v1766 = vadd.f32 0.0, %v1765
      %v1767 = vpop.f32.mrb[0].mxu0
      %v1768 = vpop.f32.mrb[0].mxu0
      %v1769 = vadd.f32 0.0, %v1768
      %v1770 = vpop.f32.mrb[0].mxu0
      %1771 = vdwg.mxu0
      %v1772 = vadd.f32 %v1607, %v1734
      %v1773 = vadd.f32 %v1608, %v1737
      %v1774 = vadd.f32 %v1609, %v1742
      %v1775 = vadd.f32 %v1610, %v1745
      %v1776 = vadd.f32 %v1611, %v1750
      %v1777 = vadd.f32 %v1612, %v1753
      %v1778 = vadd.f32 %v1613, %v1758
      %v1779 = vadd.f32 %v1614, %v1761
      %v1780 = vadd.f32 %v1615, %v1766
      %v1781 = vadd.f32 %v1616, %v1769
      %v1782 = vld [vmem:[%s2] sm:$0x1]
      %v1784 = vlaneseq
      %v1785 = vshrl.u32 %v1784, 7
      %v1786 = vsub.s32 0, %v1785
      %v1787 = vrot.slane %v1782, %v1786
      %v1789 = vmul.f32 %v1772, %v1787
      %v1790 = vmul.f32 %v1773, %v1787
      %v1791 = vmul.f32 %v1774, %v1787
      %v1792 = vmul.f32 %v1775, %v1787
      %v1793 = vmul.f32 %v1776, %v1787
      %v1794 = vmul.f32 %v1777, %v1787
      %v1795 = vmul.f32 %v1778, %v1787
      %v1796 = vmul.f32 %v1779, %v1787
      %v1797 = vmul.f32 %v1780, %v1787
      %v1798 = vmul.f32 %v1781, %v1787
      %v1799 = vld [vmem:[%s3] sm:$0x1]
      %v1801 = vlaneseq
      %v1802 = vshrl.u32 %v1801, 7
      %v1803 = vsub.s32 0, %v1802
      %v1804 = vrot.slane %v1799, %v1803
      %v1806 = vadd.f32 %v1789, %v1804
      %v1807 = vadd.f32 %v1790, %v1804
      %v1808 = vadd.f32 %v1791, %v1804
      %v1809 = vadd.f32 %v1792, %v1804
      %v1810 = vadd.f32 %v1793, %v1804
      %v1811 = vadd.f32 %v1794, %v1804
      %v1812 = vadd.f32 %v1795, %v1804
      %v1813 = vadd.f32 %v1796, %v1804
      %v1814 = vadd.f32 %v1797, %v1804
      %v1815 = vadd.f32 %v1798, %v1804
      %v1816 = vmax.f32 %v1806, 0.0
      %v1817 = vmax.f32 %v1807, 0.0
      %v1818 = vmax.f32 %v1808, 0.0
      %v1819 = vmax.f32 %v1809, 0.0
      %v1820 = vmax.f32 %v1810, 0.0
      %v1821 = vmax.f32 %v1811, 0.0
      %v1822 = vmax.f32 %v1812, 0.0
      %v1823 = vmax.f32 %v1813, 0.0
      %v1824 = vmax.f32 %v1814, 0.0
      %v1825 = vmax.f32 %v1815, 0.0
      %1826 = vst [vmem:[%s197] sm:$0xff] %v1816
      %1827 = vst [vmem:[%s197 + $0x8] sm:$0xff] %v1817
      %1828 = vst [vmem:[%s197 + $0x10] sm:$0xff] %v1818
      %1829 = vst [vmem:[%s197 + $0x18] sm:$0xff] %v1819
      %1830 = vst [vmem:[%s197 + $0x20] sm:$0xff] %v1820
      %1831 = vst [vmem:[%s197 + $0x28] sm:$0xff] %v1821
      %1832 = vst [vmem:[%s197 + $0x30] sm:$0xff] %v1822
      %1833 = vst [vmem:[%s197 + $0x38] sm:$0xff] %v1823
      %1834 = vst [vmem:[%s197 + $0x40] sm:$0xff] %v1824
      %1835 = vst [vmem:[%s197 + $0x48] sm:$0xff] %v1825
      %p1836 = scmp.lt.s32.totalorder %s15, 1
      %s1837 = scalar_select %p1836, %s15, 1
      %s1838 = smul.addr %s1837, 10
      %s1839 = smul.addr %s1838, 8
      %s1840 = scalar_lea.vmem %s4, %s1839
      // Predicated region
      $region37: #{attanet_head_forward.15} parent=35 // pred_check
        %p1841 = pneg %p122
      $region38: #{attanet_head_forward.15} parent=35 // pred_check_branch
        %1843 = sbr.rel (%p1841) target = $region40
      $region39: #{attanet_head_forward.15} parent=35 // pred_region
        _
      $region40: #{attanet_head_forward.15} parent=35 // pred_fallthru
        _
    $region36: #{attanet_head_forward.15} parent=5 // pred_fallthru
      _
    %p1844 = scmp.le.s32.totalorder 2, %s10
    // Predicated region
    $region41: #{attanet_head_forward.15} parent=5 // pred_check
      %p1845 = pneg %p1844
    $region42: #{attanet_head_forward.15} parent=5 // pred_check_branch
      %1847 = sbr.rel (%p1845) target = $region44
    $region43: #{attanet_head_forward.15} parent=5 // pred_region
      %s1848 = ssub.s32 %s10, 2
      // Predicated region
      $region45: #{attanet_head_forward.15} parent=43 // pred_check
        %p1849 = pneg %p128
      $region46: #{attanet_head_forward.15} parent=43 // pred_check_branch
        %1851 = sbr.rel (%p1849) target = $region48
      $region47: #{attanet_head_forward.15} parent=43 // pred_region
        %p1852 = scmp.lt.s32.totalorder %s16, 1
        %s1853 = scalar_select %p1852, %s16, 1
        %s1854 = smul.addr %s1853, 10
        %s1855 = smul.addr %s1854, 8
        %s1856 = scalar_lea.vmem %s4, %s1855
      $region48: #{attanet_head_forward.15} parent=43 // pred_fallthru
        _
    $region44: #{attanet_head_forward.15} parent=5 // pred_fallthru
      _
  $region6: #{attanet_head_forward.15} parent=0 // loop_footer
    %s14 = sadd.s32 1, %s10
  $region7: #{attanet_head_forward.15} parent=0 // loop_footer_branch
    %9 = sbr.rel target = $region3
  $region8: #{attanet_head_forward.15} parent=0 // loop_exit
    _

</llo_original>
